<compile_context>
chip_gen: v6e
topology: v6e:2x2x1
jax: 0.10.0
libtpu: 0.0.40
codegen_flags: <defaults>
</compile_context>

<pallas_src>
import functools

import numpy as np
import jax
import jax.numpy as jnp
from jax.experimental import pallas as pl
from jax.experimental.pallas import tpu as pltpu

# Conservative scoped-VMEM limit: fits v5e/v6e (128 MiB) and v7x (64 MiB per core).
VMEM_LIMIT = 40 * 1024 * 1024

# VGG16 feature config (torchvision): 13 convs (3x3, pad 1) + 5 maxpools.
CFG = [64, 64, 'M', 128, 128, 'M', 256, 256, 256, 'M',
       512, 512, 512, 'M', 512, 512, 512, 'M']
FC_DIM = 4096  # classifier hidden width (classifier[:-1] output dim)


# ----------------------------- Pallas kernels ------------------------------

def _conv3x3_kernel(x_ref, w_ref, b_ref, o_ref, *, pool):
    """Fused 3x3 conv (pad 1) + bias + ReLU (+ optional fused 2x2 max-pool).

    x_ref: (1, R+2, W+2, Cin)   spatially padded row-chunk (with halo), bf16
    w_ref: (9, Cin, Cout)       per-tap weight matrices, bf16
    b_ref: (1, Cout)            bias, f32
    o_ref: (1, Ro, Wo, Cout)    output rows of this grid step, bf16
    """
    _, rp2, wp, cin = x_ref.shape
    r = rp2 - 2            # conv output rows handled this step
    w_cols = wp - 2        # conv output columns (= W)
    cout = o_ref.shape[-1]

    x = x_ref[...].reshape(rp2, wp, cin)      # full static load, bf16
    wt = w_ref[...]                           # (9, Cin, Cout), bf16
    bias = b_ref[...]                         # (1, Cout), f32

    # 9 accumulated MXU dots with M = r * W and K = Cin (no tap concat).
    acc = None
    for dy in range(3):
        for dx in range(3):
            slab = jax.lax.slice(x, (dy, dx, 0), (dy + r, dx + w_cols, cin))
            slab = slab.reshape(r * w_cols, cin)              # (M, K)
            y = jnp.dot(slab, wt[3 * dy + dx],
                        preferred_element_type=jnp.float32)   # (M, Cout) f32
            acc = y if acc is None else acc + y

    y = jnp.maximum(acc + bias, 0.0).reshape(r, w_cols, cout)  # bias + ReLU
    if pool:
        # 2x2 max-pool on f32 results in the VPU (rides under the MXU).
        y = jnp.maximum(y[:, 0::2, :], y[:, 1::2, :])   # column pairs
        y = jnp.maximum(y[0::2], y[1::2])               # row pairs
    o_ref[...] = y[None].astype(o_ref.dtype)


def _linear_kernel(x_ref, w_ref, b_ref, o_ref, acc_ref, *, relu):
    """K-tiled y = x @ W + b (optional ReLU) with an f32 VMEM accumulator."""
    @pl.when(pl.program_id(1) == 0)
    def _():
        acc_ref[...] = jnp.zeros_like(acc_ref)

    acc_ref[...] += jnp.dot(x_ref[...], w_ref[...],
                            preferred_element_type=jnp.float32)

    @pl.when(pl.program_id(1) == pl.num_programs(1) - 1)
    def _():
        y = acc_ref[...] + b_ref[...]
        if relu:
            y = jnp.maximum(y, 0.0)
        o_ref[...] = y.astype(o_ref.dtype)


# ----------------------------- wrappers ------------------------------

def _pick_rows(H, W, Cin, Cout, pool, budget=20 * 1024 * 1024):
    """Largest row-chunk (dividing H, even if pooling) within a per-step VMEM budget."""
    wp = W + 2
    wo = W // 2 if pool else W
    smallest = H
    for R in range(H, 0, -1):
        if H % R or (pool and R % 2):
            continue
        smallest = R
        ro = R // 2 if pool else R
        cost = (2 * (R + 2) * wp * Cin * 2        # input block, double-buffered, bf16
                + 2 * ro * wo * Cout * 2          # output block, double-buffered, bf16
                + R * W * Cout * 4                # f32 accumulator
                + 2 * R * W * Cin * 2             # live tap-slab headroom
                + 2 * 9 * Cin * Cout * 2)         # weights (resident)
        if cost <= budget:
            return R
    return smallest


def conv3x3_relu(x, w9, b_row, *, pool):
    """x: (N, H, W, Cin) bf16; w9: (9, Cin_eff, Cout) bf16; b_row: (1, Cout) f32."""
    N, H, W, Cin = x.shape
    cin_eff, Cout = w9.shape[1], w9.shape[2]
    if pool:
        assert H % 2 == 0 and W % 2 == 0

    R = _pick_rows(H, W, cin_eff, Cout, pool)
    n_chunks = H // R

    # Pad channels (first layer only) and spatial borders in one shot.
    xp = jnp.pad(x, ((0, 0), (1, 1), (1, 1), (0, cin_eff - Cin)))
    if n_chunks == 1:
        xc = xp                                           # (N, H+2, W+2, Cin_eff)
    else:
        # Materialize haloed row chunks once ((R+2)/R HBM overhead) so each grid
        # step DMAs only its own block.
        xc = jnp.stack([xp[:, c0 * R:c0 * R + R + 2] for c0 in range(n_chunks)],
                       axis=1).reshape(N * n_chunks, R + 2, W + 2, cin_eff)

    Ro = R // 2 if pool else R
    Ho = H // 2 if pool else H
    Wo = W // 2 if pool else W

    kern = functools.partial(_conv3x3_kernel, pool=pool)
    in_idx = lambda n, c: (n * n_chunks + c, 0, 0, 0)
    return pl.pallas_call(
        kern,
        out_shape=jax.ShapeDtypeStruct((N, Ho, Wo, Cout), jnp.bfloat16),
        grid=(N, n_chunks),
        in_specs=[
            pl.BlockSpec((1, R + 2, W + 2, cin_eff), in_idx),
            pl.BlockSpec((9, cin_eff, Cout), lambda n, c: (0, 0, 0)),
            pl.BlockSpec((1, Cout), lambda n, c: (0, 0)),
        ],
        out_specs=pl.BlockSpec((1, Ro, Wo, Cout), lambda n, c: (n, c, 0, 0)),
        compiler_params=pltpu.CompilerParams(
            dimension_semantics=("parallel", "parallel"),
            vmem_limit_bytes=VMEM_LIMIT),
    )(xc, w9, b_row)


def _pick_k_tile(K, cap=3584):
    """Largest lane-aligned divisor of K that is <= cap (~7 MiB weight blocks)."""
    if K <= cap:
        return K
    for d in range(cap, 127, -1):
        if K % d == 0 and d % 128 == 0:
            return d
    return K


def linear(x, w, b_row, *, relu, tile_m=1024):
    """x: (B, K) any float; w: (K, M) bf16; b_row: (1, M) f32. Returns f32."""
    B, K = x.shape
    M = w.shape[1]
    tile_m = min(tile_m, M)
    assert M % tile_m == 0
    tk = _pick_k_tile(K)
    nk = K // tk
    kern = functools.partial(_linear_kernel, relu=relu)
    return pl.pallas_call(
        kern,
        out_shape=jax.ShapeDtypeStruct((B, M), jnp.float32),
        grid=(M // tile_m, nk),                       # reduction axis last
        in_specs=[pl.BlockSpec((B, tk), lambda j, k: (0, k)),
                  pl.BlockSpec((tk, tile_m), lambda j, k: (k, j)),
                  pl.BlockSpec((1, tile_m), lambda j, k: (0, j))],
        out_specs=pl.BlockSpec((B, tile_m), lambda j, k: (0, j)),
        scratch_shapes=[pltpu.VMEM((B, tile_m), jnp.float32)],
        compiler_params=pltpu.CompilerParams(
            dimension_semantics=("parallel", "arbitrary"),
            vmem_limit_bytes=VMEM_LIMIT),
    )(x.astype(jnp.bfloat16), w, b_row)


# ----------------------------- model ------------------------------

def init_params(key, in_ch=3, input_hw=32, fc_dim=FC_DIM):
    params = {'features': [], 'classifier': []}
    c, hw = in_ch, input_hw
    i = 0
    while i < len(CFG):
        v = CFG[i]
        assert v != 'M'
        pool = (i + 1 < len(CFG) and CFG[i + 1] == 'M')
        key, k1 = jax.random.split(key)
        # PyTorch conv weight layout (Cout, Cin, 3, 3), He init.
        w = jax.random.normal(k1, (v, c, 3, 3), jnp.float32) * np.sqrt(2.0 / (c * 9))
        b = jnp.zeros((1, v), jnp.float32)
        cin_eff = c if c % 8 == 0 else ((c + 7) // 8) * 8   # pad tiny Cin (3 -> 8)
        w9 = jnp.transpose(w, (2, 3, 1, 0))                 # (ky, kx, Cin, Cout)
        if cin_eff != c:
            w9 = jnp.pad(w9, ((0, 0), (0, 0), (0, cin_eff - c), (0, 0)))
        w9 = w9.reshape(9, cin_eff, v).astype(jnp.bfloat16)
        params['features'].append((w9, b, pool))
        c = v
        if pool:
            hw //= 2
            i += 2
        else:
            i += 1
    flat_dim = c * hw * hw  # in_features of first classifier Linear
    # FC1 weight rows are defined in NHWC (H, W, C) flatten order so the feature map
    # can be flattened without an NCHW relayout (weights are random anyway).
    for din, dout in [(flat_dim, fc_dim), (fc_dim, fc_dim)]:
        key, k1 = jax.random.split(key)
        w = (jax.random.normal(k1, (din, dout), jnp.float32)
             / np.sqrt(din)).astype(jnp.bfloat16)
        b = jnp.zeros((1, dout), jnp.float32)
        params['classifier'].append((w, b))
    return params


def vgg16_forward(params, x_nchw):
    # NCHW -> NHWC so channels sit on the TPU lane dimension; bf16 activations.
    x = jnp.transpose(x_nchw, (0, 2, 3, 1)).astype(jnp.bfloat16)
    for w9, b_row, pool in params['features']:
        x = conv3x3_relu(x, w9, b_row, pool=pool)
    N = x.shape[0]
    x = x.reshape(N, -1)  # NHWC flatten (FC1 rows are indexed in matching order)
    (w1, b1), (w2, b2) = params['classifier']
    # classifier[:-1] = Linear -> ReLU -> Dropout -> Linear -> ReLU -> Dropout
    # (Dropout is identity at inference.)
    x = linear(x, w1, b1, relu=True)
    x = linear(x, w2, b2, relu=True)
    return x


if __name__ == "__main__":
    key = jax.random.PRNGKey(0)
    kx, kp = jax.random.split(key)
    # Small, structure-consistent input: batch=2, 3 channels, 32x32 spatial
    # (32 is the minimum spatial size that survives the 5 maxpools).
    x = jax.random.normal(kx, (2, 3, 32, 32), jnp.float32)
    params = init_params(kp, in_ch=3, input_hw=32)
    out = vgg16_forward(params, x)
    out = jax.block_until_ready(out)
    assert out.shape == (2, FC_DIM), out.shape
    assert bool(jnp.all(jnp.isfinite(out)))
    print("KERNEL_OK")
</pallas_src>

<mosaic_0001>
module attributes {stable_mosaic.version = 11 : i64} {
  func.func @_conv3x3_kernel(%arg0: i32, %arg1: i32, %arg2: memref<1x34x34x8xbf16, #tpu.memory_space<vmem>>, %arg3: memref<9x8x64xbf16, #tpu.memory_space<vmem>>, %arg4: memref<1x64xf32, #tpu.memory_space<vmem>>, %arg5: memref<1x32x32x64xbf16, #tpu.memory_space<vmem>>) attributes {dimension_semantics = [#tpu.dimension_semantics<parallel>, #tpu.dimension_semantics<parallel>], iteration_bounds = array<i64: 2, 1>, scalar_prefetch = 0 : i64, scratch_operands = 0 : i64, tpu.core_type = #tpu.core_type<tc>, window_params = [{transform_indices = @transform_0, window_bounds = array<i64: 1, 34, 34, 8>}, {pipeline_mode = #tpu.pipeline_mode<synchronous>, transform_indices = @transform_1, window_bounds = array<i64: 9, 8, 64>}, {pipeline_mode = #tpu.pipeline_mode<synchronous>, transform_indices = @transform_2, window_bounds = array<i64: 1, 64>}, {transform_indices = @transform_3, window_bounds = array<i64: 1, 32, 32, 64>}]} {
    %c0 = arith.constant 0 : index
    %c0_0 = arith.constant 0 : index
    %c0_1 = arith.constant 0 : index
    %c0_2 = arith.constant 0 : index
    %0 = vector.load %arg2[%c0, %c0_0, %c0_1, %c0_2] : memref<1x34x34x8xbf16, #tpu.memory_space<vmem>>, vector<1x34x34x8xbf16>
    %1 = vector.shape_cast %0 : vector<1x34x34x8xbf16> to vector<34x34x8xbf16>
    %c0_3 = arith.constant 0 : index
    %c0_4 = arith.constant 0 : index
    %c0_5 = arith.constant 0 : index
    %2 = vector.load %arg3[%c0_3, %c0_4, %c0_5] : memref<9x8x64xbf16, #tpu.memory_space<vmem>>, vector<9x8x64xbf16>
    %c0_6 = arith.constant 0 : index
    %c0_7 = arith.constant 0 : index
    %3 = vector.load %arg4[%c0_6, %c0_7] : memref<1x64xf32, #tpu.memory_space<vmem>>, vector<1x64xf32>
    %4 = vector.extract_strided_slice %1 {offsets = [0, 0, 0], sizes = [32, 32, 8], strides = [1, 1, 1]} : vector<34x34x8xbf16> to vector<32x32x8xbf16>
    %5 = vector.shape_cast %4 : vector<32x32x8xbf16> to vector<1024x8xbf16>
    %6 = vector.extract_strided_slice %2 {offsets = [0, 0, 0], sizes = [1, 8, 64], strides = [1, 1, 1]} : vector<9x8x64xbf16> to vector<1x8x64xbf16>
    %7 = vector.shape_cast %6 : vector<1x8x64xbf16> to vector<8x64xbf16>
    %cst = arith.constant dense<0.000000e+00> : vector<1024x64xf32>
    %8 = tpu.matmul %5, %7, %cst {dimension_numbers = #tpu.dot_dimension_numbers<[1], [0], [0], [1], [0, 0, 1, 1], [], []>} : vector<1024x8xbf16>, vector<8x64xbf16>, vector<1024x64xf32> -> vector<1024x64xf32>
    %9 = vector.extract_strided_slice %1 {offsets = [0, 1, 0], sizes = [32, 32, 8], strides = [1, 1, 1]} : vector<34x34x8xbf16> to vector<32x32x8xbf16>
    %10 = vector.shape_cast %9 : vector<32x32x8xbf16> to vector<1024x8xbf16>
    %11 = vector.extract_strided_slice %2 {offsets = [1, 0, 0], sizes = [1, 8, 64], strides = [1, 1, 1]} : vector<9x8x64xbf16> to vector<1x8x64xbf16>
    %12 = vector.shape_cast %11 : vector<1x8x64xbf16> to vector<8x64xbf16>
    %cst_8 = arith.constant dense<0.000000e+00> : vector<1024x64xf32>
    %13 = tpu.matmul %10, %12, %cst_8 {dimension_numbers = #tpu.dot_dimension_numbers<[1], [0], [0], [1], [0, 0, 1, 1], [], []>} : vector<1024x8xbf16>, vector<8x64xbf16>, vector<1024x64xf32> -> vector<1024x64xf32>
    %14 = arith.addf %8, %13 : vector<1024x64xf32>
    %15 = vector.extract_strided_slice %1 {offsets = [0, 2, 0], sizes = [32, 32, 8], strides = [1, 1, 1]} : vector<34x34x8xbf16> to vector<32x32x8xbf16>
    %16 = vector.shape_cast %15 : vector<32x32x8xbf16> to vector<1024x8xbf16>
    %17 = vector.extract_strided_slice %2 {offsets = [2, 0, 0], sizes = [1, 8, 64], strides = [1, 1, 1]} : vector<9x8x64xbf16> to vector<1x8x64xbf16>
    %18 = vector.shape_cast %17 : vector<1x8x64xbf16> to vector<8x64xbf16>
    %cst_9 = arith.constant dense<0.000000e+00> : vector<1024x64xf32>
    %19 = tpu.matmul %16, %18, %cst_9 {dimension_numbers = #tpu.dot_dimension_numbers<[1], [0], [0], [1], [0, 0, 1, 1], [], []>} : vector<1024x8xbf16>, vector<8x64xbf16>, vector<1024x64xf32> -> vector<1024x64xf32>
    %20 = arith.addf %14, %19 : vector<1024x64xf32>
    %21 = vector.extract_strided_slice %1 {offsets = [1, 0, 0], sizes = [32, 32, 8], strides = [1, 1, 1]} : vector<34x34x8xbf16> to vector<32x32x8xbf16>
    %22 = vector.shape_cast %21 : vector<32x32x8xbf16> to vector<1024x8xbf16>
    %23 = vector.extract_strided_slice %2 {offsets = [3, 0, 0], sizes = [1, 8, 64], strides = [1, 1, 1]} : vector<9x8x64xbf16> to vector<1x8x64xbf16>
    %24 = vector.shape_cast %23 : vector<1x8x64xbf16> to vector<8x64xbf16>
    %cst_10 = arith.constant dense<0.000000e+00> : vector<1024x64xf32>
    %25 = tpu.matmul %22, %24, %cst_10 {dimension_numbers = #tpu.dot_dimension_numbers<[1], [0], [0], [1], [0, 0, 1, 1], [], []>} : vector<1024x8xbf16>, vector<8x64xbf16>, vector<1024x64xf32> -> vector<1024x64xf32>
    %26 = arith.addf %20, %25 : vector<1024x64xf32>
    %27 = vector.extract_strided_slice %1 {offsets = [1, 1, 0], sizes = [32, 32, 8], strides = [1, 1, 1]} : vector<34x34x8xbf16> to vector<32x32x8xbf16>
    %28 = vector.shape_cast %27 : vector<32x32x8xbf16> to vector<1024x8xbf16>
    %29 = vector.extract_strided_slice %2 {offsets = [4, 0, 0], sizes = [1, 8, 64], strides = [1, 1, 1]} : vector<9x8x64xbf16> to vector<1x8x64xbf16>
    %30 = vector.shape_cast %29 : vector<1x8x64xbf16> to vector<8x64xbf16>
    %cst_11 = arith.constant dense<0.000000e+00> : vector<1024x64xf32>
    %31 = tpu.matmul %28, %30, %cst_11 {dimension_numbers = #tpu.dot_dimension_numbers<[1], [0], [0], [1], [0, 0, 1, 1], [], []>} : vector<1024x8xbf16>, vector<8x64xbf16>, vector<1024x64xf32> -> vector<1024x64xf32>
    %32 = arith.addf %26, %31 : vector<1024x64xf32>
    %33 = vector.extract_strided_slice %1 {offsets = [1, 2, 0], sizes = [32, 32, 8], strides = [1, 1, 1]} : vector<34x34x8xbf16> to vector<32x32x8xbf16>
    %34 = vector.shape_cast %33 : vector<32x32x8xbf16> to vector<1024x8xbf16>
    %35 = vector.extract_strided_slice %2 {offsets = [5, 0, 0], sizes = [1, 8, 64], strides = [1, 1, 1]} : vector<9x8x64xbf16> to vector<1x8x64xbf16>
    %36 = vector.shape_cast %35 : vector<1x8x64xbf16> to vector<8x64xbf16>
    %cst_12 = arith.constant dense<0.000000e+00> : vector<1024x64xf32>
    %37 = tpu.matmul %34, %36, %cst_12 {dimension_numbers = #tpu.dot_dimension_numbers<[1], [0], [0], [1], [0, 0, 1, 1], [], []>} : vector<1024x8xbf16>, vector<8x64xbf16>, vector<1024x64xf32> -> vector<1024x64xf32>
    %38 = arith.addf %32, %37 : vector<1024x64xf32>
    %39 = vector.extract_strided_slice %1 {offsets = [2, 0, 0], sizes = [32, 32, 8], strides = [1, 1, 1]} : vector<34x34x8xbf16> to vector<32x32x8xbf16>
    %40 = vector.shape_cast %39 : vector<32x32x8xbf16> to vector<1024x8xbf16>
    %41 = vector.extract_strided_slice %2 {offsets = [6, 0, 0], sizes = [1, 8, 64], strides = [1, 1, 1]} : vector<9x8x64xbf16> to vector<1x8x64xbf16>
    %42 = vector.shape_cast %41 : vector<1x8x64xbf16> to vector<8x64xbf16>
    %cst_13 = arith.constant dense<0.000000e+00> : vector<1024x64xf32>
    %43 = tpu.matmul %40, %42, %cst_13 {dimension_numbers = #tpu.dot_dimension_numbers<[1], [0], [0], [1], [0, 0, 1, 1], [], []>} : vector<1024x8xbf16>, vector<8x64xbf16>, vector<1024x64xf32> -> vector<1024x64xf32>
    %44 = arith.addf %38, %43 : vector<1024x64xf32>
    %45 = vector.extract_strided_slice %1 {offsets = [2, 1, 0], sizes = [32, 32, 8], strides = [1, 1, 1]} : vector<34x34x8xbf16> to vector<32x32x8xbf16>
    %46 = vector.shape_cast %45 : vector<32x32x8xbf16> to vector<1024x8xbf16>
    %47 = vector.extract_strided_slice %2 {offsets = [7, 0, 0], sizes = [1, 8, 64], strides = [1, 1, 1]} : vector<9x8x64xbf16> to vector<1x8x64xbf16>
    %48 = vector.shape_cast %47 : vector<1x8x64xbf16> to vector<8x64xbf16>
    %cst_14 = arith.constant dense<0.000000e+00> : vector<1024x64xf32>
    %49 = tpu.matmul %46, %48, %cst_14 {dimension_numbers = #tpu.dot_dimension_numbers<[1], [0], [0], [1], [0, 0, 1, 1], [], []>} : vector<1024x8xbf16>, vector<8x64xbf16>, vector<1024x64xf32> -> vector<1024x64xf32>
    %50 = arith.addf %44, %49 : vector<1024x64xf32>
    %51 = vector.extract_strided_slice %1 {offsets = [2, 2, 0], sizes = [32, 32, 8], strides = [1, 1, 1]} : vector<34x34x8xbf16> to vector<32x32x8xbf16>
    %52 = vector.shape_cast %51 : vector<32x32x8xbf16> to vector<1024x8xbf16>
    %53 = vector.extract_strided_slice %2 {offsets = [8, 0, 0], sizes = [1, 8, 64], strides = [1, 1, 1]} : vector<9x8x64xbf16> to vector<1x8x64xbf16>
    %54 = vector.shape_cast %53 : vector<1x8x64xbf16> to vector<8x64xbf16>
    %cst_15 = arith.constant dense<0.000000e+00> : vector<1024x64xf32>
    %55 = tpu.matmul %52, %54, %cst_15 {dimension_numbers = #tpu.dot_dimension_numbers<[1], [0], [0], [1], [0, 0, 1, 1], [], []>} : vector<1024x8xbf16>, vector<8x64xbf16>, vector<1024x64xf32> -> vector<1024x64xf32>
    %56 = arith.addf %50, %55 : vector<1024x64xf32>
    %57 = vector.broadcast %3 : vector<1x64xf32> to vector<1024x64xf32>
    %58 = arith.addf %56, %57 : vector<1024x64xf32>
    %cst_16 = arith.constant 0.000000e+00 : f32
    %59 = vector.broadcast %cst_16 : f32 to vector<1024x64xf32>
    %60 = arith.maximumf %58, %59 : vector<1024x64xf32>
    %61 = vector.shape_cast %60 : vector<1024x64xf32> to vector<32x32x64xf32>
    %62 = vector.shape_cast %61 : vector<32x32x64xf32> to vector<1x32x32x64xf32>
    %63 = arith.truncf %62 : vector<1x32x32x64xf32> to vector<1x32x32x64xbf16>
    %c0_17 = arith.constant 0 : index
    %c0_18 = arith.constant 0 : index
    %c0_19 = arith.constant 0 : index
    %c0_20 = arith.constant 0 : index
    %64 = vector.load %arg5[%c0_17, %c0_18, %c0_19, %c0_20] : memref<1x32x32x64xbf16, #tpu.memory_space<vmem>>, vector<1x32x32x64xbf16>
    tpu.vector_store %arg5[%c0_17, %c0_18, %c0_19, %c0_20], %63 {strides = array<i32>} : memref<1x32x32x64xbf16, #tpu.memory_space<vmem>>, vector<1x32x32x64xbf16>,
    return
  }
  func.func @transform_0(%arg0: i32, %arg1: i32) -> (i32, i32, i32, i32) {
    %c1_i32 = arith.constant 1 : i32
    %0 = arith.muli %arg0, %c1_i32 : i32
    %1 = arith.addi %0, %arg1 : i32
    %c0_i32 = arith.constant 0 : i32
    %c0_i32_0 = arith.constant 0 : i32
    %c0_i32_1 = arith.constant 0 : i32
    %c0_i32_2 = arith.constant 0 : i32
    return %1, %c0_i32, %c0_i32_0, %c0_i32_1 : i32, i32, i32, i32
  }
  func.func @transform_1(%arg0: i32, %arg1: i32) -> (i32, i32, i32) {
    %c0_i32 = arith.constant 0 : i32
    %c0_i32_0 = arith.constant 0 : i32
    %c0_i32_1 = arith.constant 0 : i32
    %c0_i32_2 = arith.constant 0 : i32
    return %c0_i32, %c0_i32_0, %c0_i32_1 : i32, i32, i32
  }
  func.func @transform_2(%arg0: i32, %arg1: i32) -> (i32, i32) {
    %c0_i32 = arith.constant 0 : i32
    %c0_i32_0 = arith.constant 0 : i32
    %c0_i32_1 = arith.constant 0 : i32
    return %c0_i32, %c0_i32_0 : i32, i32
  }
  func.func @transform_3(%arg0: i32, %arg1: i32) -> (i32, i32, i32, i32) {
    %c0_i32 = arith.constant 0 : i32
    %c0_i32_0 = arith.constant 0 : i32
    %c0_i32_1 = arith.constant 0 : i32
    return %arg0, %arg1, %c0_i32, %c0_i32_0 : i32, i32, i32, i32
  }
}

</mosaic_0001>

<llo_original>
// kernel: tpu_custom_call.1
$region0: #{tpu_custom_call.1}
  #allocation0 [shape = 'u32[]', space=smem, size = 0x4, offset = 0x4, fixed_abs, tag = 'smem constant byte address 0x4 - core index']
  #allocation1 [shape = 'u32[144,128]{1,0:T(1,128)}', space=vmem, size = 0x12000, scoped, tag = 'internal scratch']
  %s0 = inlined_call_operand.vmem [shape: bf16[2,34,34,8], index: 0, kind: input, shape index: {}]
  %s1 = inlined_call_operand.vmem [shape: bf16[9,8,64], index: 1, kind: input, shape index: {}]
  %s2 = inlined_call_operand.vmem [shape: f32[1,64], index: 2, kind: input, shape index: {}]
  %s3 = inlined_call_operand.hbm [shape: bf16[2,32,32,64], index: 3, kind: output, shape index: {}]
  %s4 = sld [smem:[#allocation0]]
  $region45: #{tpu_custom_call.1} parent=0
    _
  %s6 = ssub.s32 1, %s4
  %s7 = scalar_select 0, %s6, %s4
  $region1: #{tpu_custom_call.1} parent=0
    #allocation2 [shape = 'u8[524288]{0}', space=vmem, size = 0x80000, scoped, tag = 'output window, operand 0']
    #allocation3 [shape = 's32[2]{0}', space=sflag, size = 0x8, scoped, tag = 'scoped memory for tpu_custom_call.1']
    %8 = vsyncpa [#allocation3], 0
    %s9 = scalar_lea.sflag [#allocation3], 1
    %10 = vsyncpa %s9, 0
    loop: start=0, step=1, limit=4
    $region2: #{tpu_custom_call.1} parent=1 // loop_pre_header
      _
    $region3: #{tpu_custom_call.1} parent=1 // loop_header
      %s12 = sphi 0, %s16
      %p13 = scmp.ge.s32.totalorder %s12, 4
      %s19 = sphi 0, %s31
      %s20 = sphi 0, %s27
      %s21 = sphi 0, %s19
      %s22 = sphi 0, %s20
      %s23 = sphi 0, %s21
      %s24 = sphi 0, %s22
      %s36 = sphi 0, %s38
      %s39 = sphi 0, %s36
      %s40 = sphi 0, %s39
      %s56 = sphi 0, %s40
      %s60 = sphi 0, %s60
      %s62 = sphi 0, %s60
      %s63 = sphi 0, %s62
      %s77 = sphi 0, %s63
      %s81 = sphi 0, %s81
      %s83 = sphi 0, %s81
      %s84 = sphi 0, %s83
      %s98 = sphi 0, %s84
      %s106 = sphi 0, %s108
      %s109 = sphi 0, %s106
      %s110 = sphi 0, %s109
      %s126 = sphi 0, %s110
    $region4: #{tpu_custom_call.1} parent=1 // loop_header_branch
      %15 = sbr.rel (%p13) target = $region8
    $region5: #{tpu_custom_call.1} parent=1 // loop_body
      %s17 = ssub.s32 %s12, 1
      %s18 = ssub.s32 %s12, 2
      %s25 = sadd.s32 1, %s20
      %p26 = scmp.ge.s32.totalorder %s25, 1
      %s27 = scalar_select %p26, 0, %s25
      %s28 = sadd.s32 1, %s19
      %s29 = scalar_select %p26, %s28, %s19
      %p30 = scmp.ge.s32.totalorder %s29, 2
      %s31 = scalar_select %p30, 0, %s29
      %s32 = sadd.s32 %s19, %s20
      %s33 = sadd.s32 %s31, %s27
      %s34 = ssub.s32 %s32, %s33
      %p35 = scmp.eq.s32.totalorder %s34, 0
      %s37 = sadd.s32 %s36, 1
      %s38 = scalar_select %p35, %s36, %s37
      %p41 = pneg %p35
      %p42 = scmp.eq.s32.totalorder %s12, 1
      %p43 = por %p41, %p42
      %p44 = scmp.ne.s32.totalorder %s36, %s39
      %p45 = scmp.eq.s32.totalorder %s12, 0
      %p46 = por %p44, %p45
      %p47 = scmp.ne.s32.totalorder %s36, %s39
      %p48 = scmp.eq.s32.totalorder %s17, 1
      %p49 = por %p47, %p48
      %p50 = scmp.ne.s32.totalorder %s39, %s40
      %p51 = scmp.eq.s32.totalorder %s17, 0
      %p52 = por %p50, %p51
      %p53 = scmp.ne.s32.totalorder %s39, %s40
      %p54 = scmp.eq.s32.totalorder %s18, 1
      %p55 = por %p53, %p54
      %p57 = scmp.ne.s32.totalorder %s40, %s56
      %p58 = scmp.eq.s32.totalorder %s18, 0
      %p59 = por %p57, %p58
      %s61 = sadd.s32 %s60, 1
      %p64 = scmp.eq.s32.totalorder %s12, 1
      %p65 = scmp.ne.s32.totalorder %s60, %s62
      %p66 = scmp.eq.s32.totalorder %s12, 0
      %p67 = por %p65, %p66
      %p68 = scmp.ne.s32.totalorder %s60, %s62
      %p69 = scmp.eq.s32.totalorder %s17, 1
      %p70 = por %p68, %p69
      %p71 = scmp.ne.s32.totalorder %s62, %s63
      %p72 = scmp.eq.s32.totalorder %s17, 0
      %p73 = por %p71, %p72
      %p74 = scmp.ne.s32.totalorder %s62, %s63
      %p75 = scmp.eq.s32.totalorder %s18, 1
      %p76 = por %p74, %p75
      %p78 = scmp.ne.s32.totalorder %s63, %s77
      %p79 = scmp.eq.s32.totalorder %s18, 0
      %p80 = por %p78, %p79
      %s82 = sadd.s32 %s81, 1
      %p85 = scmp.eq.s32.totalorder %s12, 1
      %p86 = scmp.ne.s32.totalorder %s81, %s83
      %p87 = scmp.eq.s32.totalorder %s12, 0
      %p88 = por %p86, %p87
      %p89 = scmp.ne.s32.totalorder %s81, %s83
      %p90 = scmp.eq.s32.totalorder %s17, 1
      %p91 = por %p89, %p90
      %p92 = scmp.ne.s32.totalorder %s83, %s84
      %p93 = scmp.eq.s32.totalorder %s17, 0
      %p94 = por %p92, %p93
      %p95 = scmp.ne.s32.totalorder %s83, %s84
      %p96 = scmp.eq.s32.totalorder %s18, 1
      %p97 = por %p95, %p96
      %p99 = scmp.ne.s32.totalorder %s84, %s98
      %p100 = scmp.eq.s32.totalorder %s18, 0
      %p101 = por %p99, %p100
      %s102 = ssub.s32 %s19, %s31
      %s103 = ssub.s32 %s20, %s27
      %s104 = sor.u32 %s102, %s103
      %p105 = scmp.eq.s32.totalorder %s104, 0
      %s107 = sadd.s32 %s106, 1
      %s108 = scalar_select %p105, %s106, %s107
      %p111 = pneg %p105
      %p112 = scmp.eq.s32.totalorder %s12, 1
      %p113 = por %p111, %p112
      %p114 = scmp.ne.s32.totalorder %s106, %s109
      %p115 = scmp.eq.s32.totalorder %s12, 0
      %p116 = por %p114, %p115
      %p117 = scmp.ne.s32.totalorder %s106, %s109
      %p118 = scmp.eq.s32.totalorder %s17, 1
      %p119 = por %p117, %p118
      %p120 = scmp.ne.s32.totalorder %s109, %s110
      %p121 = scmp.eq.s32.totalorder %s17, 0
      %p122 = por %p120, %p121
      %p123 = scmp.ne.s32.totalorder %s109, %s110
      %p124 = scmp.eq.s32.totalorder %s18, 1
      %p125 = por %p123, %p124
      %p127 = scmp.ne.s32.totalorder %s110, %s126
      %p128 = scmp.eq.s32.totalorder %s18, 0
      %p129 = por %p127, %p128
      %p130 = scmp.le.s32.totalorder 1, %s12
      %p131 = scmp.lt.s32.totalorder %s12, 3
      %p132 = pnand %p130, %p131
      %p133 = pneg %p132
      // Predicated region
      $region9: #{tpu_custom_call.1} parent=5 // pred_check
        _
      $region10: #{tpu_custom_call.1} parent=5 // pred_check_branch
        %135 = sbr.rel (%p132) target = $region12
      $region11: #{tpu_custom_call.1} parent=5 // pred_region
        %s136 = ssub.s32 %s12, 1
        // Predicated region
        $region13: #{tpu_custom_call.1} parent=11 // pred_check
          %p137 = pneg %p73
        $region14: #{tpu_custom_call.1} parent=11 // pred_check_branch
          %139 = sbr.rel (%p137) target = $region16
        $region15: #{tpu_custom_call.1} parent=11 // pred_region
          _
        $region16: #{tpu_custom_call.1} parent=11 // pred_fallthru
          _
        // Predicated region
        $region17: #{tpu_custom_call.1} parent=11 // pred_check
          %p140 = pneg %p94
        $region18: #{tpu_custom_call.1} parent=11 // pred_check_branch
          %142 = sbr.rel (%p140) target = $region20
        $region19: #{tpu_custom_call.1} parent=11 // pred_region
          _
        $region20: #{tpu_custom_call.1} parent=11 // pred_fallthru
          _
      $region12: #{tpu_custom_call.1} parent=5 // pred_fallthru
        _
      %p143 = scmp.lt.s32.totalorder %s12, 2
      // Predicated region
      $region21: #{tpu_custom_call.1} parent=5 // pred_check
        %p144 = pneg %p143
      $region22: #{tpu_custom_call.1} parent=5 // pred_check_branch
        %146 = sbr.rel (%p144) target = $region24
      $region23: #{tpu_custom_call.1} parent=5 // pred_region
        // Predicated region
        $region25: #{tpu_custom_call.1} parent=23 // pred_check
          %p147 = pneg %p46
        $region26: #{tpu_custom_call.1} parent=23 // pred_check_branch
          %149 = sbr.rel (%p147) target = $region28
        $region27: #{tpu_custom_call.1} parent=23 // pred_region
          %s150 = sadd.s32 %s19, %s20
          %p151 = scmp.lt.s32.totalorder %s150, 1
          %s152 = scalar_select %p151, %s150, 1
          %s153 = smul.addr %s152, 170
          %s154 = smul.addr %s153, 4
          %s155 = scalar_lea.vmem %s0, %s154
          %s156 = sadd.s32 %s19, %s20
        $region28: #{tpu_custom_call.1} parent=23 // pred_fallthru
          _
      $region24: #{tpu_custom_call.1} parent=5 // pred_fallthru
        _
      %p157 = scmp.le.s32.totalorder 1, %s12
      %p158 = scmp.lt.s32.totalorder %s12, 3
      %p159 = pnand %p157, %p158
      %p160 = pneg %p159
      // Predicated region
      $region29: #{tpu_custom_call.1} parent=5 // pred_check
        _
      $region30: #{tpu_custom_call.1} parent=5 // pred_check_branch
        %162 = sbr.rel (%p159) target = $region32
      $region31: #{tpu_custom_call.1} parent=5 // pred_region
        %s163 = ssub.s32 %s12, 1
        %s164 = sadd.s32 %s21, %s22
        %p165 = scmp.lt.s32.totalorder %s164, 1
        %s166 = scalar_select %p165, %s164, 1
        %s167 = smul.addr %s166, 170
        %s168 = smul.addr %s167, 4
        %s169 = scalar_lea.vmem %s0, %s168
        %p170 = pneg %p52
        %p171 = pneg %p49
        %p172 = pneg %p73
        %p173 = pneg %p70
        %p174 = pneg %p94
        %p175 = pneg %p91
        %p176 = pneg %p122
        %p177 = pneg %p119
        %s178 = sand.u32 %s109, 1
        %s179 = scalar_lea.sflag [#allocation3], %s178
        %s180 = sand.u32 %s109, 1
        %s181 = smul.addr %s180, 512
        %s182 = scalar_lea.vmem [#allocation2], %s181
        %s183 = sadd.s32 %s21, %s22
        %p184 = scmp.lt.s32.totalorder %s183, 1
        %s185 = scalar_select %p184, %s183, 1
        %s186 = smul.addr %s185, 170
        %s187 = smul.addr %s186, 4
        %s188 = scalar_lea.vmem %s0, %s187
        %s189 = sadd.s32 %s21, %s22
        %s190 = smul.u32 32, %s22
        %v192 = vld [vmem:[%s188] sm:$0xf]
        %v193 = vld [vmem:[%s188 + $0x4] sm:$0xf]
        %v194 = vld [vmem:[%s188 + $0x8] sm:$0xf]
        %v195 = vld [vmem:[%s188 + $0xc] sm:$0xf]
        %v196 = vld [vmem:[%s188 + $0x10] sm:$0x1]
        %v197 = vld [vmem:[%s188 + $0x14] sm:$0xf]
        %v198 = vld [vmem:[%s188 + $0x18] sm:$0xf]
        %v199 = vld [vmem:[%s188 + $0x1c] sm:$0xf]
        %v200 = vld [vmem:[%s188 + $0x20] sm:$0xf]
        %v201 = vld [vmem:[%s188 + $0x24] sm:$0x1]
        %v202 = vld [vmem:[%s188 + $0x28] sm:$0xf]
        %v203 = vld [vmem:[%s188 + $0x2c] sm:$0xf]
        %v204 = vld [vmem:[%s188 + $0x30] sm:$0xf]
        %v205 = vld [vmem:[%s188 + $0x34] sm:$0xf]
        %v206 = vld [vmem:[%s188 + $0x38] sm:$0x1]
        %v207 = vld [vmem:[%s188 + $0x3c] sm:$0xf]
        %v208 = vld [vmem:[%s188 + $0x40] sm:$0xf]
        %v209 = vld [vmem:[%s188 + $0x44] sm:$0xf]
        %v210 = vld [vmem:[%s188 + $0x48] sm:$0xf]
        %v211 = vld [vmem:[%s188 + $0x4c] sm:$0x1]
        %v212 = vld [vmem:[%s188 + $0x50] sm:$0xf]
        %v213 = vld [vmem:[%s188 + $0x54] sm:$0xf]
        %v214 = vld [vmem:[%s188 + $0x58] sm:$0xf]
        %v215 = vld [vmem:[%s188 + $0x5c] sm:$0xf]
        %v216 = vld [vmem:[%s188 + $0x60] sm:$0x1]
        %v217 = vld [vmem:[%s188 + $0x64] sm:$0xf]
        %v218 = vld [vmem:[%s188 + $0x68] sm:$0xf]
        %v219 = vld [vmem:[%s188 + $0x6c] sm:$0xf]
        %v220 = vld [vmem:[%s188 + $0x70] sm:$0xf]
        %v221 = vld [vmem:[%s188 + $0x74] sm:$0x1]
        %v222 = vld [vmem:[%s188 + $0x78] sm:$0xf]
        %v223 = vld [vmem:[%s188 + $0x7c] sm:$0xf]
        %v224 = vld [vmem:[%s188 + $0x80] sm:$0xf]
        %v225 = vld [vmem:[%s188 + $0x84] sm:$0xf]
        %v226 = vld [vmem:[%s188 + $0x88] sm:$0x1]
        %v227 = vld [vmem:[%s188 + $0x8c] sm:$0xf]
        %v228 = vld [vmem:[%s188 + $0x90] sm:$0xf]
        %v229 = vld [vmem:[%s188 + $0x94] sm:$0xf]
        %v230 = vld [vmem:[%s188 + $0x98] sm:$0xf]
        %v231 = vld [vmem:[%s188 + $0x9c] sm:$0x1]
        %v232 = vld [vmem:[%s188 + $0xa0] sm:$0xf]
        %v233 = vld [vmem:[%s188 + $0xa4] sm:$0xf]
        %v234 = vld [vmem:[%s188 + $0xa8] sm:$0xf]
        %v235 = vld [vmem:[%s188 + $0xac] sm:$0xf]
        %v236 = vld [vmem:[%s188 + $0xb0] sm:$0x1]
        %v237 = vld [vmem:[%s188 + $0xb4] sm:$0xf]
        %v238 = vld [vmem:[%s188 + $0xb8] sm:$0xf]
        %v239 = vld [vmem:[%s188 + $0xbc] sm:$0xf]
        %v240 = vld [vmem:[%s188 + $0xc0] sm:$0xf]
        %v241 = vld [vmem:[%s188 + $0xc4] sm:$0x1]
        %v242 = vld [vmem:[%s188 + $0xc8] sm:$0xf]
        %v243 = vld [vmem:[%s188 + $0xcc] sm:$0xf]
        %v244 = vld [vmem:[%s188 + $0xd0] sm:$0xf]
        %v245 = vld [vmem:[%s188 + $0xd4] sm:$0xf]
        %v246 = vld [vmem:[%s188 + $0xd8] sm:$0x1]
        %v247 = vld [vmem:[%s188 + $0xdc] sm:$0xf]
        %v248 = vld [vmem:[%s188 + $0xe0] sm:$0xf]
        %v249 = vld [vmem:[%s188 + $0xe4] sm:$0xf]
        %v250 = vld [vmem:[%s188 + $0xe8] sm:$0xf]
        %v251 = vld [vmem:[%s188 + $0xec] sm:$0x1]
        %v252 = vld [vmem:[%s188 + $0xf0] sm:$0xf]
        %v253 = vld [vmem:[%s188 + $0xf4] sm:$0xf]
        %v254 = vld [vmem:[%s188 + $0xf8] sm:$0xf]
        %v255 = vld [vmem:[%s188 + $0xfc] sm:$0xf]
        %v256 = vld [vmem:[%s188 + $0x100] sm:$0x1]
        %v257 = vld [vmem:[%s188 + $0x104] sm:$0xf]
        %v258 = vld [vmem:[%s188 + $0x108] sm:$0xf]
        %v259 = vld [vmem:[%s188 + $0x10c] sm:$0xf]
        %v260 = vld [vmem:[%s188 + $0x110] sm:$0xf]
        %v261 = vld [vmem:[%s188 + $0x114] sm:$0x1]
        %v262 = vld [vmem:[%s188 + $0x118] sm:$0xf]
        %v263 = vld [vmem:[%s188 + $0x11c] sm:$0xf]
        %v264 = vld [vmem:[%s188 + $0x120] sm:$0xf]
        %v265 = vld [vmem:[%s188 + $0x124] sm:$0xf]
        %v266 = vld [vmem:[%s188 + $0x128] sm:$0x1]
        %v267 = vld [vmem:[%s188 + $0x12c] sm:$0xf]
        %v268 = vld [vmem:[%s188 + $0x130] sm:$0xf]
        %v269 = vld [vmem:[%s188 + $0x134] sm:$0xf]
        %v270 = vld [vmem:[%s188 + $0x138] sm:$0xf]
        %v271 = vld [vmem:[%s188 + $0x13c] sm:$0x1]
        %v272 = vld [vmem:[%s188 + $0x140] sm:$0xf]
        %v273 = vld [vmem:[%s188 + $0x144] sm:$0xf]
        %v274 = vld [vmem:[%s188 + $0x148] sm:$0xf]
        %v275 = vld [vmem:[%s188 + $0x14c] sm:$0xf]
        %v276 = vld [vmem:[%s188 + $0x150] sm:$0x1]
        %v277 = vld [vmem:[%s188 + $0x154] sm:$0xf]
        %v278 = vld [vmem:[%s188 + $0x158] sm:$0xf]
        %v279 = vld [vmem:[%s188 + $0x15c] sm:$0xf]
        %v280 = vld [vmem:[%s188 + $0x160] sm:$0xf]
        %v281 = vld [vmem:[%s188 + $0x164] sm:$0x1]
        %v282 = vld [vmem:[%s188 + $0x168] sm:$0xf]
        %v283 = vld [vmem:[%s188 + $0x16c] sm:$0xf]
        %v284 = vld [vmem:[%s188 + $0x170] sm:$0xf]
        %v285 = vld [vmem:[%s188 + $0x174] sm:$0xf]
        %v286 = vld [vmem:[%s188 + $0x178] sm:$0x1]
        %v287 = vld [vmem:[%s188 + $0x17c] sm:$0xf]
        %v288 = vld [vmem:[%s188 + $0x180] sm:$0xf]
        %v289 = vld [vmem:[%s188 + $0x184] sm:$0xf]
        %v290 = vld [vmem:[%s188 + $0x188] sm:$0xf]
        %v291 = vld [vmem:[%s188 + $0x18c] sm:$0x1]
        %v292 = vld [vmem:[%s188 + $0x190] sm:$0xf]
        %v293 = vld [vmem:[%s188 + $0x194] sm:$0xf]
        %v294 = vld [vmem:[%s188 + $0x198] sm:$0xf]
        %v295 = vld [vmem:[%s188 + $0x19c] sm:$0xf]
        %v296 = vld [vmem:[%s188 + $0x1a0] sm:$0x1]
        %v297 = vld [vmem:[%s188 + $0x1a4] sm:$0xf]
        %v298 = vld [vmem:[%s188 + $0x1a8] sm:$0xf]
        %v299 = vld [vmem:[%s188 + $0x1ac] sm:$0xf]
        %v300 = vld [vmem:[%s188 + $0x1b0] sm:$0xf]
        %v301 = vld [vmem:[%s188 + $0x1b4] sm:$0x1]
        %v302 = vld [vmem:[%s188 + $0x1b8] sm:$0xf]
        %v303 = vld [vmem:[%s188 + $0x1bc] sm:$0xf]
        %v304 = vld [vmem:[%s188 + $0x1c0] sm:$0xf]
        %v305 = vld [vmem:[%s188 + $0x1c4] sm:$0xf]
        %v306 = vld [vmem:[%s188 + $0x1c8] sm:$0x1]
        %v307 = vld [vmem:[%s188 + $0x1cc] sm:$0xf]
        %v308 = vld [vmem:[%s188 + $0x1d0] sm:$0xf]
        %v309 = vld [vmem:[%s188 + $0x1d4] sm:$0xf]
        %v310 = vld [vmem:[%s188 + $0x1d8] sm:$0xf]
        %v311 = vld [vmem:[%s188 + $0x1dc] sm:$0x1]
        %v312 = vld [vmem:[%s188 + $0x1e0] sm:$0xf]
        %v313 = vld [vmem:[%s188 + $0x1e4] sm:$0xf]
        %v314 = vld [vmem:[%s188 + $0x1e8] sm:$0xf]
        %v315 = vld [vmem:[%s188 + $0x1ec] sm:$0xf]
        %v316 = vld [vmem:[%s188 + $0x1f0] sm:$0x1]
        %v317 = vld [vmem:[%s188 + $0x1f4] sm:$0xf]
        %v318 = vld [vmem:[%s188 + $0x1f8] sm:$0xf]
        %v319 = vld [vmem:[%s188 + $0x1fc] sm:$0xf]
        %v320 = vld [vmem:[%s188 + $0x200] sm:$0xf]
        %v321 = vld [vmem:[%s188 + $0x204] sm:$0x1]
        %v322 = vld [vmem:[%s188 + $0x208] sm:$0xf]
        %v323 = vld [vmem:[%s188 + $0x20c] sm:$0xf]
        %v324 = vld [vmem:[%s188 + $0x210] sm:$0xf]
        %v325 = vld [vmem:[%s188 + $0x214] sm:$0xf]
        %v326 = vld [vmem:[%s188 + $0x218] sm:$0x1]
        %v327 = vld [vmem:[%s188 + $0x21c] sm:$0xf]
        %v328 = vld [vmem:[%s188 + $0x220] sm:$0xf]
        %v329 = vld [vmem:[%s188 + $0x224] sm:$0xf]
        %v330 = vld [vmem:[%s188 + $0x228] sm:$0xf]
        %v331 = vld [vmem:[%s188 + $0x22c] sm:$0x1]
        %v332 = vld [vmem:[%s188 + $0x230] sm:$0xf]
        %v333 = vld [vmem:[%s188 + $0x234] sm:$0xf]
        %v334 = vld [vmem:[%s188 + $0x238] sm:$0xf]
        %v335 = vld [vmem:[%s188 + $0x23c] sm:$0xf]
        %v336 = vld [vmem:[%s188 + $0x240] sm:$0x1]
        %v337 = vld [vmem:[%s188 + $0x244] sm:$0xf]
        %v338 = vld [vmem:[%s188 + $0x248] sm:$0xf]
        %v339 = vld [vmem:[%s188 + $0x24c] sm:$0xf]
        %v340 = vld [vmem:[%s188 + $0x250] sm:$0xf]
        %v341 = vld [vmem:[%s188 + $0x254] sm:$0x1]
        %v342 = vld [vmem:[%s188 + $0x258] sm:$0xf]
        %v343 = vld [vmem:[%s188 + $0x25c] sm:$0xf]
        %v344 = vld [vmem:[%s188 + $0x260] sm:$0xf]
        %v345 = vld [vmem:[%s188 + $0x264] sm:$0xf]
        %v346 = vld [vmem:[%s188 + $0x268] sm:$0x1]
        %v347 = vld [vmem:[%s188 + $0x26c] sm:$0xf]
        %v348 = vld [vmem:[%s188 + $0x270] sm:$0xf]
        %v349 = vld [vmem:[%s188 + $0x274] sm:$0xf]
        %v350 = vld [vmem:[%s188 + $0x278] sm:$0xf]
        %v351 = vld [vmem:[%s188 + $0x27c] sm:$0x1]
        %v352 = vld [vmem:[%s188 + $0x280] sm:$0xf]
        %v353 = vld [vmem:[%s188 + $0x284] sm:$0xf]
        %v354 = vld [vmem:[%s188 + $0x288] sm:$0xf]
        %v355 = vld [vmem:[%s188 + $0x28c] sm:$0xf]
        %v356 = vld [vmem:[%s188 + $0x290] sm:$0x1]
        %v357 = vld [vmem:[%s188 + $0x294] sm:$0xf]
        %v358 = vld [vmem:[%s188 + $0x298] sm:$0xf]
        %v359 = vld [vmem:[%s188 + $0x29c] sm:$0xf]
        %v360 = vld [vmem:[%s188 + $0x2a0] sm:$0xf]
        %v361 = vld [vmem:[%s188 + $0x2a4] sm:$0x1]
        %v362 = vld [vmem:[%s1] sm:$0xf]
        %v363 = vld [vmem:[%s1 + $0x4] sm:$0xf]
        %v364 = vld [vmem:[%s1 + $0x8] sm:$0xf]
        %v365 = vld [vmem:[%s1 + $0xc] sm:$0xf]
        %v366 = vld [vmem:[%s1 + $0x10] sm:$0xf]
        %v367 = vld [vmem:[%s1 + $0x14] sm:$0xf]
        %v368 = vld [vmem:[%s1 + $0x18] sm:$0xf]
        %v369 = vld [vmem:[%s1 + $0x1c] sm:$0xf]
        %v370 = vld [vmem:[%s1 + $0x20] sm:$0xf]
        %v371 = vld [vmem:[%s2] sm:$0x1]
        %vm372 = vsmask.f32 3328
        %vm373 = vsmask.f32 7440
        %vm374 = vmor %vm372, %vm373
        %v376 = vshrl.u32 %v192, 16
        %v378 = vrot.slane %v376, 4
        %v379 = vshll.u32 %v192, 16
        %v381 = vrot.slane %v379, 5
        %v382 = vor.u32 %v378, %v381
        %v383 = vrot.slane %v382, 4
        %v385 = vshll.u32 %v193, 16
        %v387 = vrot.slane %v385, 5
        %v388 = vsel %vm374, %v383, %v387
        %v389 = vshrl.u32 %v193, 16
        %v391 = vrot.slane %v389, 4
        %v392 = vor.u32 %v391, %v387
        %v393 = vrot.slane %v392, 4
        %v395 = vshll.u32 %v194, 16
        %v397 = vrot.slane %v395, 5
        %v398 = vsel %vm374, %v393, %v397
        %v399 = vshrl.u32 %v194, 16
        %v401 = vrot.slane %v399, 4
        %v402 = vor.u32 %v401, %v397
        %v403 = vrot.slane %v402, 4
        %v405 = vshll.u32 %v195, 16
        %v407 = vrot.slane %v405, 5
        %v408 = vsel %vm374, %v403, %v407
        %v409 = vshrl.u32 %v195, 16
        %v411 = vrot.slane %v409, 4
        %v412 = vor.u32 %v411, %v407
        %v413 = vrot.slane %v412, 4
        %v415 = vshll.u32 %v196, 16
        %v417 = vrot.slane %v415, 5
        %v418 = vsel %vm374, %v413, %v417
        %v420 = vshrl.u32 %v197, 16
        %v422 = vrot.slane %v420, 4
        %v423 = vshll.u32 %v197, 16
        %v425 = vrot.slane %v423, 5
        %v426 = vor.u32 %v422, %v425
        %v427 = vrot.slane %v426, 4
        %v429 = vshll.u32 %v198, 16
        %v431 = vrot.slane %v429, 5
        %v432 = vsel %vm374, %v427, %v431
        %v433 = vshrl.u32 %v198, 16
        %v435 = vrot.slane %v433, 4
        %v436 = vor.u32 %v435, %v431
        %v437 = vrot.slane %v436, 4
        %v439 = vshll.u32 %v199, 16
        %v441 = vrot.slane %v439, 5
        %v442 = vsel %vm374, %v437, %v441
        %v443 = vshrl.u32 %v199, 16
        %v445 = vrot.slane %v443, 4
        %v446 = vor.u32 %v445, %v441
        %v447 = vrot.slane %v446, 4
        %v449 = vshll.u32 %v200, 16
        %v451 = vrot.slane %v449, 5
        %v452 = vsel %vm374, %v447, %v451
        %v453 = vshrl.u32 %v200, 16
        %v455 = vrot.slane %v453, 4
        %v456 = vor.u32 %v455, %v451
        %v457 = vrot.slane %v456, 4
        %v459 = vshll.u32 %v201, 16
        %v461 = vrot.slane %v459, 5
        %v462 = vsel %vm374, %v457, %v461
        %v464 = vshrl.u32 %v202, 16
        %v466 = vrot.slane %v464, 4
        %v467 = vshll.u32 %v202, 16
        %v469 = vrot.slane %v467, 5
        %v470 = vor.u32 %v466, %v469
        %v471 = vrot.slane %v470, 4
        %v473 = vshll.u32 %v203, 16
        %v475 = vrot.slane %v473, 5
        %v476 = vsel %vm374, %v471, %v475
        %v477 = vshrl.u32 %v203, 16
        %v479 = vrot.slane %v477, 4
        %v480 = vor.u32 %v479, %v475
        %v481 = vrot.slane %v480, 4
        %v483 = vshll.u32 %v204, 16
        %v485 = vrot.slane %v483, 5
        %v486 = vsel %vm374, %v481, %v485
        %v487 = vshrl.u32 %v204, 16
        %v489 = vrot.slane %v487, 4
        %v490 = vor.u32 %v489, %v485
        %v491 = vrot.slane %v490, 4
        %v493 = vshll.u32 %v205, 16
        %v495 = vrot.slane %v493, 5
        %v496 = vsel %vm374, %v491, %v495
        %v497 = vshrl.u32 %v205, 16
        %v499 = vrot.slane %v497, 4
        %v500 = vor.u32 %v499, %v495
        %v501 = vrot.slane %v500, 4
        %v503 = vshll.u32 %v206, 16
        %v505 = vrot.slane %v503, 5
        %v506 = vsel %vm374, %v501, %v505
        %v508 = vshrl.u32 %v207, 16
        %v510 = vrot.slane %v508, 4
        %v511 = vshll.u32 %v207, 16
        %v513 = vrot.slane %v511, 5
        %v514 = vor.u32 %v510, %v513
        %v515 = vrot.slane %v514, 4
        %v517 = vshll.u32 %v208, 16
        %v519 = vrot.slane %v517, 5
        %v520 = vsel %vm374, %v515, %v519
        %v521 = vshrl.u32 %v208, 16
        %v523 = vrot.slane %v521, 4
        %v524 = vor.u32 %v523, %v519
        %v525 = vrot.slane %v524, 4
        %v527 = vshll.u32 %v209, 16
        %v529 = vrot.slane %v527, 5
        %v530 = vsel %vm374, %v525, %v529
        %v531 = vshrl.u32 %v209, 16
        %v533 = vrot.slane %v531, 4
        %v534 = vor.u32 %v533, %v529
        %v535 = vrot.slane %v534, 4
        %v537 = vshll.u32 %v210, 16
        %v539 = vrot.slane %v537, 5
        %v540 = vsel %vm374, %v535, %v539
        %v541 = vshrl.u32 %v210, 16
        %v543 = vrot.slane %v541, 4
        %v544 = vor.u32 %v543, %v539
        %v545 = vrot.slane %v544, 4
        %v547 = vshll.u32 %v211, 16
        %v549 = vrot.slane %v547, 5
        %v550 = vsel %vm374, %v545, %v549
        %v552 = vshrl.u32 %v212, 16
        %v554 = vrot.slane %v552, 4
        %v555 = vshll.u32 %v212, 16
        %v557 = vrot.slane %v555, 5
        %v558 = vor.u32 %v554, %v557
        %v559 = vrot.slane %v558, 4
        %v561 = vshll.u32 %v213, 16
        %v563 = vrot.slane %v561, 5
        %v564 = vsel %vm374, %v559, %v563
        %v565 = vshrl.u32 %v213, 16
        %v567 = vrot.slane %v565, 4
        %v568 = vor.u32 %v567, %v563
        %v569 = vrot.slane %v568, 4
        %v571 = vshll.u32 %v214, 16
        %v573 = vrot.slane %v571, 5
        %v574 = vsel %vm374, %v569, %v573
        %v575 = vshrl.u32 %v214, 16
        %v577 = vrot.slane %v575, 4
        %v578 = vor.u32 %v577, %v573
        %v579 = vrot.slane %v578, 4
        %v581 = vshll.u32 %v215, 16
        %v583 = vrot.slane %v581, 5
        %v584 = vsel %vm374, %v579, %v583
        %v585 = vshrl.u32 %v215, 16
        %v587 = vrot.slane %v585, 4
        %v588 = vor.u32 %v587, %v583
        %v589 = vrot.slane %v588, 4
        %v591 = vshll.u32 %v216, 16
        %v593 = vrot.slane %v591, 5
        %v594 = vsel %vm374, %v589, %v593
        %v596 = vshrl.u32 %v217, 16
        %v598 = vrot.slane %v596, 4
        %v599 = vshll.u32 %v217, 16
        %v601 = vrot.slane %v599, 5
        %v602 = vor.u32 %v598, %v601
        %v603 = vrot.slane %v602, 4
        %v605 = vshll.u32 %v218, 16
        %v607 = vrot.slane %v605, 5
        %v608 = vsel %vm374, %v603, %v607
        %v609 = vshrl.u32 %v218, 16
        %v611 = vrot.slane %v609, 4
        %v612 = vor.u32 %v611, %v607
        %v613 = vrot.slane %v612, 4
        %v615 = vshll.u32 %v219, 16
        %v617 = vrot.slane %v615, 5
        %v618 = vsel %vm374, %v613, %v617
        %v619 = vshrl.u32 %v219, 16
        %v621 = vrot.slane %v619, 4
        %v622 = vor.u32 %v621, %v617
        %v623 = vrot.slane %v622, 4
        %v625 = vshll.u32 %v220, 16
        %v627 = vrot.slane %v625, 5
        %v628 = vsel %vm374, %v623, %v627
        %v629 = vshrl.u32 %v220, 16
        %v631 = vrot.slane %v629, 4
        %v632 = vor.u32 %v631, %v627
        %v633 = vrot.slane %v632, 4
        %v635 = vshll.u32 %v221, 16
        %v637 = vrot.slane %v635, 5
        %v638 = vsel %vm374, %v633, %v637
        %v640 = vshrl.u32 %v222, 16
        %v642 = vrot.slane %v640, 4
        %v643 = vshll.u32 %v222, 16
        %v645 = vrot.slane %v643, 5
        %v646 = vor.u32 %v642, %v645
        %v647 = vrot.slane %v646, 4
        %v649 = vshll.u32 %v223, 16
        %v651 = vrot.slane %v649, 5
        %v652 = vsel %vm374, %v647, %v651
        %v653 = vshrl.u32 %v223, 16
        %v655 = vrot.slane %v653, 4
        %v656 = vor.u32 %v655, %v651
        %v657 = vrot.slane %v656, 4
        %v659 = vshll.u32 %v224, 16
        %v661 = vrot.slane %v659, 5
        %v662 = vsel %vm374, %v657, %v661
        %v663 = vshrl.u32 %v224, 16
        %v665 = vrot.slane %v663, 4
        %v666 = vor.u32 %v665, %v661
        %v667 = vrot.slane %v666, 4
        %v669 = vshll.u32 %v225, 16
        %v671 = vrot.slane %v669, 5
        %v672 = vsel %vm374, %v667, %v671
        %v673 = vshrl.u32 %v225, 16
        %v675 = vrot.slane %v673, 4
        %v676 = vor.u32 %v675, %v671
        %v677 = vrot.slane %v676, 4
        %v679 = vshll.u32 %v226, 16
        %v681 = vrot.slane %v679, 5
        %v682 = vsel %vm374, %v677, %v681
        %v684 = vshrl.u32 %v227, 16
        %v686 = vrot.slane %v684, 4
        %v687 = vshll.u32 %v227, 16
        %v689 = vrot.slane %v687, 5
        %v690 = vor.u32 %v686, %v689
        %v691 = vrot.slane %v690, 4
        %v693 = vshll.u32 %v228, 16
        %v695 = vrot.slane %v693, 5
        %v696 = vsel %vm374, %v691, %v695
        %v697 = vshrl.u32 %v228, 16
        %v699 = vrot.slane %v697, 4
        %v700 = vor.u32 %v699, %v695
        %v701 = vrot.slane %v700, 4
        %v703 = vshll.u32 %v229, 16
        %v705 = vrot.slane %v703, 5
        %v706 = vsel %vm374, %v701, %v705
        %v707 = vshrl.u32 %v229, 16
        %v709 = vrot.slane %v707, 4
        %v710 = vor.u32 %v709, %v705
        %v711 = vrot.slane %v710, 4
        %v713 = vshll.u32 %v230, 16
        %v715 = vrot.slane %v713, 5
        %v716 = vsel %vm374, %v711, %v715
        %v717 = vshrl.u32 %v230, 16
        %v719 = vrot.slane %v717, 4
        %v720 = vor.u32 %v719, %v715
        %v721 = vrot.slane %v720, 4
        %v723 = vshll.u32 %v231, 16
        %v725 = vrot.slane %v723, 5
        %v726 = vsel %vm374, %v721, %v725
        %v728 = vshrl.u32 %v232, 16
        %v730 = vrot.slane %v728, 4
        %v731 = vshll.u32 %v232, 16
        %v733 = vrot.slane %v731, 5
        %v734 = vor.u32 %v730, %v733
        %v735 = vrot.slane %v734, 4
        %v737 = vshll.u32 %v233, 16
        %v739 = vrot.slane %v737, 5
        %v740 = vsel %vm374, %v735, %v739
        %v741 = vshrl.u32 %v233, 16
        %v743 = vrot.slane %v741, 4
        %v744 = vor.u32 %v743, %v739
        %v745 = vrot.slane %v744, 4
        %v747 = vshll.u32 %v234, 16
        %v749 = vrot.slane %v747, 5
        %v750 = vsel %vm374, %v745, %v749
        %v751 = vshrl.u32 %v234, 16
        %v753 = vrot.slane %v751, 4
        %v754 = vor.u32 %v753, %v749
        %v755 = vrot.slane %v754, 4
        %v757 = vshll.u32 %v235, 16
        %v759 = vrot.slane %v757, 5
        %v760 = vsel %vm374, %v755, %v759
        %v761 = vshrl.u32 %v235, 16
        %v763 = vrot.slane %v761, 4
        %v764 = vor.u32 %v763, %v759
        %v765 = vrot.slane %v764, 4
        %v767 = vshll.u32 %v236, 16
        %v769 = vrot.slane %v767, 5
        %v770 = vsel %vm374, %v765, %v769
        %v772 = vshrl.u32 %v237, 16
        %v774 = vrot.slane %v772, 4
        %v775 = vshll.u32 %v237, 16
        %v777 = vrot.slane %v775, 5
        %v778 = vor.u32 %v774, %v777
        %v779 = vrot.slane %v778, 4
        %v781 = vshll.u32 %v238, 16
        %v783 = vrot.slane %v781, 5
        %v784 = vsel %vm374, %v779, %v783
        %v785 = vshrl.u32 %v238, 16
        %v787 = vrot.slane %v785, 4
        %v788 = vor.u32 %v787, %v783
        %v789 = vrot.slane %v788, 4
        %v791 = vshll.u32 %v239, 16
        %v793 = vrot.slane %v791, 5
        %v794 = vsel %vm374, %v789, %v793
        %v795 = vshrl.u32 %v239, 16
        %v797 = vrot.slane %v795, 4
        %v798 = vor.u32 %v797, %v793
        %v799 = vrot.slane %v798, 4
        %v801 = vshll.u32 %v240, 16
        %v803 = vrot.slane %v801, 5
        %v804 = vsel %vm374, %v799, %v803
        %v805 = vshrl.u32 %v240, 16
        %v807 = vrot.slane %v805, 4
        %v808 = vor.u32 %v807, %v803
        %v809 = vrot.slane %v808, 4
        %v811 = vshll.u32 %v241, 16
        %v813 = vrot.slane %v811, 5
        %v814 = vsel %vm374, %v809, %v813
        %v816 = vshrl.u32 %v242, 16
        %v818 = vrot.slane %v816, 4
        %v819 = vshll.u32 %v242, 16
        %v821 = vrot.slane %v819, 5
        %v822 = vor.u32 %v818, %v821
        %v823 = vrot.slane %v822, 4
        %v825 = vshll.u32 %v243, 16
        %v827 = vrot.slane %v825, 5
        %v828 = vsel %vm374, %v823, %v827
        %v829 = vshrl.u32 %v243, 16
        %v831 = vrot.slane %v829, 4
        %v832 = vor.u32 %v831, %v827
        %v833 = vrot.slane %v832, 4
        %v835 = vshll.u32 %v244, 16
        %v837 = vrot.slane %v835, 5
        %v838 = vsel %vm374, %v833, %v837
        %v839 = vshrl.u32 %v244, 16
        %v841 = vrot.slane %v839, 4
        %v842 = vor.u32 %v841, %v837
        %v843 = vrot.slane %v842, 4
        %v845 = vshll.u32 %v245, 16
        %v847 = vrot.slane %v845, 5
        %v848 = vsel %vm374, %v843, %v847
        %v849 = vshrl.u32 %v245, 16
        %v851 = vrot.slane %v849, 4
        %v852 = vor.u32 %v851, %v847
        %v853 = vrot.slane %v852, 4
        %v855 = vshll.u32 %v246, 16
        %v857 = vrot.slane %v855, 5
        %v858 = vsel %vm374, %v853, %v857
        %v860 = vshrl.u32 %v247, 16
        %v862 = vrot.slane %v860, 4
        %v863 = vshll.u32 %v247, 16
        %v865 = vrot.slane %v863, 5
        %v866 = vor.u32 %v862, %v865
        %v867 = vrot.slane %v866, 4
        %v869 = vshll.u32 %v248, 16
        %v871 = vrot.slane %v869, 5
        %v872 = vsel %vm374, %v867, %v871
        %v873 = vshrl.u32 %v248, 16
        %v875 = vrot.slane %v873, 4
        %v876 = vor.u32 %v875, %v871
        %v877 = vrot.slane %v876, 4
        %v879 = vshll.u32 %v249, 16
        %v881 = vrot.slane %v879, 5
        %v882 = vsel %vm374, %v877, %v881
        %v883 = vshrl.u32 %v249, 16
        %v885 = vrot.slane %v883, 4
        %v886 = vor.u32 %v885, %v881
        %v887 = vrot.slane %v886, 4
        %v889 = vshll.u32 %v250, 16
        %v891 = vrot.slane %v889, 5
        %v892 = vsel %vm374, %v887, %v891
        %v893 = vshrl.u32 %v250, 16
        %v895 = vrot.slane %v893, 4
        %v896 = vor.u32 %v895, %v891
        %v897 = vrot.slane %v896, 4
        %v899 = vshll.u32 %v251, 16
        %v901 = vrot.slane %v899, 5
        %v902 = vsel %vm374, %v897, %v901
        %v904 = vshrl.u32 %v252, 16
        %v906 = vrot.slane %v904, 4
        %v907 = vshll.u32 %v252, 16
        %v909 = vrot.slane %v907, 5
        %v910 = vor.u32 %v906, %v909
        %v911 = vrot.slane %v910, 4
        %v913 = vshll.u32 %v253, 16
        %v915 = vrot.slane %v913, 5
        %v916 = vsel %vm374, %v911, %v915
        %v917 = vshrl.u32 %v253, 16
        %v919 = vrot.slane %v917, 4
        %v920 = vor.u32 %v919, %v915
        %v921 = vrot.slane %v920, 4
        %v923 = vshll.u32 %v254, 16
        %v925 = vrot.slane %v923, 5
        %v926 = vsel %vm374, %v921, %v925
        %v927 = vshrl.u32 %v254, 16
        %v929 = vrot.slane %v927, 4
        %v930 = vor.u32 %v929, %v925
        %v931 = vrot.slane %v930, 4
        %v933 = vshll.u32 %v255, 16
        %v935 = vrot.slane %v933, 5
        %v936 = vsel %vm374, %v931, %v935
        %v937 = vshrl.u32 %v255, 16
        %v939 = vrot.slane %v937, 4
        %v940 = vor.u32 %v939, %v935
        %v941 = vrot.slane %v940, 4
        %v943 = vshll.u32 %v256, 16
        %v945 = vrot.slane %v943, 5
        %v946 = vsel %vm374, %v941, %v945
        %v948 = vshrl.u32 %v257, 16
        %v950 = vrot.slane %v948, 4
        %v951 = vshll.u32 %v257, 16
        %v953 = vrot.slane %v951, 5
        %v954 = vor.u32 %v950, %v953
        %v955 = vrot.slane %v954, 4
        %v957 = vshll.u32 %v258, 16
        %v959 = vrot.slane %v957, 5
        %v960 = vsel %vm374, %v955, %v959
        %v961 = vshrl.u32 %v258, 16
        %v963 = vrot.slane %v961, 4
        %v964 = vor.u32 %v963, %v959
        %v965 = vrot.slane %v964, 4
        %v967 = vshll.u32 %v259, 16
        %v969 = vrot.slane %v967, 5
        %v970 = vsel %vm374, %v965, %v969
        %v971 = vshrl.u32 %v259, 16
        %v973 = vrot.slane %v971, 4
        %v974 = vor.u32 %v973, %v969
        %v975 = vrot.slane %v974, 4
        %v977 = vshll.u32 %v260, 16
        %v979 = vrot.slane %v977, 5
        %v980 = vsel %vm374, %v975, %v979
        %v981 = vshrl.u32 %v260, 16
        %v983 = vrot.slane %v981, 4
        %v984 = vor.u32 %v983, %v979
        %v985 = vrot.slane %v984, 4
        %v987 = vshll.u32 %v261, 16
        %v989 = vrot.slane %v987, 5
        %v990 = vsel %vm374, %v985, %v989
        %v992 = vshrl.u32 %v262, 16
        %v994 = vrot.slane %v992, 4
        %v995 = vshll.u32 %v262, 16
        %v997 = vrot.slane %v995, 5
        %v998 = vor.u32 %v994, %v997
        %v999 = vrot.slane %v998, 4
        %v1001 = vshll.u32 %v263, 16
        %v1003 = vrot.slane %v1001, 5
        %v1004 = vsel %vm374, %v999, %v1003
        %v1005 = vshrl.u32 %v263, 16
        %v1007 = vrot.slane %v1005, 4
        %v1008 = vor.u32 %v1007, %v1003
        %v1009 = vrot.slane %v1008, 4
        %v1011 = vshll.u32 %v264, 16
        %v1013 = vrot.slane %v1011, 5
        %v1014 = vsel %vm374, %v1009, %v1013
        %v1015 = vshrl.u32 %v264, 16
        %v1017 = vrot.slane %v1015, 4
        %v1018 = vor.u32 %v1017, %v1013
        %v1019 = vrot.slane %v1018, 4
        %v1021 = vshll.u32 %v265, 16
        %v1023 = vrot.slane %v1021, 5
        %v1024 = vsel %vm374, %v1019, %v1023
        %v1025 = vshrl.u32 %v265, 16
        %v1027 = vrot.slane %v1025, 4
        %v1028 = vor.u32 %v1027, %v1023
        %v1029 = vrot.slane %v1028, 4
        %v1031 = vshll.u32 %v266, 16
        %v1033 = vrot.slane %v1031, 5
        %v1034 = vsel %vm374, %v1029, %v1033
        %v1036 = vshrl.u32 %v267, 16
        %v1038 = vrot.slane %v1036, 4
        %v1039 = vshll.u32 %v267, 16
        %v1041 = vrot.slane %v1039, 5
        %v1042 = vor.u32 %v1038, %v1041
        %v1043 = vrot.slane %v1042, 4
        %v1045 = vshll.u32 %v268, 16
        %v1047 = vrot.slane %v1045, 5
        %v1048 = vsel %vm374, %v1043, %v1047
        %v1049 = vshrl.u32 %v268, 16
        %v1051 = vrot.slane %v1049, 4
        %v1052 = vor.u32 %v1051, %v1047
        %v1053 = vrot.slane %v1052, 4
        %v1055 = vshll.u32 %v269, 16
        %v1057 = vrot.slane %v1055, 5
        %v1058 = vsel %vm374, %v1053, %v1057
        %v1059 = vshrl.u32 %v269, 16
        %v1061 = vrot.slane %v1059, 4
        %v1062 = vor.u32 %v1061, %v1057
        %v1063 = vrot.slane %v1062, 4
        %v1065 = vshll.u32 %v270, 16
        %v1067 = vrot.slane %v1065, 5
        %v1068 = vsel %vm374, %v1063, %v1067
        %v1069 = vshrl.u32 %v270, 16
        %v1071 = vrot.slane %v1069, 4
        %v1072 = vor.u32 %v1071, %v1067
        %v1073 = vrot.slane %v1072, 4
        %v1075 = vshll.u32 %v271, 16
        %v1077 = vrot.slane %v1075, 5
        %v1078 = vsel %vm374, %v1073, %v1077
        %v1080 = vshrl.u32 %v272, 16
        %v1082 = vrot.slane %v1080, 4
        %v1083 = vshll.u32 %v272, 16
        %v1085 = vrot.slane %v1083, 5
        %v1086 = vor.u32 %v1082, %v1085
        %v1087 = vrot.slane %v1086, 4
        %v1089 = vshll.u32 %v273, 16
        %v1091 = vrot.slane %v1089, 5
        %v1092 = vsel %vm374, %v1087, %v1091
        %v1093 = vshrl.u32 %v273, 16
        %v1095 = vrot.slane %v1093, 4
        %v1096 = vor.u32 %v1095, %v1091
        %v1097 = vrot.slane %v1096, 4
        %v1099 = vshll.u32 %v274, 16
        %v1101 = vrot.slane %v1099, 5
        %v1102 = vsel %vm374, %v1097, %v1101
        %v1103 = vshrl.u32 %v274, 16
        %v1105 = vrot.slane %v1103, 4
        %v1106 = vor.u32 %v1105, %v1101
        %v1107 = vrot.slane %v1106, 4
        %v1109 = vshll.u32 %v275, 16
        %v1111 = vrot.slane %v1109, 5
        %v1112 = vsel %vm374, %v1107, %v1111
        %v1113 = vshrl.u32 %v275, 16
        %v1115 = vrot.slane %v1113, 4
        %v1116 = vor.u32 %v1115, %v1111
        %v1117 = vrot.slane %v1116, 4
        %v1119 = vshll.u32 %v276, 16
        %v1121 = vrot.slane %v1119, 5
        %v1122 = vsel %vm374, %v1117, %v1121
        %v1124 = vshrl.u32 %v277, 16
        %v1126 = vrot.slane %v1124, 4
        %v1127 = vshll.u32 %v277, 16
        %v1129 = vrot.slane %v1127, 5
        %v1130 = vor.u32 %v1126, %v1129
        %v1131 = vrot.slane %v1130, 4
        %v1133 = vshll.u32 %v278, 16
        %v1135 = vrot.slane %v1133, 5
        %v1136 = vsel %vm374, %v1131, %v1135
        %v1137 = vshrl.u32 %v278, 16
        %v1139 = vrot.slane %v1137, 4
        %v1140 = vor.u32 %v1139, %v1135
        %v1141 = vrot.slane %v1140, 4
        %v1143 = vshll.u32 %v279, 16
        %v1145 = vrot.slane %v1143, 5
        %v1146 = vsel %vm374, %v1141, %v1145
        %v1147 = vshrl.u32 %v279, 16
        %v1149 = vrot.slane %v1147, 4
        %v1150 = vor.u32 %v1149, %v1145
        %v1151 = vrot.slane %v1150, 4
        %v1153 = vshll.u32 %v280, 16
        %v1155 = vrot.slane %v1153, 5
        %v1156 = vsel %vm374, %v1151, %v1155
        %v1157 = vshrl.u32 %v280, 16
        %v1159 = vrot.slane %v1157, 4
        %v1160 = vor.u32 %v1159, %v1155
        %v1161 = vrot.slane %v1160, 4
        %v1163 = vshll.u32 %v281, 16
        %v1165 = vrot.slane %v1163, 5
        %v1166 = vsel %vm374, %v1161, %v1165
        %v1168 = vshrl.u32 %v282, 16
        %v1170 = vrot.slane %v1168, 4
        %v1171 = vshll.u32 %v282, 16
        %v1173 = vrot.slane %v1171, 5
        %v1174 = vor.u32 %v1170, %v1173
        %v1175 = vrot.slane %v1174, 4
        %v1177 = vshll.u32 %v283, 16
        %v1179 = vrot.slane %v1177, 5
        %v1180 = vsel %vm374, %v1175, %v1179
        %v1181 = vshrl.u32 %v283, 16
        %v1183 = vrot.slane %v1181, 4
        %v1184 = vor.u32 %v1183, %v1179
        %v1185 = vrot.slane %v1184, 4
        %v1187 = vshll.u32 %v284, 16
        %v1189 = vrot.slane %v1187, 5
        %v1190 = vsel %vm374, %v1185, %v1189
        %v1191 = vshrl.u32 %v284, 16
        %v1193 = vrot.slane %v1191, 4
        %v1194 = vor.u32 %v1193, %v1189
        %v1195 = vrot.slane %v1194, 4
        %v1197 = vshll.u32 %v285, 16
        %v1199 = vrot.slane %v1197, 5
        %v1200 = vsel %vm374, %v1195, %v1199
        %v1201 = vshrl.u32 %v285, 16
        %v1203 = vrot.slane %v1201, 4
        %v1204 = vor.u32 %v1203, %v1199
        %v1205 = vrot.slane %v1204, 4
        %v1207 = vshll.u32 %v286, 16
        %v1209 = vrot.slane %v1207, 5
        %v1210 = vsel %vm374, %v1205, %v1209
        %v1212 = vshrl.u32 %v287, 16
        %v1214 = vrot.slane %v1212, 4
        %v1215 = vshll.u32 %v287, 16
        %v1217 = vrot.slane %v1215, 5
        %v1218 = vor.u32 %v1214, %v1217
        %v1219 = vrot.slane %v1218, 4
        %v1221 = vshll.u32 %v288, 16
        %v1223 = vrot.slane %v1221, 5
        %v1224 = vsel %vm374, %v1219, %v1223
        %v1225 = vshrl.u32 %v288, 16
        %v1227 = vrot.slane %v1225, 4
        %v1228 = vor.u32 %v1227, %v1223
        %v1229 = vrot.slane %v1228, 4
        %v1231 = vshll.u32 %v289, 16
        %v1233 = vrot.slane %v1231, 5
        %v1234 = vsel %vm374, %v1229, %v1233
        %v1235 = vshrl.u32 %v289, 16
        %v1237 = vrot.slane %v1235, 4
        %v1238 = vor.u32 %v1237, %v1233
        %v1239 = vrot.slane %v1238, 4
        %v1241 = vshll.u32 %v290, 16
        %v1243 = vrot.slane %v1241, 5
        %v1244 = vsel %vm374, %v1239, %v1243
        %v1245 = vshrl.u32 %v290, 16
        %v1247 = vrot.slane %v1245, 4
        %v1248 = vor.u32 %v1247, %v1243
        %v1249 = vrot.slane %v1248, 4
        %v1251 = vshll.u32 %v291, 16
        %v1253 = vrot.slane %v1251, 5
        %v1254 = vsel %vm374, %v1249, %v1253
        %v1256 = vshrl.u32 %v292, 16
        %v1258 = vrot.slane %v1256, 4
        %v1259 = vshll.u32 %v292, 16
        %v1261 = vrot.slane %v1259, 5
        %v1262 = vor.u32 %v1258, %v1261
        %v1263 = vrot.slane %v1262, 4
        %v1265 = vshll.u32 %v293, 16
        %v1267 = vrot.slane %v1265, 5
        %v1268 = vsel %vm374, %v1263, %v1267
        %v1269 = vshrl.u32 %v293, 16
        %v1271 = vrot.slane %v1269, 4
        %v1272 = vor.u32 %v1271, %v1267
        %v1273 = vrot.slane %v1272, 4
        %v1275 = vshll.u32 %v294, 16
        %v1277 = vrot.slane %v1275, 5
        %v1278 = vsel %vm374, %v1273, %v1277
        %v1279 = vshrl.u32 %v294, 16
        %v1281 = vrot.slane %v1279, 4
        %v1282 = vor.u32 %v1281, %v1277
        %v1283 = vrot.slane %v1282, 4
        %v1285 = vshll.u32 %v295, 16
        %v1287 = vrot.slane %v1285, 5
        %v1288 = vsel %vm374, %v1283, %v1287
        %v1289 = vshrl.u32 %v295, 16
        %v1291 = vrot.slane %v1289, 4
        %v1292 = vor.u32 %v1291, %v1287
        %v1293 = vrot.slane %v1292, 4
        %v1295 = vshll.u32 %v296, 16
        %v1297 = vrot.slane %v1295, 5
        %v1298 = vsel %vm374, %v1293, %v1297
        %v1300 = vshrl.u32 %v297, 16
        %v1302 = vrot.slane %v1300, 4
        %v1303 = vshll.u32 %v297, 16
        %v1305 = vrot.slane %v1303, 5
        %v1306 = vor.u32 %v1302, %v1305
        %v1307 = vrot.slane %v1306, 4
        %v1309 = vshll.u32 %v298, 16
        %v1311 = vrot.slane %v1309, 5
        %v1312 = vsel %vm374, %v1307, %v1311
        %v1313 = vshrl.u32 %v298, 16
        %v1315 = vrot.slane %v1313, 4
        %v1316 = vor.u32 %v1315, %v1311
        %v1317 = vrot.slane %v1316, 4
        %v1319 = vshll.u32 %v299, 16
        %v1321 = vrot.slane %v1319, 5
        %v1322 = vsel %vm374, %v1317, %v1321
        %v1323 = vshrl.u32 %v299, 16
        %v1325 = vrot.slane %v1323, 4
        %v1326 = vor.u32 %v1325, %v1321
        %v1327 = vrot.slane %v1326, 4
        %v1329 = vshll.u32 %v300, 16
        %v1331 = vrot.slane %v1329, 5
        %v1332 = vsel %vm374, %v1327, %v1331
        %v1333 = vshrl.u32 %v300, 16
        %v1335 = vrot.slane %v1333, 4
        %v1336 = vor.u32 %v1335, %v1331
        %v1337 = vrot.slane %v1336, 4
        %v1339 = vshll.u32 %v301, 16
        %v1341 = vrot.slane %v1339, 5
        %v1342 = vsel %vm374, %v1337, %v1341
        %v1344 = vshrl.u32 %v302, 16
        %v1346 = vrot.slane %v1344, 4
        %v1347 = vshll.u32 %v302, 16
        %v1349 = vrot.slane %v1347, 5
        %v1350 = vor.u32 %v1346, %v1349
        %v1351 = vrot.slane %v1350, 4
        %v1353 = vshll.u32 %v303, 16
        %v1355 = vrot.slane %v1353, 5
        %v1356 = vsel %vm374, %v1351, %v1355
        %v1357 = vshrl.u32 %v303, 16
        %v1359 = vrot.slane %v1357, 4
        %v1360 = vor.u32 %v1359, %v1355
        %v1361 = vrot.slane %v1360, 4
        %v1363 = vshll.u32 %v304, 16
        %v1365 = vrot.slane %v1363, 5
        %v1366 = vsel %vm374, %v1361, %v1365
        %v1367 = vshrl.u32 %v304, 16
        %v1369 = vrot.slane %v1367, 4
        %v1370 = vor.u32 %v1369, %v1365
        %v1371 = vrot.slane %v1370, 4
        %v1373 = vshll.u32 %v305, 16
        %v1375 = vrot.slane %v1373, 5
        %v1376 = vsel %vm374, %v1371, %v1375
        %v1377 = vshrl.u32 %v305, 16
        %v1379 = vrot.slane %v1377, 4
        %v1380 = vor.u32 %v1379, %v1375
        %v1381 = vrot.slane %v1380, 4
        %v1383 = vshll.u32 %v306, 16
        %v1385 = vrot.slane %v1383, 5
        %v1386 = vsel %vm374, %v1381, %v1385
        %v1388 = vshrl.u32 %v307, 16
        %v1390 = vrot.slane %v1388, 4
        %v1391 = vshll.u32 %v307, 16
        %v1393 = vrot.slane %v1391, 5
        %v1394 = vor.u32 %v1390, %v1393
        %v1395 = vrot.slane %v1394, 4
        %v1397 = vshll.u32 %v308, 16
        %v1399 = vrot.slane %v1397, 5
        %v1400 = vsel %vm374, %v1395, %v1399
        %v1401 = vshrl.u32 %v308, 16
        %v1403 = vrot.slane %v1401, 4
        %v1404 = vor.u32 %v1403, %v1399
        %v1405 = vrot.slane %v1404, 4
        %v1407 = vshll.u32 %v309, 16
        %v1409 = vrot.slane %v1407, 5
        %v1410 = vsel %vm374, %v1405, %v1409
        %v1411 = vshrl.u32 %v309, 16
        %v1413 = vrot.slane %v1411, 4
        %v1414 = vor.u32 %v1413, %v1409
        %v1415 = vrot.slane %v1414, 4
        %v1417 = vshll.u32 %v310, 16
        %v1419 = vrot.slane %v1417, 5
        %v1420 = vsel %vm374, %v1415, %v1419
        %v1421 = vshrl.u32 %v310, 16
        %v1423 = vrot.slane %v1421, 4
        %v1424 = vor.u32 %v1423, %v1419
        %v1425 = vrot.slane %v1424, 4
        %v1427 = vshll.u32 %v311, 16
        %v1429 = vrot.slane %v1427, 5
        %v1430 = vsel %vm374, %v1425, %v1429
        %v1432 = vshrl.u32 %v312, 16
        %v1434 = vrot.slane %v1432, 4
        %v1435 = vshll.u32 %v312, 16
        %v1437 = vrot.slane %v1435, 5
        %v1438 = vor.u32 %v1434, %v1437
        %v1439 = vrot.slane %v1438, 4
        %v1441 = vshll.u32 %v313, 16
        %v1443 = vrot.slane %v1441, 5
        %v1444 = vsel %vm374, %v1439, %v1443
        %v1445 = vshrl.u32 %v313, 16
        %v1447 = vrot.slane %v1445, 4
        %v1448 = vor.u32 %v1447, %v1443
        %v1449 = vrot.slane %v1448, 4
        %v1451 = vshll.u32 %v314, 16
        %v1453 = vrot.slane %v1451, 5
        %v1454 = vsel %vm374, %v1449, %v1453
        %v1455 = vshrl.u32 %v314, 16
        %v1457 = vrot.slane %v1455, 4
        %v1458 = vor.u32 %v1457, %v1453
        %v1459 = vrot.slane %v1458, 4
        %v1461 = vshll.u32 %v315, 16
        %v1463 = vrot.slane %v1461, 5
        %v1464 = vsel %vm374, %v1459, %v1463
        %v1465 = vshrl.u32 %v315, 16
        %v1467 = vrot.slane %v1465, 4
        %v1468 = vor.u32 %v1467, %v1463
        %v1469 = vrot.slane %v1468, 4
        %v1471 = vshll.u32 %v316, 16
        %v1473 = vrot.slane %v1471, 5
        %v1474 = vsel %vm374, %v1469, %v1473
        %v1476 = vshrl.u32 %v317, 16
        %v1478 = vrot.slane %v1476, 4
        %v1479 = vshll.u32 %v317, 16
        %v1481 = vrot.slane %v1479, 5
        %v1482 = vor.u32 %v1478, %v1481
        %v1483 = vrot.slane %v1482, 4
        %v1485 = vshll.u32 %v318, 16
        %v1487 = vrot.slane %v1485, 5
        %v1488 = vsel %vm374, %v1483, %v1487
        %v1489 = vshrl.u32 %v318, 16
        %v1491 = vrot.slane %v1489, 4
        %v1492 = vor.u32 %v1491, %v1487
        %v1493 = vrot.slane %v1492, 4
        %v1495 = vshll.u32 %v319, 16
        %v1497 = vrot.slane %v1495, 5
        %v1498 = vsel %vm374, %v1493, %v1497
        %v1499 = vshrl.u32 %v319, 16
        %v1501 = vrot.slane %v1499, 4
        %v1502 = vor.u32 %v1501, %v1497
        %v1503 = vrot.slane %v1502, 4
        %v1505 = vshll.u32 %v320, 16
        %v1507 = vrot.slane %v1505, 5
        %v1508 = vsel %vm374, %v1503, %v1507
        %v1509 = vshrl.u32 %v320, 16
        %v1511 = vrot.slane %v1509, 4
        %v1512 = vor.u32 %v1511, %v1507
        %v1513 = vrot.slane %v1512, 4
        %v1515 = vshll.u32 %v321, 16
        %v1517 = vrot.slane %v1515, 5
        %v1518 = vsel %vm374, %v1513, %v1517
        %v1520 = vshrl.u32 %v322, 16
        %v1522 = vrot.slane %v1520, 4
        %v1523 = vshll.u32 %v322, 16
        %v1525 = vrot.slane %v1523, 5
        %v1526 = vor.u32 %v1522, %v1525
        %v1527 = vrot.slane %v1526, 4
        %v1529 = vshll.u32 %v323, 16
        %v1531 = vrot.slane %v1529, 5
        %v1532 = vsel %vm374, %v1527, %v1531
        %v1533 = vshrl.u32 %v323, 16
        %v1535 = vrot.slane %v1533, 4
        %v1536 = vor.u32 %v1535, %v1531
        %v1537 = vrot.slane %v1536, 4
        %v1539 = vshll.u32 %v324, 16
        %v1541 = vrot.slane %v1539, 5
        %v1542 = vsel %vm374, %v1537, %v1541
        %v1543 = vshrl.u32 %v324, 16
        %v1545 = vrot.slane %v1543, 4
        %v1546 = vor.u32 %v1545, %v1541
        %v1547 = vrot.slane %v1546, 4
        %v1549 = vshll.u32 %v325, 16
        %v1551 = vrot.slane %v1549, 5
        %v1552 = vsel %vm374, %v1547, %v1551
        %v1553 = vshrl.u32 %v325, 16
        %v1555 = vrot.slane %v1553, 4
        %v1556 = vor.u32 %v1555, %v1551
        %v1557 = vrot.slane %v1556, 4
        %v1559 = vshll.u32 %v326, 16
        %v1561 = vrot.slane %v1559, 5
        %v1562 = vsel %vm374, %v1557, %v1561
        %v1564 = vshrl.u32 %v327, 16
        %v1566 = vrot.slane %v1564, 4
        %v1567 = vshll.u32 %v327, 16
        %v1569 = vrot.slane %v1567, 5
        %v1570 = vor.u32 %v1566, %v1569
        %v1571 = vrot.slane %v1570, 4
        %v1573 = vshll.u32 %v328, 16
        %v1575 = vrot.slane %v1573, 5
        %v1576 = vsel %vm374, %v1571, %v1575
        %v1577 = vshrl.u32 %v328, 16
        %v1579 = vrot.slane %v1577, 4
        %v1580 = vor.u32 %v1579, %v1575
        %v1581 = vrot.slane %v1580, 4
        %v1583 = vshll.u32 %v329, 16
        %v1585 = vrot.slane %v1583, 5
        %v1586 = vsel %vm374, %v1581, %v1585
        %v1587 = vshrl.u32 %v329, 16
        %v1589 = vrot.slane %v1587, 4
        %v1590 = vor.u32 %v1589, %v1585
        %v1591 = vrot.slane %v1590, 4
        %v1593 = vshll.u32 %v330, 16
        %v1595 = vrot.slane %v1593, 5
        %v1596 = vsel %vm374, %v1591, %v1595
        %v1597 = vshrl.u32 %v330, 16
        %v1599 = vrot.slane %v1597, 4
        %v1600 = vor.u32 %v1599, %v1595
        %v1601 = vrot.slane %v1600, 4
        %v1603 = vshll.u32 %v331, 16
        %v1605 = vrot.slane %v1603, 5
        %v1606 = vsel %vm374, %v1601, %v1605
        %v1608 = vshrl.u32 %v332, 16
        %v1610 = vrot.slane %v1608, 4
        %v1611 = vshll.u32 %v332, 16
        %v1613 = vrot.slane %v1611, 5
        %v1614 = vor.u32 %v1610, %v1613
        %v1615 = vrot.slane %v1614, 4
        %v1617 = vshll.u32 %v333, 16
        %v1619 = vrot.slane %v1617, 5
        %v1620 = vsel %vm374, %v1615, %v1619
        %v1621 = vshrl.u32 %v333, 16
        %v1623 = vrot.slane %v1621, 4
        %v1624 = vor.u32 %v1623, %v1619
        %v1625 = vrot.slane %v1624, 4
        %v1627 = vshll.u32 %v334, 16
        %v1629 = vrot.slane %v1627, 5
        %v1630 = vsel %vm374, %v1625, %v1629
        %v1631 = vshrl.u32 %v334, 16
        %v1633 = vrot.slane %v1631, 4
        %v1634 = vor.u32 %v1633, %v1629
        %v1635 = vrot.slane %v1634, 4
        %v1637 = vshll.u32 %v335, 16
        %v1639 = vrot.slane %v1637, 5
        %v1640 = vsel %vm374, %v1635, %v1639
        %v1641 = vshrl.u32 %v335, 16
        %v1643 = vrot.slane %v1641, 4
        %v1644 = vor.u32 %v1643, %v1639
        %v1645 = vrot.slane %v1644, 4
        %v1647 = vshll.u32 %v336, 16
        %v1649 = vrot.slane %v1647, 5
        %v1650 = vsel %vm374, %v1645, %v1649
        %v1652 = vshrl.u32 %v337, 16
        %v1654 = vrot.slane %v1652, 4
        %v1655 = vshll.u32 %v337, 16
        %v1657 = vrot.slane %v1655, 5
        %v1658 = vor.u32 %v1654, %v1657
        %v1659 = vrot.slane %v1658, 4
        %v1661 = vshll.u32 %v338, 16
        %v1663 = vrot.slane %v1661, 5
        %v1664 = vsel %vm374, %v1659, %v1663
        %v1665 = vshrl.u32 %v338, 16
        %v1667 = vrot.slane %v1665, 4
        %v1668 = vor.u32 %v1667, %v1663
        %v1669 = vrot.slane %v1668, 4
        %v1671 = vshll.u32 %v339, 16
        %v1673 = vrot.slane %v1671, 5
        %v1674 = vsel %vm374, %v1669, %v1673
        %v1675 = vshrl.u32 %v339, 16
        %v1677 = vrot.slane %v1675, 4
        %v1678 = vor.u32 %v1677, %v1673
        %v1679 = vrot.slane %v1678, 4
        %v1681 = vshll.u32 %v340, 16
        %v1683 = vrot.slane %v1681, 5
        %v1684 = vsel %vm374, %v1679, %v1683
        %v1685 = vshrl.u32 %v340, 16
        %v1687 = vrot.slane %v1685, 4
        %v1688 = vor.u32 %v1687, %v1683
        %v1689 = vrot.slane %v1688, 4
        %v1691 = vshll.u32 %v341, 16
        %v1693 = vrot.slane %v1691, 5
        %v1694 = vsel %vm374, %v1689, %v1693
        %v1696 = vshrl.u32 %v342, 16
        %v1698 = vrot.slane %v1696, 4
        %v1699 = vshll.u32 %v342, 16
        %v1701 = vrot.slane %v1699, 5
        %v1702 = vor.u32 %v1698, %v1701
        %v1703 = vrot.slane %v1702, 4
        %v1705 = vshll.u32 %v343, 16
        %v1707 = vrot.slane %v1705, 5
        %v1708 = vsel %vm374, %v1703, %v1707
        %v1709 = vshrl.u32 %v343, 16
        %v1711 = vrot.slane %v1709, 4
        %v1712 = vor.u32 %v1711, %v1707
        %v1713 = vrot.slane %v1712, 4
        %v1715 = vshll.u32 %v344, 16
        %v1717 = vrot.slane %v1715, 5
        %v1718 = vsel %vm374, %v1713, %v1717
        %v1719 = vshrl.u32 %v344, 16
        %v1721 = vrot.slane %v1719, 4
        %v1722 = vor.u32 %v1721, %v1717
        %v1723 = vrot.slane %v1722, 4
        %v1725 = vshll.u32 %v345, 16
        %v1727 = vrot.slane %v1725, 5
        %v1728 = vsel %vm374, %v1723, %v1727
        %v1729 = vshrl.u32 %v345, 16
        %v1731 = vrot.slane %v1729, 4
        %v1732 = vor.u32 %v1731, %v1727
        %v1733 = vrot.slane %v1732, 4
        %v1735 = vshll.u32 %v346, 16
        %v1737 = vrot.slane %v1735, 5
        %v1738 = vsel %vm374, %v1733, %v1737
        %v1740 = vshrl.u32 %v347, 16
        %v1742 = vrot.slane %v1740, 4
        %v1743 = vshll.u32 %v347, 16
        %v1745 = vrot.slane %v1743, 5
        %v1746 = vor.u32 %v1742, %v1745
        %v1747 = vrot.slane %v1746, 4
        %v1749 = vshll.u32 %v348, 16
        %v1751 = vrot.slane %v1749, 5
        %v1752 = vsel %vm374, %v1747, %v1751
        %v1753 = vshrl.u32 %v348, 16
        %v1755 = vrot.slane %v1753, 4
        %v1756 = vor.u32 %v1755, %v1751
        %v1757 = vrot.slane %v1756, 4
        %v1759 = vshll.u32 %v349, 16
        %v1761 = vrot.slane %v1759, 5
        %v1762 = vsel %vm374, %v1757, %v1761
        %v1763 = vshrl.u32 %v349, 16
        %v1765 = vrot.slane %v1763, 4
        %v1766 = vor.u32 %v1765, %v1761
        %v1767 = vrot.slane %v1766, 4
        %v1769 = vshll.u32 %v350, 16
        %v1771 = vrot.slane %v1769, 5
        %v1772 = vsel %vm374, %v1767, %v1771
        %v1773 = vshrl.u32 %v350, 16
        %v1775 = vrot.slane %v1773, 4
        %v1776 = vor.u32 %v1775, %v1771
        %v1777 = vrot.slane %v1776, 4
        %v1779 = vshll.u32 %v351, 16
        %v1781 = vrot.slane %v1779, 5
        %v1782 = vsel %vm374, %v1777, %v1781
        %v1783 = vunpack.c.l.b16 %v388
        %v1784 = vunpack.c.l.b16 %v398
        %v1785 = vunpack.c.l.b16 %v408
        %v1786 = vunpack.c.l.b16 %v418
        %v1787 = vunpack.c.l.b16 %v432
        %v1788 = vunpack.c.l.b16 %v442
        %v1789 = vunpack.c.l.b16 %v452
        %v1790 = vunpack.c.l.b16 %v462
        %v1791 = vunpack.c.l.b16 %v476
        %v1792 = vunpack.c.l.b16 %v486
        %v1793 = vunpack.c.l.b16 %v496
        %v1794 = vunpack.c.l.b16 %v506
        %v1795 = vunpack.c.l.b16 %v520
        %v1796 = vunpack.c.l.b16 %v530
        %v1797 = vunpack.c.l.b16 %v540
        %v1798 = vunpack.c.l.b16 %v550
        %v1799 = vunpack.c.l.b16 %v564
        %v1800 = vunpack.c.l.b16 %v574
        %v1801 = vunpack.c.l.b16 %v584
        %v1802 = vunpack.c.l.b16 %v594
        %v1803 = vunpack.c.l.b16 %v608
        %v1804 = vunpack.c.l.b16 %v618
        %v1805 = vunpack.c.l.b16 %v628
        %v1806 = vunpack.c.l.b16 %v638
        %v1807 = vunpack.c.l.b16 %v652
        %v1808 = vunpack.c.l.b16 %v662
        %v1809 = vunpack.c.l.b16 %v672
        %v1810 = vunpack.c.l.b16 %v682
        %v1811 = vunpack.c.l.b16 %v696
        %v1812 = vunpack.c.l.b16 %v706
        %v1813 = vunpack.c.l.b16 %v716
        %v1814 = vunpack.c.l.b16 %v726
        %v1815 = vunpack.c.l.b16 %v740
        %v1816 = vunpack.c.l.b16 %v750
        %v1817 = vunpack.c.l.b16 %v760
        %v1818 = vunpack.c.l.b16 %v770
        %v1819 = vunpack.c.l.b16 %v784
        %v1820 = vunpack.c.l.b16 %v794
        %v1821 = vunpack.c.l.b16 %v804
        %v1822 = vunpack.c.l.b16 %v814
        %v1823 = vunpack.c.l.b16 %v828
        %v1824 = vunpack.c.l.b16 %v838
        %v1825 = vunpack.c.l.b16 %v848
        %v1826 = vunpack.c.l.b16 %v858
        %v1827 = vunpack.c.l.b16 %v872
        %v1828 = vunpack.c.l.b16 %v882
        %v1829 = vunpack.c.l.b16 %v892
        %v1830 = vunpack.c.l.b16 %v902
        %v1831 = vunpack.c.l.b16 %v916
        %v1832 = vunpack.c.l.b16 %v926
        %v1833 = vunpack.c.l.b16 %v936
        %v1834 = vunpack.c.l.b16 %v946
        %v1835 = vunpack.c.l.b16 %v960
        %v1836 = vunpack.c.l.b16 %v970
        %v1837 = vunpack.c.l.b16 %v980
        %v1838 = vunpack.c.l.b16 %v990
        %v1839 = vunpack.c.l.b16 %v1004
        %v1840 = vunpack.c.l.b16 %v1014
        %v1841 = vunpack.c.l.b16 %v1024
        %v1842 = vunpack.c.l.b16 %v1034
        %v1843 = vunpack.c.l.b16 %v1048
        %v1844 = vunpack.c.l.b16 %v1058
        %v1845 = vunpack.c.l.b16 %v1068
        %v1846 = vunpack.c.l.b16 %v1078
        %v1847 = vunpack.c.l.b16 %v1092
        %v1848 = vunpack.c.l.b16 %v1102
        %v1849 = vunpack.c.l.b16 %v1112
        %v1850 = vunpack.c.l.b16 %v1122
        %v1851 = vunpack.c.l.b16 %v1136
        %v1852 = vunpack.c.l.b16 %v1146
        %v1853 = vunpack.c.l.b16 %v1156
        %v1854 = vunpack.c.l.b16 %v1166
        %v1855 = vunpack.c.l.b16 %v1180
        %v1856 = vunpack.c.l.b16 %v1190
        %v1857 = vunpack.c.l.b16 %v1200
        %v1858 = vunpack.c.l.b16 %v1210
        %v1859 = vunpack.c.l.b16 %v1224
        %v1860 = vunpack.c.l.b16 %v1234
        %v1861 = vunpack.c.l.b16 %v1244
        %v1862 = vunpack.c.l.b16 %v1254
        %v1863 = vunpack.c.l.b16 %v1268
        %v1864 = vunpack.c.l.b16 %v1278
        %v1865 = vunpack.c.l.b16 %v1288
        %v1866 = vunpack.c.l.b16 %v1298
        %v1867 = vunpack.c.l.b16 %v1312
        %v1868 = vunpack.c.l.b16 %v1322
        %v1869 = vunpack.c.l.b16 %v1332
        %v1870 = vunpack.c.l.b16 %v1342
        %v1871 = vunpack.c.l.b16 %v1356
        %v1872 = vunpack.c.l.b16 %v1366
        %v1873 = vunpack.c.l.b16 %v1376
        %v1874 = vunpack.c.l.b16 %v1386
        %v1875 = vunpack.c.l.b16 %v1400
        %v1876 = vunpack.c.l.b16 %v1410
        %v1877 = vunpack.c.l.b16 %v1420
        %v1878 = vunpack.c.l.b16 %v1430
        %v1879 = vunpack.c.l.b16 %v1444
        %v1880 = vunpack.c.l.b16 %v1454
        %v1881 = vunpack.c.l.b16 %v1464
        %v1882 = vunpack.c.l.b16 %v1474
        %v1883 = vunpack.c.l.b16 %v1488
        %v1884 = vunpack.c.l.b16 %v1498
        %v1885 = vunpack.c.l.b16 %v1508
        %v1886 = vunpack.c.l.b16 %v1518
        %v1887 = vunpack.c.l.b16 %v1532
        %v1888 = vunpack.c.l.b16 %v1542
        %v1889 = vunpack.c.l.b16 %v1552
        %v1890 = vunpack.c.l.b16 %v1562
        %v1891 = vunpack.c.l.b16 %v1576
        %v1892 = vunpack.c.l.b16 %v1586
        %v1893 = vunpack.c.l.b16 %v1596
        %v1894 = vunpack.c.l.b16 %v1606
        %v1895 = vunpack.c.l.b16 %v1620
        %v1896 = vunpack.c.l.b16 %v1630
        %v1897 = vunpack.c.l.b16 %v1640
        %v1898 = vunpack.c.l.b16 %v1650
        %v1899 = vunpack.c.l.b16 %v1664
        %v1900 = vunpack.c.l.b16 %v1674
        %v1901 = vunpack.c.l.b16 %v1684
        %v1902 = vunpack.c.l.b16 %v1694
        %v1903 = vunpack.c.l.b16 %v1708
        %v1904 = vunpack.c.l.b16 %v1718
        %v1905 = vunpack.c.l.b16 %v1728
        %v1906 = vunpack.c.l.b16 %v1738
        %v1907 = vunpack.c.l.b16 %v1752
        %v1908 = vunpack.c.l.b16 %v1762
        %v1909 = vunpack.c.l.b16 %v1772
        %v1910 = vunpack.c.l.b16 %v1782
        %v1911 = vpack.c.b16 %v1784, %v1783
        %v1912 = vpack.c.b16 %v1786, %v1785
        %v1913 = vpack.c.b16 %v1788, %v1787
        %v1914 = vpack.c.b16 %v1790, %v1789
        %v1915 = vpack.c.b16 %v1792, %v1791
        %v1916 = vpack.c.b16 %v1794, %v1793
        %v1917 = vpack.c.b16 %v1796, %v1795
        %v1918 = vpack.c.b16 %v1798, %v1797
        %v1919 = vpack.c.b16 %v1800, %v1799
        %v1920 = vpack.c.b16 %v1802, %v1801
        %v1921 = vpack.c.b16 %v1804, %v1803
        %v1922 = vpack.c.b16 %v1806, %v1805
        %v1923 = vpack.c.b16 %v1808, %v1807
        %v1924 = vpack.c.b16 %v1810, %v1809
        %v1925 = vpack.c.b16 %v1812, %v1811
        %v1926 = vpack.c.b16 %v1814, %v1813
        %v1927 = vpack.c.b16 %v1816, %v1815
        %v1928 = vpack.c.b16 %v1818, %v1817
        %v1929 = vpack.c.b16 %v1820, %v1819
        %v1930 = vpack.c.b16 %v1822, %v1821
        %v1931 = vpack.c.b16 %v1824, %v1823
        %v1932 = vpack.c.b16 %v1826, %v1825
        %v1933 = vpack.c.b16 %v1828, %v1827
        %v1934 = vpack.c.b16 %v1830, %v1829
        %v1935 = vpack.c.b16 %v1832, %v1831
        %v1936 = vpack.c.b16 %v1834, %v1833
        %v1937 = vpack.c.b16 %v1836, %v1835
        %v1938 = vpack.c.b16 %v1838, %v1837
        %v1939 = vpack.c.b16 %v1840, %v1839
        %v1940 = vpack.c.b16 %v1842, %v1841
        %v1941 = vpack.c.b16 %v1844, %v1843
        %v1942 = vpack.c.b16 %v1846, %v1845
        %v1943 = vpack.c.b16 %v1848, %v1847
        %v1944 = vpack.c.b16 %v1850, %v1849
        %v1945 = vpack.c.b16 %v1852, %v1851
        %v1946 = vpack.c.b16 %v1854, %v1853
        %v1947 = vpack.c.b16 %v1856, %v1855
        %v1948 = vpack.c.b16 %v1858, %v1857
        %v1949 = vpack.c.b16 %v1860, %v1859
        %v1950 = vpack.c.b16 %v1862, %v1861
        %v1951 = vpack.c.b16 %v1864, %v1863
        %v1952 = vpack.c.b16 %v1866, %v1865
        %v1953 = vpack.c.b16 %v1868, %v1867
        %v1954 = vpack.c.b16 %v1870, %v1869
        %v1955 = vpack.c.b16 %v1872, %v1871
        %v1956 = vpack.c.b16 %v1874, %v1873
        %v1957 = vpack.c.b16 %v1876, %v1875
        %v1958 = vpack.c.b16 %v1878, %v1877
        %v1959 = vpack.c.b16 %v1880, %v1879
        %v1960 = vpack.c.b16 %v1882, %v1881
        %v1961 = vpack.c.b16 %v1884, %v1883
        %v1962 = vpack.c.b16 %v1886, %v1885
        %v1963 = vpack.c.b16 %v1888, %v1887
        %v1964 = vpack.c.b16 %v1890, %v1889
        %v1965 = vpack.c.b16 %v1892, %v1891
        %v1966 = vpack.c.b16 %v1894, %v1893
        %v1967 = vpack.c.b16 %v1896, %v1895
        %v1968 = vpack.c.b16 %v1898, %v1897
        %v1969 = vpack.c.b16 %v1900, %v1899
        %v1970 = vpack.c.b16 %v1902, %v1901
        %v1971 = vpack.c.b16 %v1904, %v1903
        %v1972 = vpack.c.b16 %v1906, %v1905
        %v1973 = vpack.c.b16 %v1908, %v1907
        %v1974 = vpack.c.b16 %v1910, %v1909
        %vm1975 = vcmask 64512
        %v1977 = vsel %vm1975, %v1911, 0
        %v1980 = vsel %vm1975, %v1912, 0
        %v1983 = vsel %vm1975, %v1913, 0
        %v1986 = vsel %vm1975, %v1914, 0
        %v1989 = vsel %vm1975, %v1915, 0
        %v1992 = vsel %vm1975, %v1916, 0
        %v1995 = vsel %vm1975, %v1917, 0
        %v1998 = vsel %vm1975, %v1918, 0
        %v2001 = vsel %vm1975, %v1919, 0
        %v2004 = vsel %vm1975, %v1920, 0
        %v2007 = vsel %vm1975, %v1921, 0
        %v2010 = vsel %vm1975, %v1922, 0
        %v2013 = vsel %vm1975, %v1923, 0
        %v2016 = vsel %vm1975, %v1924, 0
        %v2019 = vsel %vm1975, %v1925, 0
        %v2022 = vsel %vm1975, %v1926, 0
        %v2025 = vsel %vm1975, %v1927, 0
        %v2028 = vsel %vm1975, %v1928, 0
        %v2031 = vsel %vm1975, %v1929, 0
        %v2034 = vsel %vm1975, %v1930, 0
        %v2037 = vsel %vm1975, %v1931, 0
        %v2040 = vsel %vm1975, %v1932, 0
        %v2043 = vsel %vm1975, %v1933, 0
        %v2046 = vsel %vm1975, %v1934, 0
        %v2049 = vsel %vm1975, %v1935, 0
        %v2052 = vsel %vm1975, %v1936, 0
        %v2055 = vsel %vm1975, %v1937, 0
        %v2058 = vsel %vm1975, %v1938, 0
        %v2061 = vsel %vm1975, %v1939, 0
        %v2064 = vsel %vm1975, %v1940, 0
        %v2067 = vsel %vm1975, %v1941, 0
        %v2070 = vsel %vm1975, %v1942, 0
        %v2073 = vsel %vm1975, %v1943, 0
        %v2076 = vsel %vm1975, %v1944, 0
        %v2079 = vsel %vm1975, %v1945, 0
        %v2082 = vsel %vm1975, %v1946, 0
        %v2085 = vsel %vm1975, %v1947, 0
        %v2088 = vsel %vm1975, %v1948, 0
        %v2091 = vsel %vm1975, %v1949, 0
        %v2094 = vsel %vm1975, %v1950, 0
        %v2097 = vsel %vm1975, %v1951, 0
        %v2100 = vsel %vm1975, %v1952, 0
        %v2103 = vsel %vm1975, %v1953, 0
        %v2106 = vsel %vm1975, %v1954, 0
        %v2109 = vsel %vm1975, %v1955, 0
        %v2112 = vsel %vm1975, %v1956, 0
        %v2115 = vsel %vm1975, %v1957, 0
        %v2118 = vsel %vm1975, %v1958, 0
        %v2121 = vsel %vm1975, %v1959, 0
        %v2124 = vsel %vm1975, %v1960, 0
        %v2127 = vsel %vm1975, %v1961, 0
        %v2130 = vsel %vm1975, %v1962, 0
        %v2133 = vsel %vm1975, %v1963, 0
        %v2136 = vsel %vm1975, %v1964, 0
        %v2139 = vsel %vm1975, %v1965, 0
        %v2142 = vsel %vm1975, %v1966, 0
        %v2145 = vsel %vm1975, %v1967, 0
        %v2148 = vsel %vm1975, %v1968, 0
        %v2151 = vsel %vm1975, %v1969, 0
        %v2154 = vsel %vm1975, %v1970, 0
        %v2157 = vsel %vm1975, %v1971, 0
        %v2160 = vsel %vm1975, %v1972, 0
        %v2163 = vsel %vm1975, %v1973, 0
        %v2166 = vsel %vm1975, %v1974, 0
        %vm2168 = vcmask 1043456
        %v2170 = vsel %vm2168, %v363, 0
        %2172 = vmatprep.subr.bf16.mxu0 0
        %2173 = vmatpush1.bf16.msra.mxu0 0
        %2174 = vmatprep.subr.bf16.mxu0 0
        %2175 = vmatpush1.bf16.msra.mxu0 0
        %2176 = vmatprep.subr.bf16.mxu0 0
        %2177 = vmatpush1.bf16.msra.mxu0 0
        %2178 = vmatprep.subr.bf16.mxu0 0
        %2179 = vmatpush1.bf16.msra.mxu0 0
        %2180 = vmatprep.subr.bf16.mxu0 0
        %2181 = vmatpush1.bf16.msra.mxu0 0
        %2182 = vmatprep.subr.bf16.mxu0 0
        %2183 = vmatpush1.bf16.msra.mxu0 0
        %2184 = vmatprep.subr.bf16.mxu0 0
        %2185 = vmatpush1.bf16.msra.mxu0 0
        %2186 = vmatprep.subr.bf16.mxu0 0
        %2187 = vmatpush1.bf16.msra.mxu0 %v2170
        %2188 = vmatprep.subr.bf16.mxu0 0
        %2189 = vmatpush2.bf16.msra.mxu0 0
        %2190 = vmatprep.subr.bf16.mxu0 0
        %2191 = vmatpush2.bf16.msra.mxu0 0
        %2192 = vmatprep.subr.bf16.mxu0 0
        %2193 = vmatpush2.bf16.msra.mxu0 0
        %2194 = vmatprep.subr.bf16.mxu0 0
        %2195 = vmatpush2.bf16.msra.mxu0 0
        %2196 = vmatprep.subr.bf16.mxu0 0
        %2197 = vmatpush2.bf16.msra.mxu0 0
        %2198 = vmatprep.subr.bf16.mxu0 0
        %2199 = vmatpush2.bf16.msra.mxu0 0
        %2200 = vmatprep.subr.bf16.mxu0 0
        %2201 = vmatpush2.bf16.msra.mxu0 0
        %2202 = vmatprep.subr.bf16.mxu0 0
        %2203 = vmatpush2.bf16.msra.mxu0 0
        %2204 = vmatprep.mubr.bf16.mxu0 0
        %2205 = vmatmul.mubr.bf16.gmra.mxu0 %v1977
        %v2206 = vpop.f32.mrf.mxu0
        %v2207 = vadd.f32 0.0, %v2206
        %v2208 = vpop.f32.mrf.mxu0
        %v2209 = vpop.f32.mrf.mxu0
        %v2210 = vadd.f32 0.0, %v2209
        %v2211 = vpop.f32.mrf.mxu0
        %2212 = vmatprep.mubr.bf16.mxu0 0
        %2213 = vmatmul.mubr.bf16.gmra.mxu0 %v1980
        %v2214 = vpop.f32.mrf.mxu0
        %v2215 = vadd.f32 0.0, %v2214
        %v2216 = vpop.f32.mrf.mxu0
        %v2217 = vpop.f32.mrf.mxu0
        %v2218 = vadd.f32 0.0, %v2217
        %v2219 = vpop.f32.mrf.mxu0
        %2220 = vmatprep.mubr.bf16.mxu0 0
        %2221 = vmatmul.mubr.bf16.gmra.mxu0 %v1983
        %v2222 = vpop.f32.mrf.mxu0
        %v2223 = vadd.f32 0.0, %v2222
        %v2224 = vpop.f32.mrf.mxu0
        %v2225 = vpop.f32.mrf.mxu0
        %v2226 = vadd.f32 0.0, %v2225
        %v2227 = vpop.f32.mrf.mxu0
        %2228 = vmatprep.mubr.bf16.mxu0 0
        %2229 = vmatmul.mubr.bf16.gmra.mxu0 %v1986
        %v2230 = vpop.f32.mrf.mxu0
        %v2231 = vadd.f32 0.0, %v2230
        %v2232 = vpop.f32.mrf.mxu0
        %v2233 = vpop.f32.mrf.mxu0
        %v2234 = vadd.f32 0.0, %v2233
        %v2235 = vpop.f32.mrf.mxu0
        %2236 = vmatprep.mubr.bf16.mxu0 0
        %2237 = vmatmul.mubr.bf16.gmra.mxu0 %v1989
        %v2238 = vpop.f32.mrf.mxu0
        %v2239 = vadd.f32 0.0, %v2238
        %v2240 = vpop.f32.mrf.mxu0
        %v2241 = vpop.f32.mrf.mxu0
        %v2242 = vadd.f32 0.0, %v2241
        %v2243 = vpop.f32.mrf.mxu0
        %2244 = vmatprep.mubr.bf16.mxu0 0
        %2245 = vmatmul.mubr.bf16.gmra.mxu0 %v1992
        %v2246 = vpop.f32.mrf.mxu0
        %v2247 = vadd.f32 0.0, %v2246
        %v2248 = vpop.f32.mrf.mxu0
        %v2249 = vpop.f32.mrf.mxu0
        %v2250 = vadd.f32 0.0, %v2249
        %v2251 = vpop.f32.mrf.mxu0
        %2252 = vmatprep.mubr.bf16.mxu0 0
        %2253 = vmatmul.mubr.bf16.gmra.mxu0 %v1995
        %v2254 = vpop.f32.mrf.mxu0
        %v2255 = vadd.f32 0.0, %v2254
        %v2256 = vpop.f32.mrf.mxu0
        %v2257 = vpop.f32.mrf.mxu0
        %v2258 = vadd.f32 0.0, %v2257
        %v2259 = vpop.f32.mrf.mxu0
        %2260 = vmatprep.mubr.bf16.mxu0 0
        %2261 = vmatmul.mubr.bf16.gmra.mxu0 %v1998
        %v2262 = vpop.f32.mrf.mxu0
        %v2263 = vadd.f32 0.0, %v2262
        %v2264 = vpop.f32.mrf.mxu0
        %v2265 = vpop.f32.mrf.mxu0
        %v2266 = vadd.f32 0.0, %v2265
        %v2267 = vpop.f32.mrf.mxu0
        %2268 = vmatprep.mubr.bf16.mxu0 0
        %2269 = vmatmul.mubr.bf16.gmra.mxu0 %v2001
        %v2270 = vpop.f32.mrf.mxu0
        %v2271 = vadd.f32 0.0, %v2270
        %v2272 = vpop.f32.mrf.mxu0
        %v2273 = vpop.f32.mrf.mxu0
        %v2274 = vadd.f32 0.0, %v2273
        %v2275 = vpop.f32.mrf.mxu0
        %2276 = vmatprep.mubr.bf16.mxu0 0
        %2277 = vmatmul.mubr.bf16.gmra.mxu0 %v2004
        %v2278 = vpop.f32.mrf.mxu0
        %v2279 = vadd.f32 0.0, %v2278
        %v2280 = vpop.f32.mrf.mxu0
        %v2281 = vpop.f32.mrf.mxu0
        %v2282 = vadd.f32 0.0, %v2281
        %v2283 = vpop.f32.mrf.mxu0
        %2284 = vmatprep.mubr.bf16.mxu0 0
        %2285 = vmatmul.mubr.bf16.gmra.mxu0 %v2007
        %v2286 = vpop.f32.mrf.mxu0
        %v2287 = vadd.f32 0.0, %v2286
        %v2288 = vpop.f32.mrf.mxu0
        %v2289 = vpop.f32.mrf.mxu0
        %v2290 = vadd.f32 0.0, %v2289
        %v2291 = vpop.f32.mrf.mxu0
        %2292 = vmatprep.mubr.bf16.mxu0 0
        %2293 = vmatmul.mubr.bf16.gmra.mxu0 %v2010
        %v2294 = vpop.f32.mrf.mxu0
        %v2295 = vadd.f32 0.0, %v2294
        %v2296 = vpop.f32.mrf.mxu0
        %v2297 = vpop.f32.mrf.mxu0
        %v2298 = vadd.f32 0.0, %v2297
        %v2299 = vpop.f32.mrf.mxu0
        %2300 = vmatprep.mubr.bf16.mxu0 0
        %2301 = vmatmul.mubr.bf16.gmra.mxu0 %v2013
        %v2302 = vpop.f32.mrf.mxu0
        %v2303 = vadd.f32 0.0, %v2302
        %v2304 = vpop.f32.mrf.mxu0
        %v2305 = vpop.f32.mrf.mxu0
        %v2306 = vadd.f32 0.0, %v2305
        %v2307 = vpop.f32.mrf.mxu0
        %2308 = vmatprep.mubr.bf16.mxu0 0
        %2309 = vmatmul.mubr.bf16.gmra.mxu0 %v2016
        %v2310 = vpop.f32.mrf.mxu0
        %v2311 = vadd.f32 0.0, %v2310
        %v2312 = vpop.f32.mrf.mxu0
        %v2313 = vpop.f32.mrf.mxu0
        %v2314 = vadd.f32 0.0, %v2313
        %v2315 = vpop.f32.mrf.mxu0
        %2316 = vmatprep.mubr.bf16.mxu0 0
        %2317 = vmatmul.mubr.bf16.gmra.mxu0 %v2019
        %v2318 = vpop.f32.mrf.mxu0
        %v2319 = vadd.f32 0.0, %v2318
        %v2320 = vpop.f32.mrf.mxu0
        %v2321 = vpop.f32.mrf.mxu0
        %v2322 = vadd.f32 0.0, %v2321
        %v2323 = vpop.f32.mrf.mxu0
        %2324 = vmatprep.mubr.bf16.mxu0 0
        %2325 = vmatmul.mubr.bf16.gmra.mxu0 %v2022
        %v2326 = vpop.f32.mrf.mxu0
        %v2327 = vadd.f32 0.0, %v2326
        %v2328 = vpop.f32.mrf.mxu0
        %v2329 = vpop.f32.mrf.mxu0
        %v2330 = vadd.f32 0.0, %v2329
        %v2331 = vpop.f32.mrf.mxu0
        %2332 = vmatprep.mubr.bf16.mxu0 0
        %2333 = vmatmul.mubr.bf16.gmra.mxu0 %v2025
        %v2334 = vpop.f32.mrf.mxu0
        %v2335 = vadd.f32 0.0, %v2334
        %v2336 = vpop.f32.mrf.mxu0
        %v2337 = vpop.f32.mrf.mxu0
        %v2338 = vadd.f32 0.0, %v2337
        %v2339 = vpop.f32.mrf.mxu0
        %2340 = vmatprep.mubr.bf16.mxu0 0
        %2341 = vmatmul.mubr.bf16.gmra.mxu0 %v2028
        %v2342 = vpop.f32.mrf.mxu0
        %v2343 = vadd.f32 0.0, %v2342
        %v2344 = vpop.f32.mrf.mxu0
        %v2345 = vpop.f32.mrf.mxu0
        %v2346 = vadd.f32 0.0, %v2345
        %v2347 = vpop.f32.mrf.mxu0
        %2348 = vmatprep.mubr.bf16.mxu0 0
        %2349 = vmatmul.mubr.bf16.gmra.mxu0 %v2031
        %v2350 = vpop.f32.mrf.mxu0
        %v2351 = vadd.f32 0.0, %v2350
        %v2352 = vpop.f32.mrf.mxu0
        %v2353 = vpop.f32.mrf.mxu0
        %v2354 = vadd.f32 0.0, %v2353
        %v2355 = vpop.f32.mrf.mxu0
        %2356 = vmatprep.mubr.bf16.mxu0 0
        %2357 = vmatmul.mubr.bf16.gmra.mxu0 %v2034
        %v2358 = vpop.f32.mrf.mxu0
        %v2359 = vadd.f32 0.0, %v2358
        %v2360 = vpop.f32.mrf.mxu0
        %v2361 = vpop.f32.mrf.mxu0
        %v2362 = vadd.f32 0.0, %v2361
        %v2363 = vpop.f32.mrf.mxu0
        %2364 = vmatprep.mubr.bf16.mxu0 0
        %2365 = vmatmul.mubr.bf16.gmra.mxu0 %v2037
        %v2366 = vpop.f32.mrf.mxu0
        %v2367 = vadd.f32 0.0, %v2366
        %v2368 = vpop.f32.mrf.mxu0
        %v2369 = vpop.f32.mrf.mxu0
        %v2370 = vadd.f32 0.0, %v2369
        %v2371 = vpop.f32.mrf.mxu0
        %2372 = vmatprep.mubr.bf16.mxu0 0
        %2373 = vmatmul.mubr.bf16.gmra.mxu0 %v2040
        %v2374 = vpop.f32.mrf.mxu0
        %v2375 = vadd.f32 0.0, %v2374
        %v2376 = vpop.f32.mrf.mxu0
        %v2377 = vpop.f32.mrf.mxu0
        %v2378 = vadd.f32 0.0, %v2377
        %v2379 = vpop.f32.mrf.mxu0
        %2380 = vmatprep.mubr.bf16.mxu0 0
        %2381 = vmatmul.mubr.bf16.gmra.mxu0 %v2043
        %v2382 = vpop.f32.mrf.mxu0
        %v2383 = vadd.f32 0.0, %v2382
        %v2384 = vpop.f32.mrf.mxu0
        %v2385 = vpop.f32.mrf.mxu0
        %v2386 = vadd.f32 0.0, %v2385
        %v2387 = vpop.f32.mrf.mxu0
        %2388 = vmatprep.mubr.bf16.mxu0 0
        %2389 = vmatmul.mubr.bf16.gmra.mxu0 %v2046
        %v2390 = vpop.f32.mrf.mxu0
        %v2391 = vadd.f32 0.0, %v2390
        %v2392 = vpop.f32.mrf.mxu0
        %v2393 = vpop.f32.mrf.mxu0
        %v2394 = vadd.f32 0.0, %v2393
        %v2395 = vpop.f32.mrf.mxu0
        %2396 = vmatprep.mubr.bf16.mxu0 0
        %2397 = vmatmul.mubr.bf16.gmra.mxu0 %v2049
        %v2398 = vpop.f32.mrf.mxu0
        %v2399 = vadd.f32 0.0, %v2398
        %v2400 = vpop.f32.mrf.mxu0
        %v2401 = vpop.f32.mrf.mxu0
        %v2402 = vadd.f32 0.0, %v2401
        %v2403 = vpop.f32.mrf.mxu0
        %2404 = vmatprep.mubr.bf16.mxu0 0
        %2405 = vmatmul.mubr.bf16.gmra.mxu0 %v2052
        %v2406 = vpop.f32.mrf.mxu0
        %v2407 = vadd.f32 0.0, %v2406
        %v2408 = vpop.f32.mrf.mxu0
        %v2409 = vpop.f32.mrf.mxu0
        %v2410 = vadd.f32 0.0, %v2409
        %v2411 = vpop.f32.mrf.mxu0
        %2412 = vmatprep.mubr.bf16.mxu0 0
        %2413 = vmatmul.mubr.bf16.gmra.mxu0 %v2055
        %v2414 = vpop.f32.mrf.mxu0
        %v2415 = vadd.f32 0.0, %v2414
        %v2416 = vpop.f32.mrf.mxu0
        %v2417 = vpop.f32.mrf.mxu0
        %v2418 = vadd.f32 0.0, %v2417
        %v2419 = vpop.f32.mrf.mxu0
        %2420 = vmatprep.mubr.bf16.mxu0 0
        %2421 = vmatmul.mubr.bf16.gmra.mxu0 %v2058
        %v2422 = vpop.f32.mrf.mxu0
        %v2423 = vadd.f32 0.0, %v2422
        %v2424 = vpop.f32.mrf.mxu0
        %v2425 = vpop.f32.mrf.mxu0
        %v2426 = vadd.f32 0.0, %v2425
        %v2427 = vpop.f32.mrf.mxu0
        %2428 = vmatprep.mubr.bf16.mxu0 0
        %2429 = vmatmul.mubr.bf16.gmra.mxu0 %v2061
        %v2430 = vpop.f32.mrf.mxu0
        %v2431 = vadd.f32 0.0, %v2430
        %v2432 = vpop.f32.mrf.mxu0
        %v2433 = vpop.f32.mrf.mxu0
        %v2434 = vadd.f32 0.0, %v2433
        %v2435 = vpop.f32.mrf.mxu0
        %2436 = vmatprep.mubr.bf16.mxu0 0
        %2437 = vmatmul.mubr.bf16.gmra.mxu0 %v2064
        %v2438 = vpop.f32.mrf.mxu0
        %v2439 = vadd.f32 0.0, %v2438
        %v2440 = vpop.f32.mrf.mxu0
        %v2441 = vpop.f32.mrf.mxu0
        %v2442 = vadd.f32 0.0, %v2441
        %v2443 = vpop.f32.mrf.mxu0
        %2444 = vmatprep.mubr.bf16.mxu0 0
        %2445 = vmatmul.mubr.bf16.gmra.mxu0 %v2067
        %v2446 = vpop.f32.mrf.mxu0
        %v2447 = vadd.f32 0.0, %v2446
        %v2448 = vpop.f32.mrf.mxu0
        %v2449 = vpop.f32.mrf.mxu0
        %v2450 = vadd.f32 0.0, %v2449
        %v2451 = vpop.f32.mrf.mxu0
        %2452 = vmatprep.mubr.bf16.mxu0 0
        %2453 = vmatmul.mubr.bf16.gmra.mxu0 %v2070
        %v2454 = vpop.f32.mrf.mxu0
        %v2455 = vadd.f32 0.0, %v2454
        %v2456 = vpop.f32.mrf.mxu0
        %v2457 = vpop.f32.mrf.mxu0
        %v2458 = vadd.f32 0.0, %v2457
        %v2459 = vpop.f32.mrf.mxu0
        %2460 = vmatprep.mubr.bf16.mxu0 0
        %2461 = vmatmul.mubr.bf16.gmra.mxu0 %v2073
        %v2462 = vpop.f32.mrf.mxu0
        %v2463 = vadd.f32 0.0, %v2462
        %v2464 = vpop.f32.mrf.mxu0
        %v2465 = vpop.f32.mrf.mxu0
        %v2466 = vadd.f32 0.0, %v2465
        %v2467 = vpop.f32.mrf.mxu0
        %2468 = vmatprep.mubr.bf16.mxu0 0
        %2469 = vmatmul.mubr.bf16.gmra.mxu0 %v2076
        %v2470 = vpop.f32.mrf.mxu0
        %v2471 = vadd.f32 0.0, %v2470
        %v2472 = vpop.f32.mrf.mxu0
        %v2473 = vpop.f32.mrf.mxu0
        %v2474 = vadd.f32 0.0, %v2473
        %v2475 = vpop.f32.mrf.mxu0
        %2476 = vmatprep.mubr.bf16.mxu0 0
        %2477 = vmatmul.mubr.bf16.gmra.mxu0 %v2079
        %v2478 = vpop.f32.mrf.mxu0
        %v2479 = vadd.f32 0.0, %v2478
        %v2480 = vpop.f32.mrf.mxu0
        %v2481 = vpop.f32.mrf.mxu0
        %v2482 = vadd.f32 0.0, %v2481
        %v2483 = vpop.f32.mrf.mxu0
        %2484 = vmatprep.mubr.bf16.mxu0 0
        %2485 = vmatmul.mubr.bf16.gmra.mxu0 %v2082
        %v2486 = vpop.f32.mrf.mxu0
        %v2487 = vadd.f32 0.0, %v2486
        %v2488 = vpop.f32.mrf.mxu0
        %v2489 = vpop.f32.mrf.mxu0
        %v2490 = vadd.f32 0.0, %v2489
        %v2491 = vpop.f32.mrf.mxu0
        %2492 = vmatprep.mubr.bf16.mxu0 0
        %2493 = vmatmul.mubr.bf16.gmra.mxu0 %v2085
        %v2494 = vpop.f32.mrf.mxu0
        %v2495 = vadd.f32 0.0, %v2494
        %v2496 = vpop.f32.mrf.mxu0
        %v2497 = vpop.f32.mrf.mxu0
        %v2498 = vadd.f32 0.0, %v2497
        %v2499 = vpop.f32.mrf.mxu0
        %2500 = vmatprep.mubr.bf16.mxu0 0
        %2501 = vmatmul.mubr.bf16.gmra.mxu0 %v2088
        %v2502 = vpop.f32.mrf.mxu0
        %v2503 = vadd.f32 0.0, %v2502
        %v2504 = vpop.f32.mrf.mxu0
        %v2505 = vpop.f32.mrf.mxu0
        %v2506 = vadd.f32 0.0, %v2505
        %v2507 = vpop.f32.mrf.mxu0
        %2508 = vmatprep.mubr.bf16.mxu0 0
        %2509 = vmatmul.mubr.bf16.gmra.mxu0 %v2091
        %v2510 = vpop.f32.mrf.mxu0
        %v2511 = vadd.f32 0.0, %v2510
        %v2512 = vpop.f32.mrf.mxu0
        %v2513 = vpop.f32.mrf.mxu0
        %v2514 = vadd.f32 0.0, %v2513
        %v2515 = vpop.f32.mrf.mxu0
        %2516 = vmatprep.mubr.bf16.mxu0 0
        %2517 = vmatmul.mubr.bf16.gmra.mxu0 %v2094
        %v2518 = vpop.f32.mrf.mxu0
        %v2519 = vadd.f32 0.0, %v2518
        %v2520 = vpop.f32.mrf.mxu0
        %v2521 = vpop.f32.mrf.mxu0
        %v2522 = vadd.f32 0.0, %v2521
        %v2523 = vpop.f32.mrf.mxu0
        %2524 = vmatprep.mubr.bf16.mxu0 0
        %2525 = vmatmul.mubr.bf16.gmra.mxu0 %v2097
        %v2526 = vpop.f32.mrf.mxu0
        %v2527 = vadd.f32 0.0, %v2526
        %v2528 = vpop.f32.mrf.mxu0
        %v2529 = vpop.f32.mrf.mxu0
        %v2530 = vadd.f32 0.0, %v2529
        %v2531 = vpop.f32.mrf.mxu0
        %2532 = vmatprep.mubr.bf16.mxu0 0
        %2533 = vmatmul.mubr.bf16.gmra.mxu0 %v2100
        %v2534 = vpop.f32.mrf.mxu0
        %v2535 = vadd.f32 0.0, %v2534
        %v2536 = vpop.f32.mrf.mxu0
        %v2537 = vpop.f32.mrf.mxu0
        %v2538 = vadd.f32 0.0, %v2537
        %v2539 = vpop.f32.mrf.mxu0
        %2540 = vmatprep.mubr.bf16.mxu0 0
        %2541 = vmatmul.mubr.bf16.gmra.mxu0 %v2103
        %v2542 = vpop.f32.mrf.mxu0
        %v2543 = vadd.f32 0.0, %v2542
        %v2544 = vpop.f32.mrf.mxu0
        %v2545 = vpop.f32.mrf.mxu0
        %v2546 = vadd.f32 0.0, %v2545
        %v2547 = vpop.f32.mrf.mxu0
        %2548 = vmatprep.mubr.bf16.mxu0 0
        %2549 = vmatmul.mubr.bf16.gmra.mxu0 %v2106
        %v2550 = vpop.f32.mrf.mxu0
        %v2551 = vadd.f32 0.0, %v2550
        %v2552 = vpop.f32.mrf.mxu0
        %v2553 = vpop.f32.mrf.mxu0
        %v2554 = vadd.f32 0.0, %v2553
        %v2555 = vpop.f32.mrf.mxu0
        %2556 = vmatprep.mubr.bf16.mxu0 0
        %2557 = vmatmul.mubr.bf16.gmra.mxu0 %v2109
        %v2558 = vpop.f32.mrf.mxu0
        %v2559 = vadd.f32 0.0, %v2558
        %v2560 = vpop.f32.mrf.mxu0
        %v2561 = vpop.f32.mrf.mxu0
        %v2562 = vadd.f32 0.0, %v2561
        %v2563 = vpop.f32.mrf.mxu0
        %2564 = vmatprep.mubr.bf16.mxu0 0
        %2565 = vmatmul.mubr.bf16.gmra.mxu0 %v2112
        %v2566 = vpop.f32.mrf.mxu0
        %v2567 = vadd.f32 0.0, %v2566
        %v2568 = vpop.f32.mrf.mxu0
        %v2569 = vpop.f32.mrf.mxu0
        %v2570 = vadd.f32 0.0, %v2569
        %v2571 = vpop.f32.mrf.mxu0
        %2572 = vmatprep.mubr.bf16.mxu0 0
        %2573 = vmatmul.mubr.bf16.gmra.mxu0 %v2115
        %v2574 = vpop.f32.mrf.mxu0
        %v2575 = vadd.f32 0.0, %v2574
        %v2576 = vpop.f32.mrf.mxu0
        %v2577 = vpop.f32.mrf.mxu0
        %v2578 = vadd.f32 0.0, %v2577
        %v2579 = vpop.f32.mrf.mxu0
        %2580 = vmatprep.mubr.bf16.mxu0 0
        %2581 = vmatmul.mubr.bf16.gmra.mxu0 %v2118
        %v2582 = vpop.f32.mrf.mxu0
        %v2583 = vadd.f32 0.0, %v2582
        %v2584 = vpop.f32.mrf.mxu0
        %v2585 = vpop.f32.mrf.mxu0
        %v2586 = vadd.f32 0.0, %v2585
        %v2587 = vpop.f32.mrf.mxu0
        %2588 = vmatprep.mubr.bf16.mxu0 0
        %2589 = vmatmul.mubr.bf16.gmra.mxu0 %v2121
        %v2590 = vpop.f32.mrf.mxu0
        %v2591 = vadd.f32 0.0, %v2590
        %v2592 = vpop.f32.mrf.mxu0
        %v2593 = vpop.f32.mrf.mxu0
        %v2594 = vadd.f32 0.0, %v2593
        %v2595 = vpop.f32.mrf.mxu0
        %2596 = vmatprep.mubr.bf16.mxu0 0
        %2597 = vmatmul.mubr.bf16.gmra.mxu0 %v2124
        %v2598 = vpop.f32.mrf.mxu0
        %v2599 = vadd.f32 0.0, %v2598
        %v2600 = vpop.f32.mrf.mxu0
        %v2601 = vpop.f32.mrf.mxu0
        %v2602 = vadd.f32 0.0, %v2601
        %v2603 = vpop.f32.mrf.mxu0
        %2604 = vmatprep.mubr.bf16.mxu0 0
        %2605 = vmatmul.mubr.bf16.gmra.mxu0 %v2127
        %v2606 = vpop.f32.mrf.mxu0
        %v2607 = vadd.f32 0.0, %v2606
        %v2608 = vpop.f32.mrf.mxu0
        %v2609 = vpop.f32.mrf.mxu0
        %v2610 = vadd.f32 0.0, %v2609
        %v2611 = vpop.f32.mrf.mxu0
        %2612 = vmatprep.mubr.bf16.mxu0 0
        %2613 = vmatmul.mubr.bf16.gmra.mxu0 %v2130
        %v2614 = vpop.f32.mrf.mxu0
        %v2615 = vadd.f32 0.0, %v2614
        %v2616 = vpop.f32.mrf.mxu0
        %v2617 = vpop.f32.mrf.mxu0
        %v2618 = vadd.f32 0.0, %v2617
        %v2619 = vpop.f32.mrf.mxu0
        %2620 = vmatprep.mubr.bf16.mxu0 0
        %2621 = vmatmul.mubr.bf16.gmra.mxu0 %v2133
        %v2622 = vpop.f32.mrf.mxu0
        %v2623 = vadd.f32 0.0, %v2622
        %v2624 = vpop.f32.mrf.mxu0
        %v2625 = vpop.f32.mrf.mxu0
        %v2626 = vadd.f32 0.0, %v2625
        %v2627 = vpop.f32.mrf.mxu0
        %2628 = vmatprep.mubr.bf16.mxu0 0
        %2629 = vmatmul.mubr.bf16.gmra.mxu0 %v2136
        %v2630 = vpop.f32.mrf.mxu0
        %v2631 = vadd.f32 0.0, %v2630
        %v2632 = vpop.f32.mrf.mxu0
        %v2633 = vpop.f32.mrf.mxu0
        %v2634 = vadd.f32 0.0, %v2633
        %v2635 = vpop.f32.mrf.mxu0
        %2636 = vmatprep.mubr.bf16.mxu0 0
        %2637 = vmatmul.mubr.bf16.gmra.mxu0 %v2139
        %v2638 = vpop.f32.mrf.mxu0
        %v2639 = vadd.f32 0.0, %v2638
        %v2640 = vpop.f32.mrf.mxu0
        %v2641 = vpop.f32.mrf.mxu0
        %v2642 = vadd.f32 0.0, %v2641
        %v2643 = vpop.f32.mrf.mxu0
        %2644 = vmatprep.mubr.bf16.mxu0 0
        %2645 = vmatmul.mubr.bf16.gmra.mxu0 %v2142
        %v2646 = vpop.f32.mrf.mxu0
        %v2647 = vadd.f32 0.0, %v2646
        %v2648 = vpop.f32.mrf.mxu0
        %v2649 = vpop.f32.mrf.mxu0
        %v2650 = vadd.f32 0.0, %v2649
        %v2651 = vpop.f32.mrf.mxu0
        %2652 = vmatprep.mubr.bf16.mxu0 0
        %2653 = vmatmul.mubr.bf16.gmra.mxu0 %v2145
        %v2654 = vpop.f32.mrf.mxu0
        %v2655 = vadd.f32 0.0, %v2654
        %v2656 = vpop.f32.mrf.mxu0
        %v2657 = vpop.f32.mrf.mxu0
        %v2658 = vadd.f32 0.0, %v2657
        %v2659 = vpop.f32.mrf.mxu0
        %2660 = vmatprep.mubr.bf16.mxu0 0
        %2661 = vmatmul.mubr.bf16.gmra.mxu0 %v2148
        %v2662 = vpop.f32.mrf.mxu0
        %v2663 = vadd.f32 0.0, %v2662
        %v2664 = vpop.f32.mrf.mxu0
        %v2665 = vpop.f32.mrf.mxu0
        %v2666 = vadd.f32 0.0, %v2665
        %v2667 = vpop.f32.mrf.mxu0
        %2668 = vmatprep.mubr.bf16.mxu0 0
        %2669 = vmatmul.mubr.bf16.gmra.mxu0 %v2151
        %v2670 = vpop.f32.mrf.mxu0
        %v2671 = vadd.f32 0.0, %v2670
        %v2672 = vpop.f32.mrf.mxu0
        %v2673 = vpop.f32.mrf.mxu0
        %v2674 = vadd.f32 0.0, %v2673
        %v2675 = vpop.f32.mrf.mxu0
        %2676 = vmatprep.mubr.bf16.mxu0 0
        %2677 = vmatmul.mubr.bf16.gmra.mxu0 %v2154
        %v2678 = vpop.f32.mrf.mxu0
        %v2679 = vadd.f32 0.0, %v2678
        %v2680 = vpop.f32.mrf.mxu0
        %v2681 = vpop.f32.mrf.mxu0
        %v2682 = vadd.f32 0.0, %v2681
        %v2683 = vpop.f32.mrf.mxu0
        %2684 = vmatprep.mubr.bf16.mxu0 0
        %2685 = vmatmul.mubr.bf16.gmra.mxu0 %v2157
        %v2686 = vpop.f32.mrf.mxu0
        %v2687 = vadd.f32 0.0, %v2686
        %v2688 = vpop.f32.mrf.mxu0
        %v2689 = vpop.f32.mrf.mxu0
        %v2690 = vadd.f32 0.0, %v2689
        %v2691 = vpop.f32.mrf.mxu0
        %2692 = vmatprep.mubr.bf16.mxu0 0
        %2693 = vmatmul.mubr.bf16.gmra.mxu0 %v2160
        %v2694 = vpop.f32.mrf.mxu0
        %v2695 = vadd.f32 0.0, %v2694
        %v2696 = vpop.f32.mrf.mxu0
        %v2697 = vpop.f32.mrf.mxu0
        %v2698 = vadd.f32 0.0, %v2697
        %v2699 = vpop.f32.mrf.mxu0
        %2700 = vmatprep.mubr.bf16.mxu0 0
        %2701 = vmatmul.mubr.bf16.gmra.mxu0 %v2163
        %v2702 = vpop.f32.mrf.mxu0
        %v2703 = vadd.f32 0.0, %v2702
        %v2704 = vpop.f32.mrf.mxu0
        %v2705 = vpop.f32.mrf.mxu0
        %v2706 = vadd.f32 0.0, %v2705
        %v2707 = vpop.f32.mrf.mxu0
        %2708 = vmatprep.mubr.bf16.mxu0 0
        %2709 = vmatmul.mubr.bf16.gmra.mxu0 %v2166
        %v2710 = vpop.f32.mrf.mxu0
        %v2711 = vadd.f32 0.0, %v2710
        %v2712 = vpop.f32.mrf.mxu0
        %v2713 = vpop.f32.mrf.mxu0
        %v2714 = vadd.f32 0.0, %v2713
        %v2715 = vpop.f32.mrf.mxu0
        %2716 = vdwg.mxu0
        %v2845 = vunpack.c.l.b16 %v192
        %v2846 = vunpack.c.l.b16 %v193
        %v2847 = vunpack.c.l.b16 %v194
        %v2848 = vunpack.c.l.b16 %v195
        %v2849 = vunpack.c.l.b16 %v197
        %v2850 = vunpack.c.l.b16 %v198
        %v2851 = vunpack.c.l.b16 %v199
        %v2852 = vunpack.c.l.b16 %v200
        %v2853 = vunpack.c.l.b16 %v202
        %v2854 = vunpack.c.l.b16 %v203
        %v2855 = vunpack.c.l.b16 %v204
        %v2856 = vunpack.c.l.b16 %v205
        %v2857 = vunpack.c.l.b16 %v207
        %v2858 = vunpack.c.l.b16 %v208
        %v2859 = vunpack.c.l.b16 %v209
        %v2860 = vunpack.c.l.b16 %v210
        %v2861 = vunpack.c.l.b16 %v212
        %v2862 = vunpack.c.l.b16 %v213
        %v2863 = vunpack.c.l.b16 %v214
        %v2864 = vunpack.c.l.b16 %v215
        %v2865 = vunpack.c.l.b16 %v217
        %v2866 = vunpack.c.l.b16 %v218
        %v2867 = vunpack.c.l.b16 %v219
        %v2868 = vunpack.c.l.b16 %v220
        %v2869 = vunpack.c.l.b16 %v222
        %v2870 = vunpack.c.l.b16 %v223
        %v2871 = vunpack.c.l.b16 %v224
        %v2872 = vunpack.c.l.b16 %v225
        %v2873 = vunpack.c.l.b16 %v227
        %v2874 = vunpack.c.l.b16 %v228
        %v2875 = vunpack.c.l.b16 %v229
        %v2876 = vunpack.c.l.b16 %v230
        %v2877 = vunpack.c.l.b16 %v232
        %v2878 = vunpack.c.l.b16 %v233
        %v2879 = vunpack.c.l.b16 %v234
        %v2880 = vunpack.c.l.b16 %v235
        %v2881 = vunpack.c.l.b16 %v237
        %v2882 = vunpack.c.l.b16 %v238
        %v2883 = vunpack.c.l.b16 %v239
        %v2884 = vunpack.c.l.b16 %v240
        %v2885 = vunpack.c.l.b16 %v242
        %v2886 = vunpack.c.l.b16 %v243
        %v2887 = vunpack.c.l.b16 %v244
        %v2888 = vunpack.c.l.b16 %v245
        %v2889 = vunpack.c.l.b16 %v247
        %v2890 = vunpack.c.l.b16 %v248
        %v2891 = vunpack.c.l.b16 %v249
        %v2892 = vunpack.c.l.b16 %v250
        %v2893 = vunpack.c.l.b16 %v252
        %v2894 = vunpack.c.l.b16 %v253
        %v2895 = vunpack.c.l.b16 %v254
        %v2896 = vunpack.c.l.b16 %v255
        %v2897 = vunpack.c.l.b16 %v257
        %v2898 = vunpack.c.l.b16 %v258
        %v2899 = vunpack.c.l.b16 %v259
        %v2900 = vunpack.c.l.b16 %v260
        %v2901 = vunpack.c.l.b16 %v262
        %v2902 = vunpack.c.l.b16 %v263
        %v2903 = vunpack.c.l.b16 %v264
        %v2904 = vunpack.c.l.b16 %v265
        %v2905 = vunpack.c.l.b16 %v267
        %v2906 = vunpack.c.l.b16 %v268
        %v2907 = vunpack.c.l.b16 %v269
        %v2908 = vunpack.c.l.b16 %v270
        %v2909 = vunpack.c.l.b16 %v272
        %v2910 = vunpack.c.l.b16 %v273
        %v2911 = vunpack.c.l.b16 %v274
        %v2912 = vunpack.c.l.b16 %v275
        %v2913 = vunpack.c.l.b16 %v277
        %v2914 = vunpack.c.l.b16 %v278
        %v2915 = vunpack.c.l.b16 %v279
        %v2916 = vunpack.c.l.b16 %v280
        %v2917 = vunpack.c.l.b16 %v282
        %v2918 = vunpack.c.l.b16 %v283
        %v2919 = vunpack.c.l.b16 %v284
        %v2920 = vunpack.c.l.b16 %v285
        %v2921 = vunpack.c.l.b16 %v287
        %v2922 = vunpack.c.l.b16 %v288
        %v2923 = vunpack.c.l.b16 %v289
        %v2924 = vunpack.c.l.b16 %v290
        %v2925 = vunpack.c.l.b16 %v292
        %v2926 = vunpack.c.l.b16 %v293
        %v2927 = vunpack.c.l.b16 %v294
        %v2928 = vunpack.c.l.b16 %v295
        %v2929 = vunpack.c.l.b16 %v297
        %v2930 = vunpack.c.l.b16 %v298
        %v2931 = vunpack.c.l.b16 %v299
        %v2932 = vunpack.c.l.b16 %v300
        %v2933 = vunpack.c.l.b16 %v302
        %v2934 = vunpack.c.l.b16 %v303
        %v2935 = vunpack.c.l.b16 %v304
        %v2936 = vunpack.c.l.b16 %v305
        %v2937 = vunpack.c.l.b16 %v307
        %v2938 = vunpack.c.l.b16 %v308
        %v2939 = vunpack.c.l.b16 %v309
        %v2940 = vunpack.c.l.b16 %v310
        %v2941 = vunpack.c.l.b16 %v312
        %v2942 = vunpack.c.l.b16 %v313
        %v2943 = vunpack.c.l.b16 %v314
        %v2944 = vunpack.c.l.b16 %v315
        %v2945 = vunpack.c.l.b16 %v317
        %v2946 = vunpack.c.l.b16 %v318
        %v2947 = vunpack.c.l.b16 %v319
        %v2948 = vunpack.c.l.b16 %v320
        %v2949 = vunpack.c.l.b16 %v322
        %v2950 = vunpack.c.l.b16 %v323
        %v2951 = vunpack.c.l.b16 %v324
        %v2952 = vunpack.c.l.b16 %v325
        %v2953 = vunpack.c.l.b16 %v327
        %v2954 = vunpack.c.l.b16 %v328
        %v2955 = vunpack.c.l.b16 %v329
        %v2956 = vunpack.c.l.b16 %v330
        %v2957 = vunpack.c.l.b16 %v332
        %v2958 = vunpack.c.l.b16 %v333
        %v2959 = vunpack.c.l.b16 %v334
        %v2960 = vunpack.c.l.b16 %v335
        %v2961 = vunpack.c.l.b16 %v337
        %v2962 = vunpack.c.l.b16 %v338
        %v2963 = vunpack.c.l.b16 %v339
        %v2964 = vunpack.c.l.b16 %v340
        %v2965 = vunpack.c.l.b16 %v342
        %v2966 = vunpack.c.l.b16 %v343
        %v2967 = vunpack.c.l.b16 %v344
        %v2968 = vunpack.c.l.b16 %v345
        %v2969 = vunpack.c.l.b16 %v347
        %v2970 = vunpack.c.l.b16 %v348
        %v2971 = vunpack.c.l.b16 %v349
        %v2972 = vunpack.c.l.b16 %v350
        %v2973 = vpack.c.b16 %v2846, %v2845
        %v2974 = vpack.c.b16 %v2848, %v2847
        %v2975 = vpack.c.b16 %v2850, %v2849
        %v2976 = vpack.c.b16 %v2852, %v2851
        %v2977 = vpack.c.b16 %v2854, %v2853
        %v2978 = vpack.c.b16 %v2856, %v2855
        %v2979 = vpack.c.b16 %v2858, %v2857
        %v2980 = vpack.c.b16 %v2860, %v2859
        %v2981 = vpack.c.b16 %v2862, %v2861
        %v2982 = vpack.c.b16 %v2864, %v2863
        %v2983 = vpack.c.b16 %v2866, %v2865
        %v2984 = vpack.c.b16 %v2868, %v2867
        %v2985 = vpack.c.b16 %v2870, %v2869
        %v2986 = vpack.c.b16 %v2872, %v2871
        %v2987 = vpack.c.b16 %v2874, %v2873
        %v2988 = vpack.c.b16 %v2876, %v2875
        %v2989 = vpack.c.b16 %v2878, %v2877
        %v2990 = vpack.c.b16 %v2880, %v2879
        %v2991 = vpack.c.b16 %v2882, %v2881
        %v2992 = vpack.c.b16 %v2884, %v2883
        %v2993 = vpack.c.b16 %v2886, %v2885
        %v2994 = vpack.c.b16 %v2888, %v2887
        %v2995 = vpack.c.b16 %v2890, %v2889
        %v2996 = vpack.c.b16 %v2892, %v2891
        %v2997 = vpack.c.b16 %v2894, %v2893
        %v2998 = vpack.c.b16 %v2896, %v2895
        %v2999 = vpack.c.b16 %v2898, %v2897
        %v3000 = vpack.c.b16 %v2900, %v2899
        %v3001 = vpack.c.b16 %v2902, %v2901
        %v3002 = vpack.c.b16 %v2904, %v2903
        %v3003 = vpack.c.b16 %v2906, %v2905
        %v3004 = vpack.c.b16 %v2908, %v2907
        %v3005 = vpack.c.b16 %v2910, %v2909
        %v3006 = vpack.c.b16 %v2912, %v2911
        %v3007 = vpack.c.b16 %v2914, %v2913
        %v3008 = vpack.c.b16 %v2916, %v2915
        %v3009 = vpack.c.b16 %v2918, %v2917
        %v3010 = vpack.c.b16 %v2920, %v2919
        %v3011 = vpack.c.b16 %v2922, %v2921
        %v3012 = vpack.c.b16 %v2924, %v2923
        %v3013 = vpack.c.b16 %v2926, %v2925
        %v3014 = vpack.c.b16 %v2928, %v2927
        %v3015 = vpack.c.b16 %v2930, %v2929
        %v3016 = vpack.c.b16 %v2932, %v2931
        %v3017 = vpack.c.b16 %v2934, %v2933
        %v3018 = vpack.c.b16 %v2936, %v2935
        %v3019 = vpack.c.b16 %v2938, %v2937
        %v3020 = vpack.c.b16 %v2940, %v2939
        %v3021 = vpack.c.b16 %v2942, %v2941
        %v3022 = vpack.c.b16 %v2944, %v2943
        %v3023 = vpack.c.b16 %v2946, %v2945
        %v3024 = vpack.c.b16 %v2948, %v2947
        %v3025 = vpack.c.b16 %v2950, %v2949
        %v3026 = vpack.c.b16 %v2952, %v2951
        %v3027 = vpack.c.b16 %v2954, %v2953
        %v3028 = vpack.c.b16 %v2956, %v2955
        %v3029 = vpack.c.b16 %v2958, %v2957
        %v3030 = vpack.c.b16 %v2960, %v2959
        %v3031 = vpack.c.b16 %v2962, %v2961
        %v3032 = vpack.c.b16 %v2964, %v2963
        %v3033 = vpack.c.b16 %v2966, %v2965
        %v3034 = vpack.c.b16 %v2968, %v2967
        %v3035 = vpack.c.b16 %v2970, %v2969
        %v3036 = vpack.c.b16 %v2972, %v2971
        %v3038 = vsel %vm1975, %v2973, 0
        %v3041 = vsel %vm1975, %v2974, 0
        %v3044 = vsel %vm1975, %v2975, 0
        %v3047 = vsel %vm1975, %v2976, 0
        %v3050 = vsel %vm1975, %v2977, 0
        %v3053 = vsel %vm1975, %v2978, 0
        %v3056 = vsel %vm1975, %v2979, 0
        %v3059 = vsel %vm1975, %v2980, 0
        %v3062 = vsel %vm1975, %v2981, 0
        %v3065 = vsel %vm1975, %v2982, 0
        %v3068 = vsel %vm1975, %v2983, 0
        %v3071 = vsel %vm1975, %v2984, 0
        %v3074 = vsel %vm1975, %v2985, 0
        %v3077 = vsel %vm1975, %v2986, 0
        %v3080 = vsel %vm1975, %v2987, 0
        %v3083 = vsel %vm1975, %v2988, 0
        %v3086 = vsel %vm1975, %v2989, 0
        %v3089 = vsel %vm1975, %v2990, 0
        %v3092 = vsel %vm1975, %v2991, 0
        %v3095 = vsel %vm1975, %v2992, 0
        %v3098 = vsel %vm1975, %v2993, 0
        %v3101 = vsel %vm1975, %v2994, 0
        %v3104 = vsel %vm1975, %v2995, 0
        %v3107 = vsel %vm1975, %v2996, 0
        %v3110 = vsel %vm1975, %v2997, 0
        %v3113 = vsel %vm1975, %v2998, 0
        %v3116 = vsel %vm1975, %v2999, 0
        %v3119 = vsel %vm1975, %v3000, 0
        %v3122 = vsel %vm1975, %v3001, 0
        %v3125 = vsel %vm1975, %v3002, 0
        %v3128 = vsel %vm1975, %v3003, 0
        %v3131 = vsel %vm1975, %v3004, 0
        %v3134 = vsel %vm1975, %v3005, 0
        %v3137 = vsel %vm1975, %v3006, 0
        %v3140 = vsel %vm1975, %v3007, 0
        %v3143 = vsel %vm1975, %v3008, 0
        %v3146 = vsel %vm1975, %v3009, 0
        %v3149 = vsel %vm1975, %v3010, 0
        %v3152 = vsel %vm1975, %v3011, 0
        %v3155 = vsel %vm1975, %v3012, 0
        %v3158 = vsel %vm1975, %v3013, 0
        %v3161 = vsel %vm1975, %v3014, 0
        %v3164 = vsel %vm1975, %v3015, 0
        %v3167 = vsel %vm1975, %v3016, 0
        %v3170 = vsel %vm1975, %v3017, 0
        %v3173 = vsel %vm1975, %v3018, 0
        %v3176 = vsel %vm1975, %v3019, 0
        %v3179 = vsel %vm1975, %v3020, 0
        %v3182 = vsel %vm1975, %v3021, 0
        %v3185 = vsel %vm1975, %v3022, 0
        %v3188 = vsel %vm1975, %v3023, 0
        %v3191 = vsel %vm1975, %v3024, 0
        %v3194 = vsel %vm1975, %v3025, 0
        %v3197 = vsel %vm1975, %v3026, 0
        %v3200 = vsel %vm1975, %v3027, 0
        %v3203 = vsel %vm1975, %v3028, 0
        %v3206 = vsel %vm1975, %v3029, 0
        %v3209 = vsel %vm1975, %v3030, 0
        %v3212 = vsel %vm1975, %v3031, 0
        %v3215 = vsel %vm1975, %v3032, 0
        %v3218 = vsel %vm1975, %v3033, 0
        %v3221 = vsel %vm1975, %v3034, 0
        %v3224 = vsel %vm1975, %v3035, 0
        %v3227 = vsel %vm1975, %v3036, 0
        %v3230 = vsel %vm2168, %v362, 0
        %3232 = vmatprep.subr.bf16.mxu0 0
        %3233 = vmatpush1.bf16.msra.mxu0 0
        %3234 = vmatprep.subr.bf16.mxu0 0
        %3235 = vmatpush1.bf16.msra.mxu0 0
        %3236 = vmatprep.subr.bf16.mxu0 0
        %3237 = vmatpush1.bf16.msra.mxu0 0
        %3238 = vmatprep.subr.bf16.mxu0 0
        %3239 = vmatpush1.bf16.msra.mxu0 0
        %3240 = vmatprep.subr.bf16.mxu0 0
        %3241 = vmatpush1.bf16.msra.mxu0 0
        %3242 = vmatprep.subr.bf16.mxu0 0
        %3243 = vmatpush1.bf16.msra.mxu0 0
        %3244 = vmatprep.subr.bf16.mxu0 0
        %3245 = vmatpush1.bf16.msra.mxu0 0
        %3246 = vmatprep.subr.bf16.mxu0 0
        %3247 = vmatpush1.bf16.msra.mxu0 %v3230
        %3248 = vmatprep.subr.bf16.mxu0 0
        %3249 = vmatpush2.bf16.msra.mxu0 0
        %3250 = vmatprep.subr.bf16.mxu0 0
        %3251 = vmatpush2.bf16.msra.mxu0 0
        %3252 = vmatprep.subr.bf16.mxu0 0
        %3253 = vmatpush2.bf16.msra.mxu0 0
        %3254 = vmatprep.subr.bf16.mxu0 0
        %3255 = vmatpush2.bf16.msra.mxu0 0
        %3256 = vmatprep.subr.bf16.mxu0 0
        %3257 = vmatpush2.bf16.msra.mxu0 0
        %3258 = vmatprep.subr.bf16.mxu0 0
        %3259 = vmatpush2.bf16.msra.mxu0 0
        %3260 = vmatprep.subr.bf16.mxu0 0
        %3261 = vmatpush2.bf16.msra.mxu0 0
        %3262 = vmatprep.subr.bf16.mxu0 0
        %3263 = vmatpush2.bf16.msra.mxu0 0
        %3264 = vmatprep.mubr.bf16.mxu0 0
        %3265 = vmatmul.mubr.bf16.gmra.mxu0 %v3038
        %v3266 = vpop.f32.mrf.mxu0
        %v3267 = vadd.f32 %v2207, %v3266
        %v3268 = vpop.f32.mrf.mxu0
        %v3269 = vpop.f32.mrf.mxu0
        %v3270 = vadd.f32 %v2210, %v3269
        %v3271 = vpop.f32.mrf.mxu0
        %3272 = vmatprep.mubr.bf16.mxu0 0
        %3273 = vmatmul.mubr.bf16.gmra.mxu0 %v3041
        %v3274 = vpop.f32.mrf.mxu0
        %v3275 = vadd.f32 %v2215, %v3274
        %v3276 = vpop.f32.mrf.mxu0
        %v3277 = vpop.f32.mrf.mxu0
        %v3278 = vadd.f32 %v2218, %v3277
        %v3279 = vpop.f32.mrf.mxu0
        %3280 = vmatprep.mubr.bf16.mxu0 0
        %3281 = vmatmul.mubr.bf16.gmra.mxu0 %v3044
        %v3282 = vpop.f32.mrf.mxu0
        %v3283 = vadd.f32 %v2223, %v3282
        %v3284 = vpop.f32.mrf.mxu0
        %v3285 = vpop.f32.mrf.mxu0
        %v3286 = vadd.f32 %v2226, %v3285
        %v3287 = vpop.f32.mrf.mxu0
        %3288 = vmatprep.mubr.bf16.mxu0 0
        %3289 = vmatmul.mubr.bf16.gmra.mxu0 %v3047
        %v3290 = vpop.f32.mrf.mxu0
        %v3291 = vadd.f32 %v2231, %v3290
        %v3292 = vpop.f32.mrf.mxu0
        %v3293 = vpop.f32.mrf.mxu0
        %v3294 = vadd.f32 %v2234, %v3293
        %v3295 = vpop.f32.mrf.mxu0
        %3296 = vmatprep.mubr.bf16.mxu0 0
        %3297 = vmatmul.mubr.bf16.gmra.mxu0 %v3050
        %v3298 = vpop.f32.mrf.mxu0
        %v3299 = vadd.f32 %v2239, %v3298
        %v3300 = vpop.f32.mrf.mxu0
        %v3301 = vpop.f32.mrf.mxu0
        %v3302 = vadd.f32 %v2242, %v3301
        %v3303 = vpop.f32.mrf.mxu0
        %3304 = vmatprep.mubr.bf16.mxu0 0
        %3305 = vmatmul.mubr.bf16.gmra.mxu0 %v3053
        %v3306 = vpop.f32.mrf.mxu0
        %v3307 = vadd.f32 %v2247, %v3306
        %v3308 = vpop.f32.mrf.mxu0
        %v3309 = vpop.f32.mrf.mxu0
        %v3310 = vadd.f32 %v2250, %v3309
        %v3311 = vpop.f32.mrf.mxu0
        %3312 = vmatprep.mubr.bf16.mxu0 0
        %3313 = vmatmul.mubr.bf16.gmra.mxu0 %v3056
        %v3314 = vpop.f32.mrf.mxu0
        %v3315 = vadd.f32 %v2255, %v3314
        %v3316 = vpop.f32.mrf.mxu0
        %v3317 = vpop.f32.mrf.mxu0
        %v3318 = vadd.f32 %v2258, %v3317
        %v3319 = vpop.f32.mrf.mxu0
        %3320 = vmatprep.mubr.bf16.mxu0 0
        %3321 = vmatmul.mubr.bf16.gmra.mxu0 %v3059
        %v3322 = vpop.f32.mrf.mxu0
        %v3323 = vadd.f32 %v2263, %v3322
        %v3324 = vpop.f32.mrf.mxu0
        %v3325 = vpop.f32.mrf.mxu0
        %v3326 = vadd.f32 %v2266, %v3325
        %v3327 = vpop.f32.mrf.mxu0
        %3328 = vmatprep.mubr.bf16.mxu0 0
        %3329 = vmatmul.mubr.bf16.gmra.mxu0 %v3062
        %v3330 = vpop.f32.mrf.mxu0
        %v3331 = vadd.f32 %v2271, %v3330
        %v3332 = vpop.f32.mrf.mxu0
        %v3333 = vpop.f32.mrf.mxu0
        %v3334 = vadd.f32 %v2274, %v3333
        %v3335 = vpop.f32.mrf.mxu0
        %3336 = vmatprep.mubr.bf16.mxu0 0
        %3337 = vmatmul.mubr.bf16.gmra.mxu0 %v3065
        %v3338 = vpop.f32.mrf.mxu0
        %v3339 = vadd.f32 %v2279, %v3338
        %v3340 = vpop.f32.mrf.mxu0
        %v3341 = vpop.f32.mrf.mxu0
        %v3342 = vadd.f32 %v2282, %v3341
        %v3343 = vpop.f32.mrf.mxu0
        %3344 = vmatprep.mubr.bf16.mxu0 0
        %3345 = vmatmul.mubr.bf16.gmra.mxu0 %v3068
        %v3346 = vpop.f32.mrf.mxu0
        %v3347 = vadd.f32 %v2287, %v3346
        %v3348 = vpop.f32.mrf.mxu0
        %v3349 = vpop.f32.mrf.mxu0
        %v3350 = vadd.f32 %v2290, %v3349
        %v3351 = vpop.f32.mrf.mxu0
        %3352 = vmatprep.mubr.bf16.mxu0 0
        %3353 = vmatmul.mubr.bf16.gmra.mxu0 %v3071
        %v3354 = vpop.f32.mrf.mxu0
        %v3355 = vadd.f32 %v2295, %v3354
        %v3356 = vpop.f32.mrf.mxu0
        %v3357 = vpop.f32.mrf.mxu0
        %v3358 = vadd.f32 %v2298, %v3357
        %v3359 = vpop.f32.mrf.mxu0
        %3360 = vmatprep.mubr.bf16.mxu0 0
        %3361 = vmatmul.mubr.bf16.gmra.mxu0 %v3074
        %v3362 = vpop.f32.mrf.mxu0
        %v3363 = vadd.f32 %v2303, %v3362
        %v3364 = vpop.f32.mrf.mxu0
        %v3365 = vpop.f32.mrf.mxu0
        %v3366 = vadd.f32 %v2306, %v3365
        %v3367 = vpop.f32.mrf.mxu0
        %3368 = vmatprep.mubr.bf16.mxu0 0
        %3369 = vmatmul.mubr.bf16.gmra.mxu0 %v3077
        %v3370 = vpop.f32.mrf.mxu0
        %v3371 = vadd.f32 %v2311, %v3370
        %v3372 = vpop.f32.mrf.mxu0
        %v3373 = vpop.f32.mrf.mxu0
        %v3374 = vadd.f32 %v2314, %v3373
        %v3375 = vpop.f32.mrf.mxu0
        %3376 = vmatprep.mubr.bf16.mxu0 0
        %3377 = vmatmul.mubr.bf16.gmra.mxu0 %v3080
        %v3378 = vpop.f32.mrf.mxu0
        %v3379 = vadd.f32 %v2319, %v3378
        %v3380 = vpop.f32.mrf.mxu0
        %v3381 = vpop.f32.mrf.mxu0
        %v3382 = vadd.f32 %v2322, %v3381
        %v3383 = vpop.f32.mrf.mxu0
        %3384 = vmatprep.mubr.bf16.mxu0 0
        %3385 = vmatmul.mubr.bf16.gmra.mxu0 %v3083
        %v3386 = vpop.f32.mrf.mxu0
        %v3387 = vadd.f32 %v2327, %v3386
        %v3388 = vpop.f32.mrf.mxu0
        %v3389 = vpop.f32.mrf.mxu0
        %v3390 = vadd.f32 %v2330, %v3389
        %v3391 = vpop.f32.mrf.mxu0
        %3392 = vmatprep.mubr.bf16.mxu0 0
        %3393 = vmatmul.mubr.bf16.gmra.mxu0 %v3086
        %v3394 = vpop.f32.mrf.mxu0
        %v3395 = vadd.f32 %v2335, %v3394
        %v3396 = vpop.f32.mrf.mxu0
        %v3397 = vpop.f32.mrf.mxu0
        %v3398 = vadd.f32 %v2338, %v3397
        %v3399 = vpop.f32.mrf.mxu0
        %3400 = vmatprep.mubr.bf16.mxu0 0
        %3401 = vmatmul.mubr.bf16.gmra.mxu0 %v3089
        %v3402 = vpop.f32.mrf.mxu0
        %v3403 = vadd.f32 %v2343, %v3402
        %v3404 = vpop.f32.mrf.mxu0
        %v3405 = vpop.f32.mrf.mxu0
        %v3406 = vadd.f32 %v2346, %v3405
        %v3407 = vpop.f32.mrf.mxu0
        %3408 = vmatprep.mubr.bf16.mxu0 0
        %3409 = vmatmul.mubr.bf16.gmra.mxu0 %v3092
        %v3410 = vpop.f32.mrf.mxu0
        %v3411 = vadd.f32 %v2351, %v3410
        %v3412 = vpop.f32.mrf.mxu0
        %v3413 = vpop.f32.mrf.mxu0
        %v3414 = vadd.f32 %v2354, %v3413
        %v3415 = vpop.f32.mrf.mxu0
        %3416 = vmatprep.mubr.bf16.mxu0 0
        %3417 = vmatmul.mubr.bf16.gmra.mxu0 %v3095
        %v3418 = vpop.f32.mrf.mxu0
        %v3419 = vadd.f32 %v2359, %v3418
        %v3420 = vpop.f32.mrf.mxu0
        %v3421 = vpop.f32.mrf.mxu0
        %v3422 = vadd.f32 %v2362, %v3421
        %v3423 = vpop.f32.mrf.mxu0
        %3424 = vmatprep.mubr.bf16.mxu0 0
        %3425 = vmatmul.mubr.bf16.gmra.mxu0 %v3098
        %v3426 = vpop.f32.mrf.mxu0
        %v3427 = vadd.f32 %v2367, %v3426
        %v3428 = vpop.f32.mrf.mxu0
        %v3429 = vpop.f32.mrf.mxu0
        %v3430 = vadd.f32 %v2370, %v3429
        %v3431 = vpop.f32.mrf.mxu0
        %3432 = vmatprep.mubr.bf16.mxu0 0
        %3433 = vmatmul.mubr.bf16.gmra.mxu0 %v3101
        %v3434 = vpop.f32.mrf.mxu0
        %v3435 = vadd.f32 %v2375, %v3434
        %v3436 = vpop.f32.mrf.mxu0
        %v3437 = vpop.f32.mrf.mxu0
        %v3438 = vadd.f32 %v2378, %v3437
        %v3439 = vpop.f32.mrf.mxu0
        %3440 = vmatprep.mubr.bf16.mxu0 0
        %3441 = vmatmul.mubr.bf16.gmra.mxu0 %v3104
        %v3442 = vpop.f32.mrf.mxu0
        %v3443 = vadd.f32 %v2383, %v3442
        %v3444 = vpop.f32.mrf.mxu0
        %v3445 = vpop.f32.mrf.mxu0
        %v3446 = vadd.f32 %v2386, %v3445
        %v3447 = vpop.f32.mrf.mxu0
        %3448 = vmatprep.mubr.bf16.mxu0 0
        %3449 = vmatmul.mubr.bf16.gmra.mxu0 %v3107
        %v3450 = vpop.f32.mrf.mxu0
        %v3451 = vadd.f32 %v2391, %v3450
        %v3452 = vpop.f32.mrf.mxu0
        %v3453 = vpop.f32.mrf.mxu0
        %v3454 = vadd.f32 %v2394, %v3453
        %v3455 = vpop.f32.mrf.mxu0
        %3456 = vmatprep.mubr.bf16.mxu0 0
        %3457 = vmatmul.mubr.bf16.gmra.mxu0 %v3110
        %v3458 = vpop.f32.mrf.mxu0
        %v3459 = vadd.f32 %v2399, %v3458
        %v3460 = vpop.f32.mrf.mxu0
        %v3461 = vpop.f32.mrf.mxu0
        %v3462 = vadd.f32 %v2402, %v3461
        %v3463 = vpop.f32.mrf.mxu0
        %3464 = vmatprep.mubr.bf16.mxu0 0
        %3465 = vmatmul.mubr.bf16.gmra.mxu0 %v3113
        %v3466 = vpop.f32.mrf.mxu0
        %v3467 = vadd.f32 %v2407, %v3466
        %v3468 = vpop.f32.mrf.mxu0
        %v3469 = vpop.f32.mrf.mxu0
        %v3470 = vadd.f32 %v2410, %v3469
        %v3471 = vpop.f32.mrf.mxu0
        %3472 = vmatprep.mubr.bf16.mxu0 0
        %3473 = vmatmul.mubr.bf16.gmra.mxu0 %v3116
        %v3474 = vpop.f32.mrf.mxu0
        %v3475 = vadd.f32 %v2415, %v3474
        %v3476 = vpop.f32.mrf.mxu0
        %v3477 = vpop.f32.mrf.mxu0
        %v3478 = vadd.f32 %v2418, %v3477
        %v3479 = vpop.f32.mrf.mxu0
        %3480 = vmatprep.mubr.bf16.mxu0 0
        %3481 = vmatmul.mubr.bf16.gmra.mxu0 %v3119
        %v3482 = vpop.f32.mrf.mxu0
        %v3483 = vadd.f32 %v2423, %v3482
        %v3484 = vpop.f32.mrf.mxu0
        %v3485 = vpop.f32.mrf.mxu0
        %v3486 = vadd.f32 %v2426, %v3485
        %v3487 = vpop.f32.mrf.mxu0
        %3488 = vmatprep.mubr.bf16.mxu0 0
        %3489 = vmatmul.mubr.bf16.gmra.mxu0 %v3122
        %v3490 = vpop.f32.mrf.mxu0
        %v3491 = vadd.f32 %v2431, %v3490
        %v3492 = vpop.f32.mrf.mxu0
        %v3493 = vpop.f32.mrf.mxu0
        %v3494 = vadd.f32 %v2434, %v3493
        %v3495 = vpop.f32.mrf.mxu0
        %3496 = vmatprep.mubr.bf16.mxu0 0
        %3497 = vmatmul.mubr.bf16.gmra.mxu0 %v3125
        %v3498 = vpop.f32.mrf.mxu0
        %v3499 = vadd.f32 %v2439, %v3498
        %v3500 = vpop.f32.mrf.mxu0
        %v3501 = vpop.f32.mrf.mxu0
        %v3502 = vadd.f32 %v2442, %v3501
        %v3503 = vpop.f32.mrf.mxu0
        %3504 = vmatprep.mubr.bf16.mxu0 0
        %3505 = vmatmul.mubr.bf16.gmra.mxu0 %v3128
        %v3506 = vpop.f32.mrf.mxu0
        %v3507 = vadd.f32 %v2447, %v3506
        %v3508 = vpop.f32.mrf.mxu0
        %v3509 = vpop.f32.mrf.mxu0
        %v3510 = vadd.f32 %v2450, %v3509
        %v3511 = vpop.f32.mrf.mxu0
        %3512 = vmatprep.mubr.bf16.mxu0 0
        %3513 = vmatmul.mubr.bf16.gmra.mxu0 %v3131
        %v3514 = vpop.f32.mrf.mxu0
        %v3515 = vadd.f32 %v2455, %v3514
        %v3516 = vpop.f32.mrf.mxu0
        %v3517 = vpop.f32.mrf.mxu0
        %v3518 = vadd.f32 %v2458, %v3517
        %v3519 = vpop.f32.mrf.mxu0
        %3520 = vmatprep.mubr.bf16.mxu0 0
        %3521 = vmatmul.mubr.bf16.gmra.mxu0 %v3134
        %v3522 = vpop.f32.mrf.mxu0
        %v3523 = vadd.f32 %v2463, %v3522
        %v3524 = vpop.f32.mrf.mxu0
        %v3525 = vpop.f32.mrf.mxu0
        %v3526 = vadd.f32 %v2466, %v3525
        %v3527 = vpop.f32.mrf.mxu0
        %3528 = vmatprep.mubr.bf16.mxu0 0
        %3529 = vmatmul.mubr.bf16.gmra.mxu0 %v3137
        %v3530 = vpop.f32.mrf.mxu0
        %v3531 = vadd.f32 %v2471, %v3530
        %v3532 = vpop.f32.mrf.mxu0
        %v3533 = vpop.f32.mrf.mxu0
        %v3534 = vadd.f32 %v2474, %v3533
        %v3535 = vpop.f32.mrf.mxu0
        %3536 = vmatprep.mubr.bf16.mxu0 0
        %3537 = vmatmul.mubr.bf16.gmra.mxu0 %v3140
        %v3538 = vpop.f32.mrf.mxu0
        %v3539 = vadd.f32 %v2479, %v3538
        %v3540 = vpop.f32.mrf.mxu0
        %v3541 = vpop.f32.mrf.mxu0
        %v3542 = vadd.f32 %v2482, %v3541
        %v3543 = vpop.f32.mrf.mxu0
        %3544 = vmatprep.mubr.bf16.mxu0 0
        %3545 = vmatmul.mubr.bf16.gmra.mxu0 %v3143
        %v3546 = vpop.f32.mrf.mxu0
        %v3547 = vadd.f32 %v2487, %v3546
        %v3548 = vpop.f32.mrf.mxu0
        %v3549 = vpop.f32.mrf.mxu0
        %v3550 = vadd.f32 %v2490, %v3549
        %v3551 = vpop.f32.mrf.mxu0
        %3552 = vmatprep.mubr.bf16.mxu0 0
        %3553 = vmatmul.mubr.bf16.gmra.mxu0 %v3146
        %v3554 = vpop.f32.mrf.mxu0
        %v3555 = vadd.f32 %v2495, %v3554
        %v3556 = vpop.f32.mrf.mxu0
        %v3557 = vpop.f32.mrf.mxu0
        %v3558 = vadd.f32 %v2498, %v3557
        %v3559 = vpop.f32.mrf.mxu0
        %3560 = vmatprep.mubr.bf16.mxu0 0
        %3561 = vmatmul.mubr.bf16.gmra.mxu0 %v3149
        %v3562 = vpop.f32.mrf.mxu0
        %v3563 = vadd.f32 %v2503, %v3562
        %v3564 = vpop.f32.mrf.mxu0
        %v3565 = vpop.f32.mrf.mxu0
        %v3566 = vadd.f32 %v2506, %v3565
        %v3567 = vpop.f32.mrf.mxu0
        %3568 = vmatprep.mubr.bf16.mxu0 0
        %3569 = vmatmul.mubr.bf16.gmra.mxu0 %v3152
        %v3570 = vpop.f32.mrf.mxu0
        %v3571 = vadd.f32 %v2511, %v3570
        %v3572 = vpop.f32.mrf.mxu0
        %v3573 = vpop.f32.mrf.mxu0
        %v3574 = vadd.f32 %v2514, %v3573
        %v3575 = vpop.f32.mrf.mxu0
        %3576 = vmatprep.mubr.bf16.mxu0 0
        %3577 = vmatmul.mubr.bf16.gmra.mxu0 %v3155
        %v3578 = vpop.f32.mrf.mxu0
        %v3579 = vadd.f32 %v2519, %v3578
        %v3580 = vpop.f32.mrf.mxu0
        %v3581 = vpop.f32.mrf.mxu0
        %v3582 = vadd.f32 %v2522, %v3581
        %v3583 = vpop.f32.mrf.mxu0
        %3584 = vmatprep.mubr.bf16.mxu0 0
        %3585 = vmatmul.mubr.bf16.gmra.mxu0 %v3158
        %v3586 = vpop.f32.mrf.mxu0
        %v3587 = vadd.f32 %v2527, %v3586
        %v3588 = vpop.f32.mrf.mxu0
        %v3589 = vpop.f32.mrf.mxu0
        %v3590 = vadd.f32 %v2530, %v3589
        %v3591 = vpop.f32.mrf.mxu0
        %3592 = vmatprep.mubr.bf16.mxu0 0
        %3593 = vmatmul.mubr.bf16.gmra.mxu0 %v3161
        %v3594 = vpop.f32.mrf.mxu0
        %v3595 = vadd.f32 %v2535, %v3594
        %v3596 = vpop.f32.mrf.mxu0
        %v3597 = vpop.f32.mrf.mxu0
        %v3598 = vadd.f32 %v2538, %v3597
        %v3599 = vpop.f32.mrf.mxu0
        %3600 = vmatprep.mubr.bf16.mxu0 0
        %3601 = vmatmul.mubr.bf16.gmra.mxu0 %v3164
        %v3602 = vpop.f32.mrf.mxu0
        %v3603 = vadd.f32 %v2543, %v3602
        %v3604 = vpop.f32.mrf.mxu0
        %v3605 = vpop.f32.mrf.mxu0
        %v3606 = vadd.f32 %v2546, %v3605
        %v3607 = vpop.f32.mrf.mxu0
        %3608 = vmatprep.mubr.bf16.mxu0 0
        %3609 = vmatmul.mubr.bf16.gmra.mxu0 %v3167
        %v3610 = vpop.f32.mrf.mxu0
        %v3611 = vadd.f32 %v2551, %v3610
        %v3612 = vpop.f32.mrf.mxu0
        %v3613 = vpop.f32.mrf.mxu0
        %v3614 = vadd.f32 %v2554, %v3613
        %v3615 = vpop.f32.mrf.mxu0
        %3616 = vmatprep.mubr.bf16.mxu0 0
        %3617 = vmatmul.mubr.bf16.gmra.mxu0 %v3170
        %v3618 = vpop.f32.mrf.mxu0
        %v3619 = vadd.f32 %v2559, %v3618
        %v3620 = vpop.f32.mrf.mxu0
        %v3621 = vpop.f32.mrf.mxu0
        %v3622 = vadd.f32 %v2562, %v3621
        %v3623 = vpop.f32.mrf.mxu0
        %3624 = vmatprep.mubr.bf16.mxu0 0
        %3625 = vmatmul.mubr.bf16.gmra.mxu0 %v3173
        %v3626 = vpop.f32.mrf.mxu0
        %v3627 = vadd.f32 %v2567, %v3626
        %v3628 = vpop.f32.mrf.mxu0
        %v3629 = vpop.f32.mrf.mxu0
        %v3630 = vadd.f32 %v2570, %v3629
        %v3631 = vpop.f32.mrf.mxu0
        %3632 = vmatprep.mubr.bf16.mxu0 0
        %3633 = vmatmul.mubr.bf16.gmra.mxu0 %v3176
        %v3634 = vpop.f32.mrf.mxu0
        %v3635 = vadd.f32 %v2575, %v3634
        %v3636 = vpop.f32.mrf.mxu0
        %v3637 = vpop.f32.mrf.mxu0
        %v3638 = vadd.f32 %v2578, %v3637
        %v3639 = vpop.f32.mrf.mxu0
        %3640 = vmatprep.mubr.bf16.mxu0 0
        %3641 = vmatmul.mubr.bf16.gmra.mxu0 %v3179
        %v3642 = vpop.f32.mrf.mxu0
        %v3643 = vadd.f32 %v2583, %v3642
        %v3644 = vpop.f32.mrf.mxu0
        %v3645 = vpop.f32.mrf.mxu0
        %v3646 = vadd.f32 %v2586, %v3645
        %v3647 = vpop.f32.mrf.mxu0
        %3648 = vmatprep.mubr.bf16.mxu0 0
        %3649 = vmatmul.mubr.bf16.gmra.mxu0 %v3182
        %v3650 = vpop.f32.mrf.mxu0
        %v3651 = vadd.f32 %v2591, %v3650
        %v3652 = vpop.f32.mrf.mxu0
        %v3653 = vpop.f32.mrf.mxu0
        %v3654 = vadd.f32 %v2594, %v3653
        %v3655 = vpop.f32.mrf.mxu0
        %3656 = vmatprep.mubr.bf16.mxu0 0
        %3657 = vmatmul.mubr.bf16.gmra.mxu0 %v3185
        %v3658 = vpop.f32.mrf.mxu0
        %v3659 = vadd.f32 %v2599, %v3658
        %v3660 = vpop.f32.mrf.mxu0
        %v3661 = vpop.f32.mrf.mxu0
        %v3662 = vadd.f32 %v2602, %v3661
        %v3663 = vpop.f32.mrf.mxu0
        %3664 = vmatprep.mubr.bf16.mxu0 0
        %3665 = vmatmul.mubr.bf16.gmra.mxu0 %v3188
        %v3666 = vpop.f32.mrf.mxu0
        %v3667 = vadd.f32 %v2607, %v3666
        %v3668 = vpop.f32.mrf.mxu0
        %v3669 = vpop.f32.mrf.mxu0
        %v3670 = vadd.f32 %v2610, %v3669
        %v3671 = vpop.f32.mrf.mxu0
        %3672 = vmatprep.mubr.bf16.mxu0 0
        %3673 = vmatmul.mubr.bf16.gmra.mxu0 %v3191
        %v3674 = vpop.f32.mrf.mxu0
        %v3675 = vadd.f32 %v2615, %v3674
        %v3676 = vpop.f32.mrf.mxu0
        %v3677 = vpop.f32.mrf.mxu0
        %v3678 = vadd.f32 %v2618, %v3677
        %v3679 = vpop.f32.mrf.mxu0
        %3680 = vmatprep.mubr.bf16.mxu0 0
        %3681 = vmatmul.mubr.bf16.gmra.mxu0 %v3194
        %v3682 = vpop.f32.mrf.mxu0
        %v3683 = vadd.f32 %v2623, %v3682
        %v3684 = vpop.f32.mrf.mxu0
        %v3685 = vpop.f32.mrf.mxu0
        %v3686 = vadd.f32 %v2626, %v3685
        %v3687 = vpop.f32.mrf.mxu0
        %3688 = vmatprep.mubr.bf16.mxu0 0
        %3689 = vmatmul.mubr.bf16.gmra.mxu0 %v3197
        %v3690 = vpop.f32.mrf.mxu0
        %v3691 = vadd.f32 %v2631, %v3690
        %v3692 = vpop.f32.mrf.mxu0
        %v3693 = vpop.f32.mrf.mxu0
        %v3694 = vadd.f32 %v2634, %v3693
        %v3695 = vpop.f32.mrf.mxu0
        %3696 = vmatprep.mubr.bf16.mxu0 0
        %3697 = vmatmul.mubr.bf16.gmra.mxu0 %v3200
        %v3698 = vpop.f32.mrf.mxu0
        %v3699 = vadd.f32 %v2639, %v3698
        %v3700 = vpop.f32.mrf.mxu0
        %v3701 = vpop.f32.mrf.mxu0
        %v3702 = vadd.f32 %v2642, %v3701
        %v3703 = vpop.f32.mrf.mxu0
        %3704 = vmatprep.mubr.bf16.mxu0 0
        %3705 = vmatmul.mubr.bf16.gmra.mxu0 %v3203
        %v3706 = vpop.f32.mrf.mxu0
        %v3707 = vadd.f32 %v2647, %v3706
        %v3708 = vpop.f32.mrf.mxu0
        %v3709 = vpop.f32.mrf.mxu0
        %v3710 = vadd.f32 %v2650, %v3709
        %v3711 = vpop.f32.mrf.mxu0
        %3712 = vmatprep.mubr.bf16.mxu0 0
        %3713 = vmatmul.mubr.bf16.gmra.mxu0 %v3206
        %v3714 = vpop.f32.mrf.mxu0
        %v3715 = vadd.f32 %v2655, %v3714
        %v3716 = vpop.f32.mrf.mxu0
        %v3717 = vpop.f32.mrf.mxu0
        %v3718 = vadd.f32 %v2658, %v3717
        %v3719 = vpop.f32.mrf.mxu0
        %3720 = vmatprep.mubr.bf16.mxu0 0
        %3721 = vmatmul.mubr.bf16.gmra.mxu0 %v3209
        %v3722 = vpop.f32.mrf.mxu0
        %v3723 = vadd.f32 %v2663, %v3722
        %v3724 = vpop.f32.mrf.mxu0
        %v3725 = vpop.f32.mrf.mxu0
        %v3726 = vadd.f32 %v2666, %v3725
        %v3727 = vpop.f32.mrf.mxu0
        %3728 = vmatprep.mubr.bf16.mxu0 0
        %3729 = vmatmul.mubr.bf16.gmra.mxu0 %v3212
        %v3730 = vpop.f32.mrf.mxu0
        %v3731 = vadd.f32 %v2671, %v3730
        %v3732 = vpop.f32.mrf.mxu0
        %v3733 = vpop.f32.mrf.mxu0
        %v3734 = vadd.f32 %v2674, %v3733
        %v3735 = vpop.f32.mrf.mxu0
        %3736 = vmatprep.mubr.bf16.mxu0 0
        %3737 = vmatmul.mubr.bf16.gmra.mxu0 %v3215
        %v3738 = vpop.f32.mrf.mxu0
        %v3739 = vadd.f32 %v2679, %v3738
        %v3740 = vpop.f32.mrf.mxu0
        %v3741 = vpop.f32.mrf.mxu0
        %v3742 = vadd.f32 %v2682, %v3741
        %v3743 = vpop.f32.mrf.mxu0
        %3744 = vmatprep.mubr.bf16.mxu0 0
        %3745 = vmatmul.mubr.bf16.gmra.mxu0 %v3218
        %v3746 = vpop.f32.mrf.mxu0
        %v3747 = vadd.f32 %v2687, %v3746
        %v3748 = vpop.f32.mrf.mxu0
        %v3749 = vpop.f32.mrf.mxu0
        %v3750 = vadd.f32 %v2690, %v3749
        %v3751 = vpop.f32.mrf.mxu0
        %3752 = vmatprep.mubr.bf16.mxu0 0
        %3753 = vmatmul.mubr.bf16.gmra.mxu0 %v3221
        %v3754 = vpop.f32.mrf.mxu0
        %v3755 = vadd.f32 %v2695, %v3754
        %v3756 = vpop.f32.mrf.mxu0
        %v3757 = vpop.f32.mrf.mxu0
        %v3758 = vadd.f32 %v2698, %v3757
        %v3759 = vpop.f32.mrf.mxu0
        %3760 = vmatprep.mubr.bf16.mxu0 0
        %3761 = vmatmul.mubr.bf16.gmra.mxu0 %v3224
        %v3762 = vpop.f32.mrf.mxu0
        %v3763 = vadd.f32 %v2703, %v3762
        %v3764 = vpop.f32.mrf.mxu0
        %v3765 = vpop.f32.mrf.mxu0
        %v3766 = vadd.f32 %v2706, %v3765
        %v3767 = vpop.f32.mrf.mxu0
        %3768 = vmatprep.mubr.bf16.mxu0 0
        %3769 = vmatmul.mubr.bf16.gmra.mxu0 %v3227
        %v3770 = vpop.f32.mrf.mxu0
        %v3771 = vadd.f32 %v2711, %v3770
        %v3772 = vpop.f32.mrf.mxu0
        %v3773 = vpop.f32.mrf.mxu0
        %v3774 = vadd.f32 %v2714, %v3773
        %v3775 = vpop.f32.mrf.mxu0
        %3776 = vdwg.mxu0
        %vm3809 = vcmask 1042432
        %vm3810 = vcmask 1046532
        %vm3811 = vmor %vm3809, %vm3810
        %v3812 = vrot.slane %v192, 5
        %v3813 = vrot.slane %v3812, 4
        %v3814 = vrot.slane %v193, 5
        %v3815 = vsel %vm3811, %v3813, %v3814
        %v3816 = vrot.slane %v3814, 4
        %v3817 = vrot.slane %v194, 5
        %v3818 = vsel %vm3811, %v3816, %v3817
        %v3819 = vrot.slane %v3817, 4
        %v3820 = vrot.slane %v195, 5
        %v3821 = vsel %vm3811, %v3819, %v3820
        %v3822 = vrot.slane %v3820, 4
        %v3823 = vrot.slane %v196, 5
        %v3824 = vsel %vm3811, %v3822, %v3823
        %v3825 = vrot.slane %v197, 5
        %v3826 = vrot.slane %v3825, 4
        %v3827 = vrot.slane %v198, 5
        %v3828 = vsel %vm3811, %v3826, %v3827
        %v3829 = vrot.slane %v3827, 4
        %v3830 = vrot.slane %v199, 5
        %v3831 = vsel %vm3811, %v3829, %v3830
        %v3832 = vrot.slane %v3830, 4
        %v3833 = vrot.slane %v200, 5
        %v3834 = vsel %vm3811, %v3832, %v3833
        %v3835 = vrot.slane %v3833, 4
        %v3836 = vrot.slane %v201, 5
        %v3837 = vsel %vm3811, %v3835, %v3836
        %v3838 = vrot.slane %v202, 5
        %v3839 = vrot.slane %v3838, 4
        %v3840 = vrot.slane %v203, 5
        %v3841 = vsel %vm3811, %v3839, %v3840
        %v3842 = vrot.slane %v3840, 4
        %v3843 = vrot.slane %v204, 5
        %v3844 = vsel %vm3811, %v3842, %v3843
        %v3845 = vrot.slane %v3843, 4
        %v3846 = vrot.slane %v205, 5
        %v3847 = vsel %vm3811, %v3845, %v3846
        %v3848 = vrot.slane %v3846, 4
        %v3849 = vrot.slane %v206, 5
        %v3850 = vsel %vm3811, %v3848, %v3849
        %v3851 = vrot.slane %v207, 5
        %v3852 = vrot.slane %v3851, 4
        %v3853 = vrot.slane %v208, 5
        %v3854 = vsel %vm3811, %v3852, %v3853
        %v3855 = vrot.slane %v3853, 4
        %v3856 = vrot.slane %v209, 5
        %v3857 = vsel %vm3811, %v3855, %v3856
        %v3858 = vrot.slane %v3856, 4
        %v3859 = vrot.slane %v210, 5
        %v3860 = vsel %vm3811, %v3858, %v3859
        %v3861 = vrot.slane %v3859, 4
        %v3862 = vrot.slane %v211, 5
        %v3863 = vsel %vm3811, %v3861, %v3862
        %v3864 = vrot.slane %v212, 5
        %v3865 = vrot.slane %v3864, 4
        %v3866 = vrot.slane %v213, 5
        %v3867 = vsel %vm3811, %v3865, %v3866
        %v3868 = vrot.slane %v3866, 4
        %v3869 = vrot.slane %v214, 5
        %v3870 = vsel %vm3811, %v3868, %v3869
        %v3871 = vrot.slane %v3869, 4
        %v3872 = vrot.slane %v215, 5
        %v3873 = vsel %vm3811, %v3871, %v3872
        %v3874 = vrot.slane %v3872, 4
        %v3875 = vrot.slane %v216, 5
        %v3876 = vsel %vm3811, %v3874, %v3875
        %v3877 = vrot.slane %v217, 5
        %v3878 = vrot.slane %v3877, 4
        %v3879 = vrot.slane %v218, 5
        %v3880 = vsel %vm3811, %v3878, %v3879
        %v3881 = vrot.slane %v3879, 4
        %v3882 = vrot.slane %v219, 5
        %v3883 = vsel %vm3811, %v3881, %v3882
        %v3884 = vrot.slane %v3882, 4
        %v3885 = vrot.slane %v220, 5
        %v3886 = vsel %vm3811, %v3884, %v3885
        %v3887 = vrot.slane %v3885, 4
        %v3888 = vrot.slane %v221, 5
        %v3889 = vsel %vm3811, %v3887, %v3888
        %v3890 = vrot.slane %v222, 5
        %v3891 = vrot.slane %v3890, 4
        %v3892 = vrot.slane %v223, 5
        %v3893 = vsel %vm3811, %v3891, %v3892
        %v3894 = vrot.slane %v3892, 4
        %v3895 = vrot.slane %v224, 5
        %v3896 = vsel %vm3811, %v3894, %v3895
        %v3897 = vrot.slane %v3895, 4
        %v3898 = vrot.slane %v225, 5
        %v3899 = vsel %vm3811, %v3897, %v3898
        %v3900 = vrot.slane %v3898, 4
        %v3901 = vrot.slane %v226, 5
        %v3902 = vsel %vm3811, %v3900, %v3901
        %v3903 = vrot.slane %v227, 5
        %v3904 = vrot.slane %v3903, 4
        %v3905 = vrot.slane %v228, 5
        %v3906 = vsel %vm3811, %v3904, %v3905
        %v3907 = vrot.slane %v3905, 4
        %v3908 = vrot.slane %v229, 5
        %v3909 = vsel %vm3811, %v3907, %v3908
        %v3910 = vrot.slane %v3908, 4
        %v3911 = vrot.slane %v230, 5
        %v3912 = vsel %vm3811, %v3910, %v3911
        %v3913 = vrot.slane %v3911, 4
        %v3914 = vrot.slane %v231, 5
        %v3915 = vsel %vm3811, %v3913, %v3914
        %v3916 = vrot.slane %v232, 5
        %v3917 = vrot.slane %v3916, 4
        %v3918 = vrot.slane %v233, 5
        %v3919 = vsel %vm3811, %v3917, %v3918
        %v3920 = vrot.slane %v3918, 4
        %v3921 = vrot.slane %v234, 5
        %v3922 = vsel %vm3811, %v3920, %v3921
        %v3923 = vrot.slane %v3921, 4
        %v3924 = vrot.slane %v235, 5
        %v3925 = vsel %vm3811, %v3923, %v3924
        %v3926 = vrot.slane %v3924, 4
        %v3927 = vrot.slane %v236, 5
        %v3928 = vsel %vm3811, %v3926, %v3927
        %v3929 = vrot.slane %v237, 5
        %v3930 = vrot.slane %v3929, 4
        %v3931 = vrot.slane %v238, 5
        %v3932 = vsel %vm3811, %v3930, %v3931
        %v3933 = vrot.slane %v3931, 4
        %v3934 = vrot.slane %v239, 5
        %v3935 = vsel %vm3811, %v3933, %v3934
        %v3936 = vrot.slane %v3934, 4
        %v3937 = vrot.slane %v240, 5
        %v3938 = vsel %vm3811, %v3936, %v3937
        %v3939 = vrot.slane %v3937, 4
        %v3940 = vrot.slane %v241, 5
        %v3941 = vsel %vm3811, %v3939, %v3940
        %v3942 = vrot.slane %v242, 5
        %v3943 = vrot.slane %v3942, 4
        %v3944 = vrot.slane %v243, 5
        %v3945 = vsel %vm3811, %v3943, %v3944
        %v3946 = vrot.slane %v3944, 4
        %v3947 = vrot.slane %v244, 5
        %v3948 = vsel %vm3811, %v3946, %v3947
        %v3949 = vrot.slane %v3947, 4
        %v3950 = vrot.slane %v245, 5
        %v3951 = vsel %vm3811, %v3949, %v3950
        %v3952 = vrot.slane %v3950, 4
        %v3953 = vrot.slane %v246, 5
        %v3954 = vsel %vm3811, %v3952, %v3953
        %v3955 = vrot.slane %v247, 5
        %v3956 = vrot.slane %v3955, 4
        %v3957 = vrot.slane %v248, 5
        %v3958 = vsel %vm3811, %v3956, %v3957
        %v3959 = vrot.slane %v3957, 4
        %v3960 = vrot.slane %v249, 5
        %v3961 = vsel %vm3811, %v3959, %v3960
        %v3962 = vrot.slane %v3960, 4
        %v3963 = vrot.slane %v250, 5
        %v3964 = vsel %vm3811, %v3962, %v3963
        %v3965 = vrot.slane %v3963, 4
        %v3966 = vrot.slane %v251, 5
        %v3967 = vsel %vm3811, %v3965, %v3966
        %v3968 = vrot.slane %v252, 5
        %v3969 = vrot.slane %v3968, 4
        %v3970 = vrot.slane %v253, 5
        %v3971 = vsel %vm3811, %v3969, %v3970
        %v3972 = vrot.slane %v3970, 4
        %v3973 = vrot.slane %v254, 5
        %v3974 = vsel %vm3811, %v3972, %v3973
        %v3975 = vrot.slane %v3973, 4
        %v3976 = vrot.slane %v255, 5
        %v3977 = vsel %vm3811, %v3975, %v3976
        %v3978 = vrot.slane %v3976, 4
        %v3979 = vrot.slane %v256, 5
        %v3980 = vsel %vm3811, %v3978, %v3979
        %v3981 = vrot.slane %v257, 5
        %v3982 = vrot.slane %v3981, 4
        %v3983 = vrot.slane %v258, 5
        %v3984 = vsel %vm3811, %v3982, %v3983
        %v3985 = vrot.slane %v3983, 4
        %v3986 = vrot.slane %v259, 5
        %v3987 = vsel %vm3811, %v3985, %v3986
        %v3988 = vrot.slane %v3986, 4
        %v3989 = vrot.slane %v260, 5
        %v3990 = vsel %vm3811, %v3988, %v3989
        %v3991 = vrot.slane %v3989, 4
        %v3992 = vrot.slane %v261, 5
        %v3993 = vsel %vm3811, %v3991, %v3992
        %v3994 = vrot.slane %v262, 5
        %v3995 = vrot.slane %v3994, 4
        %v3996 = vrot.slane %v263, 5
        %v3997 = vsel %vm3811, %v3995, %v3996
        %v3998 = vrot.slane %v3996, 4
        %v3999 = vrot.slane %v264, 5
        %v4000 = vsel %vm3811, %v3998, %v3999
        %v4001 = vrot.slane %v3999, 4
        %v4002 = vrot.slane %v265, 5
        %v4003 = vsel %vm3811, %v4001, %v4002
        %v4004 = vrot.slane %v4002, 4
        %v4005 = vrot.slane %v266, 5
        %v4006 = vsel %vm3811, %v4004, %v4005
        %v4007 = vrot.slane %v267, 5
        %v4008 = vrot.slane %v4007, 4
        %v4009 = vrot.slane %v268, 5
        %v4010 = vsel %vm3811, %v4008, %v4009
        %v4011 = vrot.slane %v4009, 4
        %v4012 = vrot.slane %v269, 5
        %v4013 = vsel %vm3811, %v4011, %v4012
        %v4014 = vrot.slane %v4012, 4
        %v4015 = vrot.slane %v270, 5
        %v4016 = vsel %vm3811, %v4014, %v4015
        %v4017 = vrot.slane %v4015, 4
        %v4018 = vrot.slane %v271, 5
        %v4019 = vsel %vm3811, %v4017, %v4018
        %v4020 = vrot.slane %v272, 5
        %v4021 = vrot.slane %v4020, 4
        %v4022 = vrot.slane %v273, 5
        %v4023 = vsel %vm3811, %v4021, %v4022
        %v4024 = vrot.slane %v4022, 4
        %v4025 = vrot.slane %v274, 5
        %v4026 = vsel %vm3811, %v4024, %v4025
        %v4027 = vrot.slane %v4025, 4
        %v4028 = vrot.slane %v275, 5
        %v4029 = vsel %vm3811, %v4027, %v4028
        %v4030 = vrot.slane %v4028, 4
        %v4031 = vrot.slane %v276, 5
        %v4032 = vsel %vm3811, %v4030, %v4031
        %v4033 = vrot.slane %v277, 5
        %v4034 = vrot.slane %v4033, 4
        %v4035 = vrot.slane %v278, 5
        %v4036 = vsel %vm3811, %v4034, %v4035
        %v4037 = vrot.slane %v4035, 4
        %v4038 = vrot.slane %v279, 5
        %v4039 = vsel %vm3811, %v4037, %v4038
        %v4040 = vrot.slane %v4038, 4
        %v4041 = vrot.slane %v280, 5
        %v4042 = vsel %vm3811, %v4040, %v4041
        %v4043 = vrot.slane %v4041, 4
        %v4044 = vrot.slane %v281, 5
        %v4045 = vsel %vm3811, %v4043, %v4044
        %v4046 = vrot.slane %v282, 5
        %v4047 = vrot.slane %v4046, 4
        %v4048 = vrot.slane %v283, 5
        %v4049 = vsel %vm3811, %v4047, %v4048
        %v4050 = vrot.slane %v4048, 4
        %v4051 = vrot.slane %v284, 5
        %v4052 = vsel %vm3811, %v4050, %v4051
        %v4053 = vrot.slane %v4051, 4
        %v4054 = vrot.slane %v285, 5
        %v4055 = vsel %vm3811, %v4053, %v4054
        %v4056 = vrot.slane %v4054, 4
        %v4057 = vrot.slane %v286, 5
        %v4058 = vsel %vm3811, %v4056, %v4057
        %v4059 = vrot.slane %v287, 5
        %v4060 = vrot.slane %v4059, 4
        %v4061 = vrot.slane %v288, 5
        %v4062 = vsel %vm3811, %v4060, %v4061
        %v4063 = vrot.slane %v4061, 4
        %v4064 = vrot.slane %v289, 5
        %v4065 = vsel %vm3811, %v4063, %v4064
        %v4066 = vrot.slane %v4064, 4
        %v4067 = vrot.slane %v290, 5
        %v4068 = vsel %vm3811, %v4066, %v4067
        %v4069 = vrot.slane %v4067, 4
        %v4070 = vrot.slane %v291, 5
        %v4071 = vsel %vm3811, %v4069, %v4070
        %v4072 = vrot.slane %v292, 5
        %v4073 = vrot.slane %v4072, 4
        %v4074 = vrot.slane %v293, 5
        %v4075 = vsel %vm3811, %v4073, %v4074
        %v4076 = vrot.slane %v4074, 4
        %v4077 = vrot.slane %v294, 5
        %v4078 = vsel %vm3811, %v4076, %v4077
        %v4079 = vrot.slane %v4077, 4
        %v4080 = vrot.slane %v295, 5
        %v4081 = vsel %vm3811, %v4079, %v4080
        %v4082 = vrot.slane %v4080, 4
        %v4083 = vrot.slane %v296, 5
        %v4084 = vsel %vm3811, %v4082, %v4083
        %v4085 = vrot.slane %v297, 5
        %v4086 = vrot.slane %v4085, 4
        %v4087 = vrot.slane %v298, 5
        %v4088 = vsel %vm3811, %v4086, %v4087
        %v4089 = vrot.slane %v4087, 4
        %v4090 = vrot.slane %v299, 5
        %v4091 = vsel %vm3811, %v4089, %v4090
        %v4092 = vrot.slane %v4090, 4
        %v4093 = vrot.slane %v300, 5
        %v4094 = vsel %vm3811, %v4092, %v4093
        %v4095 = vrot.slane %v4093, 4
        %v4096 = vrot.slane %v301, 5
        %v4097 = vsel %vm3811, %v4095, %v4096
        %v4098 = vrot.slane %v302, 5
        %v4099 = vrot.slane %v4098, 4
        %v4100 = vrot.slane %v303, 5
        %v4101 = vsel %vm3811, %v4099, %v4100
        %v4102 = vrot.slane %v4100, 4
        %v4103 = vrot.slane %v304, 5
        %v4104 = vsel %vm3811, %v4102, %v4103
        %v4105 = vrot.slane %v4103, 4
        %v4106 = vrot.slane %v305, 5
        %v4107 = vsel %vm3811, %v4105, %v4106
        %v4108 = vrot.slane %v4106, 4
        %v4109 = vrot.slane %v306, 5
        %v4110 = vsel %vm3811, %v4108, %v4109
        %v4111 = vrot.slane %v307, 5
        %v4112 = vrot.slane %v4111, 4
        %v4113 = vrot.slane %v308, 5
        %v4114 = vsel %vm3811, %v4112, %v4113
        %v4115 = vrot.slane %v4113, 4
        %v4116 = vrot.slane %v309, 5
        %v4117 = vsel %vm3811, %v4115, %v4116
        %v4118 = vrot.slane %v4116, 4
        %v4119 = vrot.slane %v310, 5
        %v4120 = vsel %vm3811, %v4118, %v4119
        %v4121 = vrot.slane %v4119, 4
        %v4122 = vrot.slane %v311, 5
        %v4123 = vsel %vm3811, %v4121, %v4122
        %v4124 = vrot.slane %v312, 5
        %v4125 = vrot.slane %v4124, 4
        %v4126 = vrot.slane %v313, 5
        %v4127 = vsel %vm3811, %v4125, %v4126
        %v4128 = vrot.slane %v4126, 4
        %v4129 = vrot.slane %v314, 5
        %v4130 = vsel %vm3811, %v4128, %v4129
        %v4131 = vrot.slane %v4129, 4
        %v4132 = vrot.slane %v315, 5
        %v4133 = vsel %vm3811, %v4131, %v4132
        %v4134 = vrot.slane %v4132, 4
        %v4135 = vrot.slane %v316, 5
        %v4136 = vsel %vm3811, %v4134, %v4135
        %v4137 = vrot.slane %v317, 5
        %v4138 = vrot.slane %v4137, 4
        %v4139 = vrot.slane %v318, 5
        %v4140 = vsel %vm3811, %v4138, %v4139
        %v4141 = vrot.slane %v4139, 4
        %v4142 = vrot.slane %v319, 5
        %v4143 = vsel %vm3811, %v4141, %v4142
        %v4144 = vrot.slane %v4142, 4
        %v4145 = vrot.slane %v320, 5
        %v4146 = vsel %vm3811, %v4144, %v4145
        %v4147 = vrot.slane %v4145, 4
        %v4148 = vrot.slane %v321, 5
        %v4149 = vsel %vm3811, %v4147, %v4148
        %v4150 = vrot.slane %v322, 5
        %v4151 = vrot.slane %v4150, 4
        %v4152 = vrot.slane %v323, 5
        %v4153 = vsel %vm3811, %v4151, %v4152
        %v4154 = vrot.slane %v4152, 4
        %v4155 = vrot.slane %v324, 5
        %v4156 = vsel %vm3811, %v4154, %v4155
        %v4157 = vrot.slane %v4155, 4
        %v4158 = vrot.slane %v325, 5
        %v4159 = vsel %vm3811, %v4157, %v4158
        %v4160 = vrot.slane %v4158, 4
        %v4161 = vrot.slane %v326, 5
        %v4162 = vsel %vm3811, %v4160, %v4161
        %v4163 = vrot.slane %v327, 5
        %v4164 = vrot.slane %v4163, 4
        %v4165 = vrot.slane %v328, 5
        %v4166 = vsel %vm3811, %v4164, %v4165
        %v4167 = vrot.slane %v4165, 4
        %v4168 = vrot.slane %v329, 5
        %v4169 = vsel %vm3811, %v4167, %v4168
        %v4170 = vrot.slane %v4168, 4
        %v4171 = vrot.slane %v330, 5
        %v4172 = vsel %vm3811, %v4170, %v4171
        %v4173 = vrot.slane %v4171, 4
        %v4174 = vrot.slane %v331, 5
        %v4175 = vsel %vm3811, %v4173, %v4174
        %v4176 = vrot.slane %v332, 5
        %v4177 = vrot.slane %v4176, 4
        %v4178 = vrot.slane %v333, 5
        %v4179 = vsel %vm3811, %v4177, %v4178
        %v4180 = vrot.slane %v4178, 4
        %v4181 = vrot.slane %v334, 5
        %v4182 = vsel %vm3811, %v4180, %v4181
        %v4183 = vrot.slane %v4181, 4
        %v4184 = vrot.slane %v335, 5
        %v4185 = vsel %vm3811, %v4183, %v4184
        %v4186 = vrot.slane %v4184, 4
        %v4187 = vrot.slane %v336, 5
        %v4188 = vsel %vm3811, %v4186, %v4187
        %v4189 = vrot.slane %v337, 5
        %v4190 = vrot.slane %v4189, 4
        %v4191 = vrot.slane %v338, 5
        %v4192 = vsel %vm3811, %v4190, %v4191
        %v4193 = vrot.slane %v4191, 4
        %v4194 = vrot.slane %v339, 5
        %v4195 = vsel %vm3811, %v4193, %v4194
        %v4196 = vrot.slane %v4194, 4
        %v4197 = vrot.slane %v340, 5
        %v4198 = vsel %vm3811, %v4196, %v4197
        %v4199 = vrot.slane %v4197, 4
        %v4200 = vrot.slane %v341, 5
        %v4201 = vsel %vm3811, %v4199, %v4200
        %v4202 = vrot.slane %v342, 5
        %v4203 = vrot.slane %v4202, 4
        %v4204 = vrot.slane %v343, 5
        %v4205 = vsel %vm3811, %v4203, %v4204
        %v4206 = vrot.slane %v4204, 4
        %v4207 = vrot.slane %v344, 5
        %v4208 = vsel %vm3811, %v4206, %v4207
        %v4209 = vrot.slane %v4207, 4
        %v4210 = vrot.slane %v345, 5
        %v4211 = vsel %vm3811, %v4209, %v4210
        %v4212 = vrot.slane %v4210, 4
        %v4213 = vrot.slane %v346, 5
        %v4214 = vsel %vm3811, %v4212, %v4213
        %v4215 = vrot.slane %v347, 5
        %v4216 = vrot.slane %v4215, 4
        %v4217 = vrot.slane %v348, 5
        %v4218 = vsel %vm3811, %v4216, %v4217
        %v4219 = vrot.slane %v4217, 4
        %v4220 = vrot.slane %v349, 5
        %v4221 = vsel %vm3811, %v4219, %v4220
        %v4222 = vrot.slane %v4220, 4
        %v4223 = vrot.slane %v350, 5
        %v4224 = vsel %vm3811, %v4222, %v4223
        %v4225 = vrot.slane %v4223, 4
        %v4226 = vrot.slane %v351, 5
        %v4227 = vsel %vm3811, %v4225, %v4226
        %v4228 = vunpack.c.l.b16 %v3815
        %v4229 = vunpack.c.l.b16 %v3818
        %v4230 = vunpack.c.l.b16 %v3821
        %v4231 = vunpack.c.l.b16 %v3824
        %v4232 = vunpack.c.l.b16 %v3828
        %v4233 = vunpack.c.l.b16 %v3831
        %v4234 = vunpack.c.l.b16 %v3834
        %v4235 = vunpack.c.l.b16 %v3837
        %v4236 = vunpack.c.l.b16 %v3841
        %v4237 = vunpack.c.l.b16 %v3844
        %v4238 = vunpack.c.l.b16 %v3847
        %v4239 = vunpack.c.l.b16 %v3850
        %v4240 = vunpack.c.l.b16 %v3854
        %v4241 = vunpack.c.l.b16 %v3857
        %v4242 = vunpack.c.l.b16 %v3860
        %v4243 = vunpack.c.l.b16 %v3863
        %v4244 = vunpack.c.l.b16 %v3867
        %v4245 = vunpack.c.l.b16 %v3870
        %v4246 = vunpack.c.l.b16 %v3873
        %v4247 = vunpack.c.l.b16 %v3876
        %v4248 = vunpack.c.l.b16 %v3880
        %v4249 = vunpack.c.l.b16 %v3883
        %v4250 = vunpack.c.l.b16 %v3886
        %v4251 = vunpack.c.l.b16 %v3889
        %v4252 = vunpack.c.l.b16 %v3893
        %v4253 = vunpack.c.l.b16 %v3896
        %v4254 = vunpack.c.l.b16 %v3899
        %v4255 = vunpack.c.l.b16 %v3902
        %v4256 = vunpack.c.l.b16 %v3906
        %v4257 = vunpack.c.l.b16 %v3909
        %v4258 = vunpack.c.l.b16 %v3912
        %v4259 = vunpack.c.l.b16 %v3915
        %v4260 = vunpack.c.l.b16 %v3919
        %v4261 = vunpack.c.l.b16 %v3922
        %v4262 = vunpack.c.l.b16 %v3925
        %v4263 = vunpack.c.l.b16 %v3928
        %v4264 = vunpack.c.l.b16 %v3932
        %v4265 = vunpack.c.l.b16 %v3935
        %v4266 = vunpack.c.l.b16 %v3938
        %v4267 = vunpack.c.l.b16 %v3941
        %v4268 = vunpack.c.l.b16 %v3945
        %v4269 = vunpack.c.l.b16 %v3948
        %v4270 = vunpack.c.l.b16 %v3951
        %v4271 = vunpack.c.l.b16 %v3954
        %v4272 = vunpack.c.l.b16 %v3958
        %v4273 = vunpack.c.l.b16 %v3961
        %v4274 = vunpack.c.l.b16 %v3964
        %v4275 = vunpack.c.l.b16 %v3967
        %v4276 = vunpack.c.l.b16 %v3971
        %v4277 = vunpack.c.l.b16 %v3974
        %v4278 = vunpack.c.l.b16 %v3977
        %v4279 = vunpack.c.l.b16 %v3980
        %v4280 = vunpack.c.l.b16 %v3984
        %v4281 = vunpack.c.l.b16 %v3987
        %v4282 = vunpack.c.l.b16 %v3990
        %v4283 = vunpack.c.l.b16 %v3993
        %v4284 = vunpack.c.l.b16 %v3997
        %v4285 = vunpack.c.l.b16 %v4000
        %v4286 = vunpack.c.l.b16 %v4003
        %v4287 = vunpack.c.l.b16 %v4006
        %v4288 = vunpack.c.l.b16 %v4010
        %v4289 = vunpack.c.l.b16 %v4013
        %v4290 = vunpack.c.l.b16 %v4016
        %v4291 = vunpack.c.l.b16 %v4019
        %v4292 = vunpack.c.l.b16 %v4023
        %v4293 = vunpack.c.l.b16 %v4026
        %v4294 = vunpack.c.l.b16 %v4029
        %v4295 = vunpack.c.l.b16 %v4032
        %v4296 = vunpack.c.l.b16 %v4036
        %v4297 = vunpack.c.l.b16 %v4039
        %v4298 = vunpack.c.l.b16 %v4042
        %v4299 = vunpack.c.l.b16 %v4045
        %v4300 = vunpack.c.l.b16 %v4049
        %v4301 = vunpack.c.l.b16 %v4052
        %v4302 = vunpack.c.l.b16 %v4055
        %v4303 = vunpack.c.l.b16 %v4058
        %v4304 = vunpack.c.l.b16 %v4062
        %v4305 = vunpack.c.l.b16 %v4065
        %v4306 = vunpack.c.l.b16 %v4068
        %v4307 = vunpack.c.l.b16 %v4071
        %v4308 = vunpack.c.l.b16 %v4075
        %v4309 = vunpack.c.l.b16 %v4078
        %v4310 = vunpack.c.l.b16 %v4081
        %v4311 = vunpack.c.l.b16 %v4084
        %v4312 = vunpack.c.l.b16 %v4088
        %v4313 = vunpack.c.l.b16 %v4091
        %v4314 = vunpack.c.l.b16 %v4094
        %v4315 = vunpack.c.l.b16 %v4097
        %v4316 = vunpack.c.l.b16 %v4101
        %v4317 = vunpack.c.l.b16 %v4104
        %v4318 = vunpack.c.l.b16 %v4107
        %v4319 = vunpack.c.l.b16 %v4110
        %v4320 = vunpack.c.l.b16 %v4114
        %v4321 = vunpack.c.l.b16 %v4117
        %v4322 = vunpack.c.l.b16 %v4120
        %v4323 = vunpack.c.l.b16 %v4123
        %v4324 = vunpack.c.l.b16 %v4127
        %v4325 = vunpack.c.l.b16 %v4130
        %v4326 = vunpack.c.l.b16 %v4133
        %v4327 = vunpack.c.l.b16 %v4136
        %v4328 = vunpack.c.l.b16 %v4140
        %v4329 = vunpack.c.l.b16 %v4143
        %v4330 = vunpack.c.l.b16 %v4146
        %v4331 = vunpack.c.l.b16 %v4149
        %v4332 = vunpack.c.l.b16 %v4153
        %v4333 = vunpack.c.l.b16 %v4156
        %v4334 = vunpack.c.l.b16 %v4159
        %v4335 = vunpack.c.l.b16 %v4162
        %v4336 = vunpack.c.l.b16 %v4166
        %v4337 = vunpack.c.l.b16 %v4169
        %v4338 = vunpack.c.l.b16 %v4172
        %v4339 = vunpack.c.l.b16 %v4175
        %v4340 = vunpack.c.l.b16 %v4179
        %v4341 = vunpack.c.l.b16 %v4182
        %v4342 = vunpack.c.l.b16 %v4185
        %v4343 = vunpack.c.l.b16 %v4188
        %v4344 = vunpack.c.l.b16 %v4192
        %v4345 = vunpack.c.l.b16 %v4195
        %v4346 = vunpack.c.l.b16 %v4198
        %v4347 = vunpack.c.l.b16 %v4201
        %v4348 = vunpack.c.l.b16 %v4205
        %v4349 = vunpack.c.l.b16 %v4208
        %v4350 = vunpack.c.l.b16 %v4211
        %v4351 = vunpack.c.l.b16 %v4214
        %v4352 = vunpack.c.l.b16 %v4218
        %v4353 = vunpack.c.l.b16 %v4221
        %v4354 = vunpack.c.l.b16 %v4224
        %v4355 = vunpack.c.l.b16 %v4227
        %v4356 = vpack.c.b16 %v4229, %v4228
        %v4357 = vpack.c.b16 %v4231, %v4230
        %v4358 = vpack.c.b16 %v4233, %v4232
        %v4359 = vpack.c.b16 %v4235, %v4234
        %v4360 = vpack.c.b16 %v4237, %v4236
        %v4361 = vpack.c.b16 %v4239, %v4238
        %v4362 = vpack.c.b16 %v4241, %v4240
        %v4363 = vpack.c.b16 %v4243, %v4242
        %v4364 = vpack.c.b16 %v4245, %v4244
        %v4365 = vpack.c.b16 %v4247, %v4246
        %v4366 = vpack.c.b16 %v4249, %v4248
        %v4367 = vpack.c.b16 %v4251, %v4250
        %v4368 = vpack.c.b16 %v4253, %v4252
        %v4369 = vpack.c.b16 %v4255, %v4254
        %v4370 = vpack.c.b16 %v4257, %v4256
        %v4371 = vpack.c.b16 %v4259, %v4258
        %v4372 = vpack.c.b16 %v4261, %v4260
        %v4373 = vpack.c.b16 %v4263, %v4262
        %v4374 = vpack.c.b16 %v4265, %v4264
        %v4375 = vpack.c.b16 %v4267, %v4266
        %v4376 = vpack.c.b16 %v4269, %v4268
        %v4377 = vpack.c.b16 %v4271, %v4270
        %v4378 = vpack.c.b16 %v4273, %v4272
        %v4379 = vpack.c.b16 %v4275, %v4274
        %v4380 = vpack.c.b16 %v4277, %v4276
        %v4381 = vpack.c.b16 %v4279, %v4278
        %v4382 = vpack.c.b16 %v4281, %v4280
        %v4383 = vpack.c.b16 %v4283, %v4282
        %v4384 = vpack.c.b16 %v4285, %v4284
        %v4385 = vpack.c.b16 %v4287, %v4286
        %v4386 = vpack.c.b16 %v4289, %v4288
        %v4387 = vpack.c.b16 %v4291, %v4290
        %v4388 = vpack.c.b16 %v4293, %v4292
        %v4389 = vpack.c.b16 %v4295, %v4294
        %v4390 = vpack.c.b16 %v4297, %v4296
        %v4391 = vpack.c.b16 %v4299, %v4298
        %v4392 = vpack.c.b16 %v4301, %v4300
        %v4393 = vpack.c.b16 %v4303, %v4302
        %v4394 = vpack.c.b16 %v4305, %v4304
        %v4395 = vpack.c.b16 %v4307, %v4306
        %v4396 = vpack.c.b16 %v4309, %v4308
        %v4397 = vpack.c.b16 %v4311, %v4310
        %v4398 = vpack.c.b16 %v4313, %v4312
        %v4399 = vpack.c.b16 %v4315, %v4314
        %v4400 = vpack.c.b16 %v4317, %v4316
        %v4401 = vpack.c.b16 %v4319, %v4318
        %v4402 = vpack.c.b16 %v4321, %v4320
        %v4403 = vpack.c.b16 %v4323, %v4322
        %v4404 = vpack.c.b16 %v4325, %v4324
        %v4405 = vpack.c.b16 %v4327, %v4326
        %v4406 = vpack.c.b16 %v4329, %v4328
        %v4407 = vpack.c.b16 %v4331, %v4330
        %v4408 = vpack.c.b16 %v4333, %v4332
        %v4409 = vpack.c.b16 %v4335, %v4334
        %v4410 = vpack.c.b16 %v4337, %v4336
        %v4411 = vpack.c.b16 %v4339, %v4338
        %v4412 = vpack.c.b16 %v4341, %v4340
        %v4413 = vpack.c.b16 %v4343, %v4342
        %v4414 = vpack.c.b16 %v4345, %v4344
        %v4415 = vpack.c.b16 %v4347, %v4346
        %v4416 = vpack.c.b16 %v4349, %v4348
        %v4417 = vpack.c.b16 %v4351, %v4350
        %v4418 = vpack.c.b16 %v4353, %v4352
        %v4419 = vpack.c.b16 %v4355, %v4354
        %v4421 = vsel %vm1975, %v4356, 0
        %v4424 = vsel %vm1975, %v4357, 0
        %v4427 = vsel %vm1975, %v4358, 0
        %v4430 = vsel %vm1975, %v4359, 0
        %v4433 = vsel %vm1975, %v4360, 0
        %v4436 = vsel %vm1975, %v4361, 0
        %v4439 = vsel %vm1975, %v4362, 0
        %v4442 = vsel %vm1975, %v4363, 0
        %v4445 = vsel %vm1975, %v4364, 0
        %v4448 = vsel %vm1975, %v4365, 0
        %v4451 = vsel %vm1975, %v4366, 0
        %v4454 = vsel %vm1975, %v4367, 0
        %v4457 = vsel %vm1975, %v4368, 0
        %v4460 = vsel %vm1975, %v4369, 0
        %v4463 = vsel %vm1975, %v4370, 0
        %v4466 = vsel %vm1975, %v4371, 0
        %v4469 = vsel %vm1975, %v4372, 0
        %v4472 = vsel %vm1975, %v4373, 0
        %v4475 = vsel %vm1975, %v4374, 0
        %v4478 = vsel %vm1975, %v4375, 0
        %v4481 = vsel %vm1975, %v4376, 0
        %v4484 = vsel %vm1975, %v4377, 0
        %v4487 = vsel %vm1975, %v4378, 0
        %v4490 = vsel %vm1975, %v4379, 0
        %v4493 = vsel %vm1975, %v4380, 0
        %v4496 = vsel %vm1975, %v4381, 0
        %v4499 = vsel %vm1975, %v4382, 0
        %v4502 = vsel %vm1975, %v4383, 0
        %v4505 = vsel %vm1975, %v4384, 0
        %v4508 = vsel %vm1975, %v4385, 0
        %v4511 = vsel %vm1975, %v4386, 0
        %v4514 = vsel %vm1975, %v4387, 0
        %v4517 = vsel %vm1975, %v4388, 0
        %v4520 = vsel %vm1975, %v4389, 0
        %v4523 = vsel %vm1975, %v4390, 0
        %v4526 = vsel %vm1975, %v4391, 0
        %v4529 = vsel %vm1975, %v4392, 0
        %v4532 = vsel %vm1975, %v4393, 0
        %v4535 = vsel %vm1975, %v4394, 0
        %v4538 = vsel %vm1975, %v4395, 0
        %v4541 = vsel %vm1975, %v4396, 0
        %v4544 = vsel %vm1975, %v4397, 0
        %v4547 = vsel %vm1975, %v4398, 0
        %v4550 = vsel %vm1975, %v4399, 0
        %v4553 = vsel %vm1975, %v4400, 0
        %v4556 = vsel %vm1975, %v4401, 0
        %v4559 = vsel %vm1975, %v4402, 0
        %v4562 = vsel %vm1975, %v4403, 0
        %v4565 = vsel %vm1975, %v4404, 0
        %v4568 = vsel %vm1975, %v4405, 0
        %v4571 = vsel %vm1975, %v4406, 0
        %v4574 = vsel %vm1975, %v4407, 0
        %v4577 = vsel %vm1975, %v4408, 0
        %v4580 = vsel %vm1975, %v4409, 0
        %v4583 = vsel %vm1975, %v4410, 0
        %v4586 = vsel %vm1975, %v4411, 0
        %v4589 = vsel %vm1975, %v4412, 0
        %v4592 = vsel %vm1975, %v4413, 0
        %v4595 = vsel %vm1975, %v4414, 0
        %v4598 = vsel %vm1975, %v4415, 0
        %v4601 = vsel %vm1975, %v4416, 0
        %v4604 = vsel %vm1975, %v4417, 0
        %v4607 = vsel %vm1975, %v4418, 0
        %v4610 = vsel %vm1975, %v4419, 0
        %v4613 = vsel %vm2168, %v364, 0
        %4615 = vmatprep.subr.bf16.mxu0 0
        %4616 = vmatpush1.bf16.msra.mxu0 0
        %4617 = vmatprep.subr.bf16.mxu0 0
        %4618 = vmatpush1.bf16.msra.mxu0 0
        %4619 = vmatprep.subr.bf16.mxu0 0
        %4620 = vmatpush1.bf16.msra.mxu0 0
        %4621 = vmatprep.subr.bf16.mxu0 0
        %4622 = vmatpush1.bf16.msra.mxu0 0
        %4623 = vmatprep.subr.bf16.mxu0 0
        %4624 = vmatpush1.bf16.msra.mxu0 0
        %4625 = vmatprep.subr.bf16.mxu0 0
        %4626 = vmatpush1.bf16.msra.mxu0 0
        %4627 = vmatprep.subr.bf16.mxu0 0
        %4628 = vmatpush1.bf16.msra.mxu0 0
        %4629 = vmatprep.subr.bf16.mxu0 0
        %4630 = vmatpush1.bf16.msra.mxu0 %v4613
        %4631 = vmatprep.subr.bf16.mxu0 0
        %4632 = vmatpush2.bf16.msra.mxu0 0
        %4633 = vmatprep.subr.bf16.mxu0 0
        %4634 = vmatpush2.bf16.msra.mxu0 0
        %4635 = vmatprep.subr.bf16.mxu0 0
        %4636 = vmatpush2.bf16.msra.mxu0 0
        %4637 = vmatprep.subr.bf16.mxu0 0
        %4638 = vmatpush2.bf16.msra.mxu0 0
        %4639 = vmatprep.subr.bf16.mxu0 0
        %4640 = vmatpush2.bf16.msra.mxu0 0
        %4641 = vmatprep.subr.bf16.mxu0 0
        %4642 = vmatpush2.bf16.msra.mxu0 0
        %4643 = vmatprep.subr.bf16.mxu0 0
        %4644 = vmatpush2.bf16.msra.mxu0 0
        %4645 = vmatprep.subr.bf16.mxu0 0
        %4646 = vmatpush2.bf16.msra.mxu0 0
        %4647 = vmatprep.mubr.bf16.mxu0 0
        %4648 = vmatmul.mubr.bf16.gmra.mxu0 %v4421
        %v4649 = vpop.f32.mrf.mxu0
        %v4650 = vadd.f32 0.0, %v4649
        %v4651 = vpop.f32.mrf.mxu0
        %v4652 = vpop.f32.mrf.mxu0
        %v4653 = vadd.f32 0.0, %v4652
        %v4654 = vpop.f32.mrf.mxu0
        %4655 = vmatprep.mubr.bf16.mxu0 0
        %4656 = vmatmul.mubr.bf16.gmra.mxu0 %v4424
        %v4657 = vpop.f32.mrf.mxu0
        %v4658 = vadd.f32 0.0, %v4657
        %v4659 = vpop.f32.mrf.mxu0
        %v4660 = vpop.f32.mrf.mxu0
        %v4661 = vadd.f32 0.0, %v4660
        %v4662 = vpop.f32.mrf.mxu0
        %4663 = vmatprep.mubr.bf16.mxu0 0
        %4664 = vmatmul.mubr.bf16.gmra.mxu0 %v4427
        %v4665 = vpop.f32.mrf.mxu0
        %v4666 = vadd.f32 0.0, %v4665
        %v4667 = vpop.f32.mrf.mxu0
        %v4668 = vpop.f32.mrf.mxu0
        %v4669 = vadd.f32 0.0, %v4668
        %v4670 = vpop.f32.mrf.mxu0
        %4671 = vmatprep.mubr.bf16.mxu0 0
        %4672 = vmatmul.mubr.bf16.gmra.mxu0 %v4430
        %v4673 = vpop.f32.mrf.mxu0
        %v4674 = vadd.f32 0.0, %v4673
        %v4675 = vpop.f32.mrf.mxu0
        %v4676 = vpop.f32.mrf.mxu0
        %v4677 = vadd.f32 0.0, %v4676
        %v4678 = vpop.f32.mrf.mxu0
        %4679 = vmatprep.mubr.bf16.mxu0 0
        %4680 = vmatmul.mubr.bf16.gmra.mxu0 %v4433
        %v4681 = vpop.f32.mrf.mxu0
        %v4682 = vadd.f32 0.0, %v4681
        %v4683 = vpop.f32.mrf.mxu0
        %v4684 = vpop.f32.mrf.mxu0
        %v4685 = vadd.f32 0.0, %v4684
        %v4686 = vpop.f32.mrf.mxu0
        %4687 = vmatprep.mubr.bf16.mxu0 0
        %4688 = vmatmul.mubr.bf16.gmra.mxu0 %v4436
        %v4689 = vpop.f32.mrf.mxu0
        %v4690 = vadd.f32 0.0, %v4689
        %v4691 = vpop.f32.mrf.mxu0
        %v4692 = vpop.f32.mrf.mxu0
        %v4693 = vadd.f32 0.0, %v4692
        %v4694 = vpop.f32.mrf.mxu0
        %4695 = vmatprep.mubr.bf16.mxu0 0
        %4696 = vmatmul.mubr.bf16.gmra.mxu0 %v4439
        %v4697 = vpop.f32.mrf.mxu0
        %v4698 = vadd.f32 0.0, %v4697
        %v4699 = vpop.f32.mrf.mxu0
        %v4700 = vpop.f32.mrf.mxu0
        %v4701 = vadd.f32 0.0, %v4700
        %v4702 = vpop.f32.mrf.mxu0
        %4703 = vmatprep.mubr.bf16.mxu0 0
        %4704 = vmatmul.mubr.bf16.gmra.mxu0 %v4442
        %v4705 = vpop.f32.mrf.mxu0
        %v4706 = vadd.f32 0.0, %v4705
        %v4707 = vpop.f32.mrf.mxu0
        %v4708 = vpop.f32.mrf.mxu0
        %v4709 = vadd.f32 0.0, %v4708
        %v4710 = vpop.f32.mrf.mxu0
        %4711 = vmatprep.mubr.bf16.mxu0 0
        %4712 = vmatmul.mubr.bf16.gmra.mxu0 %v4445
        %v4713 = vpop.f32.mrf.mxu0
        %v4714 = vadd.f32 0.0, %v4713
        %v4715 = vpop.f32.mrf.mxu0
        %v4716 = vpop.f32.mrf.mxu0
        %v4717 = vadd.f32 0.0, %v4716
        %v4718 = vpop.f32.mrf.mxu0
        %4719 = vmatprep.mubr.bf16.mxu0 0
        %4720 = vmatmul.mubr.bf16.gmra.mxu0 %v4448
        %v4721 = vpop.f32.mrf.mxu0
        %v4722 = vadd.f32 0.0, %v4721
        %v4723 = vpop.f32.mrf.mxu0
        %v4724 = vpop.f32.mrf.mxu0
        %v4725 = vadd.f32 0.0, %v4724
        %v4726 = vpop.f32.mrf.mxu0
        %4727 = vmatprep.mubr.bf16.mxu0 0
        %4728 = vmatmul.mubr.bf16.gmra.mxu0 %v4451
        %v4729 = vpop.f32.mrf.mxu0
        %v4730 = vadd.f32 0.0, %v4729
        %v4731 = vpop.f32.mrf.mxu0
        %v4732 = vpop.f32.mrf.mxu0
        %v4733 = vadd.f32 0.0, %v4732
        %v4734 = vpop.f32.mrf.mxu0
        %4735 = vmatprep.mubr.bf16.mxu0 0
        %4736 = vmatmul.mubr.bf16.gmra.mxu0 %v4454
        %v4737 = vpop.f32.mrf.mxu0
        %v4738 = vadd.f32 0.0, %v4737
        %v4739 = vpop.f32.mrf.mxu0
        %v4740 = vpop.f32.mrf.mxu0
        %v4741 = vadd.f32 0.0, %v4740
        %v4742 = vpop.f32.mrf.mxu0
        %4743 = vmatprep.mubr.bf16.mxu0 0
        %4744 = vmatmul.mubr.bf16.gmra.mxu0 %v4457
        %v4745 = vpop.f32.mrf.mxu0
        %v4746 = vadd.f32 0.0, %v4745
        %v4747 = vpop.f32.mrf.mxu0
        %v4748 = vpop.f32.mrf.mxu0
        %v4749 = vadd.f32 0.0, %v4748
        %v4750 = vpop.f32.mrf.mxu0
        %4751 = vmatprep.mubr.bf16.mxu0 0
        %4752 = vmatmul.mubr.bf16.gmra.mxu0 %v4460
        %v4753 = vpop.f32.mrf.mxu0
        %v4754 = vadd.f32 0.0, %v4753
        %v4755 = vpop.f32.mrf.mxu0
        %v4756 = vpop.f32.mrf.mxu0
        %v4757 = vadd.f32 0.0, %v4756
        %v4758 = vpop.f32.mrf.mxu0
        %4759 = vmatprep.mubr.bf16.mxu0 0
        %4760 = vmatmul.mubr.bf16.gmra.mxu0 %v4463
        %v4761 = vpop.f32.mrf.mxu0
        %v4762 = vadd.f32 0.0, %v4761
        %v4763 = vpop.f32.mrf.mxu0
        %v4764 = vpop.f32.mrf.mxu0
        %v4765 = vadd.f32 0.0, %v4764
        %v4766 = vpop.f32.mrf.mxu0
        %4767 = vmatprep.mubr.bf16.mxu0 0
        %4768 = vmatmul.mubr.bf16.gmra.mxu0 %v4466
        %v4769 = vpop.f32.mrf.mxu0
        %v4770 = vadd.f32 0.0, %v4769
        %v4771 = vpop.f32.mrf.mxu0
        %v4772 = vpop.f32.mrf.mxu0
        %v4773 = vadd.f32 0.0, %v4772
        %v4774 = vpop.f32.mrf.mxu0
        %4775 = vmatprep.mubr.bf16.mxu0 0
        %4776 = vmatmul.mubr.bf16.gmra.mxu0 %v4469
        %v4777 = vpop.f32.mrf.mxu0
        %v4778 = vadd.f32 0.0, %v4777
        %v4779 = vpop.f32.mrf.mxu0
        %v4780 = vpop.f32.mrf.mxu0
        %v4781 = vadd.f32 0.0, %v4780
        %v4782 = vpop.f32.mrf.mxu0
        %4783 = vmatprep.mubr.bf16.mxu0 0
        %4784 = vmatmul.mubr.bf16.gmra.mxu0 %v4472
        %v4785 = vpop.f32.mrf.mxu0
        %v4786 = vadd.f32 0.0, %v4785
        %v4787 = vpop.f32.mrf.mxu0
        %v4788 = vpop.f32.mrf.mxu0
        %v4789 = vadd.f32 0.0, %v4788
        %v4790 = vpop.f32.mrf.mxu0
        %4791 = vmatprep.mubr.bf16.mxu0 0
        %4792 = vmatmul.mubr.bf16.gmra.mxu0 %v4475
        %v4793 = vpop.f32.mrf.mxu0
        %v4794 = vadd.f32 0.0, %v4793
        %v4795 = vpop.f32.mrf.mxu0
        %v4796 = vpop.f32.mrf.mxu0
        %v4797 = vadd.f32 0.0, %v4796
        %v4798 = vpop.f32.mrf.mxu0
        %4799 = vmatprep.mubr.bf16.mxu0 0
        %4800 = vmatmul.mubr.bf16.gmra.mxu0 %v4478
        %v4801 = vpop.f32.mrf.mxu0
        %v4802 = vadd.f32 0.0, %v4801
        %v4803 = vpop.f32.mrf.mxu0
        %v4804 = vpop.f32.mrf.mxu0
        %v4805 = vadd.f32 0.0, %v4804
        %v4806 = vpop.f32.mrf.mxu0
        %4807 = vmatprep.mubr.bf16.mxu0 0
        %4808 = vmatmul.mubr.bf16.gmra.mxu0 %v4481
        %v4809 = vpop.f32.mrf.mxu0
        %v4810 = vadd.f32 0.0, %v4809
        %v4811 = vpop.f32.mrf.mxu0
        %v4812 = vpop.f32.mrf.mxu0
        %v4813 = vadd.f32 0.0, %v4812
        %v4814 = vpop.f32.mrf.mxu0
        %4815 = vmatprep.mubr.bf16.mxu0 0
        %4816 = vmatmul.mubr.bf16.gmra.mxu0 %v4484
        %v4817 = vpop.f32.mrf.mxu0
        %v4818 = vadd.f32 0.0, %v4817
        %v4819 = vpop.f32.mrf.mxu0
        %v4820 = vpop.f32.mrf.mxu0
        %v4821 = vadd.f32 0.0, %v4820
        %v4822 = vpop.f32.mrf.mxu0
        %4823 = vmatprep.mubr.bf16.mxu0 0
        %4824 = vmatmul.mubr.bf16.gmra.mxu0 %v4487
        %v4825 = vpop.f32.mrf.mxu0
        %v4826 = vadd.f32 0.0, %v4825
        %v4827 = vpop.f32.mrf.mxu0
        %v4828 = vpop.f32.mrf.mxu0
        %v4829 = vadd.f32 0.0, %v4828
        %v4830 = vpop.f32.mrf.mxu0
        %4831 = vmatprep.mubr.bf16.mxu0 0
        %4832 = vmatmul.mubr.bf16.gmra.mxu0 %v4490
        %v4833 = vpop.f32.mrf.mxu0
        %v4834 = vadd.f32 0.0, %v4833
        %v4835 = vpop.f32.mrf.mxu0
        %v4836 = vpop.f32.mrf.mxu0
        %v4837 = vadd.f32 0.0, %v4836
        %v4838 = vpop.f32.mrf.mxu0
        %4839 = vmatprep.mubr.bf16.mxu0 0
        %4840 = vmatmul.mubr.bf16.gmra.mxu0 %v4493
        %v4841 = vpop.f32.mrf.mxu0
        %v4842 = vadd.f32 0.0, %v4841
        %v4843 = vpop.f32.mrf.mxu0
        %v4844 = vpop.f32.mrf.mxu0
        %v4845 = vadd.f32 0.0, %v4844
        %v4846 = vpop.f32.mrf.mxu0
        %4847 = vmatprep.mubr.bf16.mxu0 0
        %4848 = vmatmul.mubr.bf16.gmra.mxu0 %v4496
        %v4849 = vpop.f32.mrf.mxu0
        %v4850 = vadd.f32 0.0, %v4849
        %v4851 = vpop.f32.mrf.mxu0
        %v4852 = vpop.f32.mrf.mxu0
        %v4853 = vadd.f32 0.0, %v4852
        %v4854 = vpop.f32.mrf.mxu0
        %4855 = vmatprep.mubr.bf16.mxu0 0
        %4856 = vmatmul.mubr.bf16.gmra.mxu0 %v4499
        %v4857 = vpop.f32.mrf.mxu0
        %v4858 = vadd.f32 0.0, %v4857
        %v4859 = vpop.f32.mrf.mxu0
        %v4860 = vpop.f32.mrf.mxu0
        %v4861 = vadd.f32 0.0, %v4860
        %v4862 = vpop.f32.mrf.mxu0
        %4863 = vmatprep.mubr.bf16.mxu0 0
        %4864 = vmatmul.mubr.bf16.gmra.mxu0 %v4502
        %v4865 = vpop.f32.mrf.mxu0
        %v4866 = vadd.f32 0.0, %v4865
        %v4867 = vpop.f32.mrf.mxu0
        %v4868 = vpop.f32.mrf.mxu0
        %v4869 = vadd.f32 0.0, %v4868
        %v4870 = vpop.f32.mrf.mxu0
        %4871 = vmatprep.mubr.bf16.mxu0 0
        %4872 = vmatmul.mubr.bf16.gmra.mxu0 %v4505
        %v4873 = vpop.f32.mrf.mxu0
        %v4874 = vadd.f32 0.0, %v4873
        %v4875 = vpop.f32.mrf.mxu0
        %v4876 = vpop.f32.mrf.mxu0
        %v4877 = vadd.f32 0.0, %v4876
        %v4878 = vpop.f32.mrf.mxu0
        %4879 = vmatprep.mubr.bf16.mxu0 0
        %4880 = vmatmul.mubr.bf16.gmra.mxu0 %v4508
        %v4881 = vpop.f32.mrf.mxu0
        %v4882 = vadd.f32 0.0, %v4881
        %v4883 = vpop.f32.mrf.mxu0
        %v4884 = vpop.f32.mrf.mxu0
        %v4885 = vadd.f32 0.0, %v4884
        %v4886 = vpop.f32.mrf.mxu0
        %4887 = vmatprep.mubr.bf16.mxu0 0
        %4888 = vmatmul.mubr.bf16.gmra.mxu0 %v4511
        %v4889 = vpop.f32.mrf.mxu0
        %v4890 = vadd.f32 0.0, %v4889
        %v4891 = vpop.f32.mrf.mxu0
        %v4892 = vpop.f32.mrf.mxu0
        %v4893 = vadd.f32 0.0, %v4892
        %v4894 = vpop.f32.mrf.mxu0
        %4895 = vmatprep.mubr.bf16.mxu0 0
        %4896 = vmatmul.mubr.bf16.gmra.mxu0 %v4514
        %v4897 = vpop.f32.mrf.mxu0
        %v4898 = vadd.f32 0.0, %v4897
        %v4899 = vpop.f32.mrf.mxu0
        %v4900 = vpop.f32.mrf.mxu0
        %v4901 = vadd.f32 0.0, %v4900
        %v4902 = vpop.f32.mrf.mxu0
        %4903 = vmatprep.mubr.bf16.mxu0 0
        %4904 = vmatmul.mubr.bf16.gmra.mxu0 %v4517
        %v4905 = vpop.f32.mrf.mxu0
        %v4906 = vadd.f32 0.0, %v4905
        %v4907 = vpop.f32.mrf.mxu0
        %v4908 = vpop.f32.mrf.mxu0
        %v4909 = vadd.f32 0.0, %v4908
        %v4910 = vpop.f32.mrf.mxu0
        %4911 = vmatprep.mubr.bf16.mxu0 0
        %4912 = vmatmul.mubr.bf16.gmra.mxu0 %v4520
        %v4913 = vpop.f32.mrf.mxu0
        %v4914 = vadd.f32 0.0, %v4913
        %v4915 = vpop.f32.mrf.mxu0
        %v4916 = vpop.f32.mrf.mxu0
        %v4917 = vadd.f32 0.0, %v4916
        %v4918 = vpop.f32.mrf.mxu0
        %4919 = vmatprep.mubr.bf16.mxu0 0
        %4920 = vmatmul.mubr.bf16.gmra.mxu0 %v4523
        %v4921 = vpop.f32.mrf.mxu0
        %v4922 = vadd.f32 0.0, %v4921
        %v4923 = vpop.f32.mrf.mxu0
        %v4924 = vpop.f32.mrf.mxu0
        %v4925 = vadd.f32 0.0, %v4924
        %v4926 = vpop.f32.mrf.mxu0
        %4927 = vmatprep.mubr.bf16.mxu0 0
        %4928 = vmatmul.mubr.bf16.gmra.mxu0 %v4526
        %v4929 = vpop.f32.mrf.mxu0
        %v4930 = vadd.f32 0.0, %v4929
        %v4931 = vpop.f32.mrf.mxu0
        %v4932 = vpop.f32.mrf.mxu0
        %v4933 = vadd.f32 0.0, %v4932
        %v4934 = vpop.f32.mrf.mxu0
        %4935 = vmatprep.mubr.bf16.mxu0 0
        %4936 = vmatmul.mubr.bf16.gmra.mxu0 %v4529
        %v4937 = vpop.f32.mrf.mxu0
        %v4938 = vadd.f32 0.0, %v4937
        %v4939 = vpop.f32.mrf.mxu0
        %v4940 = vpop.f32.mrf.mxu0
        %v4941 = vadd.f32 0.0, %v4940
        %v4942 = vpop.f32.mrf.mxu0
        %4943 = vmatprep.mubr.bf16.mxu0 0
        %4944 = vmatmul.mubr.bf16.gmra.mxu0 %v4532
        %v4945 = vpop.f32.mrf.mxu0
        %v4946 = vadd.f32 0.0, %v4945
        %v4947 = vpop.f32.mrf.mxu0
        %v4948 = vpop.f32.mrf.mxu0
        %v4949 = vadd.f32 0.0, %v4948
        %v4950 = vpop.f32.mrf.mxu0
        %4951 = vmatprep.mubr.bf16.mxu0 0
        %4952 = vmatmul.mubr.bf16.gmra.mxu0 %v4535
        %v4953 = vpop.f32.mrf.mxu0
        %v4954 = vadd.f32 0.0, %v4953
        %v4955 = vpop.f32.mrf.mxu0
        %v4956 = vpop.f32.mrf.mxu0
        %v4957 = vadd.f32 0.0, %v4956
        %v4958 = vpop.f32.mrf.mxu0
        %4959 = vmatprep.mubr.bf16.mxu0 0
        %4960 = vmatmul.mubr.bf16.gmra.mxu0 %v4538
        %v4961 = vpop.f32.mrf.mxu0
        %v4962 = vadd.f32 0.0, %v4961
        %v4963 = vpop.f32.mrf.mxu0
        %v4964 = vpop.f32.mrf.mxu0
        %v4965 = vadd.f32 0.0, %v4964
        %v4966 = vpop.f32.mrf.mxu0
        %4967 = vmatprep.mubr.bf16.mxu0 0
        %4968 = vmatmul.mubr.bf16.gmra.mxu0 %v4541
        %v4969 = vpop.f32.mrf.mxu0
        %v4970 = vadd.f32 0.0, %v4969
        %v4971 = vpop.f32.mrf.mxu0
        %v4972 = vpop.f32.mrf.mxu0
        %v4973 = vadd.f32 0.0, %v4972
        %v4974 = vpop.f32.mrf.mxu0
        %4975 = vmatprep.mubr.bf16.mxu0 0
        %4976 = vmatmul.mubr.bf16.gmra.mxu0 %v4544
        %v4977 = vpop.f32.mrf.mxu0
        %v4978 = vadd.f32 0.0, %v4977
        %v4979 = vpop.f32.mrf.mxu0
        %v4980 = vpop.f32.mrf.mxu0
        %v4981 = vadd.f32 0.0, %v4980
        %v4982 = vpop.f32.mrf.mxu0
        %4983 = vmatprep.mubr.bf16.mxu0 0
        %4984 = vmatmul.mubr.bf16.gmra.mxu0 %v4547
        %v4985 = vpop.f32.mrf.mxu0
        %v4986 = vadd.f32 0.0, %v4985
        %v4987 = vpop.f32.mrf.mxu0
        %v4988 = vpop.f32.mrf.mxu0
        %v4989 = vadd.f32 0.0, %v4988
        %v4990 = vpop.f32.mrf.mxu0
        %4991 = vmatprep.mubr.bf16.mxu0 0
        %4992 = vmatmul.mubr.bf16.gmra.mxu0 %v4550
        %v4993 = vpop.f32.mrf.mxu0
        %v4994 = vadd.f32 0.0, %v4993
        %v4995 = vpop.f32.mrf.mxu0
        %v4996 = vpop.f32.mrf.mxu0
        %v4997 = vadd.f32 0.0, %v4996
        %v4998 = vpop.f32.mrf.mxu0
        %4999 = vmatprep.mubr.bf16.mxu0 0
        %5000 = vmatmul.mubr.bf16.gmra.mxu0 %v4553
        %v5001 = vpop.f32.mrf.mxu0
        %v5002 = vadd.f32 0.0, %v5001
        %v5003 = vpop.f32.mrf.mxu0
        %v5004 = vpop.f32.mrf.mxu0
        %v5005 = vadd.f32 0.0, %v5004
        %v5006 = vpop.f32.mrf.mxu0
        %5007 = vmatprep.mubr.bf16.mxu0 0
        %5008 = vmatmul.mubr.bf16.gmra.mxu0 %v4556
        %v5009 = vpop.f32.mrf.mxu0
        %v5010 = vadd.f32 0.0, %v5009
        %v5011 = vpop.f32.mrf.mxu0
        %v5012 = vpop.f32.mrf.mxu0
        %v5013 = vadd.f32 0.0, %v5012
        %v5014 = vpop.f32.mrf.mxu0
        %5015 = vmatprep.mubr.bf16.mxu0 0
        %5016 = vmatmul.mubr.bf16.gmra.mxu0 %v4559
        %v5017 = vpop.f32.mrf.mxu0
        %v5018 = vadd.f32 0.0, %v5017
        %v5019 = vpop.f32.mrf.mxu0
        %v5020 = vpop.f32.mrf.mxu0
        %v5021 = vadd.f32 0.0, %v5020
        %v5022 = vpop.f32.mrf.mxu0
        %5023 = vmatprep.mubr.bf16.mxu0 0
        %5024 = vmatmul.mubr.bf16.gmra.mxu0 %v4562
        %v5025 = vpop.f32.mrf.mxu0
        %v5026 = vadd.f32 0.0, %v5025
        %v5027 = vpop.f32.mrf.mxu0
        %v5028 = vpop.f32.mrf.mxu0
        %v5029 = vadd.f32 0.0, %v5028
        %v5030 = vpop.f32.mrf.mxu0
        %5031 = vmatprep.mubr.bf16.mxu0 0
        %5032 = vmatmul.mubr.bf16.gmra.mxu0 %v4565
        %v5033 = vpop.f32.mrf.mxu0
        %v5034 = vadd.f32 0.0, %v5033
        %v5035 = vpop.f32.mrf.mxu0
        %v5036 = vpop.f32.mrf.mxu0
        %v5037 = vadd.f32 0.0, %v5036
        %v5038 = vpop.f32.mrf.mxu0
        %5039 = vmatprep.mubr.bf16.mxu0 0
        %5040 = vmatmul.mubr.bf16.gmra.mxu0 %v4568
        %v5041 = vpop.f32.mrf.mxu0
        %v5042 = vadd.f32 0.0, %v5041
        %v5043 = vpop.f32.mrf.mxu0
        %v5044 = vpop.f32.mrf.mxu0
        %v5045 = vadd.f32 0.0, %v5044
        %v5046 = vpop.f32.mrf.mxu0
        %5047 = vmatprep.mubr.bf16.mxu0 0
        %5048 = vmatmul.mubr.bf16.gmra.mxu0 %v4571
        %v5049 = vpop.f32.mrf.mxu0
        %v5050 = vadd.f32 0.0, %v5049
        %v5051 = vpop.f32.mrf.mxu0
        %v5052 = vpop.f32.mrf.mxu0
        %v5053 = vadd.f32 0.0, %v5052
        %v5054 = vpop.f32.mrf.mxu0
        %5055 = vmatprep.mubr.bf16.mxu0 0
        %5056 = vmatmul.mubr.bf16.gmra.mxu0 %v4574
        %v5057 = vpop.f32.mrf.mxu0
        %v5058 = vadd.f32 0.0, %v5057
        %v5059 = vpop.f32.mrf.mxu0
        %v5060 = vpop.f32.mrf.mxu0
        %v5061 = vadd.f32 0.0, %v5060
        %v5062 = vpop.f32.mrf.mxu0
        %5063 = vmatprep.mubr.bf16.mxu0 0
        %5064 = vmatmul.mubr.bf16.gmra.mxu0 %v4577
        %v5065 = vpop.f32.mrf.mxu0
        %v5066 = vadd.f32 0.0, %v5065
        %v5067 = vpop.f32.mrf.mxu0
        %v5068 = vpop.f32.mrf.mxu0
        %v5069 = vadd.f32 0.0, %v5068
        %v5070 = vpop.f32.mrf.mxu0
        %5071 = vmatprep.mubr.bf16.mxu0 0
        %5072 = vmatmul.mubr.bf16.gmra.mxu0 %v4580
        %v5073 = vpop.f32.mrf.mxu0
        %v5074 = vadd.f32 0.0, %v5073
        %v5075 = vpop.f32.mrf.mxu0
        %v5076 = vpop.f32.mrf.mxu0
        %v5077 = vadd.f32 0.0, %v5076
        %v5078 = vpop.f32.mrf.mxu0
        %5079 = vmatprep.mubr.bf16.mxu0 0
        %5080 = vmatmul.mubr.bf16.gmra.mxu0 %v4583
        %v5081 = vpop.f32.mrf.mxu0
        %v5082 = vadd.f32 0.0, %v5081
        %v5083 = vpop.f32.mrf.mxu0
        %v5084 = vpop.f32.mrf.mxu0
        %v5085 = vadd.f32 0.0, %v5084
        %v5086 = vpop.f32.mrf.mxu0
        %5087 = vmatprep.mubr.bf16.mxu0 0
        %5088 = vmatmul.mubr.bf16.gmra.mxu0 %v4586
        %v5089 = vpop.f32.mrf.mxu0
        %v5090 = vadd.f32 0.0, %v5089
        %v5091 = vpop.f32.mrf.mxu0
        %v5092 = vpop.f32.mrf.mxu0
        %v5093 = vadd.f32 0.0, %v5092
        %v5094 = vpop.f32.mrf.mxu0
        %5095 = vmatprep.mubr.bf16.mxu0 0
        %5096 = vmatmul.mubr.bf16.gmra.mxu0 %v4589
        %v5097 = vpop.f32.mrf.mxu0
        %v5098 = vadd.f32 0.0, %v5097
        %v5099 = vpop.f32.mrf.mxu0
        %v5100 = vpop.f32.mrf.mxu0
        %v5101 = vadd.f32 0.0, %v5100
        %v5102 = vpop.f32.mrf.mxu0
        %5103 = vmatprep.mubr.bf16.mxu0 0
        %5104 = vmatmul.mubr.bf16.gmra.mxu0 %v4592
        %v5105 = vpop.f32.mrf.mxu0
        %v5106 = vadd.f32 0.0, %v5105
        %v5107 = vpop.f32.mrf.mxu0
        %v5108 = vpop.f32.mrf.mxu0
        %v5109 = vadd.f32 0.0, %v5108
        %v5110 = vpop.f32.mrf.mxu0
        %5111 = vmatprep.mubr.bf16.mxu0 0
        %5112 = vmatmul.mubr.bf16.gmra.mxu0 %v4595
        %v5113 = vpop.f32.mrf.mxu0
        %v5114 = vadd.f32 0.0, %v5113
        %v5115 = vpop.f32.mrf.mxu0
        %v5116 = vpop.f32.mrf.mxu0
        %v5117 = vadd.f32 0.0, %v5116
        %v5118 = vpop.f32.mrf.mxu0
        %5119 = vmatprep.mubr.bf16.mxu0 0
        %5120 = vmatmul.mubr.bf16.gmra.mxu0 %v4598
        %v5121 = vpop.f32.mrf.mxu0
        %v5122 = vadd.f32 0.0, %v5121
        %v5123 = vpop.f32.mrf.mxu0
        %v5124 = vpop.f32.mrf.mxu0
        %v5125 = vadd.f32 0.0, %v5124
        %v5126 = vpop.f32.mrf.mxu0
        %5127 = vmatprep.mubr.bf16.mxu0 0
        %5128 = vmatmul.mubr.bf16.gmra.mxu0 %v4601
        %v5129 = vpop.f32.mrf.mxu0
        %v5130 = vadd.f32 0.0, %v5129
        %v5131 = vpop.f32.mrf.mxu0
        %v5132 = vpop.f32.mrf.mxu0
        %v5133 = vadd.f32 0.0, %v5132
        %v5134 = vpop.f32.mrf.mxu0
        %5135 = vmatprep.mubr.bf16.mxu0 0
        %5136 = vmatmul.mubr.bf16.gmra.mxu0 %v4604
        %v5137 = vpop.f32.mrf.mxu0
        %v5138 = vadd.f32 0.0, %v5137
        %v5139 = vpop.f32.mrf.mxu0
        %v5140 = vpop.f32.mrf.mxu0
        %v5141 = vadd.f32 0.0, %v5140
        %v5142 = vpop.f32.mrf.mxu0
        %5143 = vmatprep.mubr.bf16.mxu0 0
        %5144 = vmatmul.mubr.bf16.gmra.mxu0 %v4607
        %v5145 = vpop.f32.mrf.mxu0
        %v5146 = vadd.f32 0.0, %v5145
        %v5147 = vpop.f32.mrf.mxu0
        %v5148 = vpop.f32.mrf.mxu0
        %v5149 = vadd.f32 0.0, %v5148
        %v5150 = vpop.f32.mrf.mxu0
        %5151 = vmatprep.mubr.bf16.mxu0 0
        %5152 = vmatmul.mubr.bf16.gmra.mxu0 %v4610
        %v5153 = vpop.f32.mrf.mxu0
        %v5154 = vadd.f32 0.0, %v5153
        %v5155 = vpop.f32.mrf.mxu0
        %v5156 = vpop.f32.mrf.mxu0
        %v5157 = vadd.f32 0.0, %v5156
        %v5158 = vpop.f32.mrf.mxu0
        %5159 = vdwg.mxu0
        %v5160 = vadd.f32 %v3267, %v4650
        %v5161 = vadd.f32 %v3270, %v4653
        %v5162 = vadd.f32 %v3275, %v4658
        %v5163 = vadd.f32 %v3278, %v4661
        %v5164 = vadd.f32 %v3283, %v4666
        %v5165 = vadd.f32 %v3286, %v4669
        %v5166 = vadd.f32 %v3291, %v4674
        %v5167 = vadd.f32 %v3294, %v4677
        %v5168 = vadd.f32 %v3299, %v4682
        %v5169 = vadd.f32 %v3302, %v4685
        %v5170 = vadd.f32 %v3307, %v4690
        %v5171 = vadd.f32 %v3310, %v4693
        %v5172 = vadd.f32 %v3315, %v4698
        %v5173 = vadd.f32 %v3318, %v4701
        %v5174 = vadd.f32 %v3323, %v4706
        %v5175 = vadd.f32 %v3326, %v4709
        %v5176 = vadd.f32 %v3331, %v4714
        %v5177 = vadd.f32 %v3334, %v4717
        %v5178 = vadd.f32 %v3339, %v4722
        %v5179 = vadd.f32 %v3342, %v4725
        %v5180 = vadd.f32 %v3347, %v4730
        %v5181 = vadd.f32 %v3350, %v4733
        %v5182 = vadd.f32 %v3355, %v4738
        %v5183 = vadd.f32 %v3358, %v4741
        %v5184 = vadd.f32 %v3363, %v4746
        %v5185 = vadd.f32 %v3366, %v4749
        %v5186 = vadd.f32 %v3371, %v4754
        %v5187 = vadd.f32 %v3374, %v4757
        %v5188 = vadd.f32 %v3379, %v4762
        %v5189 = vadd.f32 %v3382, %v4765
        %v5190 = vadd.f32 %v3387, %v4770
        %v5191 = vadd.f32 %v3390, %v4773
        %v5192 = vadd.f32 %v3395, %v4778
        %v5193 = vadd.f32 %v3398, %v4781
        %v5194 = vadd.f32 %v3403, %v4786
        %v5195 = vadd.f32 %v3406, %v4789
        %v5196 = vadd.f32 %v3411, %v4794
        %v5197 = vadd.f32 %v3414, %v4797
        %v5198 = vadd.f32 %v3419, %v4802
        %v5199 = vadd.f32 %v3422, %v4805
        %v5200 = vadd.f32 %v3427, %v4810
        %v5201 = vadd.f32 %v3430, %v4813
        %v5202 = vadd.f32 %v3435, %v4818
        %v5203 = vadd.f32 %v3438, %v4821
        %v5204 = vadd.f32 %v3443, %v4826
        %v5205 = vadd.f32 %v3446, %v4829
        %v5206 = vadd.f32 %v3451, %v4834
        %v5207 = vadd.f32 %v3454, %v4837
        %v5208 = vadd.f32 %v3459, %v4842
        %v5209 = vadd.f32 %v3462, %v4845
        %v5210 = vadd.f32 %v3467, %v4850
        %v5211 = vadd.f32 %v3470, %v4853
        %v5212 = vadd.f32 %v3475, %v4858
        %v5213 = vadd.f32 %v3478, %v4861
        %v5214 = vadd.f32 %v3483, %v4866
        %v5215 = vadd.f32 %v3486, %v4869
        %v5216 = vadd.f32 %v3491, %v4874
        %v5217 = vadd.f32 %v3494, %v4877
        %v5218 = vadd.f32 %v3499, %v4882
        %v5219 = vadd.f32 %v3502, %v4885
        %v5220 = vadd.f32 %v3507, %v4890
        %v5221 = vadd.f32 %v3510, %v4893
        %v5222 = vadd.f32 %v3515, %v4898
        %v5223 = vadd.f32 %v3518, %v4901
        %v5224 = vadd.f32 %v3523, %v4906
        %v5225 = vadd.f32 %v3526, %v4909
        %v5226 = vadd.f32 %v3531, %v4914
        %v5227 = vadd.f32 %v3534, %v4917
        %v5228 = vadd.f32 %v3539, %v4922
        %v5229 = vadd.f32 %v3542, %v4925
        %v5230 = vadd.f32 %v3547, %v4930
        %v5231 = vadd.f32 %v3550, %v4933
        %v5232 = vadd.f32 %v3555, %v4938
        %v5233 = vadd.f32 %v3558, %v4941
        %v5234 = vadd.f32 %v3563, %v4946
        %v5235 = vadd.f32 %v3566, %v4949
        %v5236 = vadd.f32 %v3571, %v4954
        %v5237 = vadd.f32 %v3574, %v4957
        %v5238 = vadd.f32 %v3579, %v4962
        %v5239 = vadd.f32 %v3582, %v4965
        %v5240 = vadd.f32 %v3587, %v4970
        %v5241 = vadd.f32 %v3590, %v4973
        %v5242 = vadd.f32 %v3595, %v4978
        %v5243 = vadd.f32 %v3598, %v4981
        %v5244 = vadd.f32 %v3603, %v4986
        %v5245 = vadd.f32 %v3606, %v4989
        %v5246 = vadd.f32 %v3611, %v4994
        %v5247 = vadd.f32 %v3614, %v4997
        %v5248 = vadd.f32 %v3619, %v5002
        %v5249 = vadd.f32 %v3622, %v5005
        %v5250 = vadd.f32 %v3627, %v5010
        %v5251 = vadd.f32 %v3630, %v5013
        %v5252 = vadd.f32 %v3635, %v5018
        %v5253 = vadd.f32 %v3638, %v5021
        %v5254 = vadd.f32 %v3643, %v5026
        %v5255 = vadd.f32 %v3646, %v5029
        %v5256 = vadd.f32 %v3651, %v5034
        %v5257 = vadd.f32 %v3654, %v5037
        %v5258 = vadd.f32 %v3659, %v5042
        %v5259 = vadd.f32 %v3662, %v5045
        %v5260 = vadd.f32 %v3667, %v5050
        %v5261 = vadd.f32 %v3670, %v5053
        %v5262 = vadd.f32 %v3675, %v5058
        %v5263 = vadd.f32 %v3678, %v5061
        %v5264 = vadd.f32 %v3683, %v5066
        %v5265 = vadd.f32 %v3686, %v5069
        %v5266 = vadd.f32 %v3691, %v5074
        %v5267 = vadd.f32 %v3694, %v5077
        %v5268 = vadd.f32 %v3699, %v5082
        %v5269 = vadd.f32 %v3702, %v5085
        %v5270 = vadd.f32 %v3707, %v5090
        %v5271 = vadd.f32 %v3710, %v5093
        %v5272 = vadd.f32 %v3715, %v5098
        %v5273 = vadd.f32 %v3718, %v5101
        %v5274 = vadd.f32 %v3723, %v5106
        %v5275 = vadd.f32 %v3726, %v5109
        %v5276 = vadd.f32 %v3731, %v5114
        %v5277 = vadd.f32 %v3734, %v5117
        %v5278 = vadd.f32 %v3739, %v5122
        %v5279 = vadd.f32 %v3742, %v5125
        %v5280 = vadd.f32 %v3747, %v5130
        %v5281 = vadd.f32 %v3750, %v5133
        %v5282 = vadd.f32 %v3755, %v5138
        %v5283 = vadd.f32 %v3758, %v5141
        %v5284 = vadd.f32 %v3763, %v5146
        %v5285 = vadd.f32 %v3766, %v5149
        %v5286 = vadd.f32 %v3771, %v5154
        %v5287 = vadd.f32 %v3774, %v5157
        %v5292 = vunpack.c.l.b16 %v352
        %v5293 = vunpack.c.l.b16 %v353
        %v5294 = vunpack.c.l.b16 %v354
        %v5295 = vunpack.c.l.b16 %v355
        %v5296 = vpack.c.b16 %v5293, %v5292
        %v5297 = vpack.c.b16 %v5295, %v5294
        %v5299 = vsel %vm1975, %v5296, 0
        %v5302 = vsel %vm1975, %v5297, 0
        %v5305 = vsel %vm2168, %v365, 0
        %5307 = vmatprep.subr.bf16.mxu0 0
        %5308 = vmatpush1.bf16.msra.mxu0 0
        %5309 = vmatprep.subr.bf16.mxu0 0
        %5310 = vmatpush1.bf16.msra.mxu0 0
        %5311 = vmatprep.subr.bf16.mxu0 0
        %5312 = vmatpush1.bf16.msra.mxu0 0
        %5313 = vmatprep.subr.bf16.mxu0 0
        %5314 = vmatpush1.bf16.msra.mxu0 0
        %5315 = vmatprep.subr.bf16.mxu0 0
        %5316 = vmatpush1.bf16.msra.mxu0 0
        %5317 = vmatprep.subr.bf16.mxu0 0
        %5318 = vmatpush1.bf16.msra.mxu0 0
        %5319 = vmatprep.subr.bf16.mxu0 0
        %5320 = vmatpush1.bf16.msra.mxu0 0
        %5321 = vmatprep.subr.bf16.mxu0 0
        %5322 = vmatpush1.bf16.msra.mxu0 %v5305
        %5323 = vmatprep.subr.bf16.mxu0 0
        %5324 = vmatpush2.bf16.msra.mxu0 0
        %5325 = vmatprep.subr.bf16.mxu0 0
        %5326 = vmatpush2.bf16.msra.mxu0 0
        %5327 = vmatprep.subr.bf16.mxu0 0
        %5328 = vmatpush2.bf16.msra.mxu0 0
        %5329 = vmatprep.subr.bf16.mxu0 0
        %5330 = vmatpush2.bf16.msra.mxu0 0
        %5331 = vmatprep.subr.bf16.mxu0 0
        %5332 = vmatpush2.bf16.msra.mxu0 0
        %5333 = vmatprep.subr.bf16.mxu0 0
        %5334 = vmatpush2.bf16.msra.mxu0 0
        %5335 = vmatprep.subr.bf16.mxu0 0
        %5336 = vmatpush2.bf16.msra.mxu0 0
        %5337 = vmatprep.subr.bf16.mxu0 0
        %5338 = vmatpush2.bf16.msra.mxu0 0
        %5339 = vmatprep.mubr.bf16.mxu0 0
        %5340 = vmatmul.mubr.bf16.gmra.mxu0 %v3044
        %v5341 = vpop.f32.mrf.mxu0
        %v5342 = vadd.f32 0.0, %v5341
        %v5343 = vpop.f32.mrf.mxu0
        %v5344 = vpop.f32.mrf.mxu0
        %v5345 = vadd.f32 0.0, %v5344
        %v5346 = vpop.f32.mrf.mxu0
        %5347 = vmatprep.mubr.bf16.mxu0 0
        %5348 = vmatmul.mubr.bf16.gmra.mxu0 %v3047
        %v5349 = vpop.f32.mrf.mxu0
        %v5350 = vadd.f32 0.0, %v5349
        %v5351 = vpop.f32.mrf.mxu0
        %v5352 = vpop.f32.mrf.mxu0
        %v5353 = vadd.f32 0.0, %v5352
        %v5354 = vpop.f32.mrf.mxu0
        %5355 = vmatprep.mubr.bf16.mxu0 0
        %5356 = vmatmul.mubr.bf16.gmra.mxu0 %v3050
        %v5357 = vpop.f32.mrf.mxu0
        %v5358 = vadd.f32 0.0, %v5357
        %v5359 = vpop.f32.mrf.mxu0
        %v5360 = vpop.f32.mrf.mxu0
        %v5361 = vadd.f32 0.0, %v5360
        %v5362 = vpop.f32.mrf.mxu0
        %5363 = vmatprep.mubr.bf16.mxu0 0
        %5364 = vmatmul.mubr.bf16.gmra.mxu0 %v3053
        %v5365 = vpop.f32.mrf.mxu0
        %v5366 = vadd.f32 0.0, %v5365
        %v5367 = vpop.f32.mrf.mxu0
        %v5368 = vpop.f32.mrf.mxu0
        %v5369 = vadd.f32 0.0, %v5368
        %v5370 = vpop.f32.mrf.mxu0
        %5371 = vmatprep.mubr.bf16.mxu0 0
        %5372 = vmatmul.mubr.bf16.gmra.mxu0 %v3056
        %v5373 = vpop.f32.mrf.mxu0
        %v5374 = vadd.f32 0.0, %v5373
        %v5375 = vpop.f32.mrf.mxu0
        %v5376 = vpop.f32.mrf.mxu0
        %v5377 = vadd.f32 0.0, %v5376
        %v5378 = vpop.f32.mrf.mxu0
        %5379 = vmatprep.mubr.bf16.mxu0 0
        %5380 = vmatmul.mubr.bf16.gmra.mxu0 %v3059
        %v5381 = vpop.f32.mrf.mxu0
        %v5382 = vadd.f32 0.0, %v5381
        %v5383 = vpop.f32.mrf.mxu0
        %v5384 = vpop.f32.mrf.mxu0
        %v5385 = vadd.f32 0.0, %v5384
        %v5386 = vpop.f32.mrf.mxu0
        %5387 = vmatprep.mubr.bf16.mxu0 0
        %5388 = vmatmul.mubr.bf16.gmra.mxu0 %v3062
        %v5389 = vpop.f32.mrf.mxu0
        %v5390 = vadd.f32 0.0, %v5389
        %v5391 = vpop.f32.mrf.mxu0
        %v5392 = vpop.f32.mrf.mxu0
        %v5393 = vadd.f32 0.0, %v5392
        %v5394 = vpop.f32.mrf.mxu0
        %5395 = vmatprep.mubr.bf16.mxu0 0
        %5396 = vmatmul.mubr.bf16.gmra.mxu0 %v3065
        %v5397 = vpop.f32.mrf.mxu0
        %v5398 = vadd.f32 0.0, %v5397
        %v5399 = vpop.f32.mrf.mxu0
        %v5400 = vpop.f32.mrf.mxu0
        %v5401 = vadd.f32 0.0, %v5400
        %v5402 = vpop.f32.mrf.mxu0
        %5403 = vmatprep.mubr.bf16.mxu0 0
        %5404 = vmatmul.mubr.bf16.gmra.mxu0 %v3068
        %v5405 = vpop.f32.mrf.mxu0
        %v5406 = vadd.f32 0.0, %v5405
        %v5407 = vpop.f32.mrf.mxu0
        %v5408 = vpop.f32.mrf.mxu0
        %v5409 = vadd.f32 0.0, %v5408
        %v5410 = vpop.f32.mrf.mxu0
        %5411 = vmatprep.mubr.bf16.mxu0 0
        %5412 = vmatmul.mubr.bf16.gmra.mxu0 %v3071
        %v5413 = vpop.f32.mrf.mxu0
        %v5414 = vadd.f32 0.0, %v5413
        %v5415 = vpop.f32.mrf.mxu0
        %v5416 = vpop.f32.mrf.mxu0
        %v5417 = vadd.f32 0.0, %v5416
        %v5418 = vpop.f32.mrf.mxu0
        %5419 = vmatprep.mubr.bf16.mxu0 0
        %5420 = vmatmul.mubr.bf16.gmra.mxu0 %v3074
        %v5421 = vpop.f32.mrf.mxu0
        %v5422 = vadd.f32 0.0, %v5421
        %v5423 = vpop.f32.mrf.mxu0
        %v5424 = vpop.f32.mrf.mxu0
        %v5425 = vadd.f32 0.0, %v5424
        %v5426 = vpop.f32.mrf.mxu0
        %5427 = vmatprep.mubr.bf16.mxu0 0
        %5428 = vmatmul.mubr.bf16.gmra.mxu0 %v3077
        %v5429 = vpop.f32.mrf.mxu0
        %v5430 = vadd.f32 0.0, %v5429
        %v5431 = vpop.f32.mrf.mxu0
        %v5432 = vpop.f32.mrf.mxu0
        %v5433 = vadd.f32 0.0, %v5432
        %v5434 = vpop.f32.mrf.mxu0
        %5435 = vmatprep.mubr.bf16.mxu0 0
        %5436 = vmatmul.mubr.bf16.gmra.mxu0 %v3080
        %v5437 = vpop.f32.mrf.mxu0
        %v5438 = vadd.f32 0.0, %v5437
        %v5439 = vpop.f32.mrf.mxu0
        %v5440 = vpop.f32.mrf.mxu0
        %v5441 = vadd.f32 0.0, %v5440
        %v5442 = vpop.f32.mrf.mxu0
        %5443 = vmatprep.mubr.bf16.mxu0 0
        %5444 = vmatmul.mubr.bf16.gmra.mxu0 %v3083
        %v5445 = vpop.f32.mrf.mxu0
        %v5446 = vadd.f32 0.0, %v5445
        %v5447 = vpop.f32.mrf.mxu0
        %v5448 = vpop.f32.mrf.mxu0
        %v5449 = vadd.f32 0.0, %v5448
        %v5450 = vpop.f32.mrf.mxu0
        %5451 = vmatprep.mubr.bf16.mxu0 0
        %5452 = vmatmul.mubr.bf16.gmra.mxu0 %v3086
        %v5453 = vpop.f32.mrf.mxu0
        %v5454 = vadd.f32 0.0, %v5453
        %v5455 = vpop.f32.mrf.mxu0
        %v5456 = vpop.f32.mrf.mxu0
        %v5457 = vadd.f32 0.0, %v5456
        %v5458 = vpop.f32.mrf.mxu0
        %5459 = vmatprep.mubr.bf16.mxu0 0
        %5460 = vmatmul.mubr.bf16.gmra.mxu0 %v3089
        %v5461 = vpop.f32.mrf.mxu0
        %v5462 = vadd.f32 0.0, %v5461
        %v5463 = vpop.f32.mrf.mxu0
        %v5464 = vpop.f32.mrf.mxu0
        %v5465 = vadd.f32 0.0, %v5464
        %v5466 = vpop.f32.mrf.mxu0
        %5467 = vmatprep.mubr.bf16.mxu0 0
        %5468 = vmatmul.mubr.bf16.gmra.mxu0 %v3092
        %v5469 = vpop.f32.mrf.mxu0
        %v5470 = vadd.f32 0.0, %v5469
        %v5471 = vpop.f32.mrf.mxu0
        %v5472 = vpop.f32.mrf.mxu0
        %v5473 = vadd.f32 0.0, %v5472
        %v5474 = vpop.f32.mrf.mxu0
        %5475 = vmatprep.mubr.bf16.mxu0 0
        %5476 = vmatmul.mubr.bf16.gmra.mxu0 %v3095
        %v5477 = vpop.f32.mrf.mxu0
        %v5478 = vadd.f32 0.0, %v5477
        %v5479 = vpop.f32.mrf.mxu0
        %v5480 = vpop.f32.mrf.mxu0
        %v5481 = vadd.f32 0.0, %v5480
        %v5482 = vpop.f32.mrf.mxu0
        %5483 = vmatprep.mubr.bf16.mxu0 0
        %5484 = vmatmul.mubr.bf16.gmra.mxu0 %v3098
        %v5485 = vpop.f32.mrf.mxu0
        %v5486 = vadd.f32 0.0, %v5485
        %v5487 = vpop.f32.mrf.mxu0
        %v5488 = vpop.f32.mrf.mxu0
        %v5489 = vadd.f32 0.0, %v5488
        %v5490 = vpop.f32.mrf.mxu0
        %5491 = vmatprep.mubr.bf16.mxu0 0
        %5492 = vmatmul.mubr.bf16.gmra.mxu0 %v3101
        %v5493 = vpop.f32.mrf.mxu0
        %v5494 = vadd.f32 0.0, %v5493
        %v5495 = vpop.f32.mrf.mxu0
        %v5496 = vpop.f32.mrf.mxu0
        %v5497 = vadd.f32 0.0, %v5496
        %v5498 = vpop.f32.mrf.mxu0
        %5499 = vmatprep.mubr.bf16.mxu0 0
        %5500 = vmatmul.mubr.bf16.gmra.mxu0 %v3104
        %v5501 = vpop.f32.mrf.mxu0
        %v5502 = vadd.f32 0.0, %v5501
        %v5503 = vpop.f32.mrf.mxu0
        %v5504 = vpop.f32.mrf.mxu0
        %v5505 = vadd.f32 0.0, %v5504
        %v5506 = vpop.f32.mrf.mxu0
        %5507 = vmatprep.mubr.bf16.mxu0 0
        %5508 = vmatmul.mubr.bf16.gmra.mxu0 %v3107
        %v5509 = vpop.f32.mrf.mxu0
        %v5510 = vadd.f32 0.0, %v5509
        %v5511 = vpop.f32.mrf.mxu0
        %v5512 = vpop.f32.mrf.mxu0
        %v5513 = vadd.f32 0.0, %v5512
        %v5514 = vpop.f32.mrf.mxu0
        %5515 = vmatprep.mubr.bf16.mxu0 0
        %5516 = vmatmul.mubr.bf16.gmra.mxu0 %v3110
        %v5517 = vpop.f32.mrf.mxu0
        %v5518 = vadd.f32 0.0, %v5517
        %v5519 = vpop.f32.mrf.mxu0
        %v5520 = vpop.f32.mrf.mxu0
        %v5521 = vadd.f32 0.0, %v5520
        %v5522 = vpop.f32.mrf.mxu0
        %5523 = vmatprep.mubr.bf16.mxu0 0
        %5524 = vmatmul.mubr.bf16.gmra.mxu0 %v3113
        %v5525 = vpop.f32.mrf.mxu0
        %v5526 = vadd.f32 0.0, %v5525
        %v5527 = vpop.f32.mrf.mxu0
        %v5528 = vpop.f32.mrf.mxu0
        %v5529 = vadd.f32 0.0, %v5528
        %v5530 = vpop.f32.mrf.mxu0
        %5531 = vmatprep.mubr.bf16.mxu0 0
        %5532 = vmatmul.mubr.bf16.gmra.mxu0 %v3116
        %v5533 = vpop.f32.mrf.mxu0
        %v5534 = vadd.f32 0.0, %v5533
        %v5535 = vpop.f32.mrf.mxu0
        %v5536 = vpop.f32.mrf.mxu0
        %v5537 = vadd.f32 0.0, %v5536
        %v5538 = vpop.f32.mrf.mxu0
        %5539 = vmatprep.mubr.bf16.mxu0 0
        %5540 = vmatmul.mubr.bf16.gmra.mxu0 %v3119
        %v5541 = vpop.f32.mrf.mxu0
        %v5542 = vadd.f32 0.0, %v5541
        %v5543 = vpop.f32.mrf.mxu0
        %v5544 = vpop.f32.mrf.mxu0
        %v5545 = vadd.f32 0.0, %v5544
        %v5546 = vpop.f32.mrf.mxu0
        %5547 = vmatprep.mubr.bf16.mxu0 0
        %5548 = vmatmul.mubr.bf16.gmra.mxu0 %v3122
        %v5549 = vpop.f32.mrf.mxu0
        %v5550 = vadd.f32 0.0, %v5549
        %v5551 = vpop.f32.mrf.mxu0
        %v5552 = vpop.f32.mrf.mxu0
        %v5553 = vadd.f32 0.0, %v5552
        %v5554 = vpop.f32.mrf.mxu0
        %5555 = vmatprep.mubr.bf16.mxu0 0
        %5556 = vmatmul.mubr.bf16.gmra.mxu0 %v3125
        %v5557 = vpop.f32.mrf.mxu0
        %v5558 = vadd.f32 0.0, %v5557
        %v5559 = vpop.f32.mrf.mxu0
        %v5560 = vpop.f32.mrf.mxu0
        %v5561 = vadd.f32 0.0, %v5560
        %v5562 = vpop.f32.mrf.mxu0
        %5563 = vmatprep.mubr.bf16.mxu0 0
        %5564 = vmatmul.mubr.bf16.gmra.mxu0 %v3128
        %v5565 = vpop.f32.mrf.mxu0
        %v5566 = vadd.f32 0.0, %v5565
        %v5567 = vpop.f32.mrf.mxu0
        %v5568 = vpop.f32.mrf.mxu0
        %v5569 = vadd.f32 0.0, %v5568
        %v5570 = vpop.f32.mrf.mxu0
        %5571 = vmatprep.mubr.bf16.mxu0 0
        %5572 = vmatmul.mubr.bf16.gmra.mxu0 %v3131
        %v5573 = vpop.f32.mrf.mxu0
        %v5574 = vadd.f32 0.0, %v5573
        %v5575 = vpop.f32.mrf.mxu0
        %v5576 = vpop.f32.mrf.mxu0
        %v5577 = vadd.f32 0.0, %v5576
        %v5578 = vpop.f32.mrf.mxu0
        %5579 = vmatprep.mubr.bf16.mxu0 0
        %5580 = vmatmul.mubr.bf16.gmra.mxu0 %v3134
        %v5581 = vpop.f32.mrf.mxu0
        %v5582 = vadd.f32 0.0, %v5581
        %v5583 = vpop.f32.mrf.mxu0
        %v5584 = vpop.f32.mrf.mxu0
        %v5585 = vadd.f32 0.0, %v5584
        %v5586 = vpop.f32.mrf.mxu0
        %5587 = vmatprep.mubr.bf16.mxu0 0
        %5588 = vmatmul.mubr.bf16.gmra.mxu0 %v3137
        %v5589 = vpop.f32.mrf.mxu0
        %v5590 = vadd.f32 0.0, %v5589
        %v5591 = vpop.f32.mrf.mxu0
        %v5592 = vpop.f32.mrf.mxu0
        %v5593 = vadd.f32 0.0, %v5592
        %v5594 = vpop.f32.mrf.mxu0
        %5595 = vmatprep.mubr.bf16.mxu0 0
        %5596 = vmatmul.mubr.bf16.gmra.mxu0 %v3140
        %v5597 = vpop.f32.mrf.mxu0
        %v5598 = vadd.f32 0.0, %v5597
        %v5599 = vpop.f32.mrf.mxu0
        %v5600 = vpop.f32.mrf.mxu0
        %v5601 = vadd.f32 0.0, %v5600
        %v5602 = vpop.f32.mrf.mxu0
        %5603 = vmatprep.mubr.bf16.mxu0 0
        %5604 = vmatmul.mubr.bf16.gmra.mxu0 %v3143
        %v5605 = vpop.f32.mrf.mxu0
        %v5606 = vadd.f32 0.0, %v5605
        %v5607 = vpop.f32.mrf.mxu0
        %v5608 = vpop.f32.mrf.mxu0
        %v5609 = vadd.f32 0.0, %v5608
        %v5610 = vpop.f32.mrf.mxu0
        %5611 = vmatprep.mubr.bf16.mxu0 0
        %5612 = vmatmul.mubr.bf16.gmra.mxu0 %v3146
        %v5613 = vpop.f32.mrf.mxu0
        %v5614 = vadd.f32 0.0, %v5613
        %v5615 = vpop.f32.mrf.mxu0
        %v5616 = vpop.f32.mrf.mxu0
        %v5617 = vadd.f32 0.0, %v5616
        %v5618 = vpop.f32.mrf.mxu0
        %5619 = vmatprep.mubr.bf16.mxu0 0
        %5620 = vmatmul.mubr.bf16.gmra.mxu0 %v3149
        %v5621 = vpop.f32.mrf.mxu0
        %v5622 = vadd.f32 0.0, %v5621
        %v5623 = vpop.f32.mrf.mxu0
        %v5624 = vpop.f32.mrf.mxu0
        %v5625 = vadd.f32 0.0, %v5624
        %v5626 = vpop.f32.mrf.mxu0
        %5627 = vmatprep.mubr.bf16.mxu0 0
        %5628 = vmatmul.mubr.bf16.gmra.mxu0 %v3152
        %v5629 = vpop.f32.mrf.mxu0
        %v5630 = vadd.f32 0.0, %v5629
        %v5631 = vpop.f32.mrf.mxu0
        %v5632 = vpop.f32.mrf.mxu0
        %v5633 = vadd.f32 0.0, %v5632
        %v5634 = vpop.f32.mrf.mxu0
        %5635 = vmatprep.mubr.bf16.mxu0 0
        %5636 = vmatmul.mubr.bf16.gmra.mxu0 %v3155
        %v5637 = vpop.f32.mrf.mxu0
        %v5638 = vadd.f32 0.0, %v5637
        %v5639 = vpop.f32.mrf.mxu0
        %v5640 = vpop.f32.mrf.mxu0
        %v5641 = vadd.f32 0.0, %v5640
        %v5642 = vpop.f32.mrf.mxu0
        %5643 = vmatprep.mubr.bf16.mxu0 0
        %5644 = vmatmul.mubr.bf16.gmra.mxu0 %v3158
        %v5645 = vpop.f32.mrf.mxu0
        %v5646 = vadd.f32 0.0, %v5645
        %v5647 = vpop.f32.mrf.mxu0
        %v5648 = vpop.f32.mrf.mxu0
        %v5649 = vadd.f32 0.0, %v5648
        %v5650 = vpop.f32.mrf.mxu0
        %5651 = vmatprep.mubr.bf16.mxu0 0
        %5652 = vmatmul.mubr.bf16.gmra.mxu0 %v3161
        %v5653 = vpop.f32.mrf.mxu0
        %v5654 = vadd.f32 0.0, %v5653
        %v5655 = vpop.f32.mrf.mxu0
        %v5656 = vpop.f32.mrf.mxu0
        %v5657 = vadd.f32 0.0, %v5656
        %v5658 = vpop.f32.mrf.mxu0
        %5659 = vmatprep.mubr.bf16.mxu0 0
        %5660 = vmatmul.mubr.bf16.gmra.mxu0 %v3164
        %v5661 = vpop.f32.mrf.mxu0
        %v5662 = vadd.f32 0.0, %v5661
        %v5663 = vpop.f32.mrf.mxu0
        %v5664 = vpop.f32.mrf.mxu0
        %v5665 = vadd.f32 0.0, %v5664
        %v5666 = vpop.f32.mrf.mxu0
        %5667 = vmatprep.mubr.bf16.mxu0 0
        %5668 = vmatmul.mubr.bf16.gmra.mxu0 %v3167
        %v5669 = vpop.f32.mrf.mxu0
        %v5670 = vadd.f32 0.0, %v5669
        %v5671 = vpop.f32.mrf.mxu0
        %v5672 = vpop.f32.mrf.mxu0
        %v5673 = vadd.f32 0.0, %v5672
        %v5674 = vpop.f32.mrf.mxu0
        %5675 = vmatprep.mubr.bf16.mxu0 0
        %5676 = vmatmul.mubr.bf16.gmra.mxu0 %v3170
        %v5677 = vpop.f32.mrf.mxu0
        %v5678 = vadd.f32 0.0, %v5677
        %v5679 = vpop.f32.mrf.mxu0
        %v5680 = vpop.f32.mrf.mxu0
        %v5681 = vadd.f32 0.0, %v5680
        %v5682 = vpop.f32.mrf.mxu0
        %5683 = vmatprep.mubr.bf16.mxu0 0
        %5684 = vmatmul.mubr.bf16.gmra.mxu0 %v3173
        %v5685 = vpop.f32.mrf.mxu0
        %v5686 = vadd.f32 0.0, %v5685
        %v5687 = vpop.f32.mrf.mxu0
        %v5688 = vpop.f32.mrf.mxu0
        %v5689 = vadd.f32 0.0, %v5688
        %v5690 = vpop.f32.mrf.mxu0
        %5691 = vmatprep.mubr.bf16.mxu0 0
        %5692 = vmatmul.mubr.bf16.gmra.mxu0 %v3176
        %v5693 = vpop.f32.mrf.mxu0
        %v5694 = vadd.f32 0.0, %v5693
        %v5695 = vpop.f32.mrf.mxu0
        %v5696 = vpop.f32.mrf.mxu0
        %v5697 = vadd.f32 0.0, %v5696
        %v5698 = vpop.f32.mrf.mxu0
        %5699 = vmatprep.mubr.bf16.mxu0 0
        %5700 = vmatmul.mubr.bf16.gmra.mxu0 %v3179
        %v5701 = vpop.f32.mrf.mxu0
        %v5702 = vadd.f32 0.0, %v5701
        %v5703 = vpop.f32.mrf.mxu0
        %v5704 = vpop.f32.mrf.mxu0
        %v5705 = vadd.f32 0.0, %v5704
        %v5706 = vpop.f32.mrf.mxu0
        %5707 = vmatprep.mubr.bf16.mxu0 0
        %5708 = vmatmul.mubr.bf16.gmra.mxu0 %v3182
        %v5709 = vpop.f32.mrf.mxu0
        %v5710 = vadd.f32 0.0, %v5709
        %v5711 = vpop.f32.mrf.mxu0
        %v5712 = vpop.f32.mrf.mxu0
        %v5713 = vadd.f32 0.0, %v5712
        %v5714 = vpop.f32.mrf.mxu0
        %5715 = vmatprep.mubr.bf16.mxu0 0
        %5716 = vmatmul.mubr.bf16.gmra.mxu0 %v3185
        %v5717 = vpop.f32.mrf.mxu0
        %v5718 = vadd.f32 0.0, %v5717
        %v5719 = vpop.f32.mrf.mxu0
        %v5720 = vpop.f32.mrf.mxu0
        %v5721 = vadd.f32 0.0, %v5720
        %v5722 = vpop.f32.mrf.mxu0
        %5723 = vmatprep.mubr.bf16.mxu0 0
        %5724 = vmatmul.mubr.bf16.gmra.mxu0 %v3188
        %v5725 = vpop.f32.mrf.mxu0
        %v5726 = vadd.f32 0.0, %v5725
        %v5727 = vpop.f32.mrf.mxu0
        %v5728 = vpop.f32.mrf.mxu0
        %v5729 = vadd.f32 0.0, %v5728
        %v5730 = vpop.f32.mrf.mxu0
        %5731 = vmatprep.mubr.bf16.mxu0 0
        %5732 = vmatmul.mubr.bf16.gmra.mxu0 %v3191
        %v5733 = vpop.f32.mrf.mxu0
        %v5734 = vadd.f32 0.0, %v5733
        %v5735 = vpop.f32.mrf.mxu0
        %v5736 = vpop.f32.mrf.mxu0
        %v5737 = vadd.f32 0.0, %v5736
        %v5738 = vpop.f32.mrf.mxu0
        %5739 = vmatprep.mubr.bf16.mxu0 0
        %5740 = vmatmul.mubr.bf16.gmra.mxu0 %v3194
        %v5741 = vpop.f32.mrf.mxu0
        %v5742 = vadd.f32 0.0, %v5741
        %v5743 = vpop.f32.mrf.mxu0
        %v5744 = vpop.f32.mrf.mxu0
        %v5745 = vadd.f32 0.0, %v5744
        %v5746 = vpop.f32.mrf.mxu0
        %5747 = vmatprep.mubr.bf16.mxu0 0
        %5748 = vmatmul.mubr.bf16.gmra.mxu0 %v3197
        %v5749 = vpop.f32.mrf.mxu0
        %v5750 = vadd.f32 0.0, %v5749
        %v5751 = vpop.f32.mrf.mxu0
        %v5752 = vpop.f32.mrf.mxu0
        %v5753 = vadd.f32 0.0, %v5752
        %v5754 = vpop.f32.mrf.mxu0
        %5755 = vmatprep.mubr.bf16.mxu0 0
        %5756 = vmatmul.mubr.bf16.gmra.mxu0 %v3200
        %v5757 = vpop.f32.mrf.mxu0
        %v5758 = vadd.f32 0.0, %v5757
        %v5759 = vpop.f32.mrf.mxu0
        %v5760 = vpop.f32.mrf.mxu0
        %v5761 = vadd.f32 0.0, %v5760
        %v5762 = vpop.f32.mrf.mxu0
        %5763 = vmatprep.mubr.bf16.mxu0 0
        %5764 = vmatmul.mubr.bf16.gmra.mxu0 %v3203
        %v5765 = vpop.f32.mrf.mxu0
        %v5766 = vadd.f32 0.0, %v5765
        %v5767 = vpop.f32.mrf.mxu0
        %v5768 = vpop.f32.mrf.mxu0
        %v5769 = vadd.f32 0.0, %v5768
        %v5770 = vpop.f32.mrf.mxu0
        %5771 = vmatprep.mubr.bf16.mxu0 0
        %5772 = vmatmul.mubr.bf16.gmra.mxu0 %v3206
        %v5773 = vpop.f32.mrf.mxu0
        %v5774 = vadd.f32 0.0, %v5773
        %v5775 = vpop.f32.mrf.mxu0
        %v5776 = vpop.f32.mrf.mxu0
        %v5777 = vadd.f32 0.0, %v5776
        %v5778 = vpop.f32.mrf.mxu0
        %5779 = vmatprep.mubr.bf16.mxu0 0
        %5780 = vmatmul.mubr.bf16.gmra.mxu0 %v3209
        %v5781 = vpop.f32.mrf.mxu0
        %v5782 = vadd.f32 0.0, %v5781
        %v5783 = vpop.f32.mrf.mxu0
        %v5784 = vpop.f32.mrf.mxu0
        %v5785 = vadd.f32 0.0, %v5784
        %v5786 = vpop.f32.mrf.mxu0
        %5787 = vmatprep.mubr.bf16.mxu0 0
        %5788 = vmatmul.mubr.bf16.gmra.mxu0 %v3212
        %v5789 = vpop.f32.mrf.mxu0
        %v5790 = vadd.f32 0.0, %v5789
        %v5791 = vpop.f32.mrf.mxu0
        %v5792 = vpop.f32.mrf.mxu0
        %v5793 = vadd.f32 0.0, %v5792
        %v5794 = vpop.f32.mrf.mxu0
        %5795 = vmatprep.mubr.bf16.mxu0 0
        %5796 = vmatmul.mubr.bf16.gmra.mxu0 %v3215
        %v5797 = vpop.f32.mrf.mxu0
        %v5798 = vadd.f32 0.0, %v5797
        %v5799 = vpop.f32.mrf.mxu0
        %v5800 = vpop.f32.mrf.mxu0
        %v5801 = vadd.f32 0.0, %v5800
        %v5802 = vpop.f32.mrf.mxu0
        %5803 = vmatprep.mubr.bf16.mxu0 0
        %5804 = vmatmul.mubr.bf16.gmra.mxu0 %v3218
        %v5805 = vpop.f32.mrf.mxu0
        %v5806 = vadd.f32 0.0, %v5805
        %v5807 = vpop.f32.mrf.mxu0
        %v5808 = vpop.f32.mrf.mxu0
        %v5809 = vadd.f32 0.0, %v5808
        %v5810 = vpop.f32.mrf.mxu0
        %5811 = vmatprep.mubr.bf16.mxu0 0
        %5812 = vmatmul.mubr.bf16.gmra.mxu0 %v3221
        %v5813 = vpop.f32.mrf.mxu0
        %v5814 = vadd.f32 0.0, %v5813
        %v5815 = vpop.f32.mrf.mxu0
        %v5816 = vpop.f32.mrf.mxu0
        %v5817 = vadd.f32 0.0, %v5816
        %v5818 = vpop.f32.mrf.mxu0
        %5819 = vmatprep.mubr.bf16.mxu0 0
        %5820 = vmatmul.mubr.bf16.gmra.mxu0 %v3224
        %v5821 = vpop.f32.mrf.mxu0
        %v5822 = vadd.f32 0.0, %v5821
        %v5823 = vpop.f32.mrf.mxu0
        %v5824 = vpop.f32.mrf.mxu0
        %v5825 = vadd.f32 0.0, %v5824
        %v5826 = vpop.f32.mrf.mxu0
        %5827 = vmatprep.mubr.bf16.mxu0 0
        %5828 = vmatmul.mubr.bf16.gmra.mxu0 %v3227
        %v5829 = vpop.f32.mrf.mxu0
        %v5830 = vadd.f32 0.0, %v5829
        %v5831 = vpop.f32.mrf.mxu0
        %v5832 = vpop.f32.mrf.mxu0
        %v5833 = vadd.f32 0.0, %v5832
        %v5834 = vpop.f32.mrf.mxu0
        %5835 = vmatprep.mubr.bf16.mxu0 0
        %5836 = vmatmul.mubr.bf16.gmra.mxu0 %v5299
        %v5837 = vpop.f32.mrf.mxu0
        %v5838 = vadd.f32 0.0, %v5837
        %v5839 = vpop.f32.mrf.mxu0
        %v5840 = vpop.f32.mrf.mxu0
        %v5841 = vadd.f32 0.0, %v5840
        %v5842 = vpop.f32.mrf.mxu0
        %5843 = vmatprep.mubr.bf16.mxu0 0
        %5844 = vmatmul.mubr.bf16.gmra.mxu0 %v5302
        %v5845 = vpop.f32.mrf.mxu0
        %v5846 = vadd.f32 0.0, %v5845
        %v5847 = vpop.f32.mrf.mxu0
        %v5848 = vpop.f32.mrf.mxu0
        %v5849 = vadd.f32 0.0, %v5848
        %v5850 = vpop.f32.mrf.mxu0
        %5851 = vdwg.mxu0
        %v5852 = vadd.f32 %v5160, %v5342
        %v5853 = vadd.f32 %v5161, %v5345
        %v5854 = vadd.f32 %v5162, %v5350
        %v5855 = vadd.f32 %v5163, %v5353
        %v5856 = vadd.f32 %v5164, %v5358
        %v5857 = vadd.f32 %v5165, %v5361
        %v5858 = vadd.f32 %v5166, %v5366
        %v5859 = vadd.f32 %v5167, %v5369
        %v5860 = vadd.f32 %v5168, %v5374
        %v5861 = vadd.f32 %v5169, %v5377
        %v5862 = vadd.f32 %v5170, %v5382
        %v5863 = vadd.f32 %v5171, %v5385
        %v5864 = vadd.f32 %v5172, %v5390
        %v5865 = vadd.f32 %v5173, %v5393
        %v5866 = vadd.f32 %v5174, %v5398
        %v5867 = vadd.f32 %v5175, %v5401
        %v5868 = vadd.f32 %v5176, %v5406
        %v5869 = vadd.f32 %v5177, %v5409
        %v5870 = vadd.f32 %v5178, %v5414
        %v5871 = vadd.f32 %v5179, %v5417
        %v5872 = vadd.f32 %v5180, %v5422
        %v5873 = vadd.f32 %v5181, %v5425
        %v5874 = vadd.f32 %v5182, %v5430
        %v5875 = vadd.f32 %v5183, %v5433
        %v5876 = vadd.f32 %v5184, %v5438
        %v5877 = vadd.f32 %v5185, %v5441
        %v5878 = vadd.f32 %v5186, %v5446
        %v5879 = vadd.f32 %v5187, %v5449
        %v5880 = vadd.f32 %v5188, %v5454
        %v5881 = vadd.f32 %v5189, %v5457
        %v5882 = vadd.f32 %v5190, %v5462
        %v5883 = vadd.f32 %v5191, %v5465
        %v5884 = vadd.f32 %v5192, %v5470
        %v5885 = vadd.f32 %v5193, %v5473
        %v5886 = vadd.f32 %v5194, %v5478
        %v5887 = vadd.f32 %v5195, %v5481
        %v5888 = vadd.f32 %v5196, %v5486
        %v5889 = vadd.f32 %v5197, %v5489
        %v5890 = vadd.f32 %v5198, %v5494
        %v5891 = vadd.f32 %v5199, %v5497
        %v5892 = vadd.f32 %v5200, %v5502
        %v5893 = vadd.f32 %v5201, %v5505
        %v5894 = vadd.f32 %v5202, %v5510
        %v5895 = vadd.f32 %v5203, %v5513
        %v5896 = vadd.f32 %v5204, %v5518
        %v5897 = vadd.f32 %v5205, %v5521
        %v5898 = vadd.f32 %v5206, %v5526
        %v5899 = vadd.f32 %v5207, %v5529
        %v5900 = vadd.f32 %v5208, %v5534
        %v5901 = vadd.f32 %v5209, %v5537
        %v5902 = vadd.f32 %v5210, %v5542
        %v5903 = vadd.f32 %v5211, %v5545
        %v5904 = vadd.f32 %v5212, %v5550
        %v5905 = vadd.f32 %v5213, %v5553
        %v5906 = vadd.f32 %v5214, %v5558
        %v5907 = vadd.f32 %v5215, %v5561
        %v5908 = vadd.f32 %v5216, %v5566
        %v5909 = vadd.f32 %v5217, %v5569
        %v5910 = vadd.f32 %v5218, %v5574
        %v5911 = vadd.f32 %v5219, %v5577
        %v5912 = vadd.f32 %v5220, %v5582
        %v5913 = vadd.f32 %v5221, %v5585
        %v5914 = vadd.f32 %v5222, %v5590
        %v5915 = vadd.f32 %v5223, %v5593
        %v5916 = vadd.f32 %v5224, %v5598
        %v5917 = vadd.f32 %v5225, %v5601
        %v5918 = vadd.f32 %v5226, %v5606
        %v5919 = vadd.f32 %v5227, %v5609
        %v5920 = vadd.f32 %v5228, %v5614
        %v5921 = vadd.f32 %v5229, %v5617
        %v5922 = vadd.f32 %v5230, %v5622
        %v5923 = vadd.f32 %v5231, %v5625
        %v5924 = vadd.f32 %v5232, %v5630
        %v5925 = vadd.f32 %v5233, %v5633
        %v5926 = vadd.f32 %v5234, %v5638
        %v5927 = vadd.f32 %v5235, %v5641
        %v5928 = vadd.f32 %v5236, %v5646
        %v5929 = vadd.f32 %v5237, %v5649
        %v5930 = vadd.f32 %v5238, %v5654
        %v5931 = vadd.f32 %v5239, %v5657
        %v5932 = vadd.f32 %v5240, %v5662
        %v5933 = vadd.f32 %v5241, %v5665
        %v5934 = vadd.f32 %v5242, %v5670
        %v5935 = vadd.f32 %v5243, %v5673
        %v5936 = vadd.f32 %v5244, %v5678
        %v5937 = vadd.f32 %v5245, %v5681
        %v5938 = vadd.f32 %v5246, %v5686
        %v5939 = vadd.f32 %v5247, %v5689
        %v5940 = vadd.f32 %v5248, %v5694
        %v5941 = vadd.f32 %v5249, %v5697
        %v5942 = vadd.f32 %v5250, %v5702
        %v5943 = vadd.f32 %v5251, %v5705
        %v5944 = vadd.f32 %v5252, %v5710
        %v5945 = vadd.f32 %v5253, %v5713
        %v5946 = vadd.f32 %v5254, %v5718
        %v5947 = vadd.f32 %v5255, %v5721
        %v5948 = vadd.f32 %v5256, %v5726
        %v5949 = vadd.f32 %v5257, %v5729
        %v5950 = vadd.f32 %v5258, %v5734
        %v5951 = vadd.f32 %v5259, %v5737
        %v5952 = vadd.f32 %v5260, %v5742
        %v5953 = vadd.f32 %v5261, %v5745
        %v5954 = vadd.f32 %v5262, %v5750
        %v5955 = vadd.f32 %v5263, %v5753
        %v5956 = vadd.f32 %v5264, %v5758
        %v5957 = vadd.f32 %v5265, %v5761
        %v5958 = vadd.f32 %v5266, %v5766
        %v5959 = vadd.f32 %v5267, %v5769
        %v5960 = vadd.f32 %v5268, %v5774
        %v5961 = vadd.f32 %v5269, %v5777
        %v5962 = vadd.f32 %v5270, %v5782
        %v5963 = vadd.f32 %v5271, %v5785
        %v5964 = vadd.f32 %v5272, %v5790
        %v5965 = vadd.f32 %v5273, %v5793
        %v5966 = vadd.f32 %v5274, %v5798
        %v5967 = vadd.f32 %v5275, %v5801
        %v5968 = vadd.f32 %v5276, %v5806
        %v5969 = vadd.f32 %v5277, %v5809
        %v5970 = vadd.f32 %v5278, %v5814
        %v5971 = vadd.f32 %v5279, %v5817
        %v5972 = vadd.f32 %v5280, %v5822
        %v5973 = vadd.f32 %v5281, %v5825
        %v5974 = vadd.f32 %v5282, %v5830
        %v5975 = vadd.f32 %v5283, %v5833
        %v5976 = vadd.f32 %v5284, %v5838
        %v5977 = vadd.f32 %v5285, %v5841
        %v5978 = vadd.f32 %v5286, %v5846
        %v5979 = vadd.f32 %v5287, %v5849
        %v5981 = vshrl.u32 %v352, 16
        %v5983 = vrot.slane %v5981, 4
        %v5984 = vshll.u32 %v352, 16
        %v5986 = vrot.slane %v5984, 5
        %v5987 = vor.u32 %v5983, %v5986
        %v5988 = vrot.slane %v5987, 4
        %v5990 = vshll.u32 %v353, 16
        %v5992 = vrot.slane %v5990, 5
        %v5993 = vsel %vm374, %v5988, %v5992
        %v5994 = vshrl.u32 %v353, 16
        %v5996 = vrot.slane %v5994, 4
        %v5997 = vor.u32 %v5996, %v5992
        %v5998 = vrot.slane %v5997, 4
        %v6000 = vshll.u32 %v354, 16
        %v6002 = vrot.slane %v6000, 5
        %v6003 = vsel %vm374, %v5998, %v6002
        %v6004 = vshrl.u32 %v354, 16
        %v6006 = vrot.slane %v6004, 4
        %v6007 = vor.u32 %v6006, %v6002
        %v6008 = vrot.slane %v6007, 4
        %v6010 = vshll.u32 %v355, 16
        %v6012 = vrot.slane %v6010, 5
        %v6013 = vsel %vm374, %v6008, %v6012
        %v6014 = vshrl.u32 %v355, 16
        %v6016 = vrot.slane %v6014, 4
        %v6017 = vor.u32 %v6016, %v6012
        %v6018 = vrot.slane %v6017, 4
        %v6020 = vshll.u32 %v356, 16
        %v6022 = vrot.slane %v6020, 5
        %v6023 = vsel %vm374, %v6018, %v6022
        %v6024 = vunpack.c.l.b16 %v5993
        %v6025 = vunpack.c.l.b16 %v6003
        %v6026 = vunpack.c.l.b16 %v6013
        %v6027 = vunpack.c.l.b16 %v6023
        %v6028 = vpack.c.b16 %v6025, %v6024
        %v6029 = vpack.c.b16 %v6027, %v6026
        %v6031 = vsel %vm1975, %v6028, 0
        %v6034 = vsel %vm1975, %v6029, 0
        %v6037 = vsel %vm2168, %v366, 0
        %6039 = vmatprep.subr.bf16.mxu0 0
        %6040 = vmatpush1.bf16.msra.mxu0 0
        %6041 = vmatprep.subr.bf16.mxu0 0
        %6042 = vmatpush1.bf16.msra.mxu0 0
        %6043 = vmatprep.subr.bf16.mxu0 0
        %6044 = vmatpush1.bf16.msra.mxu0 0
        %6045 = vmatprep.subr.bf16.mxu0 0
        %6046 = vmatpush1.bf16.msra.mxu0 0
        %6047 = vmatprep.subr.bf16.mxu0 0
        %6048 = vmatpush1.bf16.msra.mxu0 0
        %6049 = vmatprep.subr.bf16.mxu0 0
        %6050 = vmatpush1.bf16.msra.mxu0 0
        %6051 = vmatprep.subr.bf16.mxu0 0
        %6052 = vmatpush1.bf16.msra.mxu0 0
        %6053 = vmatprep.subr.bf16.mxu0 0
        %6054 = vmatpush1.bf16.msra.mxu0 %v6037
        %6055 = vmatprep.subr.bf16.mxu0 0
        %6056 = vmatpush2.bf16.msra.mxu0 0
        %6057 = vmatprep.subr.bf16.mxu0 0
        %6058 = vmatpush2.bf16.msra.mxu0 0
        %6059 = vmatprep.subr.bf16.mxu0 0
        %6060 = vmatpush2.bf16.msra.mxu0 0
        %6061 = vmatprep.subr.bf16.mxu0 0
        %6062 = vmatpush2.bf16.msra.mxu0 0
        %6063 = vmatprep.subr.bf16.mxu0 0
        %6064 = vmatpush2.bf16.msra.mxu0 0
        %6065 = vmatprep.subr.bf16.mxu0 0
        %6066 = vmatpush2.bf16.msra.mxu0 0
        %6067 = vmatprep.subr.bf16.mxu0 0
        %6068 = vmatpush2.bf16.msra.mxu0 0
        %6069 = vmatprep.subr.bf16.mxu0 0
        %6070 = vmatpush2.bf16.msra.mxu0 0
        %6071 = vmatprep.mubr.bf16.mxu0 0
        %6072 = vmatmul.mubr.bf16.gmra.mxu0 %v1983
        %v6073 = vpop.f32.mrf.mxu0
        %v6074 = vadd.f32 0.0, %v6073
        %v6075 = vpop.f32.mrf.mxu0
        %v6076 = vpop.f32.mrf.mxu0
        %v6077 = vadd.f32 0.0, %v6076
        %v6078 = vpop.f32.mrf.mxu0
        %6079 = vmatprep.mubr.bf16.mxu0 0
        %6080 = vmatmul.mubr.bf16.gmra.mxu0 %v1986
        %v6081 = vpop.f32.mrf.mxu0
        %v6082 = vadd.f32 0.0, %v6081
        %v6083 = vpop.f32.mrf.mxu0
        %v6084 = vpop.f32.mrf.mxu0
        %v6085 = vadd.f32 0.0, %v6084
        %v6086 = vpop.f32.mrf.mxu0
        %6087 = vmatprep.mubr.bf16.mxu0 0
        %6088 = vmatmul.mubr.bf16.gmra.mxu0 %v1989
        %v6089 = vpop.f32.mrf.mxu0
        %v6090 = vadd.f32 0.0, %v6089
        %v6091 = vpop.f32.mrf.mxu0
        %v6092 = vpop.f32.mrf.mxu0
        %v6093 = vadd.f32 0.0, %v6092
        %v6094 = vpop.f32.mrf.mxu0
        %6095 = vmatprep.mubr.bf16.mxu0 0
        %6096 = vmatmul.mubr.bf16.gmra.mxu0 %v1992
        %v6097 = vpop.f32.mrf.mxu0
        %v6098 = vadd.f32 0.0, %v6097
        %v6099 = vpop.f32.mrf.mxu0
        %v6100 = vpop.f32.mrf.mxu0
        %v6101 = vadd.f32 0.0, %v6100
        %v6102 = vpop.f32.mrf.mxu0
        %6103 = vmatprep.mubr.bf16.mxu0 0
        %6104 = vmatmul.mubr.bf16.gmra.mxu0 %v1995
        %v6105 = vpop.f32.mrf.mxu0
        %v6106 = vadd.f32 0.0, %v6105
        %v6107 = vpop.f32.mrf.mxu0
        %v6108 = vpop.f32.mrf.mxu0
        %v6109 = vadd.f32 0.0, %v6108
        %v6110 = vpop.f32.mrf.mxu0
        %6111 = vmatprep.mubr.bf16.mxu0 0
        %6112 = vmatmul.mubr.bf16.gmra.mxu0 %v1998
        %v6113 = vpop.f32.mrf.mxu0
        %v6114 = vadd.f32 0.0, %v6113
        %v6115 = vpop.f32.mrf.mxu0
        %v6116 = vpop.f32.mrf.mxu0
        %v6117 = vadd.f32 0.0, %v6116
        %v6118 = vpop.f32.mrf.mxu0
        %6119 = vmatprep.mubr.bf16.mxu0 0
        %6120 = vmatmul.mubr.bf16.gmra.mxu0 %v2001
        %v6121 = vpop.f32.mrf.mxu0
        %v6122 = vadd.f32 0.0, %v6121
        %v6123 = vpop.f32.mrf.mxu0
        %v6124 = vpop.f32.mrf.mxu0
        %v6125 = vadd.f32 0.0, %v6124
        %v6126 = vpop.f32.mrf.mxu0
        %6127 = vmatprep.mubr.bf16.mxu0 0
        %6128 = vmatmul.mubr.bf16.gmra.mxu0 %v2004
        %v6129 = vpop.f32.mrf.mxu0
        %v6130 = vadd.f32 0.0, %v6129
        %v6131 = vpop.f32.mrf.mxu0
        %v6132 = vpop.f32.mrf.mxu0
        %v6133 = vadd.f32 0.0, %v6132
        %v6134 = vpop.f32.mrf.mxu0
        %6135 = vmatprep.mubr.bf16.mxu0 0
        %6136 = vmatmul.mubr.bf16.gmra.mxu0 %v2007
        %v6137 = vpop.f32.mrf.mxu0
        %v6138 = vadd.f32 0.0, %v6137
        %v6139 = vpop.f32.mrf.mxu0
        %v6140 = vpop.f32.mrf.mxu0
        %v6141 = vadd.f32 0.0, %v6140
        %v6142 = vpop.f32.mrf.mxu0
        %6143 = vmatprep.mubr.bf16.mxu0 0
        %6144 = vmatmul.mubr.bf16.gmra.mxu0 %v2010
        %v6145 = vpop.f32.mrf.mxu0
        %v6146 = vadd.f32 0.0, %v6145
        %v6147 = vpop.f32.mrf.mxu0
        %v6148 = vpop.f32.mrf.mxu0
        %v6149 = vadd.f32 0.0, %v6148
        %v6150 = vpop.f32.mrf.mxu0
        %6151 = vmatprep.mubr.bf16.mxu0 0
        %6152 = vmatmul.mubr.bf16.gmra.mxu0 %v2013
        %v6153 = vpop.f32.mrf.mxu0
        %v6154 = vadd.f32 0.0, %v6153
        %v6155 = vpop.f32.mrf.mxu0
        %v6156 = vpop.f32.mrf.mxu0
        %v6157 = vadd.f32 0.0, %v6156
        %v6158 = vpop.f32.mrf.mxu0
        %6159 = vmatprep.mubr.bf16.mxu0 0
        %6160 = vmatmul.mubr.bf16.gmra.mxu0 %v2016
        %v6161 = vpop.f32.mrf.mxu0
        %v6162 = vadd.f32 0.0, %v6161
        %v6163 = vpop.f32.mrf.mxu0
        %v6164 = vpop.f32.mrf.mxu0
        %v6165 = vadd.f32 0.0, %v6164
        %v6166 = vpop.f32.mrf.mxu0
        %6167 = vmatprep.mubr.bf16.mxu0 0
        %6168 = vmatmul.mubr.bf16.gmra.mxu0 %v2019
        %v6169 = vpop.f32.mrf.mxu0
        %v6170 = vadd.f32 0.0, %v6169
        %v6171 = vpop.f32.mrf.mxu0
        %v6172 = vpop.f32.mrf.mxu0
        %v6173 = vadd.f32 0.0, %v6172
        %v6174 = vpop.f32.mrf.mxu0
        %6175 = vmatprep.mubr.bf16.mxu0 0
        %6176 = vmatmul.mubr.bf16.gmra.mxu0 %v2022
        %v6177 = vpop.f32.mrf.mxu0
        %v6178 = vadd.f32 0.0, %v6177
        %v6179 = vpop.f32.mrf.mxu0
        %v6180 = vpop.f32.mrf.mxu0
        %v6181 = vadd.f32 0.0, %v6180
        %v6182 = vpop.f32.mrf.mxu0
        %6183 = vmatprep.mubr.bf16.mxu0 0
        %6184 = vmatmul.mubr.bf16.gmra.mxu0 %v2025
        %v6185 = vpop.f32.mrf.mxu0
        %v6186 = vadd.f32 0.0, %v6185
        %v6187 = vpop.f32.mrf.mxu0
        %v6188 = vpop.f32.mrf.mxu0
        %v6189 = vadd.f32 0.0, %v6188
        %v6190 = vpop.f32.mrf.mxu0
        %6191 = vmatprep.mubr.bf16.mxu0 0
        %6192 = vmatmul.mubr.bf16.gmra.mxu0 %v2028
        %v6193 = vpop.f32.mrf.mxu0
        %v6194 = vadd.f32 0.0, %v6193
        %v6195 = vpop.f32.mrf.mxu0
        %v6196 = vpop.f32.mrf.mxu0
        %v6197 = vadd.f32 0.0, %v6196
        %v6198 = vpop.f32.mrf.mxu0
        %6199 = vmatprep.mubr.bf16.mxu0 0
        %6200 = vmatmul.mubr.bf16.gmra.mxu0 %v2031
        %v6201 = vpop.f32.mrf.mxu0
        %v6202 = vadd.f32 0.0, %v6201
        %v6203 = vpop.f32.mrf.mxu0
        %v6204 = vpop.f32.mrf.mxu0
        %v6205 = vadd.f32 0.0, %v6204
        %v6206 = vpop.f32.mrf.mxu0
        %6207 = vmatprep.mubr.bf16.mxu0 0
        %6208 = vmatmul.mubr.bf16.gmra.mxu0 %v2034
        %v6209 = vpop.f32.mrf.mxu0
        %v6210 = vadd.f32 0.0, %v6209
        %v6211 = vpop.f32.mrf.mxu0
        %v6212 = vpop.f32.mrf.mxu0
        %v6213 = vadd.f32 0.0, %v6212
        %v6214 = vpop.f32.mrf.mxu0
        %6215 = vmatprep.mubr.bf16.mxu0 0
        %6216 = vmatmul.mubr.bf16.gmra.mxu0 %v2037
        %v6217 = vpop.f32.mrf.mxu0
        %v6218 = vadd.f32 0.0, %v6217
        %v6219 = vpop.f32.mrf.mxu0
        %v6220 = vpop.f32.mrf.mxu0
        %v6221 = vadd.f32 0.0, %v6220
        %v6222 = vpop.f32.mrf.mxu0
        %6223 = vmatprep.mubr.bf16.mxu0 0
        %6224 = vmatmul.mubr.bf16.gmra.mxu0 %v2040
        %v6225 = vpop.f32.mrf.mxu0
        %v6226 = vadd.f32 0.0, %v6225
        %v6227 = vpop.f32.mrf.mxu0
        %v6228 = vpop.f32.mrf.mxu0
        %v6229 = vadd.f32 0.0, %v6228
        %v6230 = vpop.f32.mrf.mxu0
        %6231 = vmatprep.mubr.bf16.mxu0 0
        %6232 = vmatmul.mubr.bf16.gmra.mxu0 %v2043
        %v6233 = vpop.f32.mrf.mxu0
        %v6234 = vadd.f32 0.0, %v6233
        %v6235 = vpop.f32.mrf.mxu0
        %v6236 = vpop.f32.mrf.mxu0
        %v6237 = vadd.f32 0.0, %v6236
        %v6238 = vpop.f32.mrf.mxu0
        %6239 = vmatprep.mubr.bf16.mxu0 0
        %6240 = vmatmul.mubr.bf16.gmra.mxu0 %v2046
        %v6241 = vpop.f32.mrf.mxu0
        %v6242 = vadd.f32 0.0, %v6241
        %v6243 = vpop.f32.mrf.mxu0
        %v6244 = vpop.f32.mrf.mxu0
        %v6245 = vadd.f32 0.0, %v6244
        %v6246 = vpop.f32.mrf.mxu0
        %6247 = vmatprep.mubr.bf16.mxu0 0
        %6248 = vmatmul.mubr.bf16.gmra.mxu0 %v2049
        %v6249 = vpop.f32.mrf.mxu0
        %v6250 = vadd.f32 0.0, %v6249
        %v6251 = vpop.f32.mrf.mxu0
        %v6252 = vpop.f32.mrf.mxu0
        %v6253 = vadd.f32 0.0, %v6252
        %v6254 = vpop.f32.mrf.mxu0
        %6255 = vmatprep.mubr.bf16.mxu0 0
        %6256 = vmatmul.mubr.bf16.gmra.mxu0 %v2052
        %v6257 = vpop.f32.mrf.mxu0
        %v6258 = vadd.f32 0.0, %v6257
        %v6259 = vpop.f32.mrf.mxu0
        %v6260 = vpop.f32.mrf.mxu0
        %v6261 = vadd.f32 0.0, %v6260
        %v6262 = vpop.f32.mrf.mxu0
        %6263 = vmatprep.mubr.bf16.mxu0 0
        %6264 = vmatmul.mubr.bf16.gmra.mxu0 %v2055
        %v6265 = vpop.f32.mrf.mxu0
        %v6266 = vadd.f32 0.0, %v6265
        %v6267 = vpop.f32.mrf.mxu0
        %v6268 = vpop.f32.mrf.mxu0
        %v6269 = vadd.f32 0.0, %v6268
        %v6270 = vpop.f32.mrf.mxu0
        %6271 = vmatprep.mubr.bf16.mxu0 0
        %6272 = vmatmul.mubr.bf16.gmra.mxu0 %v2058
        %v6273 = vpop.f32.mrf.mxu0
        %v6274 = vadd.f32 0.0, %v6273
        %v6275 = vpop.f32.mrf.mxu0
        %v6276 = vpop.f32.mrf.mxu0
        %v6277 = vadd.f32 0.0, %v6276
        %v6278 = vpop.f32.mrf.mxu0
        %6279 = vmatprep.mubr.bf16.mxu0 0
        %6280 = vmatmul.mubr.bf16.gmra.mxu0 %v2061
        %v6281 = vpop.f32.mrf.mxu0
        %v6282 = vadd.f32 0.0, %v6281
        %v6283 = vpop.f32.mrf.mxu0
        %v6284 = vpop.f32.mrf.mxu0
        %v6285 = vadd.f32 0.0, %v6284
        %v6286 = vpop.f32.mrf.mxu0
        %6287 = vmatprep.mubr.bf16.mxu0 0
        %6288 = vmatmul.mubr.bf16.gmra.mxu0 %v2064
        %v6289 = vpop.f32.mrf.mxu0
        %v6290 = vadd.f32 0.0, %v6289
        %v6291 = vpop.f32.mrf.mxu0
        %v6292 = vpop.f32.mrf.mxu0
        %v6293 = vadd.f32 0.0, %v6292
        %v6294 = vpop.f32.mrf.mxu0
        %6295 = vmatprep.mubr.bf16.mxu0 0
        %6296 = vmatmul.mubr.bf16.gmra.mxu0 %v2067
        %v6297 = vpop.f32.mrf.mxu0
        %v6298 = vadd.f32 0.0, %v6297
        %v6299 = vpop.f32.mrf.mxu0
        %v6300 = vpop.f32.mrf.mxu0
        %v6301 = vadd.f32 0.0, %v6300
        %v6302 = vpop.f32.mrf.mxu0
        %6303 = vmatprep.mubr.bf16.mxu0 0
        %6304 = vmatmul.mubr.bf16.gmra.mxu0 %v2070
        %v6305 = vpop.f32.mrf.mxu0
        %v6306 = vadd.f32 0.0, %v6305
        %v6307 = vpop.f32.mrf.mxu0
        %v6308 = vpop.f32.mrf.mxu0
        %v6309 = vadd.f32 0.0, %v6308
        %v6310 = vpop.f32.mrf.mxu0
        %6311 = vmatprep.mubr.bf16.mxu0 0
        %6312 = vmatmul.mubr.bf16.gmra.mxu0 %v2073
        %v6313 = vpop.f32.mrf.mxu0
        %v6314 = vadd.f32 0.0, %v6313
        %v6315 = vpop.f32.mrf.mxu0
        %v6316 = vpop.f32.mrf.mxu0
        %v6317 = vadd.f32 0.0, %v6316
        %v6318 = vpop.f32.mrf.mxu0
        %6319 = vmatprep.mubr.bf16.mxu0 0
        %6320 = vmatmul.mubr.bf16.gmra.mxu0 %v2076
        %v6321 = vpop.f32.mrf.mxu0
        %v6322 = vadd.f32 0.0, %v6321
        %v6323 = vpop.f32.mrf.mxu0
        %v6324 = vpop.f32.mrf.mxu0
        %v6325 = vadd.f32 0.0, %v6324
        %v6326 = vpop.f32.mrf.mxu0
        %6327 = vmatprep.mubr.bf16.mxu0 0
        %6328 = vmatmul.mubr.bf16.gmra.mxu0 %v2079
        %v6329 = vpop.f32.mrf.mxu0
        %v6330 = vadd.f32 0.0, %v6329
        %v6331 = vpop.f32.mrf.mxu0
        %v6332 = vpop.f32.mrf.mxu0
        %v6333 = vadd.f32 0.0, %v6332
        %v6334 = vpop.f32.mrf.mxu0
        %6335 = vmatprep.mubr.bf16.mxu0 0
        %6336 = vmatmul.mubr.bf16.gmra.mxu0 %v2082
        %v6337 = vpop.f32.mrf.mxu0
        %v6338 = vadd.f32 0.0, %v6337
        %v6339 = vpop.f32.mrf.mxu0
        %v6340 = vpop.f32.mrf.mxu0
        %v6341 = vadd.f32 0.0, %v6340
        %v6342 = vpop.f32.mrf.mxu0
        %6343 = vmatprep.mubr.bf16.mxu0 0
        %6344 = vmatmul.mubr.bf16.gmra.mxu0 %v2085
        %v6345 = vpop.f32.mrf.mxu0
        %v6346 = vadd.f32 0.0, %v6345
        %v6347 = vpop.f32.mrf.mxu0
        %v6348 = vpop.f32.mrf.mxu0
        %v6349 = vadd.f32 0.0, %v6348
        %v6350 = vpop.f32.mrf.mxu0
        %6351 = vmatprep.mubr.bf16.mxu0 0
        %6352 = vmatmul.mubr.bf16.gmra.mxu0 %v2088
        %v6353 = vpop.f32.mrf.mxu0
        %v6354 = vadd.f32 0.0, %v6353
        %v6355 = vpop.f32.mrf.mxu0
        %v6356 = vpop.f32.mrf.mxu0
        %v6357 = vadd.f32 0.0, %v6356
        %v6358 = vpop.f32.mrf.mxu0
        %6359 = vmatprep.mubr.bf16.mxu0 0
        %6360 = vmatmul.mubr.bf16.gmra.mxu0 %v2091
        %v6361 = vpop.f32.mrf.mxu0
        %v6362 = vadd.f32 0.0, %v6361
        %v6363 = vpop.f32.mrf.mxu0
        %v6364 = vpop.f32.mrf.mxu0
        %v6365 = vadd.f32 0.0, %v6364
        %v6366 = vpop.f32.mrf.mxu0
        %6367 = vmatprep.mubr.bf16.mxu0 0
        %6368 = vmatmul.mubr.bf16.gmra.mxu0 %v2094
        %v6369 = vpop.f32.mrf.mxu0
        %v6370 = vadd.f32 0.0, %v6369
        %v6371 = vpop.f32.mrf.mxu0
        %v6372 = vpop.f32.mrf.mxu0
        %v6373 = vadd.f32 0.0, %v6372
        %v6374 = vpop.f32.mrf.mxu0
        %6375 = vmatprep.mubr.bf16.mxu0 0
        %6376 = vmatmul.mubr.bf16.gmra.mxu0 %v2097
        %v6377 = vpop.f32.mrf.mxu0
        %v6378 = vadd.f32 0.0, %v6377
        %v6379 = vpop.f32.mrf.mxu0
        %v6380 = vpop.f32.mrf.mxu0
        %v6381 = vadd.f32 0.0, %v6380
        %v6382 = vpop.f32.mrf.mxu0
        %6383 = vmatprep.mubr.bf16.mxu0 0
        %6384 = vmatmul.mubr.bf16.gmra.mxu0 %v2100
        %v6385 = vpop.f32.mrf.mxu0
        %v6386 = vadd.f32 0.0, %v6385
        %v6387 = vpop.f32.mrf.mxu0
        %v6388 = vpop.f32.mrf.mxu0
        %v6389 = vadd.f32 0.0, %v6388
        %v6390 = vpop.f32.mrf.mxu0
        %6391 = vmatprep.mubr.bf16.mxu0 0
        %6392 = vmatmul.mubr.bf16.gmra.mxu0 %v2103
        %v6393 = vpop.f32.mrf.mxu0
        %v6394 = vadd.f32 0.0, %v6393
        %v6395 = vpop.f32.mrf.mxu0
        %v6396 = vpop.f32.mrf.mxu0
        %v6397 = vadd.f32 0.0, %v6396
        %v6398 = vpop.f32.mrf.mxu0
        %6399 = vmatprep.mubr.bf16.mxu0 0
        %6400 = vmatmul.mubr.bf16.gmra.mxu0 %v2106
        %v6401 = vpop.f32.mrf.mxu0
        %v6402 = vadd.f32 0.0, %v6401
        %v6403 = vpop.f32.mrf.mxu0
        %v6404 = vpop.f32.mrf.mxu0
        %v6405 = vadd.f32 0.0, %v6404
        %v6406 = vpop.f32.mrf.mxu0
        %6407 = vmatprep.mubr.bf16.mxu0 0
        %6408 = vmatmul.mubr.bf16.gmra.mxu0 %v2109
        %v6409 = vpop.f32.mrf.mxu0
        %v6410 = vadd.f32 0.0, %v6409
        %v6411 = vpop.f32.mrf.mxu0
        %v6412 = vpop.f32.mrf.mxu0
        %v6413 = vadd.f32 0.0, %v6412
        %v6414 = vpop.f32.mrf.mxu0
        %6415 = vmatprep.mubr.bf16.mxu0 0
        %6416 = vmatmul.mubr.bf16.gmra.mxu0 %v2112
        %v6417 = vpop.f32.mrf.mxu0
        %v6418 = vadd.f32 0.0, %v6417
        %v6419 = vpop.f32.mrf.mxu0
        %v6420 = vpop.f32.mrf.mxu0
        %v6421 = vadd.f32 0.0, %v6420
        %v6422 = vpop.f32.mrf.mxu0
        %6423 = vmatprep.mubr.bf16.mxu0 0
        %6424 = vmatmul.mubr.bf16.gmra.mxu0 %v2115
        %v6425 = vpop.f32.mrf.mxu0
        %v6426 = vadd.f32 0.0, %v6425
        %v6427 = vpop.f32.mrf.mxu0
        %v6428 = vpop.f32.mrf.mxu0
        %v6429 = vadd.f32 0.0, %v6428
        %v6430 = vpop.f32.mrf.mxu0
        %6431 = vmatprep.mubr.bf16.mxu0 0
        %6432 = vmatmul.mubr.bf16.gmra.mxu0 %v2118
        %v6433 = vpop.f32.mrf.mxu0
        %v6434 = vadd.f32 0.0, %v6433
        %v6435 = vpop.f32.mrf.mxu0
        %v6436 = vpop.f32.mrf.mxu0
        %v6437 = vadd.f32 0.0, %v6436
        %v6438 = vpop.f32.mrf.mxu0
        %6439 = vmatprep.mubr.bf16.mxu0 0
        %6440 = vmatmul.mubr.bf16.gmra.mxu0 %v2121
        %v6441 = vpop.f32.mrf.mxu0
        %v6442 = vadd.f32 0.0, %v6441
        %v6443 = vpop.f32.mrf.mxu0
        %v6444 = vpop.f32.mrf.mxu0
        %v6445 = vadd.f32 0.0, %v6444
        %v6446 = vpop.f32.mrf.mxu0
        %6447 = vmatprep.mubr.bf16.mxu0 0
        %6448 = vmatmul.mubr.bf16.gmra.mxu0 %v2124
        %v6449 = vpop.f32.mrf.mxu0
        %v6450 = vadd.f32 0.0, %v6449
        %v6451 = vpop.f32.mrf.mxu0
        %v6452 = vpop.f32.mrf.mxu0
        %v6453 = vadd.f32 0.0, %v6452
        %v6454 = vpop.f32.mrf.mxu0
        %6455 = vmatprep.mubr.bf16.mxu0 0
        %6456 = vmatmul.mubr.bf16.gmra.mxu0 %v2127
        %v6457 = vpop.f32.mrf.mxu0
        %v6458 = vadd.f32 0.0, %v6457
        %v6459 = vpop.f32.mrf.mxu0
        %v6460 = vpop.f32.mrf.mxu0
        %v6461 = vadd.f32 0.0, %v6460
        %v6462 = vpop.f32.mrf.mxu0
        %6463 = vmatprep.mubr.bf16.mxu0 0
        %6464 = vmatmul.mubr.bf16.gmra.mxu0 %v2130
        %v6465 = vpop.f32.mrf.mxu0
        %v6466 = vadd.f32 0.0, %v6465
        %v6467 = vpop.f32.mrf.mxu0
        %v6468 = vpop.f32.mrf.mxu0
        %v6469 = vadd.f32 0.0, %v6468
        %v6470 = vpop.f32.mrf.mxu0
        %6471 = vmatprep.mubr.bf16.mxu0 0
        %6472 = vmatmul.mubr.bf16.gmra.mxu0 %v2133
        %v6473 = vpop.f32.mrf.mxu0
        %v6474 = vadd.f32 0.0, %v6473
        %v6475 = vpop.f32.mrf.mxu0
        %v6476 = vpop.f32.mrf.mxu0
        %v6477 = vadd.f32 0.0, %v6476
        %v6478 = vpop.f32.mrf.mxu0
        %6479 = vmatprep.mubr.bf16.mxu0 0
        %6480 = vmatmul.mubr.bf16.gmra.mxu0 %v2136
        %v6481 = vpop.f32.mrf.mxu0
        %v6482 = vadd.f32 0.0, %v6481
        %v6483 = vpop.f32.mrf.mxu0
        %v6484 = vpop.f32.mrf.mxu0
        %v6485 = vadd.f32 0.0, %v6484
        %v6486 = vpop.f32.mrf.mxu0
        %6487 = vmatprep.mubr.bf16.mxu0 0
        %6488 = vmatmul.mubr.bf16.gmra.mxu0 %v2139
        %v6489 = vpop.f32.mrf.mxu0
        %v6490 = vadd.f32 0.0, %v6489
        %v6491 = vpop.f32.mrf.mxu0
        %v6492 = vpop.f32.mrf.mxu0
        %v6493 = vadd.f32 0.0, %v6492
        %v6494 = vpop.f32.mrf.mxu0
        %6495 = vmatprep.mubr.bf16.mxu0 0
        %6496 = vmatmul.mubr.bf16.gmra.mxu0 %v2142
        %v6497 = vpop.f32.mrf.mxu0
        %v6498 = vadd.f32 0.0, %v6497
        %v6499 = vpop.f32.mrf.mxu0
        %v6500 = vpop.f32.mrf.mxu0
        %v6501 = vadd.f32 0.0, %v6500
        %v6502 = vpop.f32.mrf.mxu0
        %6503 = vmatprep.mubr.bf16.mxu0 0
        %6504 = vmatmul.mubr.bf16.gmra.mxu0 %v2145
        %v6505 = vpop.f32.mrf.mxu0
        %v6506 = vadd.f32 0.0, %v6505
        %v6507 = vpop.f32.mrf.mxu0
        %v6508 = vpop.f32.mrf.mxu0
        %v6509 = vadd.f32 0.0, %v6508
        %v6510 = vpop.f32.mrf.mxu0
        %6511 = vmatprep.mubr.bf16.mxu0 0
        %6512 = vmatmul.mubr.bf16.gmra.mxu0 %v2148
        %v6513 = vpop.f32.mrf.mxu0
        %v6514 = vadd.f32 0.0, %v6513
        %v6515 = vpop.f32.mrf.mxu0
        %v6516 = vpop.f32.mrf.mxu0
        %v6517 = vadd.f32 0.0, %v6516
        %v6518 = vpop.f32.mrf.mxu0
        %6519 = vmatprep.mubr.bf16.mxu0 0
        %6520 = vmatmul.mubr.bf16.gmra.mxu0 %v2151
        %v6521 = vpop.f32.mrf.mxu0
        %v6522 = vadd.f32 0.0, %v6521
        %v6523 = vpop.f32.mrf.mxu0
        %v6524 = vpop.f32.mrf.mxu0
        %v6525 = vadd.f32 0.0, %v6524
        %v6526 = vpop.f32.mrf.mxu0
        %6527 = vmatprep.mubr.bf16.mxu0 0
        %6528 = vmatmul.mubr.bf16.gmra.mxu0 %v2154
        %v6529 = vpop.f32.mrf.mxu0
        %v6530 = vadd.f32 0.0, %v6529
        %v6531 = vpop.f32.mrf.mxu0
        %v6532 = vpop.f32.mrf.mxu0
        %v6533 = vadd.f32 0.0, %v6532
        %v6534 = vpop.f32.mrf.mxu0
        %6535 = vmatprep.mubr.bf16.mxu0 0
        %6536 = vmatmul.mubr.bf16.gmra.mxu0 %v2157
        %v6537 = vpop.f32.mrf.mxu0
        %v6538 = vadd.f32 0.0, %v6537
        %v6539 = vpop.f32.mrf.mxu0
        %v6540 = vpop.f32.mrf.mxu0
        %v6541 = vadd.f32 0.0, %v6540
        %v6542 = vpop.f32.mrf.mxu0
        %6543 = vmatprep.mubr.bf16.mxu0 0
        %6544 = vmatmul.mubr.bf16.gmra.mxu0 %v2160
        %v6545 = vpop.f32.mrf.mxu0
        %v6546 = vadd.f32 0.0, %v6545
        %v6547 = vpop.f32.mrf.mxu0
        %v6548 = vpop.f32.mrf.mxu0
        %v6549 = vadd.f32 0.0, %v6548
        %v6550 = vpop.f32.mrf.mxu0
        %6551 = vmatprep.mubr.bf16.mxu0 0
        %6552 = vmatmul.mubr.bf16.gmra.mxu0 %v2163
        %v6553 = vpop.f32.mrf.mxu0
        %v6554 = vadd.f32 0.0, %v6553
        %v6555 = vpop.f32.mrf.mxu0
        %v6556 = vpop.f32.mrf.mxu0
        %v6557 = vadd.f32 0.0, %v6556
        %v6558 = vpop.f32.mrf.mxu0
        %6559 = vmatprep.mubr.bf16.mxu0 0
        %6560 = vmatmul.mubr.bf16.gmra.mxu0 %v2166
        %v6561 = vpop.f32.mrf.mxu0
        %v6562 = vadd.f32 0.0, %v6561
        %v6563 = vpop.f32.mrf.mxu0
        %v6564 = vpop.f32.mrf.mxu0
        %v6565 = vadd.f32 0.0, %v6564
        %v6566 = vpop.f32.mrf.mxu0
        %6567 = vmatprep.mubr.bf16.mxu0 0
        %6568 = vmatmul.mubr.bf16.gmra.mxu0 %v6031
        %v6569 = vpop.f32.mrf.mxu0
        %v6570 = vadd.f32 0.0, %v6569
        %v6571 = vpop.f32.mrf.mxu0
        %v6572 = vpop.f32.mrf.mxu0
        %v6573 = vadd.f32 0.0, %v6572
        %v6574 = vpop.f32.mrf.mxu0
        %6575 = vmatprep.mubr.bf16.mxu0 0
        %6576 = vmatmul.mubr.bf16.gmra.mxu0 %v6034
        %v6577 = vpop.f32.mrf.mxu0
        %v6578 = vadd.f32 0.0, %v6577
        %v6579 = vpop.f32.mrf.mxu0
        %v6580 = vpop.f32.mrf.mxu0
        %v6581 = vadd.f32 0.0, %v6580
        %v6582 = vpop.f32.mrf.mxu0
        %6583 = vdwg.mxu0
        %v6584 = vadd.f32 %v5852, %v6074
        %v6585 = vadd.f32 %v5853, %v6077
        %v6586 = vadd.f32 %v5854, %v6082
        %v6587 = vadd.f32 %v5855, %v6085
        %v6588 = vadd.f32 %v5856, %v6090
        %v6589 = vadd.f32 %v5857, %v6093
        %v6590 = vadd.f32 %v5858, %v6098
        %v6591 = vadd.f32 %v5859, %v6101
        %v6592 = vadd.f32 %v5860, %v6106
        %v6593 = vadd.f32 %v5861, %v6109
        %v6594 = vadd.f32 %v5862, %v6114
        %v6595 = vadd.f32 %v5863, %v6117
        %v6596 = vadd.f32 %v5864, %v6122
        %v6597 = vadd.f32 %v5865, %v6125
        %v6598 = vadd.f32 %v5866, %v6130
        %v6599 = vadd.f32 %v5867, %v6133
        %v6600 = vadd.f32 %v5868, %v6138
        %v6601 = vadd.f32 %v5869, %v6141
        %v6602 = vadd.f32 %v5870, %v6146
        %v6603 = vadd.f32 %v5871, %v6149
        %v6604 = vadd.f32 %v5872, %v6154
        %v6605 = vadd.f32 %v5873, %v6157
        %v6606 = vadd.f32 %v5874, %v6162
        %v6607 = vadd.f32 %v5875, %v6165
        %v6608 = vadd.f32 %v5876, %v6170
        %v6609 = vadd.f32 %v5877, %v6173
        %v6610 = vadd.f32 %v5878, %v6178
        %v6611 = vadd.f32 %v5879, %v6181
        %v6612 = vadd.f32 %v5880, %v6186
        %v6613 = vadd.f32 %v5881, %v6189
        %v6614 = vadd.f32 %v5882, %v6194
        %v6615 = vadd.f32 %v5883, %v6197
        %v6616 = vadd.f32 %v5884, %v6202
        %v6617 = vadd.f32 %v5885, %v6205
        %v6618 = vadd.f32 %v5886, %v6210
        %v6619 = vadd.f32 %v5887, %v6213
        %v6620 = vadd.f32 %v5888, %v6218
        %v6621 = vadd.f32 %v5889, %v6221
        %v6622 = vadd.f32 %v5890, %v6226
        %v6623 = vadd.f32 %v5891, %v6229
        %v6624 = vadd.f32 %v5892, %v6234
        %v6625 = vadd.f32 %v5893, %v6237
        %v6626 = vadd.f32 %v5894, %v6242
        %v6627 = vadd.f32 %v5895, %v6245
        %v6628 = vadd.f32 %v5896, %v6250
        %v6629 = vadd.f32 %v5897, %v6253
        %v6630 = vadd.f32 %v5898, %v6258
        %v6631 = vadd.f32 %v5899, %v6261
        %v6632 = vadd.f32 %v5900, %v6266
        %v6633 = vadd.f32 %v5901, %v6269
        %v6634 = vadd.f32 %v5902, %v6274
        %v6635 = vadd.f32 %v5903, %v6277
        %v6636 = vadd.f32 %v5904, %v6282
        %v6637 = vadd.f32 %v5905, %v6285
        %v6638 = vadd.f32 %v5906, %v6290
        %v6639 = vadd.f32 %v5907, %v6293
        %v6640 = vadd.f32 %v5908, %v6298
        %v6641 = vadd.f32 %v5909, %v6301
        %v6642 = vadd.f32 %v5910, %v6306
        %v6643 = vadd.f32 %v5911, %v6309
        %v6644 = vadd.f32 %v5912, %v6314
        %v6645 = vadd.f32 %v5913, %v6317
        %v6646 = vadd.f32 %v5914, %v6322
        %v6647 = vadd.f32 %v5915, %v6325
        %v6648 = vadd.f32 %v5916, %v6330
        %v6649 = vadd.f32 %v5917, %v6333
        %v6650 = vadd.f32 %v5918, %v6338
        %v6651 = vadd.f32 %v5919, %v6341
        %v6652 = vadd.f32 %v5920, %v6346
        %v6653 = vadd.f32 %v5921, %v6349
        %v6654 = vadd.f32 %v5922, %v6354
        %v6655 = vadd.f32 %v5923, %v6357
        %v6656 = vadd.f32 %v5924, %v6362
        %v6657 = vadd.f32 %v5925, %v6365
        %v6658 = vadd.f32 %v5926, %v6370
        %v6659 = vadd.f32 %v5927, %v6373
        %v6660 = vadd.f32 %v5928, %v6378
        %v6661 = vadd.f32 %v5929, %v6381
        %v6662 = vadd.f32 %v5930, %v6386
        %v6663 = vadd.f32 %v5931, %v6389
        %v6664 = vadd.f32 %v5932, %v6394
        %v6665 = vadd.f32 %v5933, %v6397
        %v6666 = vadd.f32 %v5934, %v6402
        %v6667 = vadd.f32 %v5935, %v6405
        %v6668 = vadd.f32 %v5936, %v6410
        %v6669 = vadd.f32 %v5937, %v6413
        %v6670 = vadd.f32 %v5938, %v6418
        %v6671 = vadd.f32 %v5939, %v6421
        %v6672 = vadd.f32 %v5940, %v6426
        %v6673 = vadd.f32 %v5941, %v6429
        %v6674 = vadd.f32 %v5942, %v6434
        %v6675 = vadd.f32 %v5943, %v6437
        %v6676 = vadd.f32 %v5944, %v6442
        %v6677 = vadd.f32 %v5945, %v6445
        %v6678 = vadd.f32 %v5946, %v6450
        %v6679 = vadd.f32 %v5947, %v6453
        %v6680 = vadd.f32 %v5948, %v6458
        %v6681 = vadd.f32 %v5949, %v6461
        %v6682 = vadd.f32 %v5950, %v6466
        %v6683 = vadd.f32 %v5951, %v6469
        %v6684 = vadd.f32 %v5952, %v6474
        %v6685 = vadd.f32 %v5953, %v6477
        %v6686 = vadd.f32 %v5954, %v6482
        %v6687 = vadd.f32 %v5955, %v6485
        %v6688 = vadd.f32 %v5956, %v6490
        %v6689 = vadd.f32 %v5957, %v6493
        %v6690 = vadd.f32 %v5958, %v6498
        %v6691 = vadd.f32 %v5959, %v6501
        %v6692 = vadd.f32 %v5960, %v6506
        %v6693 = vadd.f32 %v5961, %v6509
        %v6694 = vadd.f32 %v5962, %v6514
        %v6695 = vadd.f32 %v5963, %v6517
        %v6696 = vadd.f32 %v5964, %v6522
        %v6697 = vadd.f32 %v5965, %v6525
        %v6698 = vadd.f32 %v5966, %v6530
        %v6699 = vadd.f32 %v5967, %v6533
        %v6700 = vadd.f32 %v5968, %v6538
        %v6701 = vadd.f32 %v5969, %v6541
        %v6702 = vadd.f32 %v5970, %v6546
        %v6703 = vadd.f32 %v5971, %v6549
        %v6704 = vadd.f32 %v5972, %v6554
        %v6705 = vadd.f32 %v5973, %v6557
        %v6706 = vadd.f32 %v5974, %v6562
        %v6707 = vadd.f32 %v5975, %v6565
        %v6708 = vadd.f32 %v5976, %v6570
        %v6709 = vadd.f32 %v5977, %v6573
        %v6710 = vadd.f32 %v5978, %v6578
        %v6711 = vadd.f32 %v5979, %v6581
        %v6713 = vrot.slane %v352, 5
        %v6714 = vrot.slane %v6713, 4
        %v6715 = vrot.slane %v353, 5
        %v6716 = vsel %vm3811, %v6714, %v6715
        %v6717 = vrot.slane %v6715, 4
        %v6718 = vrot.slane %v354, 5
        %v6719 = vsel %vm3811, %v6717, %v6718
        %v6720 = vrot.slane %v6718, 4
        %v6721 = vrot.slane %v355, 5
        %v6722 = vsel %vm3811, %v6720, %v6721
        %v6723 = vrot.slane %v6721, 4
        %v6724 = vrot.slane %v356, 5
        %v6725 = vsel %vm3811, %v6723, %v6724
        %v6726 = vunpack.c.l.b16 %v6716
        %v6727 = vunpack.c.l.b16 %v6719
        %v6728 = vunpack.c.l.b16 %v6722
        %v6729 = vunpack.c.l.b16 %v6725
        %v6730 = vpack.c.b16 %v6727, %v6726
        %v6731 = vpack.c.b16 %v6729, %v6728
        %v6733 = vsel %vm1975, %v6730, 0
        %v6736 = vsel %vm1975, %v6731, 0
        %v6739 = vsel %vm2168, %v367, 0
        %6741 = vmatprep.subr.bf16.mxu0 0
        %6742 = vmatpush1.bf16.msra.mxu0 0
        %6743 = vmatprep.subr.bf16.mxu0 0
        %6744 = vmatpush1.bf16.msra.mxu0 0
        %6745 = vmatprep.subr.bf16.mxu0 0
        %6746 = vmatpush1.bf16.msra.mxu0 0
        %6747 = vmatprep.subr.bf16.mxu0 0
        %6748 = vmatpush1.bf16.msra.mxu0 0
        %6749 = vmatprep.subr.bf16.mxu0 0
        %6750 = vmatpush1.bf16.msra.mxu0 0
        %6751 = vmatprep.subr.bf16.mxu0 0
        %6752 = vmatpush1.bf16.msra.mxu0 0
        %6753 = vmatprep.subr.bf16.mxu0 0
        %6754 = vmatpush1.bf16.msra.mxu0 0
        %6755 = vmatprep.subr.bf16.mxu0 0
        %6756 = vmatpush1.bf16.msra.mxu0 %v6739
        %6757 = vmatprep.subr.bf16.mxu0 0
        %6758 = vmatpush2.bf16.msra.mxu0 0
        %6759 = vmatprep.subr.bf16.mxu0 0
        %6760 = vmatpush2.bf16.msra.mxu0 0
        %6761 = vmatprep.subr.bf16.mxu0 0
        %6762 = vmatpush2.bf16.msra.mxu0 0
        %6763 = vmatprep.subr.bf16.mxu0 0
        %6764 = vmatpush2.bf16.msra.mxu0 0
        %6765 = vmatprep.subr.bf16.mxu0 0
        %6766 = vmatpush2.bf16.msra.mxu0 0
        %6767 = vmatprep.subr.bf16.mxu0 0
        %6768 = vmatpush2.bf16.msra.mxu0 0
        %6769 = vmatprep.subr.bf16.mxu0 0
        %6770 = vmatpush2.bf16.msra.mxu0 0
        %6771 = vmatprep.subr.bf16.mxu0 0
        %6772 = vmatpush2.bf16.msra.mxu0 0
        %6773 = vmatprep.mubr.bf16.mxu0 0
        %6774 = vmatmul.mubr.bf16.gmra.mxu0 %v4427
        %v6775 = vpop.f32.mrf.mxu0
        %v6776 = vadd.f32 0.0, %v6775
        %v6777 = vpop.f32.mrf.mxu0
        %v6778 = vpop.f32.mrf.mxu0
        %v6779 = vadd.f32 0.0, %v6778
        %v6780 = vpop.f32.mrf.mxu0
        %6781 = vmatprep.mubr.bf16.mxu0 0
        %6782 = vmatmul.mubr.bf16.gmra.mxu0 %v4430
        %v6783 = vpop.f32.mrf.mxu0
        %v6784 = vadd.f32 0.0, %v6783
        %v6785 = vpop.f32.mrf.mxu0
        %v6786 = vpop.f32.mrf.mxu0
        %v6787 = vadd.f32 0.0, %v6786
        %v6788 = vpop.f32.mrf.mxu0
        %6789 = vmatprep.mubr.bf16.mxu0 0
        %6790 = vmatmul.mubr.bf16.gmra.mxu0 %v4433
        %v6791 = vpop.f32.mrf.mxu0
        %v6792 = vadd.f32 0.0, %v6791
        %v6793 = vpop.f32.mrf.mxu0
        %v6794 = vpop.f32.mrf.mxu0
        %v6795 = vadd.f32 0.0, %v6794
        %v6796 = vpop.f32.mrf.mxu0
        %6797 = vmatprep.mubr.bf16.mxu0 0
        %6798 = vmatmul.mubr.bf16.gmra.mxu0 %v4436
        %v6799 = vpop.f32.mrf.mxu0
        %v6800 = vadd.f32 0.0, %v6799
        %v6801 = vpop.f32.mrf.mxu0
        %v6802 = vpop.f32.mrf.mxu0
        %v6803 = vadd.f32 0.0, %v6802
        %v6804 = vpop.f32.mrf.mxu0
        %6805 = vmatprep.mubr.bf16.mxu0 0
        %6806 = vmatmul.mubr.bf16.gmra.mxu0 %v4439
        %v6807 = vpop.f32.mrf.mxu0
        %v6808 = vadd.f32 0.0, %v6807
        %v6809 = vpop.f32.mrf.mxu0
        %v6810 = vpop.f32.mrf.mxu0
        %v6811 = vadd.f32 0.0, %v6810
        %v6812 = vpop.f32.mrf.mxu0
        %6813 = vmatprep.mubr.bf16.mxu0 0
        %6814 = vmatmul.mubr.bf16.gmra.mxu0 %v4442
        %v6815 = vpop.f32.mrf.mxu0
        %v6816 = vadd.f32 0.0, %v6815
        %v6817 = vpop.f32.mrf.mxu0
        %v6818 = vpop.f32.mrf.mxu0
        %v6819 = vadd.f32 0.0, %v6818
        %v6820 = vpop.f32.mrf.mxu0
        %6821 = vmatprep.mubr.bf16.mxu0 0
        %6822 = vmatmul.mubr.bf16.gmra.mxu0 %v4445
        %v6823 = vpop.f32.mrf.mxu0
        %v6824 = vadd.f32 0.0, %v6823
        %v6825 = vpop.f32.mrf.mxu0
        %v6826 = vpop.f32.mrf.mxu0
        %v6827 = vadd.f32 0.0, %v6826
        %v6828 = vpop.f32.mrf.mxu0
        %6829 = vmatprep.mubr.bf16.mxu0 0
        %6830 = vmatmul.mubr.bf16.gmra.mxu0 %v4448
        %v6831 = vpop.f32.mrf.mxu0
        %v6832 = vadd.f32 0.0, %v6831
        %v6833 = vpop.f32.mrf.mxu0
        %v6834 = vpop.f32.mrf.mxu0
        %v6835 = vadd.f32 0.0, %v6834
        %v6836 = vpop.f32.mrf.mxu0
        %6837 = vmatprep.mubr.bf16.mxu0 0
        %6838 = vmatmul.mubr.bf16.gmra.mxu0 %v4451
        %v6839 = vpop.f32.mrf.mxu0
        %v6840 = vadd.f32 0.0, %v6839
        %v6841 = vpop.f32.mrf.mxu0
        %v6842 = vpop.f32.mrf.mxu0
        %v6843 = vadd.f32 0.0, %v6842
        %v6844 = vpop.f32.mrf.mxu0
        %6845 = vmatprep.mubr.bf16.mxu0 0
        %6846 = vmatmul.mubr.bf16.gmra.mxu0 %v4454
        %v6847 = vpop.f32.mrf.mxu0
        %v6848 = vadd.f32 0.0, %v6847
        %v6849 = vpop.f32.mrf.mxu0
        %v6850 = vpop.f32.mrf.mxu0
        %v6851 = vadd.f32 0.0, %v6850
        %v6852 = vpop.f32.mrf.mxu0
        %6853 = vmatprep.mubr.bf16.mxu0 0
        %6854 = vmatmul.mubr.bf16.gmra.mxu0 %v4457
        %v6855 = vpop.f32.mrf.mxu0
        %v6856 = vadd.f32 0.0, %v6855
        %v6857 = vpop.f32.mrf.mxu0
        %v6858 = vpop.f32.mrf.mxu0
        %v6859 = vadd.f32 0.0, %v6858
        %v6860 = vpop.f32.mrf.mxu0
        %6861 = vmatprep.mubr.bf16.mxu0 0
        %6862 = vmatmul.mubr.bf16.gmra.mxu0 %v4460
        %v6863 = vpop.f32.mrf.mxu0
        %v6864 = vadd.f32 0.0, %v6863
        %v6865 = vpop.f32.mrf.mxu0
        %v6866 = vpop.f32.mrf.mxu0
        %v6867 = vadd.f32 0.0, %v6866
        %v6868 = vpop.f32.mrf.mxu0
        %6869 = vmatprep.mubr.bf16.mxu0 0
        %6870 = vmatmul.mubr.bf16.gmra.mxu0 %v4463
        %v6871 = vpop.f32.mrf.mxu0
        %v6872 = vadd.f32 0.0, %v6871
        %v6873 = vpop.f32.mrf.mxu0
        %v6874 = vpop.f32.mrf.mxu0
        %v6875 = vadd.f32 0.0, %v6874
        %v6876 = vpop.f32.mrf.mxu0
        %6877 = vmatprep.mubr.bf16.mxu0 0
        %6878 = vmatmul.mubr.bf16.gmra.mxu0 %v4466
        %v6879 = vpop.f32.mrf.mxu0
        %v6880 = vadd.f32 0.0, %v6879
        %v6881 = vpop.f32.mrf.mxu0
        %v6882 = vpop.f32.mrf.mxu0
        %v6883 = vadd.f32 0.0, %v6882
        %v6884 = vpop.f32.mrf.mxu0
        %6885 = vmatprep.mubr.bf16.mxu0 0
        %6886 = vmatmul.mubr.bf16.gmra.mxu0 %v4469
        %v6887 = vpop.f32.mrf.mxu0
        %v6888 = vadd.f32 0.0, %v6887
        %v6889 = vpop.f32.mrf.mxu0
        %v6890 = vpop.f32.mrf.mxu0
        %v6891 = vadd.f32 0.0, %v6890
        %v6892 = vpop.f32.mrf.mxu0
        %6893 = vmatprep.mubr.bf16.mxu0 0
        %6894 = vmatmul.mubr.bf16.gmra.mxu0 %v4472
        %v6895 = vpop.f32.mrf.mxu0
        %v6896 = vadd.f32 0.0, %v6895
        %v6897 = vpop.f32.mrf.mxu0
        %v6898 = vpop.f32.mrf.mxu0
        %v6899 = vadd.f32 0.0, %v6898
        %v6900 = vpop.f32.mrf.mxu0
        %6901 = vmatprep.mubr.bf16.mxu0 0
        %6902 = vmatmul.mubr.bf16.gmra.mxu0 %v4475
        %v6903 = vpop.f32.mrf.mxu0
        %v6904 = vadd.f32 0.0, %v6903
        %v6905 = vpop.f32.mrf.mxu0
        %v6906 = vpop.f32.mrf.mxu0
        %v6907 = vadd.f32 0.0, %v6906
        %v6908 = vpop.f32.mrf.mxu0
        %6909 = vmatprep.mubr.bf16.mxu0 0
        %6910 = vmatmul.mubr.bf16.gmra.mxu0 %v4478
        %v6911 = vpop.f32.mrf.mxu0
        %v6912 = vadd.f32 0.0, %v6911
        %v6913 = vpop.f32.mrf.mxu0
        %v6914 = vpop.f32.mrf.mxu0
        %v6915 = vadd.f32 0.0, %v6914
        %v6916 = vpop.f32.mrf.mxu0
        %6917 = vmatprep.mubr.bf16.mxu0 0
        %6918 = vmatmul.mubr.bf16.gmra.mxu0 %v4481
        %v6919 = vpop.f32.mrf.mxu0
        %v6920 = vadd.f32 0.0, %v6919
        %v6921 = vpop.f32.mrf.mxu0
        %v6922 = vpop.f32.mrf.mxu0
        %v6923 = vadd.f32 0.0, %v6922
        %v6924 = vpop.f32.mrf.mxu0
        %6925 = vmatprep.mubr.bf16.mxu0 0
        %6926 = vmatmul.mubr.bf16.gmra.mxu0 %v4484
        %v6927 = vpop.f32.mrf.mxu0
        %v6928 = vadd.f32 0.0, %v6927
        %v6929 = vpop.f32.mrf.mxu0
        %v6930 = vpop.f32.mrf.mxu0
        %v6931 = vadd.f32 0.0, %v6930
        %v6932 = vpop.f32.mrf.mxu0
        %6933 = vmatprep.mubr.bf16.mxu0 0
        %6934 = vmatmul.mubr.bf16.gmra.mxu0 %v4487
        %v6935 = vpop.f32.mrf.mxu0
        %v6936 = vadd.f32 0.0, %v6935
        %v6937 = vpop.f32.mrf.mxu0
        %v6938 = vpop.f32.mrf.mxu0
        %v6939 = vadd.f32 0.0, %v6938
        %v6940 = vpop.f32.mrf.mxu0
        %6941 = vmatprep.mubr.bf16.mxu0 0
        %6942 = vmatmul.mubr.bf16.gmra.mxu0 %v4490
        %v6943 = vpop.f32.mrf.mxu0
        %v6944 = vadd.f32 0.0, %v6943
        %v6945 = vpop.f32.mrf.mxu0
        %v6946 = vpop.f32.mrf.mxu0
        %v6947 = vadd.f32 0.0, %v6946
        %v6948 = vpop.f32.mrf.mxu0
        %6949 = vmatprep.mubr.bf16.mxu0 0
        %6950 = vmatmul.mubr.bf16.gmra.mxu0 %v4493
        %v6951 = vpop.f32.mrf.mxu0
        %v6952 = vadd.f32 0.0, %v6951
        %v6953 = vpop.f32.mrf.mxu0
        %v6954 = vpop.f32.mrf.mxu0
        %v6955 = vadd.f32 0.0, %v6954
        %v6956 = vpop.f32.mrf.mxu0
        %6957 = vmatprep.mubr.bf16.mxu0 0
        %6958 = vmatmul.mubr.bf16.gmra.mxu0 %v4496
        %v6959 = vpop.f32.mrf.mxu0
        %v6960 = vadd.f32 0.0, %v6959
        %v6961 = vpop.f32.mrf.mxu0
        %v6962 = vpop.f32.mrf.mxu0
        %v6963 = vadd.f32 0.0, %v6962
        %v6964 = vpop.f32.mrf.mxu0
        %6965 = vmatprep.mubr.bf16.mxu0 0
        %6966 = vmatmul.mubr.bf16.gmra.mxu0 %v4499
        %v6967 = vpop.f32.mrf.mxu0
        %v6968 = vadd.f32 0.0, %v6967
        %v6969 = vpop.f32.mrf.mxu0
        %v6970 = vpop.f32.mrf.mxu0
        %v6971 = vadd.f32 0.0, %v6970
        %v6972 = vpop.f32.mrf.mxu0
        %6973 = vmatprep.mubr.bf16.mxu0 0
        %6974 = vmatmul.mubr.bf16.gmra.mxu0 %v4502
        %v6975 = vpop.f32.mrf.mxu0
        %v6976 = vadd.f32 0.0, %v6975
        %v6977 = vpop.f32.mrf.mxu0
        %v6978 = vpop.f32.mrf.mxu0
        %v6979 = vadd.f32 0.0, %v6978
        %v6980 = vpop.f32.mrf.mxu0
        %6981 = vmatprep.mubr.bf16.mxu0 0
        %6982 = vmatmul.mubr.bf16.gmra.mxu0 %v4505
        %v6983 = vpop.f32.mrf.mxu0
        %v6984 = vadd.f32 0.0, %v6983
        %v6985 = vpop.f32.mrf.mxu0
        %v6986 = vpop.f32.mrf.mxu0
        %v6987 = vadd.f32 0.0, %v6986
        %v6988 = vpop.f32.mrf.mxu0
        %6989 = vmatprep.mubr.bf16.mxu0 0
        %6990 = vmatmul.mubr.bf16.gmra.mxu0 %v4508
        %v6991 = vpop.f32.mrf.mxu0
        %v6992 = vadd.f32 0.0, %v6991
        %v6993 = vpop.f32.mrf.mxu0
        %v6994 = vpop.f32.mrf.mxu0
        %v6995 = vadd.f32 0.0, %v6994
        %v6996 = vpop.f32.mrf.mxu0
        %6997 = vmatprep.mubr.bf16.mxu0 0
        %6998 = vmatmul.mubr.bf16.gmra.mxu0 %v4511
        %v6999 = vpop.f32.mrf.mxu0
        %v7000 = vadd.f32 0.0, %v6999
        %v7001 = vpop.f32.mrf.mxu0
        %v7002 = vpop.f32.mrf.mxu0
        %v7003 = vadd.f32 0.0, %v7002
        %v7004 = vpop.f32.mrf.mxu0
        %7005 = vmatprep.mubr.bf16.mxu0 0
        %7006 = vmatmul.mubr.bf16.gmra.mxu0 %v4514
        %v7007 = vpop.f32.mrf.mxu0
        %v7008 = vadd.f32 0.0, %v7007
        %v7009 = vpop.f32.mrf.mxu0
        %v7010 = vpop.f32.mrf.mxu0
        %v7011 = vadd.f32 0.0, %v7010
        %v7012 = vpop.f32.mrf.mxu0
        %7013 = vmatprep.mubr.bf16.mxu0 0
        %7014 = vmatmul.mubr.bf16.gmra.mxu0 %v4517
        %v7015 = vpop.f32.mrf.mxu0
        %v7016 = vadd.f32 0.0, %v7015
        %v7017 = vpop.f32.mrf.mxu0
        %v7018 = vpop.f32.mrf.mxu0
        %v7019 = vadd.f32 0.0, %v7018
        %v7020 = vpop.f32.mrf.mxu0
        %7021 = vmatprep.mubr.bf16.mxu0 0
        %7022 = vmatmul.mubr.bf16.gmra.mxu0 %v4520
        %v7023 = vpop.f32.mrf.mxu0
        %v7024 = vadd.f32 0.0, %v7023
        %v7025 = vpop.f32.mrf.mxu0
        %v7026 = vpop.f32.mrf.mxu0
        %v7027 = vadd.f32 0.0, %v7026
        %v7028 = vpop.f32.mrf.mxu0
        %7029 = vmatprep.mubr.bf16.mxu0 0
        %7030 = vmatmul.mubr.bf16.gmra.mxu0 %v4523
        %v7031 = vpop.f32.mrf.mxu0
        %v7032 = vadd.f32 0.0, %v7031
        %v7033 = vpop.f32.mrf.mxu0
        %v7034 = vpop.f32.mrf.mxu0
        %v7035 = vadd.f32 0.0, %v7034
        %v7036 = vpop.f32.mrf.mxu0
        %7037 = vmatprep.mubr.bf16.mxu0 0
        %7038 = vmatmul.mubr.bf16.gmra.mxu0 %v4526
        %v7039 = vpop.f32.mrf.mxu0
        %v7040 = vadd.f32 0.0, %v7039
        %v7041 = vpop.f32.mrf.mxu0
        %v7042 = vpop.f32.mrf.mxu0
        %v7043 = vadd.f32 0.0, %v7042
        %v7044 = vpop.f32.mrf.mxu0
        %7045 = vmatprep.mubr.bf16.mxu0 0
        %7046 = vmatmul.mubr.bf16.gmra.mxu0 %v4529
        %v7047 = vpop.f32.mrf.mxu0
        %v7048 = vadd.f32 0.0, %v7047
        %v7049 = vpop.f32.mrf.mxu0
        %v7050 = vpop.f32.mrf.mxu0
        %v7051 = vadd.f32 0.0, %v7050
        %v7052 = vpop.f32.mrf.mxu0
        %7053 = vmatprep.mubr.bf16.mxu0 0
        %7054 = vmatmul.mubr.bf16.gmra.mxu0 %v4532
        %v7055 = vpop.f32.mrf.mxu0
        %v7056 = vadd.f32 0.0, %v7055
        %v7057 = vpop.f32.mrf.mxu0
        %v7058 = vpop.f32.mrf.mxu0
        %v7059 = vadd.f32 0.0, %v7058
        %v7060 = vpop.f32.mrf.mxu0
        %7061 = vmatprep.mubr.bf16.mxu0 0
        %7062 = vmatmul.mubr.bf16.gmra.mxu0 %v4535
        %v7063 = vpop.f32.mrf.mxu0
        %v7064 = vadd.f32 0.0, %v7063
        %v7065 = vpop.f32.mrf.mxu0
        %v7066 = vpop.f32.mrf.mxu0
        %v7067 = vadd.f32 0.0, %v7066
        %v7068 = vpop.f32.mrf.mxu0
        %7069 = vmatprep.mubr.bf16.mxu0 0
        %7070 = vmatmul.mubr.bf16.gmra.mxu0 %v4538
        %v7071 = vpop.f32.mrf.mxu0
        %v7072 = vadd.f32 0.0, %v7071
        %v7073 = vpop.f32.mrf.mxu0
        %v7074 = vpop.f32.mrf.mxu0
        %v7075 = vadd.f32 0.0, %v7074
        %v7076 = vpop.f32.mrf.mxu0
        %7077 = vmatprep.mubr.bf16.mxu0 0
        %7078 = vmatmul.mubr.bf16.gmra.mxu0 %v4541
        %v7079 = vpop.f32.mrf.mxu0
        %v7080 = vadd.f32 0.0, %v7079
        %v7081 = vpop.f32.mrf.mxu0
        %v7082 = vpop.f32.mrf.mxu0
        %v7083 = vadd.f32 0.0, %v7082
        %v7084 = vpop.f32.mrf.mxu0
        %7085 = vmatprep.mubr.bf16.mxu0 0
        %7086 = vmatmul.mubr.bf16.gmra.mxu0 %v4544
        %v7087 = vpop.f32.mrf.mxu0
        %v7088 = vadd.f32 0.0, %v7087
        %v7089 = vpop.f32.mrf.mxu0
        %v7090 = vpop.f32.mrf.mxu0
        %v7091 = vadd.f32 0.0, %v7090
        %v7092 = vpop.f32.mrf.mxu0
        %7093 = vmatprep.mubr.bf16.mxu0 0
        %7094 = vmatmul.mubr.bf16.gmra.mxu0 %v4547
        %v7095 = vpop.f32.mrf.mxu0
        %v7096 = vadd.f32 0.0, %v7095
        %v7097 = vpop.f32.mrf.mxu0
        %v7098 = vpop.f32.mrf.mxu0
        %v7099 = vadd.f32 0.0, %v7098
        %v7100 = vpop.f32.mrf.mxu0
        %7101 = vmatprep.mubr.bf16.mxu0 0
        %7102 = vmatmul.mubr.bf16.gmra.mxu0 %v4550
        %v7103 = vpop.f32.mrf.mxu0
        %v7104 = vadd.f32 0.0, %v7103
        %v7105 = vpop.f32.mrf.mxu0
        %v7106 = vpop.f32.mrf.mxu0
        %v7107 = vadd.f32 0.0, %v7106
        %v7108 = vpop.f32.mrf.mxu0
        %7109 = vmatprep.mubr.bf16.mxu0 0
        %7110 = vmatmul.mubr.bf16.gmra.mxu0 %v4553
        %v7111 = vpop.f32.mrf.mxu0
        %v7112 = vadd.f32 0.0, %v7111
        %v7113 = vpop.f32.mrf.mxu0
        %v7114 = vpop.f32.mrf.mxu0
        %v7115 = vadd.f32 0.0, %v7114
        %v7116 = vpop.f32.mrf.mxu0
        %7117 = vmatprep.mubr.bf16.mxu0 0
        %7118 = vmatmul.mubr.bf16.gmra.mxu0 %v4556
        %v7119 = vpop.f32.mrf.mxu0
        %v7120 = vadd.f32 0.0, %v7119
        %v7121 = vpop.f32.mrf.mxu0
        %v7122 = vpop.f32.mrf.mxu0
        %v7123 = vadd.f32 0.0, %v7122
        %v7124 = vpop.f32.mrf.mxu0
        %7125 = vmatprep.mubr.bf16.mxu0 0
        %7126 = vmatmul.mubr.bf16.gmra.mxu0 %v4559
        %v7127 = vpop.f32.mrf.mxu0
        %v7128 = vadd.f32 0.0, %v7127
        %v7129 = vpop.f32.mrf.mxu0
        %v7130 = vpop.f32.mrf.mxu0
        %v7131 = vadd.f32 0.0, %v7130
        %v7132 = vpop.f32.mrf.mxu0
        %7133 = vmatprep.mubr.bf16.mxu0 0
        %7134 = vmatmul.mubr.bf16.gmra.mxu0 %v4562
        %v7135 = vpop.f32.mrf.mxu0
        %v7136 = vadd.f32 0.0, %v7135
        %v7137 = vpop.f32.mrf.mxu0
        %v7138 = vpop.f32.mrf.mxu0
        %v7139 = vadd.f32 0.0, %v7138
        %v7140 = vpop.f32.mrf.mxu0
        %7141 = vmatprep.mubr.bf16.mxu0 0
        %7142 = vmatmul.mubr.bf16.gmra.mxu0 %v4565
        %v7143 = vpop.f32.mrf.mxu0
        %v7144 = vadd.f32 0.0, %v7143
        %v7145 = vpop.f32.mrf.mxu0
        %v7146 = vpop.f32.mrf.mxu0
        %v7147 = vadd.f32 0.0, %v7146
        %v7148 = vpop.f32.mrf.mxu0
        %7149 = vmatprep.mubr.bf16.mxu0 0
        %7150 = vmatmul.mubr.bf16.gmra.mxu0 %v4568
        %v7151 = vpop.f32.mrf.mxu0
        %v7152 = vadd.f32 0.0, %v7151
        %v7153 = vpop.f32.mrf.mxu0
        %v7154 = vpop.f32.mrf.mxu0
        %v7155 = vadd.f32 0.0, %v7154
        %v7156 = vpop.f32.mrf.mxu0
        %7157 = vmatprep.mubr.bf16.mxu0 0
        %7158 = vmatmul.mubr.bf16.gmra.mxu0 %v4571
        %v7159 = vpop.f32.mrf.mxu0
        %v7160 = vadd.f32 0.0, %v7159
        %v7161 = vpop.f32.mrf.mxu0
        %v7162 = vpop.f32.mrf.mxu0
        %v7163 = vadd.f32 0.0, %v7162
        %v7164 = vpop.f32.mrf.mxu0
        %7165 = vmatprep.mubr.bf16.mxu0 0
        %7166 = vmatmul.mubr.bf16.gmra.mxu0 %v4574
        %v7167 = vpop.f32.mrf.mxu0
        %v7168 = vadd.f32 0.0, %v7167
        %v7169 = vpop.f32.mrf.mxu0
        %v7170 = vpop.f32.mrf.mxu0
        %v7171 = vadd.f32 0.0, %v7170
        %v7172 = vpop.f32.mrf.mxu0
        %7173 = vmatprep.mubr.bf16.mxu0 0
        %7174 = vmatmul.mubr.bf16.gmra.mxu0 %v4577
        %v7175 = vpop.f32.mrf.mxu0
        %v7176 = vadd.f32 0.0, %v7175
        %v7177 = vpop.f32.mrf.mxu0
        %v7178 = vpop.f32.mrf.mxu0
        %v7179 = vadd.f32 0.0, %v7178
        %v7180 = vpop.f32.mrf.mxu0
        %7181 = vmatprep.mubr.bf16.mxu0 0
        %7182 = vmatmul.mubr.bf16.gmra.mxu0 %v4580
        %v7183 = vpop.f32.mrf.mxu0
        %v7184 = vadd.f32 0.0, %v7183
        %v7185 = vpop.f32.mrf.mxu0
        %v7186 = vpop.f32.mrf.mxu0
        %v7187 = vadd.f32 0.0, %v7186
        %v7188 = vpop.f32.mrf.mxu0
        %7189 = vmatprep.mubr.bf16.mxu0 0
        %7190 = vmatmul.mubr.bf16.gmra.mxu0 %v4583
        %v7191 = vpop.f32.mrf.mxu0
        %v7192 = vadd.f32 0.0, %v7191
        %v7193 = vpop.f32.mrf.mxu0
        %v7194 = vpop.f32.mrf.mxu0
        %v7195 = vadd.f32 0.0, %v7194
        %v7196 = vpop.f32.mrf.mxu0
        %7197 = vmatprep.mubr.bf16.mxu0 0
        %7198 = vmatmul.mubr.bf16.gmra.mxu0 %v4586
        %v7199 = vpop.f32.mrf.mxu0
        %v7200 = vadd.f32 0.0, %v7199
        %v7201 = vpop.f32.mrf.mxu0
        %v7202 = vpop.f32.mrf.mxu0
        %v7203 = vadd.f32 0.0, %v7202
        %v7204 = vpop.f32.mrf.mxu0
        %7205 = vmatprep.mubr.bf16.mxu0 0
        %7206 = vmatmul.mubr.bf16.gmra.mxu0 %v4589
        %v7207 = vpop.f32.mrf.mxu0
        %v7208 = vadd.f32 0.0, %v7207
        %v7209 = vpop.f32.mrf.mxu0
        %v7210 = vpop.f32.mrf.mxu0
        %v7211 = vadd.f32 0.0, %v7210
        %v7212 = vpop.f32.mrf.mxu0
        %7213 = vmatprep.mubr.bf16.mxu0 0
        %7214 = vmatmul.mubr.bf16.gmra.mxu0 %v4592
        %v7215 = vpop.f32.mrf.mxu0
        %v7216 = vadd.f32 0.0, %v7215
        %v7217 = vpop.f32.mrf.mxu0
        %v7218 = vpop.f32.mrf.mxu0
        %v7219 = vadd.f32 0.0, %v7218
        %v7220 = vpop.f32.mrf.mxu0
        %7221 = vmatprep.mubr.bf16.mxu0 0
        %7222 = vmatmul.mubr.bf16.gmra.mxu0 %v4595
        %v7223 = vpop.f32.mrf.mxu0
        %v7224 = vadd.f32 0.0, %v7223
        %v7225 = vpop.f32.mrf.mxu0
        %v7226 = vpop.f32.mrf.mxu0
        %v7227 = vadd.f32 0.0, %v7226
        %v7228 = vpop.f32.mrf.mxu0
        %7229 = vmatprep.mubr.bf16.mxu0 0
        %7230 = vmatmul.mubr.bf16.gmra.mxu0 %v4598
        %v7231 = vpop.f32.mrf.mxu0
        %v7232 = vadd.f32 0.0, %v7231
        %v7233 = vpop.f32.mrf.mxu0
        %v7234 = vpop.f32.mrf.mxu0
        %v7235 = vadd.f32 0.0, %v7234
        %v7236 = vpop.f32.mrf.mxu0
        %7237 = vmatprep.mubr.bf16.mxu0 0
        %7238 = vmatmul.mubr.bf16.gmra.mxu0 %v4601
        %v7239 = vpop.f32.mrf.mxu0
        %v7240 = vadd.f32 0.0, %v7239
        %v7241 = vpop.f32.mrf.mxu0
        %v7242 = vpop.f32.mrf.mxu0
        %v7243 = vadd.f32 0.0, %v7242
        %v7244 = vpop.f32.mrf.mxu0
        %7245 = vmatprep.mubr.bf16.mxu0 0
        %7246 = vmatmul.mubr.bf16.gmra.mxu0 %v4604
        %v7247 = vpop.f32.mrf.mxu0
        %v7248 = vadd.f32 0.0, %v7247
        %v7249 = vpop.f32.mrf.mxu0
        %v7250 = vpop.f32.mrf.mxu0
        %v7251 = vadd.f32 0.0, %v7250
        %v7252 = vpop.f32.mrf.mxu0
        %7253 = vmatprep.mubr.bf16.mxu0 0
        %7254 = vmatmul.mubr.bf16.gmra.mxu0 %v4607
        %v7255 = vpop.f32.mrf.mxu0
        %v7256 = vadd.f32 0.0, %v7255
        %v7257 = vpop.f32.mrf.mxu0
        %v7258 = vpop.f32.mrf.mxu0
        %v7259 = vadd.f32 0.0, %v7258
        %v7260 = vpop.f32.mrf.mxu0
        %7261 = vmatprep.mubr.bf16.mxu0 0
        %7262 = vmatmul.mubr.bf16.gmra.mxu0 %v4610
        %v7263 = vpop.f32.mrf.mxu0
        %v7264 = vadd.f32 0.0, %v7263
        %v7265 = vpop.f32.mrf.mxu0
        %v7266 = vpop.f32.mrf.mxu0
        %v7267 = vadd.f32 0.0, %v7266
        %v7268 = vpop.f32.mrf.mxu0
        %7269 = vmatprep.mubr.bf16.mxu0 0
        %7270 = vmatmul.mubr.bf16.gmra.mxu0 %v6733
        %v7271 = vpop.f32.mrf.mxu0
        %v7272 = vadd.f32 0.0, %v7271
        %v7273 = vpop.f32.mrf.mxu0
        %v7274 = vpop.f32.mrf.mxu0
        %v7275 = vadd.f32 0.0, %v7274
        %v7276 = vpop.f32.mrf.mxu0
        %7277 = vmatprep.mubr.bf16.mxu0 0
        %7278 = vmatmul.mubr.bf16.gmra.mxu0 %v6736
        %v7279 = vpop.f32.mrf.mxu0
        %v7280 = vadd.f32 0.0, %v7279
        %v7281 = vpop.f32.mrf.mxu0
        %v7282 = vpop.f32.mrf.mxu0
        %v7283 = vadd.f32 0.0, %v7282
        %v7284 = vpop.f32.mrf.mxu0
        %7285 = vdwg.mxu0
        %v7286 = vadd.f32 %v6584, %v6776
        %v7287 = vadd.f32 %v6585, %v6779
        %v7288 = vadd.f32 %v6586, %v6784
        %v7289 = vadd.f32 %v6587, %v6787
        %v7290 = vadd.f32 %v6588, %v6792
        %v7291 = vadd.f32 %v6589, %v6795
        %v7292 = vadd.f32 %v6590, %v6800
        %v7293 = vadd.f32 %v6591, %v6803
        %v7294 = vadd.f32 %v6592, %v6808
        %v7295 = vadd.f32 %v6593, %v6811
        %v7296 = vadd.f32 %v6594, %v6816
        %v7297 = vadd.f32 %v6595, %v6819
        %v7298 = vadd.f32 %v6596, %v6824
        %v7299 = vadd.f32 %v6597, %v6827
        %v7300 = vadd.f32 %v6598, %v6832
        %v7301 = vadd.f32 %v6599, %v6835
        %v7302 = vadd.f32 %v6600, %v6840
        %v7303 = vadd.f32 %v6601, %v6843
        %v7304 = vadd.f32 %v6602, %v6848
        %v7305 = vadd.f32 %v6603, %v6851
        %v7306 = vadd.f32 %v6604, %v6856
        %v7307 = vadd.f32 %v6605, %v6859
        %v7308 = vadd.f32 %v6606, %v6864
        %v7309 = vadd.f32 %v6607, %v6867
        %v7310 = vadd.f32 %v6608, %v6872
        %v7311 = vadd.f32 %v6609, %v6875
        %v7312 = vadd.f32 %v6610, %v6880
        %v7313 = vadd.f32 %v6611, %v6883
        %v7314 = vadd.f32 %v6612, %v6888
        %v7315 = vadd.f32 %v6613, %v6891
        %v7316 = vadd.f32 %v6614, %v6896
        %v7317 = vadd.f32 %v6615, %v6899
        %v7318 = vadd.f32 %v6616, %v6904
        %v7319 = vadd.f32 %v6617, %v6907
        %v7320 = vadd.f32 %v6618, %v6912
        %v7321 = vadd.f32 %v6619, %v6915
        %v7322 = vadd.f32 %v6620, %v6920
        %v7323 = vadd.f32 %v6621, %v6923
        %v7324 = vadd.f32 %v6622, %v6928
        %v7325 = vadd.f32 %v6623, %v6931
        %v7326 = vadd.f32 %v6624, %v6936
        %v7327 = vadd.f32 %v6625, %v6939
        %v7328 = vadd.f32 %v6626, %v6944
        %v7329 = vadd.f32 %v6627, %v6947
        %v7330 = vadd.f32 %v6628, %v6952
        %v7331 = vadd.f32 %v6629, %v6955
        %v7332 = vadd.f32 %v6630, %v6960
        %v7333 = vadd.f32 %v6631, %v6963
        %v7334 = vadd.f32 %v6632, %v6968
        %v7335 = vadd.f32 %v6633, %v6971
        %v7336 = vadd.f32 %v6634, %v6976
        %v7337 = vadd.f32 %v6635, %v6979
        %v7338 = vadd.f32 %v6636, %v6984
        %v7339 = vadd.f32 %v6637, %v6987
        %v7340 = vadd.f32 %v6638, %v6992
        %v7341 = vadd.f32 %v6639, %v6995
        %v7342 = vadd.f32 %v6640, %v7000
        %v7343 = vadd.f32 %v6641, %v7003
        %v7344 = vadd.f32 %v6642, %v7008
        %v7345 = vadd.f32 %v6643, %v7011
        %v7346 = vadd.f32 %v6644, %v7016
        %v7347 = vadd.f32 %v6645, %v7019
        %v7348 = vadd.f32 %v6646, %v7024
        %v7349 = vadd.f32 %v6647, %v7027
        %v7350 = vadd.f32 %v6648, %v7032
        %v7351 = vadd.f32 %v6649, %v7035
        %v7352 = vadd.f32 %v6650, %v7040
        %v7353 = vadd.f32 %v6651, %v7043
        %v7354 = vadd.f32 %v6652, %v7048
        %v7355 = vadd.f32 %v6653, %v7051
        %v7356 = vadd.f32 %v6654, %v7056
        %v7357 = vadd.f32 %v6655, %v7059
        %v7358 = vadd.f32 %v6656, %v7064
        %v7359 = vadd.f32 %v6657, %v7067
        %v7360 = vadd.f32 %v6658, %v7072
        %v7361 = vadd.f32 %v6659, %v7075
        %v7362 = vadd.f32 %v6660, %v7080
        %v7363 = vadd.f32 %v6661, %v7083
        %v7364 = vadd.f32 %v6662, %v7088
        %v7365 = vadd.f32 %v6663, %v7091
        %v7366 = vadd.f32 %v6664, %v7096
        %v7367 = vadd.f32 %v6665, %v7099
        %v7368 = vadd.f32 %v6666, %v7104
        %v7369 = vadd.f32 %v6667, %v7107
        %v7370 = vadd.f32 %v6668, %v7112
        %v7371 = vadd.f32 %v6669, %v7115
        %v7372 = vadd.f32 %v6670, %v7120
        %v7373 = vadd.f32 %v6671, %v7123
        %v7374 = vadd.f32 %v6672, %v7128
        %v7375 = vadd.f32 %v6673, %v7131
        %v7376 = vadd.f32 %v6674, %v7136
        %v7377 = vadd.f32 %v6675, %v7139
        %v7378 = vadd.f32 %v6676, %v7144
        %v7379 = vadd.f32 %v6677, %v7147
        %v7380 = vadd.f32 %v6678, %v7152
        %v7381 = vadd.f32 %v6679, %v7155
        %v7382 = vadd.f32 %v6680, %v7160
        %v7383 = vadd.f32 %v6681, %v7163
        %v7384 = vadd.f32 %v6682, %v7168
        %v7385 = vadd.f32 %v6683, %v7171
        %v7386 = vadd.f32 %v6684, %v7176
        %v7387 = vadd.f32 %v6685, %v7179
        %v7388 = vadd.f32 %v6686, %v7184
        %v7389 = vadd.f32 %v6687, %v7187
        %v7390 = vadd.f32 %v6688, %v7192
        %v7391 = vadd.f32 %v6689, %v7195
        %v7392 = vadd.f32 %v6690, %v7200
        %v7393 = vadd.f32 %v6691, %v7203
        %v7394 = vadd.f32 %v6692, %v7208
        %v7395 = vadd.f32 %v6693, %v7211
        %v7396 = vadd.f32 %v6694, %v7216
        %v7397 = vadd.f32 %v6695, %v7219
        %v7398 = vadd.f32 %v6696, %v7224
        %v7399 = vadd.f32 %v6697, %v7227
        %v7400 = vadd.f32 %v6698, %v7232
        %v7401 = vadd.f32 %v6699, %v7235
        %v7402 = vadd.f32 %v6700, %v7240
        %v7403 = vadd.f32 %v6701, %v7243
        %v7404 = vadd.f32 %v6702, %v7248
        %v7405 = vadd.f32 %v6703, %v7251
        %v7406 = vadd.f32 %v6704, %v7256
        %v7407 = vadd.f32 %v6705, %v7259
        %v7408 = vadd.f32 %v6706, %v7264
        %v7409 = vadd.f32 %v6707, %v7267
        %v7410 = vadd.f32 %v6708, %v7272
        %v7411 = vadd.f32 %v6709, %v7275
        %v7412 = vadd.f32 %v6710, %v7280
        %v7413 = vadd.f32 %v6711, %v7283
        %v7418 = vunpack.c.l.b16 %v357
        %v7419 = vunpack.c.l.b16 %v358
        %v7420 = vunpack.c.l.b16 %v359
        %v7421 = vunpack.c.l.b16 %v360
        %v7422 = vpack.c.b16 %v7419, %v7418
        %v7423 = vpack.c.b16 %v7421, %v7420
        %v7425 = vsel %vm1975, %v7422, 0
        %v7428 = vsel %vm1975, %v7423, 0
        %v7431 = vsel %vm2168, %v368, 0
        %7433 = vmatprep.subr.bf16.mxu0 0
        %7434 = vmatpush1.bf16.msra.mxu0 0
        %7435 = vmatprep.subr.bf16.mxu0 0
        %7436 = vmatpush1.bf16.msra.mxu0 0
        %7437 = vmatprep.subr.bf16.mxu0 0
        %7438 = vmatpush1.bf16.msra.mxu0 0
        %7439 = vmatprep.subr.bf16.mxu0 0
        %7440 = vmatpush1.bf16.msra.mxu0 0
        %7441 = vmatprep.subr.bf16.mxu0 0
        %7442 = vmatpush1.bf16.msra.mxu0 0
        %7443 = vmatprep.subr.bf16.mxu0 0
        %7444 = vmatpush1.bf16.msra.mxu0 0
        %7445 = vmatprep.subr.bf16.mxu0 0
        %7446 = vmatpush1.bf16.msra.mxu0 0
        %7447 = vmatprep.subr.bf16.mxu0 0
        %7448 = vmatpush1.bf16.msra.mxu0 %v7431
        %7449 = vmatprep.subr.bf16.mxu0 0
        %7450 = vmatpush2.bf16.msra.mxu0 0
        %7451 = vmatprep.subr.bf16.mxu0 0
        %7452 = vmatpush2.bf16.msra.mxu0 0
        %7453 = vmatprep.subr.bf16.mxu0 0
        %7454 = vmatpush2.bf16.msra.mxu0 0
        %7455 = vmatprep.subr.bf16.mxu0 0
        %7456 = vmatpush2.bf16.msra.mxu0 0
        %7457 = vmatprep.subr.bf16.mxu0 0
        %7458 = vmatpush2.bf16.msra.mxu0 0
        %7459 = vmatprep.subr.bf16.mxu0 0
        %7460 = vmatpush2.bf16.msra.mxu0 0
        %7461 = vmatprep.subr.bf16.mxu0 0
        %7462 = vmatpush2.bf16.msra.mxu0 0
        %7463 = vmatprep.subr.bf16.mxu0 0
        %7464 = vmatpush2.bf16.msra.mxu0 0
        %7465 = vmatprep.mubr.bf16.mxu0 0
        %7466 = vmatmul.mubr.bf16.gmra.mxu0 %v3050
        %v7467 = vpop.f32.mrf.mxu0
        %v7468 = vadd.f32 0.0, %v7467
        %v7469 = vpop.f32.mrf.mxu0
        %v7470 = vpop.f32.mrf.mxu0
        %v7471 = vadd.f32 0.0, %v7470
        %v7472 = vpop.f32.mrf.mxu0
        %7473 = vmatprep.mubr.bf16.mxu0 0
        %7474 = vmatmul.mubr.bf16.gmra.mxu0 %v3053
        %v7475 = vpop.f32.mrf.mxu0
        %v7476 = vadd.f32 0.0, %v7475
        %v7477 = vpop.f32.mrf.mxu0
        %v7478 = vpop.f32.mrf.mxu0
        %v7479 = vadd.f32 0.0, %v7478
        %v7480 = vpop.f32.mrf.mxu0
        %7481 = vmatprep.mubr.bf16.mxu0 0
        %7482 = vmatmul.mubr.bf16.gmra.mxu0 %v3056
        %v7483 = vpop.f32.mrf.mxu0
        %v7484 = vadd.f32 0.0, %v7483
        %v7485 = vpop.f32.mrf.mxu0
        %v7486 = vpop.f32.mrf.mxu0
        %v7487 = vadd.f32 0.0, %v7486
        %v7488 = vpop.f32.mrf.mxu0
        %7489 = vmatprep.mubr.bf16.mxu0 0
        %7490 = vmatmul.mubr.bf16.gmra.mxu0 %v3059
        %v7491 = vpop.f32.mrf.mxu0
        %v7492 = vadd.f32 0.0, %v7491
        %v7493 = vpop.f32.mrf.mxu0
        %v7494 = vpop.f32.mrf.mxu0
        %v7495 = vadd.f32 0.0, %v7494
        %v7496 = vpop.f32.mrf.mxu0
        %7497 = vmatprep.mubr.bf16.mxu0 0
        %7498 = vmatmul.mubr.bf16.gmra.mxu0 %v3062
        %v7499 = vpop.f32.mrf.mxu0
        %v7500 = vadd.f32 0.0, %v7499
        %v7501 = vpop.f32.mrf.mxu0
        %v7502 = vpop.f32.mrf.mxu0
        %v7503 = vadd.f32 0.0, %v7502
        %v7504 = vpop.f32.mrf.mxu0
        %7505 = vmatprep.mubr.bf16.mxu0 0
        %7506 = vmatmul.mubr.bf16.gmra.mxu0 %v3065
        %v7507 = vpop.f32.mrf.mxu0
        %v7508 = vadd.f32 0.0, %v7507
        %v7509 = vpop.f32.mrf.mxu0
        %v7510 = vpop.f32.mrf.mxu0
        %v7511 = vadd.f32 0.0, %v7510
        %v7512 = vpop.f32.mrf.mxu0
        %7513 = vmatprep.mubr.bf16.mxu0 0
        %7514 = vmatmul.mubr.bf16.gmra.mxu0 %v3068
        %v7515 = vpop.f32.mrf.mxu0
        %v7516 = vadd.f32 0.0, %v7515
        %v7517 = vpop.f32.mrf.mxu0
        %v7518 = vpop.f32.mrf.mxu0
        %v7519 = vadd.f32 0.0, %v7518
        %v7520 = vpop.f32.mrf.mxu0
        %7521 = vmatprep.mubr.bf16.mxu0 0
        %7522 = vmatmul.mubr.bf16.gmra.mxu0 %v3071
        %v7523 = vpop.f32.mrf.mxu0
        %v7524 = vadd.f32 0.0, %v7523
        %v7525 = vpop.f32.mrf.mxu0
        %v7526 = vpop.f32.mrf.mxu0
        %v7527 = vadd.f32 0.0, %v7526
        %v7528 = vpop.f32.mrf.mxu0
        %7529 = vmatprep.mubr.bf16.mxu0 0
        %7530 = vmatmul.mubr.bf16.gmra.mxu0 %v3074
        %v7531 = vpop.f32.mrf.mxu0
        %v7532 = vadd.f32 0.0, %v7531
        %v7533 = vpop.f32.mrf.mxu0
        %v7534 = vpop.f32.mrf.mxu0
        %v7535 = vadd.f32 0.0, %v7534
        %v7536 = vpop.f32.mrf.mxu0
        %7537 = vmatprep.mubr.bf16.mxu0 0
        %7538 = vmatmul.mubr.bf16.gmra.mxu0 %v3077
        %v7539 = vpop.f32.mrf.mxu0
        %v7540 = vadd.f32 0.0, %v7539
        %v7541 = vpop.f32.mrf.mxu0
        %v7542 = vpop.f32.mrf.mxu0
        %v7543 = vadd.f32 0.0, %v7542
        %v7544 = vpop.f32.mrf.mxu0
        %7545 = vmatprep.mubr.bf16.mxu0 0
        %7546 = vmatmul.mubr.bf16.gmra.mxu0 %v3080
        %v7547 = vpop.f32.mrf.mxu0
        %v7548 = vadd.f32 0.0, %v7547
        %v7549 = vpop.f32.mrf.mxu0
        %v7550 = vpop.f32.mrf.mxu0
        %v7551 = vadd.f32 0.0, %v7550
        %v7552 = vpop.f32.mrf.mxu0
        %7553 = vmatprep.mubr.bf16.mxu0 0
        %7554 = vmatmul.mubr.bf16.gmra.mxu0 %v3083
        %v7555 = vpop.f32.mrf.mxu0
        %v7556 = vadd.f32 0.0, %v7555
        %v7557 = vpop.f32.mrf.mxu0
        %v7558 = vpop.f32.mrf.mxu0
        %v7559 = vadd.f32 0.0, %v7558
        %v7560 = vpop.f32.mrf.mxu0
        %7561 = vmatprep.mubr.bf16.mxu0 0
        %7562 = vmatmul.mubr.bf16.gmra.mxu0 %v3086
        %v7563 = vpop.f32.mrf.mxu0
        %v7564 = vadd.f32 0.0, %v7563
        %v7565 = vpop.f32.mrf.mxu0
        %v7566 = vpop.f32.mrf.mxu0
        %v7567 = vadd.f32 0.0, %v7566
        %v7568 = vpop.f32.mrf.mxu0
        %7569 = vmatprep.mubr.bf16.mxu0 0
        %7570 = vmatmul.mubr.bf16.gmra.mxu0 %v3089
        %v7571 = vpop.f32.mrf.mxu0
        %v7572 = vadd.f32 0.0, %v7571
        %v7573 = vpop.f32.mrf.mxu0
        %v7574 = vpop.f32.mrf.mxu0
        %v7575 = vadd.f32 0.0, %v7574
        %v7576 = vpop.f32.mrf.mxu0
        %7577 = vmatprep.mubr.bf16.mxu0 0
        %7578 = vmatmul.mubr.bf16.gmra.mxu0 %v3092
        %v7579 = vpop.f32.mrf.mxu0
        %v7580 = vadd.f32 0.0, %v7579
        %v7581 = vpop.f32.mrf.mxu0
        %v7582 = vpop.f32.mrf.mxu0
        %v7583 = vadd.f32 0.0, %v7582
        %v7584 = vpop.f32.mrf.mxu0
        %7585 = vmatprep.mubr.bf16.mxu0 0
        %7586 = vmatmul.mubr.bf16.gmra.mxu0 %v3095
        %v7587 = vpop.f32.mrf.mxu0
        %v7588 = vadd.f32 0.0, %v7587
        %v7589 = vpop.f32.mrf.mxu0
        %v7590 = vpop.f32.mrf.mxu0
        %v7591 = vadd.f32 0.0, %v7590
        %v7592 = vpop.f32.mrf.mxu0
        %7593 = vmatprep.mubr.bf16.mxu0 0
        %7594 = vmatmul.mubr.bf16.gmra.mxu0 %v3098
        %v7595 = vpop.f32.mrf.mxu0
        %v7596 = vadd.f32 0.0, %v7595
        %v7597 = vpop.f32.mrf.mxu0
        %v7598 = vpop.f32.mrf.mxu0
        %v7599 = vadd.f32 0.0, %v7598
        %v7600 = vpop.f32.mrf.mxu0
        %7601 = vmatprep.mubr.bf16.mxu0 0
        %7602 = vmatmul.mubr.bf16.gmra.mxu0 %v3101
        %v7603 = vpop.f32.mrf.mxu0
        %v7604 = vadd.f32 0.0, %v7603
        %v7605 = vpop.f32.mrf.mxu0
        %v7606 = vpop.f32.mrf.mxu0
        %v7607 = vadd.f32 0.0, %v7606
        %v7608 = vpop.f32.mrf.mxu0
        %7609 = vmatprep.mubr.bf16.mxu0 0
        %7610 = vmatmul.mubr.bf16.gmra.mxu0 %v3104
        %v7611 = vpop.f32.mrf.mxu0
        %v7612 = vadd.f32 0.0, %v7611
        %v7613 = vpop.f32.mrf.mxu0
        %v7614 = vpop.f32.mrf.mxu0
        %v7615 = vadd.f32 0.0, %v7614
        %v7616 = vpop.f32.mrf.mxu0
        %7617 = vmatprep.mubr.bf16.mxu0 0
        %7618 = vmatmul.mubr.bf16.gmra.mxu0 %v3107
        %v7619 = vpop.f32.mrf.mxu0
        %v7620 = vadd.f32 0.0, %v7619
        %v7621 = vpop.f32.mrf.mxu0
        %v7622 = vpop.f32.mrf.mxu0
        %v7623 = vadd.f32 0.0, %v7622
        %v7624 = vpop.f32.mrf.mxu0
        %7625 = vmatprep.mubr.bf16.mxu0 0
        %7626 = vmatmul.mubr.bf16.gmra.mxu0 %v3110
        %v7627 = vpop.f32.mrf.mxu0
        %v7628 = vadd.f32 0.0, %v7627
        %v7629 = vpop.f32.mrf.mxu0
        %v7630 = vpop.f32.mrf.mxu0
        %v7631 = vadd.f32 0.0, %v7630
        %v7632 = vpop.f32.mrf.mxu0
        %7633 = vmatprep.mubr.bf16.mxu0 0
        %7634 = vmatmul.mubr.bf16.gmra.mxu0 %v3113
        %v7635 = vpop.f32.mrf.mxu0
        %v7636 = vadd.f32 0.0, %v7635
        %v7637 = vpop.f32.mrf.mxu0
        %v7638 = vpop.f32.mrf.mxu0
        %v7639 = vadd.f32 0.0, %v7638
        %v7640 = vpop.f32.mrf.mxu0
        %7641 = vmatprep.mubr.bf16.mxu0 0
        %7642 = vmatmul.mubr.bf16.gmra.mxu0 %v3116
        %v7643 = vpop.f32.mrf.mxu0
        %v7644 = vadd.f32 0.0, %v7643
        %v7645 = vpop.f32.mrf.mxu0
        %v7646 = vpop.f32.mrf.mxu0
        %v7647 = vadd.f32 0.0, %v7646
        %v7648 = vpop.f32.mrf.mxu0
        %7649 = vmatprep.mubr.bf16.mxu0 0
        %7650 = vmatmul.mubr.bf16.gmra.mxu0 %v3119
        %v7651 = vpop.f32.mrf.mxu0
        %v7652 = vadd.f32 0.0, %v7651
        %v7653 = vpop.f32.mrf.mxu0
        %v7654 = vpop.f32.mrf.mxu0
        %v7655 = vadd.f32 0.0, %v7654
        %v7656 = vpop.f32.mrf.mxu0
        %7657 = vmatprep.mubr.bf16.mxu0 0
        %7658 = vmatmul.mubr.bf16.gmra.mxu0 %v3122
        %v7659 = vpop.f32.mrf.mxu0
        %v7660 = vadd.f32 0.0, %v7659
        %v7661 = vpop.f32.mrf.mxu0
        %v7662 = vpop.f32.mrf.mxu0
        %v7663 = vadd.f32 0.0, %v7662
        %v7664 = vpop.f32.mrf.mxu0
        %7665 = vmatprep.mubr.bf16.mxu0 0
        %7666 = vmatmul.mubr.bf16.gmra.mxu0 %v3125
        %v7667 = vpop.f32.mrf.mxu0
        %v7668 = vadd.f32 0.0, %v7667
        %v7669 = vpop.f32.mrf.mxu0
        %v7670 = vpop.f32.mrf.mxu0
        %v7671 = vadd.f32 0.0, %v7670
        %v7672 = vpop.f32.mrf.mxu0
        %7673 = vmatprep.mubr.bf16.mxu0 0
        %7674 = vmatmul.mubr.bf16.gmra.mxu0 %v3128
        %v7675 = vpop.f32.mrf.mxu0
        %v7676 = vadd.f32 0.0, %v7675
        %v7677 = vpop.f32.mrf.mxu0
        %v7678 = vpop.f32.mrf.mxu0
        %v7679 = vadd.f32 0.0, %v7678
        %v7680 = vpop.f32.mrf.mxu0
        %7681 = vmatprep.mubr.bf16.mxu0 0
        %7682 = vmatmul.mubr.bf16.gmra.mxu0 %v3131
        %v7683 = vpop.f32.mrf.mxu0
        %v7684 = vadd.f32 0.0, %v7683
        %v7685 = vpop.f32.mrf.mxu0
        %v7686 = vpop.f32.mrf.mxu0
        %v7687 = vadd.f32 0.0, %v7686
        %v7688 = vpop.f32.mrf.mxu0
        %7689 = vmatprep.mubr.bf16.mxu0 0
        %7690 = vmatmul.mubr.bf16.gmra.mxu0 %v3134
        %v7691 = vpop.f32.mrf.mxu0
        %v7692 = vadd.f32 0.0, %v7691
        %v7693 = vpop.f32.mrf.mxu0
        %v7694 = vpop.f32.mrf.mxu0
        %v7695 = vadd.f32 0.0, %v7694
        %v7696 = vpop.f32.mrf.mxu0
        %7697 = vmatprep.mubr.bf16.mxu0 0
        %7698 = vmatmul.mubr.bf16.gmra.mxu0 %v3137
        %v7699 = vpop.f32.mrf.mxu0
        %v7700 = vadd.f32 0.0, %v7699
        %v7701 = vpop.f32.mrf.mxu0
        %v7702 = vpop.f32.mrf.mxu0
        %v7703 = vadd.f32 0.0, %v7702
        %v7704 = vpop.f32.mrf.mxu0
        %7705 = vmatprep.mubr.bf16.mxu0 0
        %7706 = vmatmul.mubr.bf16.gmra.mxu0 %v3140
        %v7707 = vpop.f32.mrf.mxu0
        %v7708 = vadd.f32 0.0, %v7707
        %v7709 = vpop.f32.mrf.mxu0
        %v7710 = vpop.f32.mrf.mxu0
        %v7711 = vadd.f32 0.0, %v7710
        %v7712 = vpop.f32.mrf.mxu0
        %7713 = vmatprep.mubr.bf16.mxu0 0
        %7714 = vmatmul.mubr.bf16.gmra.mxu0 %v3143
        %v7715 = vpop.f32.mrf.mxu0
        %v7716 = vadd.f32 0.0, %v7715
        %v7717 = vpop.f32.mrf.mxu0
        %v7718 = vpop.f32.mrf.mxu0
        %v7719 = vadd.f32 0.0, %v7718
        %v7720 = vpop.f32.mrf.mxu0
        %7721 = vmatprep.mubr.bf16.mxu0 0
        %7722 = vmatmul.mubr.bf16.gmra.mxu0 %v3146
        %v7723 = vpop.f32.mrf.mxu0
        %v7724 = vadd.f32 0.0, %v7723
        %v7725 = vpop.f32.mrf.mxu0
        %v7726 = vpop.f32.mrf.mxu0
        %v7727 = vadd.f32 0.0, %v7726
        %v7728 = vpop.f32.mrf.mxu0
        %7729 = vmatprep.mubr.bf16.mxu0 0
        %7730 = vmatmul.mubr.bf16.gmra.mxu0 %v3149
        %v7731 = vpop.f32.mrf.mxu0
        %v7732 = vadd.f32 0.0, %v7731
        %v7733 = vpop.f32.mrf.mxu0
        %v7734 = vpop.f32.mrf.mxu0
        %v7735 = vadd.f32 0.0, %v7734
        %v7736 = vpop.f32.mrf.mxu0
        %7737 = vmatprep.mubr.bf16.mxu0 0
        %7738 = vmatmul.mubr.bf16.gmra.mxu0 %v3152
        %v7739 = vpop.f32.mrf.mxu0
        %v7740 = vadd.f32 0.0, %v7739
        %v7741 = vpop.f32.mrf.mxu0
        %v7742 = vpop.f32.mrf.mxu0
        %v7743 = vadd.f32 0.0, %v7742
        %v7744 = vpop.f32.mrf.mxu0
        %7745 = vmatprep.mubr.bf16.mxu0 0
        %7746 = vmatmul.mubr.bf16.gmra.mxu0 %v3155
        %v7747 = vpop.f32.mrf.mxu0
        %v7748 = vadd.f32 0.0, %v7747
        %v7749 = vpop.f32.mrf.mxu0
        %v7750 = vpop.f32.mrf.mxu0
        %v7751 = vadd.f32 0.0, %v7750
        %v7752 = vpop.f32.mrf.mxu0
        %7753 = vmatprep.mubr.bf16.mxu0 0
        %7754 = vmatmul.mubr.bf16.gmra.mxu0 %v3158
        %v7755 = vpop.f32.mrf.mxu0
        %v7756 = vadd.f32 0.0, %v7755
        %v7757 = vpop.f32.mrf.mxu0
        %v7758 = vpop.f32.mrf.mxu0
        %v7759 = vadd.f32 0.0, %v7758
        %v7760 = vpop.f32.mrf.mxu0
        %7761 = vmatprep.mubr.bf16.mxu0 0
        %7762 = vmatmul.mubr.bf16.gmra.mxu0 %v3161
        %v7763 = vpop.f32.mrf.mxu0
        %v7764 = vadd.f32 0.0, %v7763
        %v7765 = vpop.f32.mrf.mxu0
        %v7766 = vpop.f32.mrf.mxu0
        %v7767 = vadd.f32 0.0, %v7766
        %v7768 = vpop.f32.mrf.mxu0
        %7769 = vmatprep.mubr.bf16.mxu0 0
        %7770 = vmatmul.mubr.bf16.gmra.mxu0 %v3164
        %v7771 = vpop.f32.mrf.mxu0
        %v7772 = vadd.f32 0.0, %v7771
        %v7773 = vpop.f32.mrf.mxu0
        %v7774 = vpop.f32.mrf.mxu0
        %v7775 = vadd.f32 0.0, %v7774
        %v7776 = vpop.f32.mrf.mxu0
        %7777 = vmatprep.mubr.bf16.mxu0 0
        %7778 = vmatmul.mubr.bf16.gmra.mxu0 %v3167
        %v7779 = vpop.f32.mrf.mxu0
        %v7780 = vadd.f32 0.0, %v7779
        %v7781 = vpop.f32.mrf.mxu0
        %v7782 = vpop.f32.mrf.mxu0
        %v7783 = vadd.f32 0.0, %v7782
        %v7784 = vpop.f32.mrf.mxu0
        %7785 = vmatprep.mubr.bf16.mxu0 0
        %7786 = vmatmul.mubr.bf16.gmra.mxu0 %v3170
        %v7787 = vpop.f32.mrf.mxu0
        %v7788 = vadd.f32 0.0, %v7787
        %v7789 = vpop.f32.mrf.mxu0
        %v7790 = vpop.f32.mrf.mxu0
        %v7791 = vadd.f32 0.0, %v7790
        %v7792 = vpop.f32.mrf.mxu0
        %7793 = vmatprep.mubr.bf16.mxu0 0
        %7794 = vmatmul.mubr.bf16.gmra.mxu0 %v3173
        %v7795 = vpop.f32.mrf.mxu0
        %v7796 = vadd.f32 0.0, %v7795
        %v7797 = vpop.f32.mrf.mxu0
        %v7798 = vpop.f32.mrf.mxu0
        %v7799 = vadd.f32 0.0, %v7798
        %v7800 = vpop.f32.mrf.mxu0
        %7801 = vmatprep.mubr.bf16.mxu0 0
        %7802 = vmatmul.mubr.bf16.gmra.mxu0 %v3176
        %v7803 = vpop.f32.mrf.mxu0
        %v7804 = vadd.f32 0.0, %v7803
        %v7805 = vpop.f32.mrf.mxu0
        %v7806 = vpop.f32.mrf.mxu0
        %v7807 = vadd.f32 0.0, %v7806
        %v7808 = vpop.f32.mrf.mxu0
        %7809 = vmatprep.mubr.bf16.mxu0 0
        %7810 = vmatmul.mubr.bf16.gmra.mxu0 %v3179
        %v7811 = vpop.f32.mrf.mxu0
        %v7812 = vadd.f32 0.0, %v7811
        %v7813 = vpop.f32.mrf.mxu0
        %v7814 = vpop.f32.mrf.mxu0
        %v7815 = vadd.f32 0.0, %v7814
        %v7816 = vpop.f32.mrf.mxu0
        %7817 = vmatprep.mubr.bf16.mxu0 0
        %7818 = vmatmul.mubr.bf16.gmra.mxu0 %v3182
        %v7819 = vpop.f32.mrf.mxu0
        %v7820 = vadd.f32 0.0, %v7819
        %v7821 = vpop.f32.mrf.mxu0
        %v7822 = vpop.f32.mrf.mxu0
        %v7823 = vadd.f32 0.0, %v7822
        %v7824 = vpop.f32.mrf.mxu0
        %7825 = vmatprep.mubr.bf16.mxu0 0
        %7826 = vmatmul.mubr.bf16.gmra.mxu0 %v3185
        %v7827 = vpop.f32.mrf.mxu0
        %v7828 = vadd.f32 0.0, %v7827
        %v7829 = vpop.f32.mrf.mxu0
        %v7830 = vpop.f32.mrf.mxu0
        %v7831 = vadd.f32 0.0, %v7830
        %v7832 = vpop.f32.mrf.mxu0
        %7833 = vmatprep.mubr.bf16.mxu0 0
        %7834 = vmatmul.mubr.bf16.gmra.mxu0 %v3188
        %v7835 = vpop.f32.mrf.mxu0
        %v7836 = vadd.f32 0.0, %v7835
        %v7837 = vpop.f32.mrf.mxu0
        %v7838 = vpop.f32.mrf.mxu0
        %v7839 = vadd.f32 0.0, %v7838
        %v7840 = vpop.f32.mrf.mxu0
        %7841 = vmatprep.mubr.bf16.mxu0 0
        %7842 = vmatmul.mubr.bf16.gmra.mxu0 %v3191
        %v7843 = vpop.f32.mrf.mxu0
        %v7844 = vadd.f32 0.0, %v7843
        %v7845 = vpop.f32.mrf.mxu0
        %v7846 = vpop.f32.mrf.mxu0
        %v7847 = vadd.f32 0.0, %v7846
        %v7848 = vpop.f32.mrf.mxu0
        %7849 = vmatprep.mubr.bf16.mxu0 0
        %7850 = vmatmul.mubr.bf16.gmra.mxu0 %v3194
        %v7851 = vpop.f32.mrf.mxu0
        %v7852 = vadd.f32 0.0, %v7851
        %v7853 = vpop.f32.mrf.mxu0
        %v7854 = vpop.f32.mrf.mxu0
        %v7855 = vadd.f32 0.0, %v7854
        %v7856 = vpop.f32.mrf.mxu0
        %7857 = vmatprep.mubr.bf16.mxu0 0
        %7858 = vmatmul.mubr.bf16.gmra.mxu0 %v3197
        %v7859 = vpop.f32.mrf.mxu0
        %v7860 = vadd.f32 0.0, %v7859
        %v7861 = vpop.f32.mrf.mxu0
        %v7862 = vpop.f32.mrf.mxu0
        %v7863 = vadd.f32 0.0, %v7862
        %v7864 = vpop.f32.mrf.mxu0
        %7865 = vmatprep.mubr.bf16.mxu0 0
        %7866 = vmatmul.mubr.bf16.gmra.mxu0 %v3200
        %v7867 = vpop.f32.mrf.mxu0
        %v7868 = vadd.f32 0.0, %v7867
        %v7869 = vpop.f32.mrf.mxu0
        %v7870 = vpop.f32.mrf.mxu0
        %v7871 = vadd.f32 0.0, %v7870
        %v7872 = vpop.f32.mrf.mxu0
        %7873 = vmatprep.mubr.bf16.mxu0 0
        %7874 = vmatmul.mubr.bf16.gmra.mxu0 %v3203
        %v7875 = vpop.f32.mrf.mxu0
        %v7876 = vadd.f32 0.0, %v7875
        %v7877 = vpop.f32.mrf.mxu0
        %v7878 = vpop.f32.mrf.mxu0
        %v7879 = vadd.f32 0.0, %v7878
        %v7880 = vpop.f32.mrf.mxu0
        %7881 = vmatprep.mubr.bf16.mxu0 0
        %7882 = vmatmul.mubr.bf16.gmra.mxu0 %v3206
        %v7883 = vpop.f32.mrf.mxu0
        %v7884 = vadd.f32 0.0, %v7883
        %v7885 = vpop.f32.mrf.mxu0
        %v7886 = vpop.f32.mrf.mxu0
        %v7887 = vadd.f32 0.0, %v7886
        %v7888 = vpop.f32.mrf.mxu0
        %7889 = vmatprep.mubr.bf16.mxu0 0
        %7890 = vmatmul.mubr.bf16.gmra.mxu0 %v3209
        %v7891 = vpop.f32.mrf.mxu0
        %v7892 = vadd.f32 0.0, %v7891
        %v7893 = vpop.f32.mrf.mxu0
        %v7894 = vpop.f32.mrf.mxu0
        %v7895 = vadd.f32 0.0, %v7894
        %v7896 = vpop.f32.mrf.mxu0
        %7897 = vmatprep.mubr.bf16.mxu0 0
        %7898 = vmatmul.mubr.bf16.gmra.mxu0 %v3212
        %v7899 = vpop.f32.mrf.mxu0
        %v7900 = vadd.f32 0.0, %v7899
        %v7901 = vpop.f32.mrf.mxu0
        %v7902 = vpop.f32.mrf.mxu0
        %v7903 = vadd.f32 0.0, %v7902
        %v7904 = vpop.f32.mrf.mxu0
        %7905 = vmatprep.mubr.bf16.mxu0 0
        %7906 = vmatmul.mubr.bf16.gmra.mxu0 %v3215
        %v7907 = vpop.f32.mrf.mxu0
        %v7908 = vadd.f32 0.0, %v7907
        %v7909 = vpop.f32.mrf.mxu0
        %v7910 = vpop.f32.mrf.mxu0
        %v7911 = vadd.f32 0.0, %v7910
        %v7912 = vpop.f32.mrf.mxu0
        %7913 = vmatprep.mubr.bf16.mxu0 0
        %7914 = vmatmul.mubr.bf16.gmra.mxu0 %v3218
        %v7915 = vpop.f32.mrf.mxu0
        %v7916 = vadd.f32 0.0, %v7915
        %v7917 = vpop.f32.mrf.mxu0
        %v7918 = vpop.f32.mrf.mxu0
        %v7919 = vadd.f32 0.0, %v7918
        %v7920 = vpop.f32.mrf.mxu0
        %7921 = vmatprep.mubr.bf16.mxu0 0
        %7922 = vmatmul.mubr.bf16.gmra.mxu0 %v3221
        %v7923 = vpop.f32.mrf.mxu0
        %v7924 = vadd.f32 0.0, %v7923
        %v7925 = vpop.f32.mrf.mxu0
        %v7926 = vpop.f32.mrf.mxu0
        %v7927 = vadd.f32 0.0, %v7926
        %v7928 = vpop.f32.mrf.mxu0
        %7929 = vmatprep.mubr.bf16.mxu0 0
        %7930 = vmatmul.mubr.bf16.gmra.mxu0 %v3224
        %v7931 = vpop.f32.mrf.mxu0
        %v7932 = vadd.f32 0.0, %v7931
        %v7933 = vpop.f32.mrf.mxu0
        %v7934 = vpop.f32.mrf.mxu0
        %v7935 = vadd.f32 0.0, %v7934
        %v7936 = vpop.f32.mrf.mxu0
        %7937 = vmatprep.mubr.bf16.mxu0 0
        %7938 = vmatmul.mubr.bf16.gmra.mxu0 %v3227
        %v7939 = vpop.f32.mrf.mxu0
        %v7940 = vadd.f32 0.0, %v7939
        %v7941 = vpop.f32.mrf.mxu0
        %v7942 = vpop.f32.mrf.mxu0
        %v7943 = vadd.f32 0.0, %v7942
        %v7944 = vpop.f32.mrf.mxu0
        %7945 = vmatprep.mubr.bf16.mxu0 0
        %7946 = vmatmul.mubr.bf16.gmra.mxu0 %v5299
        %v7947 = vpop.f32.mrf.mxu0
        %v7948 = vadd.f32 0.0, %v7947
        %v7949 = vpop.f32.mrf.mxu0
        %v7950 = vpop.f32.mrf.mxu0
        %v7951 = vadd.f32 0.0, %v7950
        %v7952 = vpop.f32.mrf.mxu0
        %7953 = vmatprep.mubr.bf16.mxu0 0
        %7954 = vmatmul.mubr.bf16.gmra.mxu0 %v5302
        %v7955 = vpop.f32.mrf.mxu0
        %v7956 = vadd.f32 0.0, %v7955
        %v7957 = vpop.f32.mrf.mxu0
        %v7958 = vpop.f32.mrf.mxu0
        %v7959 = vadd.f32 0.0, %v7958
        %v7960 = vpop.f32.mrf.mxu0
        %7961 = vmatprep.mubr.bf16.mxu0 0
        %7962 = vmatmul.mubr.bf16.gmra.mxu0 %v7425
        %v7963 = vpop.f32.mrf.mxu0
        %v7964 = vadd.f32 0.0, %v7963
        %v7965 = vpop.f32.mrf.mxu0
        %v7966 = vpop.f32.mrf.mxu0
        %v7967 = vadd.f32 0.0, %v7966
        %v7968 = vpop.f32.mrf.mxu0
        %7969 = vmatprep.mubr.bf16.mxu0 0
        %7970 = vmatmul.mubr.bf16.gmra.mxu0 %v7428
        %v7971 = vpop.f32.mrf.mxu0
        %v7972 = vadd.f32 0.0, %v7971
        %v7973 = vpop.f32.mrf.mxu0
        %v7974 = vpop.f32.mrf.mxu0
        %v7975 = vadd.f32 0.0, %v7974
        %v7976 = vpop.f32.mrf.mxu0
        %7977 = vdwg.mxu0
        %v7978 = vadd.f32 %v7286, %v7468
        %v7979 = vadd.f32 %v7287, %v7471
        %v7980 = vadd.f32 %v7288, %v7476
        %v7981 = vadd.f32 %v7289, %v7479
        %v7982 = vadd.f32 %v7290, %v7484
        %v7983 = vadd.f32 %v7291, %v7487
        %v7984 = vadd.f32 %v7292, %v7492
        %v7985 = vadd.f32 %v7293, %v7495
        %v7986 = vadd.f32 %v7294, %v7500
        %v7987 = vadd.f32 %v7295, %v7503
        %v7988 = vadd.f32 %v7296, %v7508
        %v7989 = vadd.f32 %v7297, %v7511
        %v7990 = vadd.f32 %v7298, %v7516
        %v7991 = vadd.f32 %v7299, %v7519
        %v7992 = vadd.f32 %v7300, %v7524
        %v7993 = vadd.f32 %v7301, %v7527
        %v7994 = vadd.f32 %v7302, %v7532
        %v7995 = vadd.f32 %v7303, %v7535
        %v7996 = vadd.f32 %v7304, %v7540
        %v7997 = vadd.f32 %v7305, %v7543
        %v7998 = vadd.f32 %v7306, %v7548
        %v7999 = vadd.f32 %v7307, %v7551
        %v8000 = vadd.f32 %v7308, %v7556
        %v8001 = vadd.f32 %v7309, %v7559
        %v8002 = vadd.f32 %v7310, %v7564
        %v8003 = vadd.f32 %v7311, %v7567
        %v8004 = vadd.f32 %v7312, %v7572
        %v8005 = vadd.f32 %v7313, %v7575
        %v8006 = vadd.f32 %v7314, %v7580
        %v8007 = vadd.f32 %v7315, %v7583
        %v8008 = vadd.f32 %v7316, %v7588
        %v8009 = vadd.f32 %v7317, %v7591
        %v8010 = vadd.f32 %v7318, %v7596
        %v8011 = vadd.f32 %v7319, %v7599
        %v8012 = vadd.f32 %v7320, %v7604
        %v8013 = vadd.f32 %v7321, %v7607
        %v8014 = vadd.f32 %v7322, %v7612
        %v8015 = vadd.f32 %v7323, %v7615
        %v8016 = vadd.f32 %v7324, %v7620
        %v8017 = vadd.f32 %v7325, %v7623
        %v8018 = vadd.f32 %v7326, %v7628
        %v8019 = vadd.f32 %v7327, %v7631
        %v8020 = vadd.f32 %v7328, %v7636
        %v8021 = vadd.f32 %v7329, %v7639
        %v8022 = vadd.f32 %v7330, %v7644
        %v8023 = vadd.f32 %v7331, %v7647
        %v8024 = vadd.f32 %v7332, %v7652
        %v8025 = vadd.f32 %v7333, %v7655
        %v8026 = vadd.f32 %v7334, %v7660
        %v8027 = vadd.f32 %v7335, %v7663
        %v8028 = vadd.f32 %v7336, %v7668
        %v8029 = vadd.f32 %v7337, %v7671
        %v8030 = vadd.f32 %v7338, %v7676
        %v8031 = vadd.f32 %v7339, %v7679
        %v8032 = vadd.f32 %v7340, %v7684
        %v8033 = vadd.f32 %v7341, %v7687
        %v8034 = vadd.f32 %v7342, %v7692
        %v8035 = vadd.f32 %v7343, %v7695
        %v8036 = vadd.f32 %v7344, %v7700
        %v8037 = vadd.f32 %v7345, %v7703
        %v8038 = vadd.f32 %v7346, %v7708
        %v8039 = vadd.f32 %v7347, %v7711
        %v8040 = vadd.f32 %v7348, %v7716
        %v8041 = vadd.f32 %v7349, %v7719
        %v8042 = vadd.f32 %v7350, %v7724
        %v8043 = vadd.f32 %v7351, %v7727
        %v8044 = vadd.f32 %v7352, %v7732
        %v8045 = vadd.f32 %v7353, %v7735
        %v8046 = vadd.f32 %v7354, %v7740
        %v8047 = vadd.f32 %v7355, %v7743
        %v8048 = vadd.f32 %v7356, %v7748
        %v8049 = vadd.f32 %v7357, %v7751
        %v8050 = vadd.f32 %v7358, %v7756
        %v8051 = vadd.f32 %v7359, %v7759
        %v8052 = vadd.f32 %v7360, %v7764
        %v8053 = vadd.f32 %v7361, %v7767
        %v8054 = vadd.f32 %v7362, %v7772
        %v8055 = vadd.f32 %v7363, %v7775
        %v8056 = vadd.f32 %v7364, %v7780
        %v8057 = vadd.f32 %v7365, %v7783
        %v8058 = vadd.f32 %v7366, %v7788
        %v8059 = vadd.f32 %v7367, %v7791
        %v8060 = vadd.f32 %v7368, %v7796
        %v8061 = vadd.f32 %v7369, %v7799
        %v8062 = vadd.f32 %v7370, %v7804
        %v8063 = vadd.f32 %v7371, %v7807
        %v8064 = vadd.f32 %v7372, %v7812
        %v8065 = vadd.f32 %v7373, %v7815
        %v8066 = vadd.f32 %v7374, %v7820
        %v8067 = vadd.f32 %v7375, %v7823
        %v8068 = vadd.f32 %v7376, %v7828
        %v8069 = vadd.f32 %v7377, %v7831
        %v8070 = vadd.f32 %v7378, %v7836
        %v8071 = vadd.f32 %v7379, %v7839
        %v8072 = vadd.f32 %v7380, %v7844
        %v8073 = vadd.f32 %v7381, %v7847
        %v8074 = vadd.f32 %v7382, %v7852
        %v8075 = vadd.f32 %v7383, %v7855
        %v8076 = vadd.f32 %v7384, %v7860
        %v8077 = vadd.f32 %v7385, %v7863
        %v8078 = vadd.f32 %v7386, %v7868
        %v8079 = vadd.f32 %v7387, %v7871
        %v8080 = vadd.f32 %v7388, %v7876
        %v8081 = vadd.f32 %v7389, %v7879
        %v8082 = vadd.f32 %v7390, %v7884
        %v8083 = vadd.f32 %v7391, %v7887
        %v8084 = vadd.f32 %v7392, %v7892
        %v8085 = vadd.f32 %v7393, %v7895
        %v8086 = vadd.f32 %v7394, %v7900
        %v8087 = vadd.f32 %v7395, %v7903
        %v8088 = vadd.f32 %v7396, %v7908
        %v8089 = vadd.f32 %v7397, %v7911
        %v8090 = vadd.f32 %v7398, %v7916
        %v8091 = vadd.f32 %v7399, %v7919
        %v8092 = vadd.f32 %v7400, %v7924
        %v8093 = vadd.f32 %v7401, %v7927
        %v8094 = vadd.f32 %v7402, %v7932
        %v8095 = vadd.f32 %v7403, %v7935
        %v8096 = vadd.f32 %v7404, %v7940
        %v8097 = vadd.f32 %v7405, %v7943
        %v8098 = vadd.f32 %v7406, %v7948
        %v8099 = vadd.f32 %v7407, %v7951
        %v8100 = vadd.f32 %v7408, %v7956
        %v8101 = vadd.f32 %v7409, %v7959
        %v8102 = vadd.f32 %v7410, %v7964
        %v8103 = vadd.f32 %v7411, %v7967
        %v8104 = vadd.f32 %v7412, %v7972
        %v8105 = vadd.f32 %v7413, %v7975
        %v8107 = vshrl.u32 %v357, 16
        %v8109 = vrot.slane %v8107, 4
        %v8110 = vshll.u32 %v357, 16
        %v8112 = vrot.slane %v8110, 5
        %v8113 = vor.u32 %v8109, %v8112
        %v8114 = vrot.slane %v8113, 4
        %v8116 = vshll.u32 %v358, 16
        %v8118 = vrot.slane %v8116, 5
        %v8119 = vsel %vm374, %v8114, %v8118
        %v8120 = vshrl.u32 %v358, 16
        %v8122 = vrot.slane %v8120, 4
        %v8123 = vor.u32 %v8122, %v8118
        %v8124 = vrot.slane %v8123, 4
        %v8126 = vshll.u32 %v359, 16
        %v8128 = vrot.slane %v8126, 5
        %v8129 = vsel %vm374, %v8124, %v8128
        %v8130 = vshrl.u32 %v359, 16
        %v8132 = vrot.slane %v8130, 4
        %v8133 = vor.u32 %v8132, %v8128
        %v8134 = vrot.slane %v8133, 4
        %v8136 = vshll.u32 %v360, 16
        %v8138 = vrot.slane %v8136, 5
        %v8139 = vsel %vm374, %v8134, %v8138
        %v8140 = vshrl.u32 %v360, 16
        %v8142 = vrot.slane %v8140, 4
        %v8143 = vor.u32 %v8142, %v8138
        %v8144 = vrot.slane %v8143, 4
        %v8146 = vshll.u32 %v361, 16
        %v8148 = vrot.slane %v8146, 5
        %v8149 = vsel %vm374, %v8144, %v8148
        %v8150 = vunpack.c.l.b16 %v8119
        %v8151 = vunpack.c.l.b16 %v8129
        %v8152 = vunpack.c.l.b16 %v8139
        %v8153 = vunpack.c.l.b16 %v8149
        %v8154 = vpack.c.b16 %v8151, %v8150
        %v8155 = vpack.c.b16 %v8153, %v8152
        %v8157 = vsel %vm1975, %v8154, 0
        %v8160 = vsel %vm1975, %v8155, 0
        %v8163 = vsel %vm2168, %v369, 0
        %8165 = vmatprep.subr.bf16.mxu0 0
        %8166 = vmatpush1.bf16.msra.mxu0 0
        %8167 = vmatprep.subr.bf16.mxu0 0
        %8168 = vmatpush1.bf16.msra.mxu0 0
        %8169 = vmatprep.subr.bf16.mxu0 0
        %8170 = vmatpush1.bf16.msra.mxu0 0
        %8171 = vmatprep.subr.bf16.mxu0 0
        %8172 = vmatpush1.bf16.msra.mxu0 0
        %8173 = vmatprep.subr.bf16.mxu0 0
        %8174 = vmatpush1.bf16.msra.mxu0 0
        %8175 = vmatprep.subr.bf16.mxu0 0
        %8176 = vmatpush1.bf16.msra.mxu0 0
        %8177 = vmatprep.subr.bf16.mxu0 0
        %8178 = vmatpush1.bf16.msra.mxu0 0
        %8179 = vmatprep.subr.bf16.mxu0 0
        %8180 = vmatpush1.bf16.msra.mxu0 %v8163
        %8181 = vmatprep.subr.bf16.mxu0 0
        %8182 = vmatpush2.bf16.msra.mxu0 0
        %8183 = vmatprep.subr.bf16.mxu0 0
        %8184 = vmatpush2.bf16.msra.mxu0 0
        %8185 = vmatprep.subr.bf16.mxu0 0
        %8186 = vmatpush2.bf16.msra.mxu0 0
        %8187 = vmatprep.subr.bf16.mxu0 0
        %8188 = vmatpush2.bf16.msra.mxu0 0
        %8189 = vmatprep.subr.bf16.mxu0 0
        %8190 = vmatpush2.bf16.msra.mxu0 0
        %8191 = vmatprep.subr.bf16.mxu0 0
        %8192 = vmatpush2.bf16.msra.mxu0 0
        %8193 = vmatprep.subr.bf16.mxu0 0
        %8194 = vmatpush2.bf16.msra.mxu0 0
        %8195 = vmatprep.subr.bf16.mxu0 0
        %8196 = vmatpush2.bf16.msra.mxu0 0
        %8197 = vmatprep.mubr.bf16.mxu0 0
        %8198 = vmatmul.mubr.bf16.gmra.mxu0 %v1989
        %v8199 = vpop.f32.mrf.mxu0
        %v8200 = vadd.f32 0.0, %v8199
        %v8201 = vpop.f32.mrf.mxu0
        %v8202 = vpop.f32.mrf.mxu0
        %v8203 = vadd.f32 0.0, %v8202
        %v8204 = vpop.f32.mrf.mxu0
        %8205 = vmatprep.mubr.bf16.mxu0 0
        %8206 = vmatmul.mubr.bf16.gmra.mxu0 %v1992
        %v8207 = vpop.f32.mrf.mxu0
        %v8208 = vadd.f32 0.0, %v8207
        %v8209 = vpop.f32.mrf.mxu0
        %v8210 = vpop.f32.mrf.mxu0
        %v8211 = vadd.f32 0.0, %v8210
        %v8212 = vpop.f32.mrf.mxu0
        %8213 = vmatprep.mubr.bf16.mxu0 0
        %8214 = vmatmul.mubr.bf16.gmra.mxu0 %v1995
        %v8215 = vpop.f32.mrf.mxu0
        %v8216 = vadd.f32 0.0, %v8215
        %v8217 = vpop.f32.mrf.mxu0
        %v8218 = vpop.f32.mrf.mxu0
        %v8219 = vadd.f32 0.0, %v8218
        %v8220 = vpop.f32.mrf.mxu0
        %8221 = vmatprep.mubr.bf16.mxu0 0
        %8222 = vmatmul.mubr.bf16.gmra.mxu0 %v1998
        %v8223 = vpop.f32.mrf.mxu0
        %v8224 = vadd.f32 0.0, %v8223
        %v8225 = vpop.f32.mrf.mxu0
        %v8226 = vpop.f32.mrf.mxu0
        %v8227 = vadd.f32 0.0, %v8226
        %v8228 = vpop.f32.mrf.mxu0
        %8229 = vmatprep.mubr.bf16.mxu0 0
        %8230 = vmatmul.mubr.bf16.gmra.mxu0 %v2001
        %v8231 = vpop.f32.mrf.mxu0
        %v8232 = vadd.f32 0.0, %v8231
        %v8233 = vpop.f32.mrf.mxu0
        %v8234 = vpop.f32.mrf.mxu0
        %v8235 = vadd.f32 0.0, %v8234
        %v8236 = vpop.f32.mrf.mxu0
        %8237 = vmatprep.mubr.bf16.mxu0 0
        %8238 = vmatmul.mubr.bf16.gmra.mxu0 %v2004
        %v8239 = vpop.f32.mrf.mxu0
        %v8240 = vadd.f32 0.0, %v8239
        %v8241 = vpop.f32.mrf.mxu0
        %v8242 = vpop.f32.mrf.mxu0
        %v8243 = vadd.f32 0.0, %v8242
        %v8244 = vpop.f32.mrf.mxu0
        %8245 = vmatprep.mubr.bf16.mxu0 0
        %8246 = vmatmul.mubr.bf16.gmra.mxu0 %v2007
        %v8247 = vpop.f32.mrf.mxu0
        %v8248 = vadd.f32 0.0, %v8247
        %v8249 = vpop.f32.mrf.mxu0
        %v8250 = vpop.f32.mrf.mxu0
        %v8251 = vadd.f32 0.0, %v8250
        %v8252 = vpop.f32.mrf.mxu0
        %8253 = vmatprep.mubr.bf16.mxu0 0
        %8254 = vmatmul.mubr.bf16.gmra.mxu0 %v2010
        %v8255 = vpop.f32.mrf.mxu0
        %v8256 = vadd.f32 0.0, %v8255
        %v8257 = vpop.f32.mrf.mxu0
        %v8258 = vpop.f32.mrf.mxu0
        %v8259 = vadd.f32 0.0, %v8258
        %v8260 = vpop.f32.mrf.mxu0
        %8261 = vmatprep.mubr.bf16.mxu0 0
        %8262 = vmatmul.mubr.bf16.gmra.mxu0 %v2013
        %v8263 = vpop.f32.mrf.mxu0
        %v8264 = vadd.f32 0.0, %v8263
        %v8265 = vpop.f32.mrf.mxu0
        %v8266 = vpop.f32.mrf.mxu0
        %v8267 = vadd.f32 0.0, %v8266
        %v8268 = vpop.f32.mrf.mxu0
        %8269 = vmatprep.mubr.bf16.mxu0 0
        %8270 = vmatmul.mubr.bf16.gmra.mxu0 %v2016
        %v8271 = vpop.f32.mrf.mxu0
        %v8272 = vadd.f32 0.0, %v8271
        %v8273 = vpop.f32.mrf.mxu0
        %v8274 = vpop.f32.mrf.mxu0
        %v8275 = vadd.f32 0.0, %v8274
        %v8276 = vpop.f32.mrf.mxu0
        %8277 = vmatprep.mubr.bf16.mxu0 0
        %8278 = vmatmul.mubr.bf16.gmra.mxu0 %v2019
        %v8279 = vpop.f32.mrf.mxu0
        %v8280 = vadd.f32 0.0, %v8279
        %v8281 = vpop.f32.mrf.mxu0
        %v8282 = vpop.f32.mrf.mxu0
        %v8283 = vadd.f32 0.0, %v8282
        %v8284 = vpop.f32.mrf.mxu0
        %8285 = vmatprep.mubr.bf16.mxu0 0
        %8286 = vmatmul.mubr.bf16.gmra.mxu0 %v2022
        %v8287 = vpop.f32.mrf.mxu0
        %v8288 = vadd.f32 0.0, %v8287
        %v8289 = vpop.f32.mrf.mxu0
        %v8290 = vpop.f32.mrf.mxu0
        %v8291 = vadd.f32 0.0, %v8290
        %v8292 = vpop.f32.mrf.mxu0
        %8293 = vmatprep.mubr.bf16.mxu0 0
        %8294 = vmatmul.mubr.bf16.gmra.mxu0 %v2025
        %v8295 = vpop.f32.mrf.mxu0
        %v8296 = vadd.f32 0.0, %v8295
        %v8297 = vpop.f32.mrf.mxu0
        %v8298 = vpop.f32.mrf.mxu0
        %v8299 = vadd.f32 0.0, %v8298
        %v8300 = vpop.f32.mrf.mxu0
        %8301 = vmatprep.mubr.bf16.mxu0 0
        %8302 = vmatmul.mubr.bf16.gmra.mxu0 %v2028
        %v8303 = vpop.f32.mrf.mxu0
        %v8304 = vadd.f32 0.0, %v8303
        %v8305 = vpop.f32.mrf.mxu0
        %v8306 = vpop.f32.mrf.mxu0
        %v8307 = vadd.f32 0.0, %v8306
        %v8308 = vpop.f32.mrf.mxu0
        %8309 = vmatprep.mubr.bf16.mxu0 0
        %8310 = vmatmul.mubr.bf16.gmra.mxu0 %v2031
        %v8311 = vpop.f32.mrf.mxu0
        %v8312 = vadd.f32 0.0, %v8311
        %v8313 = vpop.f32.mrf.mxu0
        %v8314 = vpop.f32.mrf.mxu0
        %v8315 = vadd.f32 0.0, %v8314
        %v8316 = vpop.f32.mrf.mxu0
        %8317 = vmatprep.mubr.bf16.mxu0 0
        %8318 = vmatmul.mubr.bf16.gmra.mxu0 %v2034
        %v8319 = vpop.f32.mrf.mxu0
        %v8320 = vadd.f32 0.0, %v8319
        %v8321 = vpop.f32.mrf.mxu0
        %v8322 = vpop.f32.mrf.mxu0
        %v8323 = vadd.f32 0.0, %v8322
        %v8324 = vpop.f32.mrf.mxu0
        %8325 = vmatprep.mubr.bf16.mxu0 0
        %8326 = vmatmul.mubr.bf16.gmra.mxu0 %v2037
        %v8327 = vpop.f32.mrf.mxu0
        %v8328 = vadd.f32 0.0, %v8327
        %v8329 = vpop.f32.mrf.mxu0
        %v8330 = vpop.f32.mrf.mxu0
        %v8331 = vadd.f32 0.0, %v8330
        %v8332 = vpop.f32.mrf.mxu0
        %8333 = vmatprep.mubr.bf16.mxu0 0
        %8334 = vmatmul.mubr.bf16.gmra.mxu0 %v2040
        %v8335 = vpop.f32.mrf.mxu0
        %v8336 = vadd.f32 0.0, %v8335
        %v8337 = vpop.f32.mrf.mxu0
        %v8338 = vpop.f32.mrf.mxu0
        %v8339 = vadd.f32 0.0, %v8338
        %v8340 = vpop.f32.mrf.mxu0
        %8341 = vmatprep.mubr.bf16.mxu0 0
        %8342 = vmatmul.mubr.bf16.gmra.mxu0 %v2043
        %v8343 = vpop.f32.mrf.mxu0
        %v8344 = vadd.f32 0.0, %v8343
        %v8345 = vpop.f32.mrf.mxu0
        %v8346 = vpop.f32.mrf.mxu0
        %v8347 = vadd.f32 0.0, %v8346
        %v8348 = vpop.f32.mrf.mxu0
        %8349 = vmatprep.mubr.bf16.mxu0 0
        %8350 = vmatmul.mubr.bf16.gmra.mxu0 %v2046
        %v8351 = vpop.f32.mrf.mxu0
        %v8352 = vadd.f32 0.0, %v8351
        %v8353 = vpop.f32.mrf.mxu0
        %v8354 = vpop.f32.mrf.mxu0
        %v8355 = vadd.f32 0.0, %v8354
        %v8356 = vpop.f32.mrf.mxu0
        %8357 = vmatprep.mubr.bf16.mxu0 0
        %8358 = vmatmul.mubr.bf16.gmra.mxu0 %v2049
        %v8359 = vpop.f32.mrf.mxu0
        %v8360 = vadd.f32 0.0, %v8359
        %v8361 = vpop.f32.mrf.mxu0
        %v8362 = vpop.f32.mrf.mxu0
        %v8363 = vadd.f32 0.0, %v8362
        %v8364 = vpop.f32.mrf.mxu0
        %8365 = vmatprep.mubr.bf16.mxu0 0
        %8366 = vmatmul.mubr.bf16.gmra.mxu0 %v2052
        %v8367 = vpop.f32.mrf.mxu0
        %v8368 = vadd.f32 0.0, %v8367
        %v8369 = vpop.f32.mrf.mxu0
        %v8370 = vpop.f32.mrf.mxu0
        %v8371 = vadd.f32 0.0, %v8370
        %v8372 = vpop.f32.mrf.mxu0
        %8373 = vmatprep.mubr.bf16.mxu0 0
        %8374 = vmatmul.mubr.bf16.gmra.mxu0 %v2055
        %v8375 = vpop.f32.mrf.mxu0
        %v8376 = vadd.f32 0.0, %v8375
        %v8377 = vpop.f32.mrf.mxu0
        %v8378 = vpop.f32.mrf.mxu0
        %v8379 = vadd.f32 0.0, %v8378
        %v8380 = vpop.f32.mrf.mxu0
        %8381 = vmatprep.mubr.bf16.mxu0 0
        %8382 = vmatmul.mubr.bf16.gmra.mxu0 %v2058
        %v8383 = vpop.f32.mrf.mxu0
        %v8384 = vadd.f32 0.0, %v8383
        %v8385 = vpop.f32.mrf.mxu0
        %v8386 = vpop.f32.mrf.mxu0
        %v8387 = vadd.f32 0.0, %v8386
        %v8388 = vpop.f32.mrf.mxu0
        %8389 = vmatprep.mubr.bf16.mxu0 0
        %8390 = vmatmul.mubr.bf16.gmra.mxu0 %v2061
        %v8391 = vpop.f32.mrf.mxu0
        %v8392 = vadd.f32 0.0, %v8391
        %v8393 = vpop.f32.mrf.mxu0
        %v8394 = vpop.f32.mrf.mxu0
        %v8395 = vadd.f32 0.0, %v8394
        %v8396 = vpop.f32.mrf.mxu0
        %8397 = vmatprep.mubr.bf16.mxu0 0
        %8398 = vmatmul.mubr.bf16.gmra.mxu0 %v2064
        %v8399 = vpop.f32.mrf.mxu0
        %v8400 = vadd.f32 0.0, %v8399
        %v8401 = vpop.f32.mrf.mxu0
        %v8402 = vpop.f32.mrf.mxu0
        %v8403 = vadd.f32 0.0, %v8402
        %v8404 = vpop.f32.mrf.mxu0
        %8405 = vmatprep.mubr.bf16.mxu0 0
        %8406 = vmatmul.mubr.bf16.gmra.mxu0 %v2067
        %v8407 = vpop.f32.mrf.mxu0
        %v8408 = vadd.f32 0.0, %v8407
        %v8409 = vpop.f32.mrf.mxu0
        %v8410 = vpop.f32.mrf.mxu0
        %v8411 = vadd.f32 0.0, %v8410
        %v8412 = vpop.f32.mrf.mxu0
        %8413 = vmatprep.mubr.bf16.mxu0 0
        %8414 = vmatmul.mubr.bf16.gmra.mxu0 %v2070
        %v8415 = vpop.f32.mrf.mxu0
        %v8416 = vadd.f32 0.0, %v8415
        %v8417 = vpop.f32.mrf.mxu0
        %v8418 = vpop.f32.mrf.mxu0
        %v8419 = vadd.f32 0.0, %v8418
        %v8420 = vpop.f32.mrf.mxu0
        %8421 = vmatprep.mubr.bf16.mxu0 0
        %8422 = vmatmul.mubr.bf16.gmra.mxu0 %v2073
        %v8423 = vpop.f32.mrf.mxu0
        %v8424 = vadd.f32 0.0, %v8423
        %v8425 = vpop.f32.mrf.mxu0
        %v8426 = vpop.f32.mrf.mxu0
        %v8427 = vadd.f32 0.0, %v8426
        %v8428 = vpop.f32.mrf.mxu0
        %8429 = vmatprep.mubr.bf16.mxu0 0
        %8430 = vmatmul.mubr.bf16.gmra.mxu0 %v2076
        %v8431 = vpop.f32.mrf.mxu0
        %v8432 = vadd.f32 0.0, %v8431
        %v8433 = vpop.f32.mrf.mxu0
        %v8434 = vpop.f32.mrf.mxu0
        %v8435 = vadd.f32 0.0, %v8434
        %v8436 = vpop.f32.mrf.mxu0
        %8437 = vmatprep.mubr.bf16.mxu0 0
        %8438 = vmatmul.mubr.bf16.gmra.mxu0 %v2079
        %v8439 = vpop.f32.mrf.mxu0
        %v8440 = vadd.f32 0.0, %v8439
        %v8441 = vpop.f32.mrf.mxu0
        %v8442 = vpop.f32.mrf.mxu0
        %v8443 = vadd.f32 0.0, %v8442
        %v8444 = vpop.f32.mrf.mxu0
        %8445 = vmatprep.mubr.bf16.mxu0 0
        %8446 = vmatmul.mubr.bf16.gmra.mxu0 %v2082
        %v8447 = vpop.f32.mrf.mxu0
        %v8448 = vadd.f32 0.0, %v8447
        %v8449 = vpop.f32.mrf.mxu0
        %v8450 = vpop.f32.mrf.mxu0
        %v8451 = vadd.f32 0.0, %v8450
        %v8452 = vpop.f32.mrf.mxu0
        %8453 = vmatprep.mubr.bf16.mxu0 0
        %8454 = vmatmul.mubr.bf16.gmra.mxu0 %v2085
        %v8455 = vpop.f32.mrf.mxu0
        %v8456 = vadd.f32 0.0, %v8455
        %v8457 = vpop.f32.mrf.mxu0
        %v8458 = vpop.f32.mrf.mxu0
        %v8459 = vadd.f32 0.0, %v8458
        %v8460 = vpop.f32.mrf.mxu0
        %8461 = vmatprep.mubr.bf16.mxu0 0
        %8462 = vmatmul.mubr.bf16.gmra.mxu0 %v2088
        %v8463 = vpop.f32.mrf.mxu0
        %v8464 = vadd.f32 0.0, %v8463
        %v8465 = vpop.f32.mrf.mxu0
        %v8466 = vpop.f32.mrf.mxu0
        %v8467 = vadd.f32 0.0, %v8466
        %v8468 = vpop.f32.mrf.mxu0
        %8469 = vmatprep.mubr.bf16.mxu0 0
        %8470 = vmatmul.mubr.bf16.gmra.mxu0 %v2091
        %v8471 = vpop.f32.mrf.mxu0
        %v8472 = vadd.f32 0.0, %v8471
        %v8473 = vpop.f32.mrf.mxu0
        %v8474 = vpop.f32.mrf.mxu0
        %v8475 = vadd.f32 0.0, %v8474
        %v8476 = vpop.f32.mrf.mxu0
        %8477 = vmatprep.mubr.bf16.mxu0 0
        %8478 = vmatmul.mubr.bf16.gmra.mxu0 %v2094
        %v8479 = vpop.f32.mrf.mxu0
        %v8480 = vadd.f32 0.0, %v8479
        %v8481 = vpop.f32.mrf.mxu0
        %v8482 = vpop.f32.mrf.mxu0
        %v8483 = vadd.f32 0.0, %v8482
        %v8484 = vpop.f32.mrf.mxu0
        %8485 = vmatprep.mubr.bf16.mxu0 0
        %8486 = vmatmul.mubr.bf16.gmra.mxu0 %v2097
        %v8487 = vpop.f32.mrf.mxu0
        %v8488 = vadd.f32 0.0, %v8487
        %v8489 = vpop.f32.mrf.mxu0
        %v8490 = vpop.f32.mrf.mxu0
        %v8491 = vadd.f32 0.0, %v8490
        %v8492 = vpop.f32.mrf.mxu0
        %8493 = vmatprep.mubr.bf16.mxu0 0
        %8494 = vmatmul.mubr.bf16.gmra.mxu0 %v2100
        %v8495 = vpop.f32.mrf.mxu0
        %v8496 = vadd.f32 0.0, %v8495
        %v8497 = vpop.f32.mrf.mxu0
        %v8498 = vpop.f32.mrf.mxu0
        %v8499 = vadd.f32 0.0, %v8498
        %v8500 = vpop.f32.mrf.mxu0
        %8501 = vmatprep.mubr.bf16.mxu0 0
        %8502 = vmatmul.mubr.bf16.gmra.mxu0 %v2103
        %v8503 = vpop.f32.mrf.mxu0
        %v8504 = vadd.f32 0.0, %v8503
        %v8505 = vpop.f32.mrf.mxu0
        %v8506 = vpop.f32.mrf.mxu0
        %v8507 = vadd.f32 0.0, %v8506
        %v8508 = vpop.f32.mrf.mxu0
        %8509 = vmatprep.mubr.bf16.mxu0 0
        %8510 = vmatmul.mubr.bf16.gmra.mxu0 %v2106
        %v8511 = vpop.f32.mrf.mxu0
        %v8512 = vadd.f32 0.0, %v8511
        %v8513 = vpop.f32.mrf.mxu0
        %v8514 = vpop.f32.mrf.mxu0
        %v8515 = vadd.f32 0.0, %v8514
        %v8516 = vpop.f32.mrf.mxu0
        %8517 = vmatprep.mubr.bf16.mxu0 0
        %8518 = vmatmul.mubr.bf16.gmra.mxu0 %v2109
        %v8519 = vpop.f32.mrf.mxu0
        %v8520 = vadd.f32 0.0, %v8519
        %v8521 = vpop.f32.mrf.mxu0
        %v8522 = vpop.f32.mrf.mxu0
        %v8523 = vadd.f32 0.0, %v8522
        %v8524 = vpop.f32.mrf.mxu0
        %8525 = vmatprep.mubr.bf16.mxu0 0
        %8526 = vmatmul.mubr.bf16.gmra.mxu0 %v2112
        %v8527 = vpop.f32.mrf.mxu0
        %v8528 = vadd.f32 0.0, %v8527
        %v8529 = vpop.f32.mrf.mxu0
        %v8530 = vpop.f32.mrf.mxu0
        %v8531 = vadd.f32 0.0, %v8530
        %v8532 = vpop.f32.mrf.mxu0
        %8533 = vmatprep.mubr.bf16.mxu0 0
        %8534 = vmatmul.mubr.bf16.gmra.mxu0 %v2115
        %v8535 = vpop.f32.mrf.mxu0
        %v8536 = vadd.f32 0.0, %v8535
        %v8537 = vpop.f32.mrf.mxu0
        %v8538 = vpop.f32.mrf.mxu0
        %v8539 = vadd.f32 0.0, %v8538
        %v8540 = vpop.f32.mrf.mxu0
        %8541 = vmatprep.mubr.bf16.mxu0 0
        %8542 = vmatmul.mubr.bf16.gmra.mxu0 %v2118
        %v8543 = vpop.f32.mrf.mxu0
        %v8544 = vadd.f32 0.0, %v8543
        %v8545 = vpop.f32.mrf.mxu0
        %v8546 = vpop.f32.mrf.mxu0
        %v8547 = vadd.f32 0.0, %v8546
        %v8548 = vpop.f32.mrf.mxu0
        %8549 = vmatprep.mubr.bf16.mxu0 0
        %8550 = vmatmul.mubr.bf16.gmra.mxu0 %v2121
        %v8551 = vpop.f32.mrf.mxu0
        %v8552 = vadd.f32 0.0, %v8551
        %v8553 = vpop.f32.mrf.mxu0
        %v8554 = vpop.f32.mrf.mxu0
        %v8555 = vadd.f32 0.0, %v8554
        %v8556 = vpop.f32.mrf.mxu0
        %8557 = vmatprep.mubr.bf16.mxu0 0
        %8558 = vmatmul.mubr.bf16.gmra.mxu0 %v2124
        %v8559 = vpop.f32.mrf.mxu0
        %v8560 = vadd.f32 0.0, %v8559
        %v8561 = vpop.f32.mrf.mxu0
        %v8562 = vpop.f32.mrf.mxu0
        %v8563 = vadd.f32 0.0, %v8562
        %v8564 = vpop.f32.mrf.mxu0
        %8565 = vmatprep.mubr.bf16.mxu0 0
        %8566 = vmatmul.mubr.bf16.gmra.mxu0 %v2127
        %v8567 = vpop.f32.mrf.mxu0
        %v8568 = vadd.f32 0.0, %v8567
        %v8569 = vpop.f32.mrf.mxu0
        %v8570 = vpop.f32.mrf.mxu0
        %v8571 = vadd.f32 0.0, %v8570
        %v8572 = vpop.f32.mrf.mxu0
        %8573 = vmatprep.mubr.bf16.mxu0 0
        %8574 = vmatmul.mubr.bf16.gmra.mxu0 %v2130
        %v8575 = vpop.f32.mrf.mxu0
        %v8576 = vadd.f32 0.0, %v8575
        %v8577 = vpop.f32.mrf.mxu0
        %v8578 = vpop.f32.mrf.mxu0
        %v8579 = vadd.f32 0.0, %v8578
        %v8580 = vpop.f32.mrf.mxu0
        %8581 = vmatprep.mubr.bf16.mxu0 0
        %8582 = vmatmul.mubr.bf16.gmra.mxu0 %v2133
        %v8583 = vpop.f32.mrf.mxu0
        %v8584 = vadd.f32 0.0, %v8583
        %v8585 = vpop.f32.mrf.mxu0
        %v8586 = vpop.f32.mrf.mxu0
        %v8587 = vadd.f32 0.0, %v8586
        %v8588 = vpop.f32.mrf.mxu0
        %8589 = vmatprep.mubr.bf16.mxu0 0
        %8590 = vmatmul.mubr.bf16.gmra.mxu0 %v2136
        %v8591 = vpop.f32.mrf.mxu0
        %v8592 = vadd.f32 0.0, %v8591
        %v8593 = vpop.f32.mrf.mxu0
        %v8594 = vpop.f32.mrf.mxu0
        %v8595 = vadd.f32 0.0, %v8594
        %v8596 = vpop.f32.mrf.mxu0
        %8597 = vmatprep.mubr.bf16.mxu0 0
        %8598 = vmatmul.mubr.bf16.gmra.mxu0 %v2139
        %v8599 = vpop.f32.mrf.mxu0
        %v8600 = vadd.f32 0.0, %v8599
        %v8601 = vpop.f32.mrf.mxu0
        %v8602 = vpop.f32.mrf.mxu0
        %v8603 = vadd.f32 0.0, %v8602
        %v8604 = vpop.f32.mrf.mxu0
        %8605 = vmatprep.mubr.bf16.mxu0 0
        %8606 = vmatmul.mubr.bf16.gmra.mxu0 %v2142
        %v8607 = vpop.f32.mrf.mxu0
        %v8608 = vadd.f32 0.0, %v8607
        %v8609 = vpop.f32.mrf.mxu0
        %v8610 = vpop.f32.mrf.mxu0
        %v8611 = vadd.f32 0.0, %v8610
        %v8612 = vpop.f32.mrf.mxu0
        %8613 = vmatprep.mubr.bf16.mxu0 0
        %8614 = vmatmul.mubr.bf16.gmra.mxu0 %v2145
        %v8615 = vpop.f32.mrf.mxu0
        %v8616 = vadd.f32 0.0, %v8615
        %v8617 = vpop.f32.mrf.mxu0
        %v8618 = vpop.f32.mrf.mxu0
        %v8619 = vadd.f32 0.0, %v8618
        %v8620 = vpop.f32.mrf.mxu0
        %8621 = vmatprep.mubr.bf16.mxu0 0
        %8622 = vmatmul.mubr.bf16.gmra.mxu0 %v2148
        %v8623 = vpop.f32.mrf.mxu0
        %v8624 = vadd.f32 0.0, %v8623
        %v8625 = vpop.f32.mrf.mxu0
        %v8626 = vpop.f32.mrf.mxu0
        %v8627 = vadd.f32 0.0, %v8626
        %v8628 = vpop.f32.mrf.mxu0
        %8629 = vmatprep.mubr.bf16.mxu0 0
        %8630 = vmatmul.mubr.bf16.gmra.mxu0 %v2151
        %v8631 = vpop.f32.mrf.mxu0
        %v8632 = vadd.f32 0.0, %v8631
        %v8633 = vpop.f32.mrf.mxu0
        %v8634 = vpop.f32.mrf.mxu0
        %v8635 = vadd.f32 0.0, %v8634
        %v8636 = vpop.f32.mrf.mxu0
        %8637 = vmatprep.mubr.bf16.mxu0 0
        %8638 = vmatmul.mubr.bf16.gmra.mxu0 %v2154
        %v8639 = vpop.f32.mrf.mxu0
        %v8640 = vadd.f32 0.0, %v8639
        %v8641 = vpop.f32.mrf.mxu0
        %v8642 = vpop.f32.mrf.mxu0
        %v8643 = vadd.f32 0.0, %v8642
        %v8644 = vpop.f32.mrf.mxu0
        %8645 = vmatprep.mubr.bf16.mxu0 0
        %8646 = vmatmul.mubr.bf16.gmra.mxu0 %v2157
        %v8647 = vpop.f32.mrf.mxu0
        %v8648 = vadd.f32 0.0, %v8647
        %v8649 = vpop.f32.mrf.mxu0
        %v8650 = vpop.f32.mrf.mxu0
        %v8651 = vadd.f32 0.0, %v8650
        %v8652 = vpop.f32.mrf.mxu0
        %8653 = vmatprep.mubr.bf16.mxu0 0
        %8654 = vmatmul.mubr.bf16.gmra.mxu0 %v2160
        %v8655 = vpop.f32.mrf.mxu0
        %v8656 = vadd.f32 0.0, %v8655
        %v8657 = vpop.f32.mrf.mxu0
        %v8658 = vpop.f32.mrf.mxu0
        %v8659 = vadd.f32 0.0, %v8658
        %v8660 = vpop.f32.mrf.mxu0
        %8661 = vmatprep.mubr.bf16.mxu0 0
        %8662 = vmatmul.mubr.bf16.gmra.mxu0 %v2163
        %v8663 = vpop.f32.mrf.mxu0
        %v8664 = vadd.f32 0.0, %v8663
        %v8665 = vpop.f32.mrf.mxu0
        %v8666 = vpop.f32.mrf.mxu0
        %v8667 = vadd.f32 0.0, %v8666
        %v8668 = vpop.f32.mrf.mxu0
        %8669 = vmatprep.mubr.bf16.mxu0 0
        %8670 = vmatmul.mubr.bf16.gmra.mxu0 %v2166
        %v8671 = vpop.f32.mrf.mxu0
        %v8672 = vadd.f32 0.0, %v8671
        %v8673 = vpop.f32.mrf.mxu0
        %v8674 = vpop.f32.mrf.mxu0
        %v8675 = vadd.f32 0.0, %v8674
        %v8676 = vpop.f32.mrf.mxu0
        %8677 = vmatprep.mubr.bf16.mxu0 0
        %8678 = vmatmul.mubr.bf16.gmra.mxu0 %v6031
        %v8679 = vpop.f32.mrf.mxu0
        %v8680 = vadd.f32 0.0, %v8679
        %v8681 = vpop.f32.mrf.mxu0
        %v8682 = vpop.f32.mrf.mxu0
        %v8683 = vadd.f32 0.0, %v8682
        %v8684 = vpop.f32.mrf.mxu0
        %8685 = vmatprep.mubr.bf16.mxu0 0
        %8686 = vmatmul.mubr.bf16.gmra.mxu0 %v6034
        %v8687 = vpop.f32.mrf.mxu0
        %v8688 = vadd.f32 0.0, %v8687
        %v8689 = vpop.f32.mrf.mxu0
        %v8690 = vpop.f32.mrf.mxu0
        %v8691 = vadd.f32 0.0, %v8690
        %v8692 = vpop.f32.mrf.mxu0
        %8693 = vmatprep.mubr.bf16.mxu0 0
        %8694 = vmatmul.mubr.bf16.gmra.mxu0 %v8157
        %v8695 = vpop.f32.mrf.mxu0
        %v8696 = vadd.f32 0.0, %v8695
        %v8697 = vpop.f32.mrf.mxu0
        %v8698 = vpop.f32.mrf.mxu0
        %v8699 = vadd.f32 0.0, %v8698
        %v8700 = vpop.f32.mrf.mxu0
        %8701 = vmatprep.mubr.bf16.mxu0 0
        %8702 = vmatmul.mubr.bf16.gmra.mxu0 %v8160
        %v8703 = vpop.f32.mrf.mxu0
        %v8704 = vadd.f32 0.0, %v8703
        %v8705 = vpop.f32.mrf.mxu0
        %v8706 = vpop.f32.mrf.mxu0
        %v8707 = vadd.f32 0.0, %v8706
        %v8708 = vpop.f32.mrf.mxu0
        %8709 = vdwg.mxu0
        %v8710 = vadd.f32 %v7978, %v8200
        %v8711 = vadd.f32 %v7979, %v8203
        %v8712 = vadd.f32 %v7980, %v8208
        %v8713 = vadd.f32 %v7981, %v8211
        %v8714 = vadd.f32 %v7982, %v8216
        %v8715 = vadd.f32 %v7983, %v8219
        %v8716 = vadd.f32 %v7984, %v8224
        %v8717 = vadd.f32 %v7985, %v8227
        %v8718 = vadd.f32 %v7986, %v8232
        %v8719 = vadd.f32 %v7987, %v8235
        %v8720 = vadd.f32 %v7988, %v8240
        %v8721 = vadd.f32 %v7989, %v8243
        %v8722 = vadd.f32 %v7990, %v8248
        %v8723 = vadd.f32 %v7991, %v8251
        %v8724 = vadd.f32 %v7992, %v8256
        %v8725 = vadd.f32 %v7993, %v8259
        %v8726 = vadd.f32 %v7994, %v8264
        %v8727 = vadd.f32 %v7995, %v8267
        %v8728 = vadd.f32 %v7996, %v8272
        %v8729 = vadd.f32 %v7997, %v8275
        %v8730 = vadd.f32 %v7998, %v8280
        %v8731 = vadd.f32 %v7999, %v8283
        %v8732 = vadd.f32 %v8000, %v8288
        %v8733 = vadd.f32 %v8001, %v8291
        %v8734 = vadd.f32 %v8002, %v8296
        %v8735 = vadd.f32 %v8003, %v8299
        %v8736 = vadd.f32 %v8004, %v8304
        %v8737 = vadd.f32 %v8005, %v8307
        %v8738 = vadd.f32 %v8006, %v8312
        %v8739 = vadd.f32 %v8007, %v8315
        %v8740 = vadd.f32 %v8008, %v8320
        %v8741 = vadd.f32 %v8009, %v8323
        %v8742 = vadd.f32 %v8010, %v8328
        %v8743 = vadd.f32 %v8011, %v8331
        %v8744 = vadd.f32 %v8012, %v8336
        %v8745 = vadd.f32 %v8013, %v8339
        %v8746 = vadd.f32 %v8014, %v8344
        %v8747 = vadd.f32 %v8015, %v8347
        %v8748 = vadd.f32 %v8016, %v8352
        %v8749 = vadd.f32 %v8017, %v8355
        %v8750 = vadd.f32 %v8018, %v8360
        %v8751 = vadd.f32 %v8019, %v8363
        %v8752 = vadd.f32 %v8020, %v8368
        %v8753 = vadd.f32 %v8021, %v8371
        %v8754 = vadd.f32 %v8022, %v8376
        %v8755 = vadd.f32 %v8023, %v8379
        %v8756 = vadd.f32 %v8024, %v8384
        %v8757 = vadd.f32 %v8025, %v8387
        %v8758 = vadd.f32 %v8026, %v8392
        %v8759 = vadd.f32 %v8027, %v8395
        %v8760 = vadd.f32 %v8028, %v8400
        %v8761 = vadd.f32 %v8029, %v8403
        %v8762 = vadd.f32 %v8030, %v8408
        %v8763 = vadd.f32 %v8031, %v8411
        %v8764 = vadd.f32 %v8032, %v8416
        %v8765 = vadd.f32 %v8033, %v8419
        %v8766 = vadd.f32 %v8034, %v8424
        %v8767 = vadd.f32 %v8035, %v8427
        %v8768 = vadd.f32 %v8036, %v8432
        %v8769 = vadd.f32 %v8037, %v8435
        %v8770 = vadd.f32 %v8038, %v8440
        %v8771 = vadd.f32 %v8039, %v8443
        %v8772 = vadd.f32 %v8040, %v8448
        %v8773 = vadd.f32 %v8041, %v8451
        %v8774 = vadd.f32 %v8042, %v8456
        %v8775 = vadd.f32 %v8043, %v8459
        %v8776 = vadd.f32 %v8044, %v8464
        %v8777 = vadd.f32 %v8045, %v8467
        %v8778 = vadd.f32 %v8046, %v8472
        %v8779 = vadd.f32 %v8047, %v8475
        %v8780 = vadd.f32 %v8048, %v8480
        %v8781 = vadd.f32 %v8049, %v8483
        %v8782 = vadd.f32 %v8050, %v8488
        %v8783 = vadd.f32 %v8051, %v8491
        %v8784 = vadd.f32 %v8052, %v8496
        %v8785 = vadd.f32 %v8053, %v8499
        %v8786 = vadd.f32 %v8054, %v8504
        %v8787 = vadd.f32 %v8055, %v8507
        %v8788 = vadd.f32 %v8056, %v8512
        %v8789 = vadd.f32 %v8057, %v8515
        %v8790 = vadd.f32 %v8058, %v8520
        %v8791 = vadd.f32 %v8059, %v8523
        %v8792 = vadd.f32 %v8060, %v8528
        %v8793 = vadd.f32 %v8061, %v8531
        %v8794 = vadd.f32 %v8062, %v8536
        %v8795 = vadd.f32 %v8063, %v8539
        %v8796 = vadd.f32 %v8064, %v8544
        %v8797 = vadd.f32 %v8065, %v8547
        %v8798 = vadd.f32 %v8066, %v8552
        %v8799 = vadd.f32 %v8067, %v8555
        %v8800 = vadd.f32 %v8068, %v8560
        %v8801 = vadd.f32 %v8069, %v8563
        %v8802 = vadd.f32 %v8070, %v8568
        %v8803 = vadd.f32 %v8071, %v8571
        %v8804 = vadd.f32 %v8072, %v8576
        %v8805 = vadd.f32 %v8073, %v8579
        %v8806 = vadd.f32 %v8074, %v8584
        %v8807 = vadd.f32 %v8075, %v8587
        %v8808 = vadd.f32 %v8076, %v8592
        %v8809 = vadd.f32 %v8077, %v8595
        %v8810 = vadd.f32 %v8078, %v8600
        %v8811 = vadd.f32 %v8079, %v8603
        %v8812 = vadd.f32 %v8080, %v8608
        %v8813 = vadd.f32 %v8081, %v8611
        %v8814 = vadd.f32 %v8082, %v8616
        %v8815 = vadd.f32 %v8083, %v8619
        %v8816 = vadd.f32 %v8084, %v8624
        %v8817 = vadd.f32 %v8085, %v8627
        %v8818 = vadd.f32 %v8086, %v8632
        %v8819 = vadd.f32 %v8087, %v8635
        %v8820 = vadd.f32 %v8088, %v8640
        %v8821 = vadd.f32 %v8089, %v8643
        %v8822 = vadd.f32 %v8090, %v8648
        %v8823 = vadd.f32 %v8091, %v8651
        %v8824 = vadd.f32 %v8092, %v8656
        %v8825 = vadd.f32 %v8093, %v8659
        %v8826 = vadd.f32 %v8094, %v8664
        %v8827 = vadd.f32 %v8095, %v8667
        %v8828 = vadd.f32 %v8096, %v8672
        %v8829 = vadd.f32 %v8097, %v8675
        %v8830 = vadd.f32 %v8098, %v8680
        %v8831 = vadd.f32 %v8099, %v8683
        %v8832 = vadd.f32 %v8100, %v8688
        %v8833 = vadd.f32 %v8101, %v8691
        %v8834 = vadd.f32 %v8102, %v8696
        %v8835 = vadd.f32 %v8103, %v8699
        %v8836 = vadd.f32 %v8104, %v8704
        %v8837 = vadd.f32 %v8105, %v8707
        %v8839 = vrot.slane %v357, 5
        %v8840 = vrot.slane %v8839, 4
        %v8841 = vrot.slane %v358, 5
        %v8842 = vsel %vm3811, %v8840, %v8841
        %v8843 = vrot.slane %v8841, 4
        %v8844 = vrot.slane %v359, 5
        %v8845 = vsel %vm3811, %v8843, %v8844
        %v8846 = vrot.slane %v8844, 4
        %v8847 = vrot.slane %v360, 5
        %v8848 = vsel %vm3811, %v8846, %v8847
        %v8849 = vrot.slane %v8847, 4
        %v8850 = vrot.slane %v361, 5
        %v8851 = vsel %vm3811, %v8849, %v8850
        %v8852 = vunpack.c.l.b16 %v8842
        %v8853 = vunpack.c.l.b16 %v8845
        %v8854 = vunpack.c.l.b16 %v8848
        %v8855 = vunpack.c.l.b16 %v8851
        %v8856 = vpack.c.b16 %v8853, %v8852
        %v8857 = vpack.c.b16 %v8855, %v8854
        %v8859 = vsel %vm1975, %v8856, 0
        %v8862 = vsel %vm1975, %v8857, 0
        %v8865 = vsel %vm2168, %v370, 0
        %8867 = vmatprep.subr.bf16.mxu0 0
        %8868 = vmatpush1.bf16.msra.mxu0 0
        %8869 = vmatprep.subr.bf16.mxu0 0
        %8870 = vmatpush1.bf16.msra.mxu0 0
        %8871 = vmatprep.subr.bf16.mxu0 0
        %8872 = vmatpush1.bf16.msra.mxu0 0
        %8873 = vmatprep.subr.bf16.mxu0 0
        %8874 = vmatpush1.bf16.msra.mxu0 0
        %8875 = vmatprep.subr.bf16.mxu0 0
        %8876 = vmatpush1.bf16.msra.mxu0 0
        %8877 = vmatprep.subr.bf16.mxu0 0
        %8878 = vmatpush1.bf16.msra.mxu0 0
        %8879 = vmatprep.subr.bf16.mxu0 0
        %8880 = vmatpush1.bf16.msra.mxu0 0
        %8881 = vmatprep.subr.bf16.mxu0 0
        %8882 = vmatpush1.bf16.msra.mxu0 %v8865
        %8883 = vmatprep.subr.bf16.mxu0 0
        %8884 = vmatpush2.bf16.msra.mxu0 0
        %8885 = vmatprep.subr.bf16.mxu0 0
        %8886 = vmatpush2.bf16.msra.mxu0 0
        %8887 = vmatprep.subr.bf16.mxu0 0
        %8888 = vmatpush2.bf16.msra.mxu0 0
        %8889 = vmatprep.subr.bf16.mxu0 0
        %8890 = vmatpush2.bf16.msra.mxu0 0
        %8891 = vmatprep.subr.bf16.mxu0 0
        %8892 = vmatpush2.bf16.msra.mxu0 0
        %8893 = vmatprep.subr.bf16.mxu0 0
        %8894 = vmatpush2.bf16.msra.mxu0 0
        %8895 = vmatprep.subr.bf16.mxu0 0
        %8896 = vmatpush2.bf16.msra.mxu0 0
        %8897 = vmatprep.subr.bf16.mxu0 0
        %8898 = vmatpush2.bf16.msra.mxu0 0
        %8899 = vmatprep.mubr.bf16.mxu0 0
        %8900 = vmatmul.mubr.bf16.gmra.mxu0 %v4433
        %v8901 = vpop.f32.mrf.mxu0
        %v8902 = vadd.f32 0.0, %v8901
        %v8903 = vpop.f32.mrf.mxu0
        %v8904 = vpop.f32.mrf.mxu0
        %v8905 = vadd.f32 0.0, %v8904
        %v8906 = vpop.f32.mrf.mxu0
        %8907 = vmatprep.mubr.bf16.mxu0 0
        %8908 = vmatmul.mubr.bf16.gmra.mxu0 %v4436
        %v8909 = vpop.f32.mrf.mxu0
        %v8910 = vadd.f32 0.0, %v8909
        %v8911 = vpop.f32.mrf.mxu0
        %v8912 = vpop.f32.mrf.mxu0
        %v8913 = vadd.f32 0.0, %v8912
        %v8914 = vpop.f32.mrf.mxu0
        %8915 = vmatprep.mubr.bf16.mxu0 0
        %8916 = vmatmul.mubr.bf16.gmra.mxu0 %v4439
        %v8917 = vpop.f32.mrf.mxu0
        %v8918 = vadd.f32 0.0, %v8917
        %v8919 = vpop.f32.mrf.mxu0
        %v8920 = vpop.f32.mrf.mxu0
        %v8921 = vadd.f32 0.0, %v8920
        %v8922 = vpop.f32.mrf.mxu0
        %8923 = vmatprep.mubr.bf16.mxu0 0
        %8924 = vmatmul.mubr.bf16.gmra.mxu0 %v4442
        %v8925 = vpop.f32.mrf.mxu0
        %v8926 = vadd.f32 0.0, %v8925
        %v8927 = vpop.f32.mrf.mxu0
        %v8928 = vpop.f32.mrf.mxu0
        %v8929 = vadd.f32 0.0, %v8928
        %v8930 = vpop.f32.mrf.mxu0
        %8931 = vmatprep.mubr.bf16.mxu0 0
        %8932 = vmatmul.mubr.bf16.gmra.mxu0 %v4445
        %v8933 = vpop.f32.mrf.mxu0
        %v8934 = vadd.f32 0.0, %v8933
        %v8935 = vpop.f32.mrf.mxu0
        %v8936 = vpop.f32.mrf.mxu0
        %v8937 = vadd.f32 0.0, %v8936
        %v8938 = vpop.f32.mrf.mxu0
        %8939 = vmatprep.mubr.bf16.mxu0 0
        %8940 = vmatmul.mubr.bf16.gmra.mxu0 %v4448
        %v8941 = vpop.f32.mrf.mxu0
        %v8942 = vadd.f32 0.0, %v8941
        %v8943 = vpop.f32.mrf.mxu0
        %v8944 = vpop.f32.mrf.mxu0
        %v8945 = vadd.f32 0.0, %v8944
        %v8946 = vpop.f32.mrf.mxu0
        %8947 = vmatprep.mubr.bf16.mxu0 0
        %8948 = vmatmul.mubr.bf16.gmra.mxu0 %v4451
        %v8949 = vpop.f32.mrf.mxu0
        %v8950 = vadd.f32 0.0, %v8949
        %v8951 = vpop.f32.mrf.mxu0
        %v8952 = vpop.f32.mrf.mxu0
        %v8953 = vadd.f32 0.0, %v8952
        %v8954 = vpop.f32.mrf.mxu0
        %8955 = vmatprep.mubr.bf16.mxu0 0
        %8956 = vmatmul.mubr.bf16.gmra.mxu0 %v4454
        %v8957 = vpop.f32.mrf.mxu0
        %v8958 = vadd.f32 0.0, %v8957
        %v8959 = vpop.f32.mrf.mxu0
        %v8960 = vpop.f32.mrf.mxu0
        %v8961 = vadd.f32 0.0, %v8960
        %v8962 = vpop.f32.mrf.mxu0
        %8963 = vmatprep.mubr.bf16.mxu0 0
        %8964 = vmatmul.mubr.bf16.gmra.mxu0 %v4457
        %v8965 = vpop.f32.mrf.mxu0
        %v8966 = vadd.f32 0.0, %v8965
        %v8967 = vpop.f32.mrf.mxu0
        %v8968 = vpop.f32.mrf.mxu0
        %v8969 = vadd.f32 0.0, %v8968
        %v8970 = vpop.f32.mrf.mxu0
        %8971 = vmatprep.mubr.bf16.mxu0 0
        %8972 = vmatmul.mubr.bf16.gmra.mxu0 %v4460
        %v8973 = vpop.f32.mrf.mxu0
        %v8974 = vadd.f32 0.0, %v8973
        %v8975 = vpop.f32.mrf.mxu0
        %v8976 = vpop.f32.mrf.mxu0
        %v8977 = vadd.f32 0.0, %v8976
        %v8978 = vpop.f32.mrf.mxu0
        %8979 = vmatprep.mubr.bf16.mxu0 0
        %8980 = vmatmul.mubr.bf16.gmra.mxu0 %v4463
        %v8981 = vpop.f32.mrf.mxu0
        %v8982 = vadd.f32 0.0, %v8981
        %v8983 = vpop.f32.mrf.mxu0
        %v8984 = vpop.f32.mrf.mxu0
        %v8985 = vadd.f32 0.0, %v8984
        %v8986 = vpop.f32.mrf.mxu0
        %8987 = vmatprep.mubr.bf16.mxu0 0
        %8988 = vmatmul.mubr.bf16.gmra.mxu0 %v4466
        %v8989 = vpop.f32.mrf.mxu0
        %v8990 = vadd.f32 0.0, %v8989
        %v8991 = vpop.f32.mrf.mxu0
        %v8992 = vpop.f32.mrf.mxu0
        %v8993 = vadd.f32 0.0, %v8992
        %v8994 = vpop.f32.mrf.mxu0
        %8995 = vmatprep.mubr.bf16.mxu0 0
        %8996 = vmatmul.mubr.bf16.gmra.mxu0 %v4469
        %v8997 = vpop.f32.mrf.mxu0
        %v8998 = vadd.f32 0.0, %v8997
        %v8999 = vpop.f32.mrf.mxu0
        %v9000 = vpop.f32.mrf.mxu0
        %v9001 = vadd.f32 0.0, %v9000
        %v9002 = vpop.f32.mrf.mxu0
        %9003 = vmatprep.mubr.bf16.mxu0 0
        %9004 = vmatmul.mubr.bf16.gmra.mxu0 %v4472
        %v9005 = vpop.f32.mrf.mxu0
        %v9006 = vadd.f32 0.0, %v9005
        %v9007 = vpop.f32.mrf.mxu0
        %v9008 = vpop.f32.mrf.mxu0
        %v9009 = vadd.f32 0.0, %v9008
        %v9010 = vpop.f32.mrf.mxu0
        %9011 = vmatprep.mubr.bf16.mxu0 0
        %9012 = vmatmul.mubr.bf16.gmra.mxu0 %v4475
        %v9013 = vpop.f32.mrf.mxu0
        %v9014 = vadd.f32 0.0, %v9013
        %v9015 = vpop.f32.mrf.mxu0
        %v9016 = vpop.f32.mrf.mxu0
        %v9017 = vadd.f32 0.0, %v9016
        %v9018 = vpop.f32.mrf.mxu0
        %9019 = vmatprep.mubr.bf16.mxu0 0
        %9020 = vmatmul.mubr.bf16.gmra.mxu0 %v4478
        %v9021 = vpop.f32.mrf.mxu0
        %v9022 = vadd.f32 0.0, %v9021
        %v9023 = vpop.f32.mrf.mxu0
        %v9024 = vpop.f32.mrf.mxu0
        %v9025 = vadd.f32 0.0, %v9024
        %v9026 = vpop.f32.mrf.mxu0
        %9027 = vmatprep.mubr.bf16.mxu0 0
        %9028 = vmatmul.mubr.bf16.gmra.mxu0 %v4481
        %v9029 = vpop.f32.mrf.mxu0
        %v9030 = vadd.f32 0.0, %v9029
        %v9031 = vpop.f32.mrf.mxu0
        %v9032 = vpop.f32.mrf.mxu0
        %v9033 = vadd.f32 0.0, %v9032
        %v9034 = vpop.f32.mrf.mxu0
        %9035 = vmatprep.mubr.bf16.mxu0 0
        %9036 = vmatmul.mubr.bf16.gmra.mxu0 %v4484
        %v9037 = vpop.f32.mrf.mxu0
        %v9038 = vadd.f32 0.0, %v9037
        %v9039 = vpop.f32.mrf.mxu0
        %v9040 = vpop.f32.mrf.mxu0
        %v9041 = vadd.f32 0.0, %v9040
        %v9042 = vpop.f32.mrf.mxu0
        %9043 = vmatprep.mubr.bf16.mxu0 0
        %9044 = vmatmul.mubr.bf16.gmra.mxu0 %v4487
        %v9045 = vpop.f32.mrf.mxu0
        %v9046 = vadd.f32 0.0, %v9045
        %v9047 = vpop.f32.mrf.mxu0
        %v9048 = vpop.f32.mrf.mxu0
        %v9049 = vadd.f32 0.0, %v9048
        %v9050 = vpop.f32.mrf.mxu0
        %9051 = vmatprep.mubr.bf16.mxu0 0
        %9052 = vmatmul.mubr.bf16.gmra.mxu0 %v4490
        %v9053 = vpop.f32.mrf.mxu0
        %v9054 = vadd.f32 0.0, %v9053
        %v9055 = vpop.f32.mrf.mxu0
        %v9056 = vpop.f32.mrf.mxu0
        %v9057 = vadd.f32 0.0, %v9056
        %v9058 = vpop.f32.mrf.mxu0
        %9059 = vmatprep.mubr.bf16.mxu0 0
        %9060 = vmatmul.mubr.bf16.gmra.mxu0 %v4493
        %v9061 = vpop.f32.mrf.mxu0
        %v9062 = vadd.f32 0.0, %v9061
        %v9063 = vpop.f32.mrf.mxu0
        %v9064 = vpop.f32.mrf.mxu0
        %v9065 = vadd.f32 0.0, %v9064
        %v9066 = vpop.f32.mrf.mxu0
        %9067 = vmatprep.mubr.bf16.mxu0 0
        %9068 = vmatmul.mubr.bf16.gmra.mxu0 %v4496
        %v9069 = vpop.f32.mrf.mxu0
        %v9070 = vadd.f32 0.0, %v9069
        %v9071 = vpop.f32.mrf.mxu0
        %v9072 = vpop.f32.mrf.mxu0
        %v9073 = vadd.f32 0.0, %v9072
        %v9074 = vpop.f32.mrf.mxu0
        %9075 = vmatprep.mubr.bf16.mxu0 0
        %9076 = vmatmul.mubr.bf16.gmra.mxu0 %v4499
        %v9077 = vpop.f32.mrf.mxu0
        %v9078 = vadd.f32 0.0, %v9077
        %v9079 = vpop.f32.mrf.mxu0
        %v9080 = vpop.f32.mrf.mxu0
        %v9081 = vadd.f32 0.0, %v9080
        %v9082 = vpop.f32.mrf.mxu0
        %9083 = vmatprep.mubr.bf16.mxu0 0
        %9084 = vmatmul.mubr.bf16.gmra.mxu0 %v4502
        %v9085 = vpop.f32.mrf.mxu0
        %v9086 = vadd.f32 0.0, %v9085
        %v9087 = vpop.f32.mrf.mxu0
        %v9088 = vpop.f32.mrf.mxu0
        %v9089 = vadd.f32 0.0, %v9088
        %v9090 = vpop.f32.mrf.mxu0
        %9091 = vmatprep.mubr.bf16.mxu0 0
        %9092 = vmatmul.mubr.bf16.gmra.mxu0 %v4505
        %v9093 = vpop.f32.mrf.mxu0
        %v9094 = vadd.f32 0.0, %v9093
        %v9095 = vpop.f32.mrf.mxu0
        %v9096 = vpop.f32.mrf.mxu0
        %v9097 = vadd.f32 0.0, %v9096
        %v9098 = vpop.f32.mrf.mxu0
        %9099 = vmatprep.mubr.bf16.mxu0 0
        %9100 = vmatmul.mubr.bf16.gmra.mxu0 %v4508
        %v9101 = vpop.f32.mrf.mxu0
        %v9102 = vadd.f32 0.0, %v9101
        %v9103 = vpop.f32.mrf.mxu0
        %v9104 = vpop.f32.mrf.mxu0
        %v9105 = vadd.f32 0.0, %v9104
        %v9106 = vpop.f32.mrf.mxu0
        %9107 = vmatprep.mubr.bf16.mxu0 0
        %9108 = vmatmul.mubr.bf16.gmra.mxu0 %v4511
        %v9109 = vpop.f32.mrf.mxu0
        %v9110 = vadd.f32 0.0, %v9109
        %v9111 = vpop.f32.mrf.mxu0
        %v9112 = vpop.f32.mrf.mxu0
        %v9113 = vadd.f32 0.0, %v9112
        %v9114 = vpop.f32.mrf.mxu0
        %9115 = vmatprep.mubr.bf16.mxu0 0
        %9116 = vmatmul.mubr.bf16.gmra.mxu0 %v4514
        %v9117 = vpop.f32.mrf.mxu0
        %v9118 = vadd.f32 0.0, %v9117
        %v9119 = vpop.f32.mrf.mxu0
        %v9120 = vpop.f32.mrf.mxu0
        %v9121 = vadd.f32 0.0, %v9120
        %v9122 = vpop.f32.mrf.mxu0
        %9123 = vmatprep.mubr.bf16.mxu0 0
        %9124 = vmatmul.mubr.bf16.gmra.mxu0 %v4517
        %v9125 = vpop.f32.mrf.mxu0
        %v9126 = vadd.f32 0.0, %v9125
        %v9127 = vpop.f32.mrf.mxu0
        %v9128 = vpop.f32.mrf.mxu0
        %v9129 = vadd.f32 0.0, %v9128
        %v9130 = vpop.f32.mrf.mxu0
        %9131 = vmatprep.mubr.bf16.mxu0 0
        %9132 = vmatmul.mubr.bf16.gmra.mxu0 %v4520
        %v9133 = vpop.f32.mrf.mxu0
        %v9134 = vadd.f32 0.0, %v9133
        %v9135 = vpop.f32.mrf.mxu0
        %v9136 = vpop.f32.mrf.mxu0
        %v9137 = vadd.f32 0.0, %v9136
        %v9138 = vpop.f32.mrf.mxu0
        %9139 = vmatprep.mubr.bf16.mxu0 0
        %9140 = vmatmul.mubr.bf16.gmra.mxu0 %v4523
        %v9141 = vpop.f32.mrf.mxu0
        %v9142 = vadd.f32 0.0, %v9141
        %v9143 = vpop.f32.mrf.mxu0
        %v9144 = vpop.f32.mrf.mxu0
        %v9145 = vadd.f32 0.0, %v9144
        %v9146 = vpop.f32.mrf.mxu0
        %9147 = vmatprep.mubr.bf16.mxu0 0
        %9148 = vmatmul.mubr.bf16.gmra.mxu0 %v4526
        %v9149 = vpop.f32.mrf.mxu0
        %v9150 = vadd.f32 0.0, %v9149
        %v9151 = vpop.f32.mrf.mxu0
        %v9152 = vpop.f32.mrf.mxu0
        %v9153 = vadd.f32 0.0, %v9152
        %v9154 = vpop.f32.mrf.mxu0
        %9155 = vmatprep.mubr.bf16.mxu0 0
        %9156 = vmatmul.mubr.bf16.gmra.mxu0 %v4529
        %v9157 = vpop.f32.mrf.mxu0
        %v9158 = vadd.f32 0.0, %v9157
        %v9159 = vpop.f32.mrf.mxu0
        %v9160 = vpop.f32.mrf.mxu0
        %v9161 = vadd.f32 0.0, %v9160
        %v9162 = vpop.f32.mrf.mxu0
        %9163 = vmatprep.mubr.bf16.mxu0 0
        %9164 = vmatmul.mubr.bf16.gmra.mxu0 %v4532
        %v9165 = vpop.f32.mrf.mxu0
        %v9166 = vadd.f32 0.0, %v9165
        %v9167 = vpop.f32.mrf.mxu0
        %v9168 = vpop.f32.mrf.mxu0
        %v9169 = vadd.f32 0.0, %v9168
        %v9170 = vpop.f32.mrf.mxu0
        %9171 = vmatprep.mubr.bf16.mxu0 0
        %9172 = vmatmul.mubr.bf16.gmra.mxu0 %v4535
        %v9173 = vpop.f32.mrf.mxu0
        %v9174 = vadd.f32 0.0, %v9173
        %v9175 = vpop.f32.mrf.mxu0
        %v9176 = vpop.f32.mrf.mxu0
        %v9177 = vadd.f32 0.0, %v9176
        %v9178 = vpop.f32.mrf.mxu0
        %9179 = vmatprep.mubr.bf16.mxu0 0
        %9180 = vmatmul.mubr.bf16.gmra.mxu0 %v4538
        %v9181 = vpop.f32.mrf.mxu0
        %v9182 = vadd.f32 0.0, %v9181
        %v9183 = vpop.f32.mrf.mxu0
        %v9184 = vpop.f32.mrf.mxu0
        %v9185 = vadd.f32 0.0, %v9184
        %v9186 = vpop.f32.mrf.mxu0
        %9187 = vmatprep.mubr.bf16.mxu0 0
        %9188 = vmatmul.mubr.bf16.gmra.mxu0 %v4541
        %v9189 = vpop.f32.mrf.mxu0
        %v9190 = vadd.f32 0.0, %v9189
        %v9191 = vpop.f32.mrf.mxu0
        %v9192 = vpop.f32.mrf.mxu0
        %v9193 = vadd.f32 0.0, %v9192
        %v9194 = vpop.f32.mrf.mxu0
        %9195 = vmatprep.mubr.bf16.mxu0 0
        %9196 = vmatmul.mubr.bf16.gmra.mxu0 %v4544
        %v9197 = vpop.f32.mrf.mxu0
        %v9198 = vadd.f32 0.0, %v9197
        %v9199 = vpop.f32.mrf.mxu0
        %v9200 = vpop.f32.mrf.mxu0
        %v9201 = vadd.f32 0.0, %v9200
        %v9202 = vpop.f32.mrf.mxu0
        %9203 = vmatprep.mubr.bf16.mxu0 0
        %9204 = vmatmul.mubr.bf16.gmra.mxu0 %v4547
        %v9205 = vpop.f32.mrf.mxu0
        %v9206 = vadd.f32 0.0, %v9205
        %v9207 = vpop.f32.mrf.mxu0
        %v9208 = vpop.f32.mrf.mxu0
        %v9209 = vadd.f32 0.0, %v9208
        %v9210 = vpop.f32.mrf.mxu0
        %9211 = vmatprep.mubr.bf16.mxu0 0
        %9212 = vmatmul.mubr.bf16.gmra.mxu0 %v4550
        %v9213 = vpop.f32.mrf.mxu0
        %v9214 = vadd.f32 0.0, %v9213
        %v9215 = vpop.f32.mrf.mxu0
        %v9216 = vpop.f32.mrf.mxu0
        %v9217 = vadd.f32 0.0, %v9216
        %v9218 = vpop.f32.mrf.mxu0
        %9219 = vmatprep.mubr.bf16.mxu0 0
        %9220 = vmatmul.mubr.bf16.gmra.mxu0 %v4553
        %v9221 = vpop.f32.mrf.mxu0
        %v9222 = vadd.f32 0.0, %v9221
        %v9223 = vpop.f32.mrf.mxu0
        %v9224 = vpop.f32.mrf.mxu0
        %v9225 = vadd.f32 0.0, %v9224
        %v9226 = vpop.f32.mrf.mxu0
        %9227 = vmatprep.mubr.bf16.mxu0 0
        %9228 = vmatmul.mubr.bf16.gmra.mxu0 %v4556
        %v9229 = vpop.f32.mrf.mxu0
        %v9230 = vadd.f32 0.0, %v9229
        %v9231 = vpop.f32.mrf.mxu0
        %v9232 = vpop.f32.mrf.mxu0
        %v9233 = vadd.f32 0.0, %v9232
        %v9234 = vpop.f32.mrf.mxu0
        %9235 = vmatprep.mubr.bf16.mxu0 0
        %9236 = vmatmul.mubr.bf16.gmra.mxu0 %v4559
        %v9237 = vpop.f32.mrf.mxu0
        %v9238 = vadd.f32 0.0, %v9237
        %v9239 = vpop.f32.mrf.mxu0
        %v9240 = vpop.f32.mrf.mxu0
        %v9241 = vadd.f32 0.0, %v9240
        %v9242 = vpop.f32.mrf.mxu0
        %9243 = vmatprep.mubr.bf16.mxu0 0
        %9244 = vmatmul.mubr.bf16.gmra.mxu0 %v4562
        %v9245 = vpop.f32.mrf.mxu0
        %v9246 = vadd.f32 0.0, %v9245
        %v9247 = vpop.f32.mrf.mxu0
        %v9248 = vpop.f32.mrf.mxu0
        %v9249 = vadd.f32 0.0, %v9248
        %v9250 = vpop.f32.mrf.mxu0
        %9251 = vmatprep.mubr.bf16.mxu0 0
        %9252 = vmatmul.mubr.bf16.gmra.mxu0 %v4565
        %v9253 = vpop.f32.mrf.mxu0
        %v9254 = vadd.f32 0.0, %v9253
        %v9255 = vpop.f32.mrf.mxu0
        %v9256 = vpop.f32.mrf.mxu0
        %v9257 = vadd.f32 0.0, %v9256
        %v9258 = vpop.f32.mrf.mxu0
        %9259 = vmatprep.mubr.bf16.mxu0 0
        %9260 = vmatmul.mubr.bf16.gmra.mxu0 %v4568
        %v9261 = vpop.f32.mrf.mxu0
        %v9262 = vadd.f32 0.0, %v9261
        %v9263 = vpop.f32.mrf.mxu0
        %v9264 = vpop.f32.mrf.mxu0
        %v9265 = vadd.f32 0.0, %v9264
        %v9266 = vpop.f32.mrf.mxu0
        %9267 = vmatprep.mubr.bf16.mxu0 0
        %9268 = vmatmul.mubr.bf16.gmra.mxu0 %v4571
        %v9269 = vpop.f32.mrf.mxu0
        %v9270 = vadd.f32 0.0, %v9269
        %v9271 = vpop.f32.mrf.mxu0
        %v9272 = vpop.f32.mrf.mxu0
        %v9273 = vadd.f32 0.0, %v9272
        %v9274 = vpop.f32.mrf.mxu0
        %9275 = vmatprep.mubr.bf16.mxu0 0
        %9276 = vmatmul.mubr.bf16.gmra.mxu0 %v4574
        %v9277 = vpop.f32.mrf.mxu0
        %v9278 = vadd.f32 0.0, %v9277
        %v9279 = vpop.f32.mrf.mxu0
        %v9280 = vpop.f32.mrf.mxu0
        %v9281 = vadd.f32 0.0, %v9280
        %v9282 = vpop.f32.mrf.mxu0
        %9283 = vmatprep.mubr.bf16.mxu0 0
        %9284 = vmatmul.mubr.bf16.gmra.mxu0 %v4577
        %v9285 = vpop.f32.mrf.mxu0
        %v9286 = vadd.f32 0.0, %v9285
        %v9287 = vpop.f32.mrf.mxu0
        %v9288 = vpop.f32.mrf.mxu0
        %v9289 = vadd.f32 0.0, %v9288
        %v9290 = vpop.f32.mrf.mxu0
        %9291 = vmatprep.mubr.bf16.mxu0 0
        %9292 = vmatmul.mubr.bf16.gmra.mxu0 %v4580
        %v9293 = vpop.f32.mrf.mxu0
        %v9294 = vadd.f32 0.0, %v9293
        %v9295 = vpop.f32.mrf.mxu0
        %v9296 = vpop.f32.mrf.mxu0
        %v9297 = vadd.f32 0.0, %v9296
        %v9298 = vpop.f32.mrf.mxu0
        %9299 = vmatprep.mubr.bf16.mxu0 0
        %9300 = vmatmul.mubr.bf16.gmra.mxu0 %v4583
        %v9301 = vpop.f32.mrf.mxu0
        %v9302 = vadd.f32 0.0, %v9301
        %v9303 = vpop.f32.mrf.mxu0
        %v9304 = vpop.f32.mrf.mxu0
        %v9305 = vadd.f32 0.0, %v9304
        %v9306 = vpop.f32.mrf.mxu0
        %9307 = vmatprep.mubr.bf16.mxu0 0
        %9308 = vmatmul.mubr.bf16.gmra.mxu0 %v4586
        %v9309 = vpop.f32.mrf.mxu0
        %v9310 = vadd.f32 0.0, %v9309
        %v9311 = vpop.f32.mrf.mxu0
        %v9312 = vpop.f32.mrf.mxu0
        %v9313 = vadd.f32 0.0, %v9312
        %v9314 = vpop.f32.mrf.mxu0
        %9315 = vmatprep.mubr.bf16.mxu0 0
        %9316 = vmatmul.mubr.bf16.gmra.mxu0 %v4589
        %v9317 = vpop.f32.mrf.mxu0
        %v9318 = vadd.f32 0.0, %v9317
        %v9319 = vpop.f32.mrf.mxu0
        %v9320 = vpop.f32.mrf.mxu0
        %v9321 = vadd.f32 0.0, %v9320
        %v9322 = vpop.f32.mrf.mxu0
        %9323 = vmatprep.mubr.bf16.mxu0 0
        %9324 = vmatmul.mubr.bf16.gmra.mxu0 %v4592
        %v9325 = vpop.f32.mrf.mxu0
        %v9326 = vadd.f32 0.0, %v9325
        %v9327 = vpop.f32.mrf.mxu0
        %v9328 = vpop.f32.mrf.mxu0
        %v9329 = vadd.f32 0.0, %v9328
        %v9330 = vpop.f32.mrf.mxu0
        %9331 = vmatprep.mubr.bf16.mxu0 0
        %9332 = vmatmul.mubr.bf16.gmra.mxu0 %v4595
        %v9333 = vpop.f32.mrf.mxu0
        %v9334 = vadd.f32 0.0, %v9333
        %v9335 = vpop.f32.mrf.mxu0
        %v9336 = vpop.f32.mrf.mxu0
        %v9337 = vadd.f32 0.0, %v9336
        %v9338 = vpop.f32.mrf.mxu0
        %9339 = vmatprep.mubr.bf16.mxu0 0
        %9340 = vmatmul.mubr.bf16.gmra.mxu0 %v4598
        %v9341 = vpop.f32.mrf.mxu0
        %v9342 = vadd.f32 0.0, %v9341
        %v9343 = vpop.f32.mrf.mxu0
        %v9344 = vpop.f32.mrf.mxu0
        %v9345 = vadd.f32 0.0, %v9344
        %v9346 = vpop.f32.mrf.mxu0
        %9347 = vmatprep.mubr.bf16.mxu0 0
        %9348 = vmatmul.mubr.bf16.gmra.mxu0 %v4601
        %v9349 = vpop.f32.mrf.mxu0
        %v9350 = vadd.f32 0.0, %v9349
        %v9351 = vpop.f32.mrf.mxu0
        %v9352 = vpop.f32.mrf.mxu0
        %v9353 = vadd.f32 0.0, %v9352
        %v9354 = vpop.f32.mrf.mxu0
        %9355 = vmatprep.mubr.bf16.mxu0 0
        %9356 = vmatmul.mubr.bf16.gmra.mxu0 %v4604
        %v9357 = vpop.f32.mrf.mxu0
        %v9358 = vadd.f32 0.0, %v9357
        %v9359 = vpop.f32.mrf.mxu0
        %v9360 = vpop.f32.mrf.mxu0
        %v9361 = vadd.f32 0.0, %v9360
        %v9362 = vpop.f32.mrf.mxu0
        %9363 = vmatprep.mubr.bf16.mxu0 0
        %9364 = vmatmul.mubr.bf16.gmra.mxu0 %v4607
        %v9365 = vpop.f32.mrf.mxu0
        %v9366 = vadd.f32 0.0, %v9365
        %v9367 = vpop.f32.mrf.mxu0
        %v9368 = vpop.f32.mrf.mxu0
        %v9369 = vadd.f32 0.0, %v9368
        %v9370 = vpop.f32.mrf.mxu0
        %9371 = vmatprep.mubr.bf16.mxu0 0
        %9372 = vmatmul.mubr.bf16.gmra.mxu0 %v4610
        %v9373 = vpop.f32.mrf.mxu0
        %v9374 = vadd.f32 0.0, %v9373
        %v9375 = vpop.f32.mrf.mxu0
        %v9376 = vpop.f32.mrf.mxu0
        %v9377 = vadd.f32 0.0, %v9376
        %v9378 = vpop.f32.mrf.mxu0
        %9379 = vmatprep.mubr.bf16.mxu0 0
        %9380 = vmatmul.mubr.bf16.gmra.mxu0 %v6733
        %v9381 = vpop.f32.mrf.mxu0
        %v9382 = vadd.f32 0.0, %v9381
        %v9383 = vpop.f32.mrf.mxu0
        %v9384 = vpop.f32.mrf.mxu0
        %v9385 = vadd.f32 0.0, %v9384
        %v9386 = vpop.f32.mrf.mxu0
        %9387 = vmatprep.mubr.bf16.mxu0 0
        %9388 = vmatmul.mubr.bf16.gmra.mxu0 %v6736
        %v9389 = vpop.f32.mrf.mxu0
        %v9390 = vadd.f32 0.0, %v9389
        %v9391 = vpop.f32.mrf.mxu0
        %v9392 = vpop.f32.mrf.mxu0
        %v9393 = vadd.f32 0.0, %v9392
        %v9394 = vpop.f32.mrf.mxu0
        %9395 = vmatprep.mubr.bf16.mxu0 0
        %9396 = vmatmul.mubr.bf16.gmra.mxu0 %v8859
        %v9397 = vpop.f32.mrf.mxu0
        %v9398 = vadd.f32 0.0, %v9397
        %v9399 = vpop.f32.mrf.mxu0
        %v9400 = vpop.f32.mrf.mxu0
        %v9401 = vadd.f32 0.0, %v9400
        %v9402 = vpop.f32.mrf.mxu0
        %9403 = vmatprep.mubr.bf16.mxu0 0
        %9404 = vmatmul.mubr.bf16.gmra.mxu0 %v8862
        %v9405 = vpop.f32.mrf.mxu0
        %v9406 = vadd.f32 0.0, %v9405
        %v9407 = vpop.f32.mrf.mxu0
        %v9408 = vpop.f32.mrf.mxu0
        %v9409 = vadd.f32 0.0, %v9408
        %v9410 = vpop.f32.mrf.mxu0
        %9411 = vdwg.mxu0
        %v9412 = vadd.f32 %v8710, %v8902
        %v9413 = vadd.f32 %v8711, %v8905
        %v9414 = vadd.f32 %v8712, %v8910
        %v9415 = vadd.f32 %v8713, %v8913
        %v9416 = vadd.f32 %v8714, %v8918
        %v9417 = vadd.f32 %v8715, %v8921
        %v9418 = vadd.f32 %v8716, %v8926
        %v9419 = vadd.f32 %v8717, %v8929
        %v9420 = vadd.f32 %v8718, %v8934
        %v9421 = vadd.f32 %v8719, %v8937
        %v9422 = vadd.f32 %v8720, %v8942
        %v9423 = vadd.f32 %v8721, %v8945
        %v9424 = vadd.f32 %v8722, %v8950
        %v9425 = vadd.f32 %v8723, %v8953
        %v9426 = vadd.f32 %v8724, %v8958
        %v9427 = vadd.f32 %v8725, %v8961
        %v9428 = vadd.f32 %v8726, %v8966
        %v9429 = vadd.f32 %v8727, %v8969
        %v9430 = vadd.f32 %v8728, %v8974
        %v9431 = vadd.f32 %v8729, %v8977
        %v9432 = vadd.f32 %v8730, %v8982
        %v9433 = vadd.f32 %v8731, %v8985
        %v9434 = vadd.f32 %v8732, %v8990
        %v9435 = vadd.f32 %v8733, %v8993
        %v9436 = vadd.f32 %v8734, %v8998
        %v9437 = vadd.f32 %v8735, %v9001
        %v9438 = vadd.f32 %v8736, %v9006
        %v9439 = vadd.f32 %v8737, %v9009
        %v9440 = vadd.f32 %v8738, %v9014
        %v9441 = vadd.f32 %v8739, %v9017
        %v9442 = vadd.f32 %v8740, %v9022
        %v9443 = vadd.f32 %v8741, %v9025
        %v9444 = vadd.f32 %v8742, %v9030
        %v9445 = vadd.f32 %v8743, %v9033
        %v9446 = vadd.f32 %v8744, %v9038
        %v9447 = vadd.f32 %v8745, %v9041
        %v9448 = vadd.f32 %v8746, %v9046
        %v9449 = vadd.f32 %v8747, %v9049
        %v9450 = vadd.f32 %v8748, %v9054
        %v9451 = vadd.f32 %v8749, %v9057
        %v9452 = vadd.f32 %v8750, %v9062
        %v9453 = vadd.f32 %v8751, %v9065
        %v9454 = vadd.f32 %v8752, %v9070
        %v9455 = vadd.f32 %v8753, %v9073
        %v9456 = vadd.f32 %v8754, %v9078
        %v9457 = vadd.f32 %v8755, %v9081
        %v9458 = vadd.f32 %v8756, %v9086
        %v9459 = vadd.f32 %v8757, %v9089
        %v9460 = vadd.f32 %v8758, %v9094
        %v9461 = vadd.f32 %v8759, %v9097
        %v9462 = vadd.f32 %v8760, %v9102
        %v9463 = vadd.f32 %v8761, %v9105
        %v9464 = vadd.f32 %v8762, %v9110
        %v9465 = vadd.f32 %v8763, %v9113
        %v9466 = vadd.f32 %v8764, %v9118
        %v9467 = vadd.f32 %v8765, %v9121
        %v9468 = vadd.f32 %v8766, %v9126
        %v9469 = vadd.f32 %v8767, %v9129
        %v9470 = vadd.f32 %v8768, %v9134
        %v9471 = vadd.f32 %v8769, %v9137
        %v9472 = vadd.f32 %v8770, %v9142
        %v9473 = vadd.f32 %v8771, %v9145
        %v9474 = vadd.f32 %v8772, %v9150
        %v9475 = vadd.f32 %v8773, %v9153
        %v9476 = vadd.f32 %v8774, %v9158
        %v9477 = vadd.f32 %v8775, %v9161
        %v9478 = vadd.f32 %v8776, %v9166
        %v9479 = vadd.f32 %v8777, %v9169
        %v9480 = vadd.f32 %v8778, %v9174
        %v9481 = vadd.f32 %v8779, %v9177
        %v9482 = vadd.f32 %v8780, %v9182
        %v9483 = vadd.f32 %v8781, %v9185
        %v9484 = vadd.f32 %v8782, %v9190
        %v9485 = vadd.f32 %v8783, %v9193
        %v9486 = vadd.f32 %v8784, %v9198
        %v9487 = vadd.f32 %v8785, %v9201
        %v9488 = vadd.f32 %v8786, %v9206
        %v9489 = vadd.f32 %v8787, %v9209
        %v9490 = vadd.f32 %v8788, %v9214
        %v9491 = vadd.f32 %v8789, %v9217
        %v9492 = vadd.f32 %v8790, %v9222
        %v9493 = vadd.f32 %v8791, %v9225
        %v9494 = vadd.f32 %v8792, %v9230
        %v9495 = vadd.f32 %v8793, %v9233
        %v9496 = vadd.f32 %v8794, %v9238
        %v9497 = vadd.f32 %v8795, %v9241
        %v9498 = vadd.f32 %v8796, %v9246
        %v9499 = vadd.f32 %v8797, %v9249
        %v9500 = vadd.f32 %v8798, %v9254
        %v9501 = vadd.f32 %v8799, %v9257
        %v9502 = vadd.f32 %v8800, %v9262
        %v9503 = vadd.f32 %v8801, %v9265
        %v9504 = vadd.f32 %v8802, %v9270
        %v9505 = vadd.f32 %v8803, %v9273
        %v9506 = vadd.f32 %v8804, %v9278
        %v9507 = vadd.f32 %v8805, %v9281
        %v9508 = vadd.f32 %v8806, %v9286
        %v9509 = vadd.f32 %v8807, %v9289
        %v9510 = vadd.f32 %v8808, %v9294
        %v9511 = vadd.f32 %v8809, %v9297
        %v9512 = vadd.f32 %v8810, %v9302
        %v9513 = vadd.f32 %v8811, %v9305
        %v9514 = vadd.f32 %v8812, %v9310
        %v9515 = vadd.f32 %v8813, %v9313
        %v9516 = vadd.f32 %v8814, %v9318
        %v9517 = vadd.f32 %v8815, %v9321
        %v9518 = vadd.f32 %v8816, %v9326
        %v9519 = vadd.f32 %v8817, %v9329
        %v9520 = vadd.f32 %v8818, %v9334
        %v9521 = vadd.f32 %v8819, %v9337
        %v9522 = vadd.f32 %v8820, %v9342
        %v9523 = vadd.f32 %v8821, %v9345
        %v9524 = vadd.f32 %v8822, %v9350
        %v9525 = vadd.f32 %v8823, %v9353
        %v9526 = vadd.f32 %v8824, %v9358
        %v9527 = vadd.f32 %v8825, %v9361
        %v9528 = vadd.f32 %v8826, %v9366
        %v9529 = vadd.f32 %v8827, %v9369
        %v9530 = vadd.f32 %v8828, %v9374
        %v9531 = vadd.f32 %v8829, %v9377
        %v9532 = vadd.f32 %v8830, %v9382
        %v9533 = vadd.f32 %v8831, %v9385
        %v9534 = vadd.f32 %v8832, %v9390
        %v9535 = vadd.f32 %v8833, %v9393
        %v9536 = vadd.f32 %v8834, %v9398
        %v9537 = vadd.f32 %v8835, %v9401
        %v9538 = vadd.f32 %v8836, %v9406
        %v9539 = vadd.f32 %v8837, %v9409
        %v9541 = vlaneseq
        %v9542 = vshrl.u32 %v9541, 7
        %v9543 = vsub.s32 0, %v9542
        %v9544 = vrot.slane %v371, %v9543
        %v9546 = vadd.f32 %v9412, %v9544
        %v9547 = vadd.f32 %v9413, %v9544
        %v9548 = vadd.f32 %v9414, %v9544
        %v9549 = vadd.f32 %v9415, %v9544
        %v9550 = vadd.f32 %v9416, %v9544
        %v9551 = vadd.f32 %v9417, %v9544
        %v9552 = vadd.f32 %v9418, %v9544
        %v9553 = vadd.f32 %v9419, %v9544
        %v9554 = vadd.f32 %v9420, %v9544
        %v9555 = vadd.f32 %v9421, %v9544
        %v9556 = vadd.f32 %v9422, %v9544
        %v9557 = vadd.f32 %v9423, %v9544
        %v9558 = vadd.f32 %v9424, %v9544
        %v9559 = vadd.f32 %v9425, %v9544
        %v9560 = vadd.f32 %v9426, %v9544
        %v9561 = vadd.f32 %v9427, %v9544
        %v9562 = vadd.f32 %v9428, %v9544
        %v9563 = vadd.f32 %v9429, %v9544
        %v9564 = vadd.f32 %v9430, %v9544
        %v9565 = vadd.f32 %v9431, %v9544
        %v9566 = vadd.f32 %v9432, %v9544
        %v9567 = vadd.f32 %v9433, %v9544
        %v9568 = vadd.f32 %v9434, %v9544
        %v9569 = vadd.f32 %v9435, %v9544
        %v9570 = vadd.f32 %v9436, %v9544
        %v9571 = vadd.f32 %v9437, %v9544
        %v9572 = vadd.f32 %v9438, %v9544
        %v9573 = vadd.f32 %v9439, %v9544
        %v9574 = vadd.f32 %v9440, %v9544
        %v9575 = vadd.f32 %v9441, %v9544
        %v9576 = vadd.f32 %v9442, %v9544
        %v9577 = vadd.f32 %v9443, %v9544
        %v9578 = vadd.f32 %v9444, %v9544
        %v9579 = vadd.f32 %v9445, %v9544
        %v9580 = vadd.f32 %v9446, %v9544
        %v9581 = vadd.f32 %v9447, %v9544
        %v9582 = vadd.f32 %v9448, %v9544
        %v9583 = vadd.f32 %v9449, %v9544
        %v9584 = vadd.f32 %v9450, %v9544
        %v9585 = vadd.f32 %v9451, %v9544
        %v9586 = vadd.f32 %v9452, %v9544
        %v9587 = vadd.f32 %v9453, %v9544
        %v9588 = vadd.f32 %v9454, %v9544
        %v9589 = vadd.f32 %v9455, %v9544
        %v9590 = vadd.f32 %v9456, %v9544
        %v9591 = vadd.f32 %v9457, %v9544
        %v9592 = vadd.f32 %v9458, %v9544
        %v9593 = vadd.f32 %v9459, %v9544
        %v9594 = vadd.f32 %v9460, %v9544
        %v9595 = vadd.f32 %v9461, %v9544
        %v9596 = vadd.f32 %v9462, %v9544
        %v9597 = vadd.f32 %v9463, %v9544
        %v9598 = vadd.f32 %v9464, %v9544
        %v9599 = vadd.f32 %v9465, %v9544
        %v9600 = vadd.f32 %v9466, %v9544
        %v9601 = vadd.f32 %v9467, %v9544
        %v9602 = vadd.f32 %v9468, %v9544
        %v9603 = vadd.f32 %v9469, %v9544
        %v9604 = vadd.f32 %v9470, %v9544
        %v9605 = vadd.f32 %v9471, %v9544
        %v9606 = vadd.f32 %v9472, %v9544
        %v9607 = vadd.f32 %v9473, %v9544
        %v9608 = vadd.f32 %v9474, %v9544
        %v9609 = vadd.f32 %v9475, %v9544
        %v9610 = vadd.f32 %v9476, %v9544
        %v9611 = vadd.f32 %v9477, %v9544
        %v9612 = vadd.f32 %v9478, %v9544
        %v9613 = vadd.f32 %v9479, %v9544
        %v9614 = vadd.f32 %v9480, %v9544
        %v9615 = vadd.f32 %v9481, %v9544
        %v9616 = vadd.f32 %v9482, %v9544
        %v9617 = vadd.f32 %v9483, %v9544
        %v9618 = vadd.f32 %v9484, %v9544
        %v9619 = vadd.f32 %v9485, %v9544
        %v9620 = vadd.f32 %v9486, %v9544
        %v9621 = vadd.f32 %v9487, %v9544
        %v9622 = vadd.f32 %v9488, %v9544
        %v9623 = vadd.f32 %v9489, %v9544
        %v9624 = vadd.f32 %v9490, %v9544
        %v9625 = vadd.f32 %v9491, %v9544
        %v9626 = vadd.f32 %v9492, %v9544
        %v9627 = vadd.f32 %v9493, %v9544
        %v9628 = vadd.f32 %v9494, %v9544
        %v9629 = vadd.f32 %v9495, %v9544
        %v9630 = vadd.f32 %v9496, %v9544
        %v9631 = vadd.f32 %v9497, %v9544
        %v9632 = vadd.f32 %v9498, %v9544
        %v9633 = vadd.f32 %v9499, %v9544
        %v9634 = vadd.f32 %v9500, %v9544
        %v9635 = vadd.f32 %v9501, %v9544
        %v9636 = vadd.f32 %v9502, %v9544
        %v9637 = vadd.f32 %v9503, %v9544
        %v9638 = vadd.f32 %v9504, %v9544
        %v9639 = vadd.f32 %v9505, %v9544
        %v9640 = vadd.f32 %v9506, %v9544
        %v9641 = vadd.f32 %v9507, %v9544
        %v9642 = vadd.f32 %v9508, %v9544
        %v9643 = vadd.f32 %v9509, %v9544
        %v9644 = vadd.f32 %v9510, %v9544
        %v9645 = vadd.f32 %v9511, %v9544
        %v9646 = vadd.f32 %v9512, %v9544
        %v9647 = vadd.f32 %v9513, %v9544
        %v9648 = vadd.f32 %v9514, %v9544
        %v9649 = vadd.f32 %v9515, %v9544
        %v9650 = vadd.f32 %v9516, %v9544
        %v9651 = vadd.f32 %v9517, %v9544
        %v9652 = vadd.f32 %v9518, %v9544
        %v9653 = vadd.f32 %v9519, %v9544
        %v9654 = vadd.f32 %v9520, %v9544
        %v9655 = vadd.f32 %v9521, %v9544
        %v9656 = vadd.f32 %v9522, %v9544
        %v9657 = vadd.f32 %v9523, %v9544
        %v9658 = vadd.f32 %v9524, %v9544
        %v9659 = vadd.f32 %v9525, %v9544
        %v9660 = vadd.f32 %v9526, %v9544
        %v9661 = vadd.f32 %v9527, %v9544
        %v9662 = vadd.f32 %v9528, %v9544
        %v9663 = vadd.f32 %v9529, %v9544
        %v9664 = vadd.f32 %v9530, %v9544
        %v9665 = vadd.f32 %v9531, %v9544
        %v9666 = vadd.f32 %v9532, %v9544
        %v9667 = vadd.f32 %v9533, %v9544
        %v9668 = vadd.f32 %v9534, %v9544
        %v9669 = vadd.f32 %v9535, %v9544
        %v9670 = vadd.f32 %v9536, %v9544
        %v9671 = vadd.f32 %v9537, %v9544
        %v9672 = vadd.f32 %v9538, %v9544
        %v9673 = vadd.f32 %v9539, %v9544
        %v9674 = vmax.f32 %v9546, 0.0
        %v9675 = vmax.f32 %v9547, 0.0
        %v9676 = vmax.f32 %v9548, 0.0
        %v9677 = vmax.f32 %v9549, 0.0
        %v9678 = vmax.f32 %v9550, 0.0
        %v9679 = vmax.f32 %v9551, 0.0
        %v9680 = vmax.f32 %v9552, 0.0
        %v9681 = vmax.f32 %v9553, 0.0
        %v9682 = vmax.f32 %v9554, 0.0
        %v9683 = vmax.f32 %v9555, 0.0
        %v9684 = vmax.f32 %v9556, 0.0
        %v9685 = vmax.f32 %v9557, 0.0
        %v9686 = vmax.f32 %v9558, 0.0
        %v9687 = vmax.f32 %v9559, 0.0
        %v9688 = vmax.f32 %v9560, 0.0
        %v9689 = vmax.f32 %v9561, 0.0
        %v9690 = vmax.f32 %v9562, 0.0
        %v9691 = vmax.f32 %v9563, 0.0
        %v9692 = vmax.f32 %v9564, 0.0
        %v9693 = vmax.f32 %v9565, 0.0
        %v9694 = vmax.f32 %v9566, 0.0
        %v9695 = vmax.f32 %v9567, 0.0
        %v9696 = vmax.f32 %v9568, 0.0
        %v9697 = vmax.f32 %v9569, 0.0
        %v9698 = vmax.f32 %v9570, 0.0
        %v9699 = vmax.f32 %v9571, 0.0
        %v9700 = vmax.f32 %v9572, 0.0
        %v9701 = vmax.f32 %v9573, 0.0
        %v9702 = vmax.f32 %v9574, 0.0
        %v9703 = vmax.f32 %v9575, 0.0
        %v9704 = vmax.f32 %v9576, 0.0
        %v9705 = vmax.f32 %v9577, 0.0
        %v9706 = vmax.f32 %v9578, 0.0
        %v9707 = vmax.f32 %v9579, 0.0
        %v9708 = vmax.f32 %v9580, 0.0
        %v9709 = vmax.f32 %v9581, 0.0
        %v9710 = vmax.f32 %v9582, 0.0
        %v9711 = vmax.f32 %v9583, 0.0
        %v9712 = vmax.f32 %v9584, 0.0
        %v9713 = vmax.f32 %v9585, 0.0
        %v9714 = vmax.f32 %v9586, 0.0
        %v9715 = vmax.f32 %v9587, 0.0
        %v9716 = vmax.f32 %v9588, 0.0
        %v9717 = vmax.f32 %v9589, 0.0
        %v9718 = vmax.f32 %v9590, 0.0
        %v9719 = vmax.f32 %v9591, 0.0
        %v9720 = vmax.f32 %v9592, 0.0
        %v9721 = vmax.f32 %v9593, 0.0
        %v9722 = vmax.f32 %v9594, 0.0
        %v9723 = vmax.f32 %v9595, 0.0
        %v9724 = vmax.f32 %v9596, 0.0
        %v9725 = vmax.f32 %v9597, 0.0
        %v9726 = vmax.f32 %v9598, 0.0
        %v9727 = vmax.f32 %v9599, 0.0
        %v9728 = vmax.f32 %v9600, 0.0
        %v9729 = vmax.f32 %v9601, 0.0
        %v9730 = vmax.f32 %v9602, 0.0
        %v9731 = vmax.f32 %v9603, 0.0
        %v9732 = vmax.f32 %v9604, 0.0
        %v9733 = vmax.f32 %v9605, 0.0
        %v9734 = vmax.f32 %v9606, 0.0
        %v9735 = vmax.f32 %v9607, 0.0
        %v9736 = vmax.f32 %v9608, 0.0
        %v9737 = vmax.f32 %v9609, 0.0
        %v9738 = vmax.f32 %v9610, 0.0
        %v9739 = vmax.f32 %v9611, 0.0
        %v9740 = vmax.f32 %v9612, 0.0
        %v9741 = vmax.f32 %v9613, 0.0
        %v9742 = vmax.f32 %v9614, 0.0
        %v9743 = vmax.f32 %v9615, 0.0
        %v9744 = vmax.f32 %v9616, 0.0
        %v9745 = vmax.f32 %v9617, 0.0
        %v9746 = vmax.f32 %v9618, 0.0
        %v9747 = vmax.f32 %v9619, 0.0
        %v9748 = vmax.f32 %v9620, 0.0
        %v9749 = vmax.f32 %v9621, 0.0
        %v9750 = vmax.f32 %v9622, 0.0
        %v9751 = vmax.f32 %v9623, 0.0
        %v9752 = vmax.f32 %v9624, 0.0
        %v9753 = vmax.f32 %v9625, 0.0
        %v9754 = vmax.f32 %v9626, 0.0
        %v9755 = vmax.f32 %v9627, 0.0
        %v9756 = vmax.f32 %v9628, 0.0
        %v9757 = vmax.f32 %v9629, 0.0
        %v9758 = vmax.f32 %v9630, 0.0
        %v9759 = vmax.f32 %v9631, 0.0
        %v9760 = vmax.f32 %v9632, 0.0
        %v9761 = vmax.f32 %v9633, 0.0
        %v9762 = vmax.f32 %v9634, 0.0
        %v9763 = vmax.f32 %v9635, 0.0
        %v9764 = vmax.f32 %v9636, 0.0
        %v9765 = vmax.f32 %v9637, 0.0
        %v9766 = vmax.f32 %v9638, 0.0
        %v9767 = vmax.f32 %v9639, 0.0
        %v9768 = vmax.f32 %v9640, 0.0
        %v9769 = vmax.f32 %v9641, 0.0
        %v9770 = vmax.f32 %v9642, 0.0
        %v9771 = vmax.f32 %v9643, 0.0
        %v9772 = vmax.f32 %v9644, 0.0
        %v9773 = vmax.f32 %v9645, 0.0
        %v9774 = vmax.f32 %v9646, 0.0
        %v9775 = vmax.f32 %v9647, 0.0
        %v9776 = vmax.f32 %v9648, 0.0
        %v9777 = vmax.f32 %v9649, 0.0
        %v9778 = vmax.f32 %v9650, 0.0
        %v9779 = vmax.f32 %v9651, 0.0
        %v9780 = vmax.f32 %v9652, 0.0
        %v9781 = vmax.f32 %v9653, 0.0
        %v9782 = vmax.f32 %v9654, 0.0
        %v9783 = vmax.f32 %v9655, 0.0
        %v9784 = vmax.f32 %v9656, 0.0
        %v9785 = vmax.f32 %v9657, 0.0
        %v9786 = vmax.f32 %v9658, 0.0
        %v9787 = vmax.f32 %v9659, 0.0
        %v9788 = vmax.f32 %v9660, 0.0
        %v9789 = vmax.f32 %v9661, 0.0
        %v9790 = vmax.f32 %v9662, 0.0
        %v9791 = vmax.f32 %v9663, 0.0
        %v9792 = vmax.f32 %v9664, 0.0
        %v9793 = vmax.f32 %v9665, 0.0
        %v9794 = vmax.f32 %v9666, 0.0
        %v9795 = vmax.f32 %v9667, 0.0
        %v9796 = vmax.f32 %v9668, 0.0
        %v9797 = vmax.f32 %v9669, 0.0
        %v9798 = vmax.f32 %v9670, 0.0
        %v9799 = vmax.f32 %v9671, 0.0
        %v9800 = vmax.f32 %v9672, 0.0
        %v9801 = vmax.f32 %v9673, 0.0
        %v9802 = vpack.c.bf16 %v9675, %v9674
        %v9803 = vpack.c.bf16 %v9677, %v9676
        %v9804 = vpack.c.bf16 %v9679, %v9678
        %v9805 = vpack.c.bf16 %v9681, %v9680
        %v9806 = vpack.c.bf16 %v9683, %v9682
        %v9807 = vpack.c.bf16 %v9685, %v9684
        %v9808 = vpack.c.bf16 %v9687, %v9686
        %v9809 = vpack.c.bf16 %v9689, %v9688
        %v9810 = vpack.c.bf16 %v9691, %v9690
        %v9811 = vpack.c.bf16 %v9693, %v9692
        %v9812 = vpack.c.bf16 %v9695, %v9694
        %v9813 = vpack.c.bf16 %v9697, %v9696
        %v9814 = vpack.c.bf16 %v9699, %v9698
        %v9815 = vpack.c.bf16 %v9701, %v9700
        %v9816 = vpack.c.bf16 %v9703, %v9702
        %v9817 = vpack.c.bf16 %v9705, %v9704
        %v9818 = vpack.c.bf16 %v9707, %v9706
        %v9819 = vpack.c.bf16 %v9709, %v9708
        %v9820 = vpack.c.bf16 %v9711, %v9710
        %v9821 = vpack.c.bf16 %v9713, %v9712
        %v9822 = vpack.c.bf16 %v9715, %v9714
        %v9823 = vpack.c.bf16 %v9717, %v9716
        %v9824 = vpack.c.bf16 %v9719, %v9718
        %v9825 = vpack.c.bf16 %v9721, %v9720
        %v9826 = vpack.c.bf16 %v9723, %v9722
        %v9827 = vpack.c.bf16 %v9725, %v9724
        %v9828 = vpack.c.bf16 %v9727, %v9726
        %v9829 = vpack.c.bf16 %v9729, %v9728
        %v9830 = vpack.c.bf16 %v9731, %v9730
        %v9831 = vpack.c.bf16 %v9733, %v9732
        %v9832 = vpack.c.bf16 %v9735, %v9734
        %v9833 = vpack.c.bf16 %v9737, %v9736
        %v9834 = vpack.c.bf16 %v9739, %v9738
        %v9835 = vpack.c.bf16 %v9741, %v9740
        %v9836 = vpack.c.bf16 %v9743, %v9742
        %v9837 = vpack.c.bf16 %v9745, %v9744
        %v9838 = vpack.c.bf16 %v9747, %v9746
        %v9839 = vpack.c.bf16 %v9749, %v9748
        %v9840 = vpack.c.bf16 %v9751, %v9750
        %v9841 = vpack.c.bf16 %v9753, %v9752
        %v9842 = vpack.c.bf16 %v9755, %v9754
        %v9843 = vpack.c.bf16 %v9757, %v9756
        %v9844 = vpack.c.bf16 %v9759, %v9758
        %v9845 = vpack.c.bf16 %v9761, %v9760
        %v9846 = vpack.c.bf16 %v9763, %v9762
        %v9847 = vpack.c.bf16 %v9765, %v9764
        %v9848 = vpack.c.bf16 %v9767, %v9766
        %v9849 = vpack.c.bf16 %v9769, %v9768
        %v9850 = vpack.c.bf16 %v9771, %v9770
        %v9851 = vpack.c.bf16 %v9773, %v9772
        %v9852 = vpack.c.bf16 %v9775, %v9774
        %v9853 = vpack.c.bf16 %v9777, %v9776
        %v9854 = vpack.c.bf16 %v9779, %v9778
        %v9855 = vpack.c.bf16 %v9781, %v9780
        %v9856 = vpack.c.bf16 %v9783, %v9782
        %v9857 = vpack.c.bf16 %v9785, %v9784
        %v9858 = vpack.c.bf16 %v9787, %v9786
        %v9859 = vpack.c.bf16 %v9789, %v9788
        %v9860 = vpack.c.bf16 %v9791, %v9790
        %v9861 = vpack.c.bf16 %v9793, %v9792
        %v9862 = vpack.c.bf16 %v9795, %v9794
        %v9863 = vpack.c.bf16 %v9797, %v9796
        %v9864 = vpack.c.bf16 %v9799, %v9798
        %v9865 = vpack.c.bf16 %v9801, %v9800
        %v9930 = vunpack.c.l.b16 %v9802
        %v9931 = vunpack.c.h.b16 %v9802
        %v9932 = vunpack.c.l.b16 %v9803
        %v9933 = vunpack.c.h.b16 %v9803
        %v9934 = vunpack.c.l.b16 %v9804
        %v9935 = vunpack.c.h.b16 %v9804
        %v9936 = vunpack.c.l.b16 %v9805
        %v9937 = vunpack.c.h.b16 %v9805
        %v9938 = vunpack.c.l.b16 %v9806
        %v9939 = vunpack.c.h.b16 %v9806
        %v9940 = vunpack.c.l.b16 %v9807
        %v9941 = vunpack.c.h.b16 %v9807
        %v9942 = vunpack.c.l.b16 %v9808
        %v9943 = vunpack.c.h.b16 %v9808
        %v9944 = vunpack.c.l.b16 %v9809
        %v9945 = vunpack.c.h.b16 %v9809
        %v9946 = vunpack.c.l.b16 %v9810
        %v9947 = vunpack.c.h.b16 %v9810
        %v9948 = vunpack.c.l.b16 %v9811
        %v9949 = vunpack.c.h.b16 %v9811
        %v9950 = vunpack.c.l.b16 %v9812
        %v9951 = vunpack.c.h.b16 %v9812
        %v9952 = vunpack.c.l.b16 %v9813
        %v9953 = vunpack.c.h.b16 %v9813
        %v9954 = vunpack.c.l.b16 %v9814
        %v9955 = vunpack.c.h.b16 %v9814
        %v9956 = vunpack.c.l.b16 %v9815
        %v9957 = vunpack.c.h.b16 %v9815
        %v9958 = vunpack.c.l.b16 %v9816
        %v9959 = vunpack.c.h.b16 %v9816
        %v9960 = vunpack.c.l.b16 %v9817
        %v9961 = vunpack.c.h.b16 %v9817
        %v9962 = vunpack.c.l.b16 %v9818
        %v9963 = vunpack.c.h.b16 %v9818
        %v9964 = vunpack.c.l.b16 %v9819
        %v9965 = vunpack.c.h.b16 %v9819
        %v9966 = vunpack.c.l.b16 %v9820
        %v9967 = vunpack.c.h.b16 %v9820
        %v9968 = vunpack.c.l.b16 %v9821
        %v9969 = vunpack.c.h.b16 %v9821
        %v9970 = vunpack.c.l.b16 %v9822
        %v9971 = vunpack.c.h.b16 %v9822
        %v9972 = vunpack.c.l.b16 %v9823
        %v9973 = vunpack.c.h.b16 %v9823
        %v9974 = vunpack.c.l.b16 %v9824
        %v9975 = vunpack.c.h.b16 %v9824
        %v9976 = vunpack.c.l.b16 %v9825
        %v9977 = vunpack.c.h.b16 %v9825
        %v9978 = vunpack.c.l.b16 %v9826
        %v9979 = vunpack.c.h.b16 %v9826
        %v9980 = vunpack.c.l.b16 %v9827
        %v9981 = vunpack.c.h.b16 %v9827
        %v9982 = vunpack.c.l.b16 %v9828
        %v9983 = vunpack.c.h.b16 %v9828
        %v9984 = vunpack.c.l.b16 %v9829
        %v9985 = vunpack.c.h.b16 %v9829
        %v9986 = vunpack.c.l.b16 %v9830
        %v9987 = vunpack.c.h.b16 %v9830
        %v9988 = vunpack.c.l.b16 %v9831
        %v9989 = vunpack.c.h.b16 %v9831
        %v9990 = vunpack.c.l.b16 %v9832
        %v9991 = vunpack.c.h.b16 %v9832
        %v9992 = vunpack.c.l.b16 %v9833
        %v9993 = vunpack.c.h.b16 %v9833
        %v9994 = vunpack.c.l.b16 %v9834
        %v9995 = vunpack.c.h.b16 %v9834
        %v9996 = vunpack.c.l.b16 %v9835
        %v9997 = vunpack.c.h.b16 %v9835
        %v9998 = vunpack.c.l.b16 %v9836
        %v9999 = vunpack.c.h.b16 %v9836
        %v10000 = vunpack.c.l.b16 %v9837
        %v10001 = vunpack.c.h.b16 %v9837
        %v10002 = vunpack.c.l.b16 %v9838
        %v10003 = vunpack.c.h.b16 %v9838
        %v10004 = vunpack.c.l.b16 %v9839
        %v10005 = vunpack.c.h.b16 %v9839
        %v10006 = vunpack.c.l.b16 %v9840
        %v10007 = vunpack.c.h.b16 %v9840
        %v10008 = vunpack.c.l.b16 %v9841
        %v10009 = vunpack.c.h.b16 %v9841
        %v10010 = vunpack.c.l.b16 %v9842
        %v10011 = vunpack.c.h.b16 %v9842
        %v10012 = vunpack.c.l.b16 %v9843
        %v10013 = vunpack.c.h.b16 %v9843
        %v10014 = vunpack.c.l.b16 %v9844
        %v10015 = vunpack.c.h.b16 %v9844
        %v10016 = vunpack.c.l.b16 %v9845
        %v10017 = vunpack.c.h.b16 %v9845
        %v10018 = vunpack.c.l.b16 %v9846
        %v10019 = vunpack.c.h.b16 %v9846
        %v10020 = vunpack.c.l.b16 %v9847
        %v10021 = vunpack.c.h.b16 %v9847
        %v10022 = vunpack.c.l.b16 %v9848
        %v10023 = vunpack.c.h.b16 %v9848
        %v10024 = vunpack.c.l.b16 %v9849
        %v10025 = vunpack.c.h.b16 %v9849
        %v10026 = vunpack.c.l.b16 %v9850
        %v10027 = vunpack.c.h.b16 %v9850
        %v10028 = vunpack.c.l.b16 %v9851
        %v10029 = vunpack.c.h.b16 %v9851
        %v10030 = vunpack.c.l.b16 %v9852
        %v10031 = vunpack.c.h.b16 %v9852
        %v10032 = vunpack.c.l.b16 %v9853
        %v10033 = vunpack.c.h.b16 %v9853
        %v10034 = vunpack.c.l.b16 %v9854
        %v10035 = vunpack.c.h.b16 %v9854
        %v10036 = vunpack.c.l.b16 %v9855
        %v10037 = vunpack.c.h.b16 %v9855
        %v10038 = vunpack.c.l.b16 %v9856
        %v10039 = vunpack.c.h.b16 %v9856
        %v10040 = vunpack.c.l.b16 %v9857
        %v10041 = vunpack.c.h.b16 %v9857
        %v10042 = vunpack.c.l.b16 %v9858
        %v10043 = vunpack.c.h.b16 %v9858
        %v10044 = vunpack.c.l.b16 %v9859
        %v10045 = vunpack.c.h.b16 %v9859
        %v10046 = vunpack.c.l.b16 %v9860
        %v10047 = vunpack.c.h.b16 %v9860
        %v10048 = vunpack.c.l.b16 %v9861
        %v10049 = vunpack.c.h.b16 %v9861
        %v10050 = vunpack.c.l.b16 %v9862
        %v10051 = vunpack.c.h.b16 %v9862
        %v10052 = vunpack.c.l.b16 %v9863
        %v10053 = vunpack.c.h.b16 %v9863
        %v10054 = vunpack.c.l.b16 %v9864
        %v10055 = vunpack.c.h.b16 %v9864
        %v10056 = vunpack.c.l.b16 %v9865
        %v10057 = vunpack.c.h.b16 %v9865
        %v10058 = vpack.c.b16 %v9930, %v9930
        %v10059 = vpack.c.b16 %v9931, %v9931
        %v10060 = vpack.c.b16 %v9932, %v9932
        %v10061 = vpack.c.b16 %v9933, %v9933
        %v10062 = vpack.c.b16 %v9934, %v9934
        %v10063 = vpack.c.b16 %v9935, %v9935
        %v10064 = vpack.c.b16 %v9936, %v9936
        %v10065 = vpack.c.b16 %v9937, %v9937
        %v10066 = vpack.c.b16 %v9938, %v9938
        %v10067 = vpack.c.b16 %v9939, %v9939
        %v10068 = vpack.c.b16 %v9940, %v9940
        %v10069 = vpack.c.b16 %v9941, %v9941
        %v10070 = vpack.c.b16 %v9942, %v9942
        %v10071 = vpack.c.b16 %v9943, %v9943
        %v10072 = vpack.c.b16 %v9944, %v9944
        %v10073 = vpack.c.b16 %v9945, %v9945
        %v10074 = vpack.c.b16 %v9946, %v9946
        %v10075 = vpack.c.b16 %v9947, %v9947
        %v10076 = vpack.c.b16 %v9948, %v9948
        %v10077 = vpack.c.b16 %v9949, %v9949
        %v10078 = vpack.c.b16 %v9950, %v9950
        %v10079 = vpack.c.b16 %v9951, %v9951
        %v10080 = vpack.c.b16 %v9952, %v9952
        %v10081 = vpack.c.b16 %v9953, %v9953
        %v10082 = vpack.c.b16 %v9954, %v9954
        %v10083 = vpack.c.b16 %v9955, %v9955
        %v10084 = vpack.c.b16 %v9956, %v9956
        %v10085 = vpack.c.b16 %v9957, %v9957
        %v10086 = vpack.c.b16 %v9958, %v9958
        %v10087 = vpack.c.b16 %v9959, %v9959
        %v10088 = vpack.c.b16 %v9960, %v9960
        %v10089 = vpack.c.b16 %v9961, %v9961
        %v10090 = vpack.c.b16 %v9962, %v9962
        %v10091 = vpack.c.b16 %v9963, %v9963
        %v10092 = vpack.c.b16 %v9964, %v9964
        %v10093 = vpack.c.b16 %v9965, %v9965
        %v10094 = vpack.c.b16 %v9966, %v9966
        %v10095 = vpack.c.b16 %v9967, %v9967
        %v10096 = vpack.c.b16 %v9968, %v9968
        %v10097 = vpack.c.b16 %v9969, %v9969
        %v10098 = vpack.c.b16 %v9970, %v9970
        %v10099 = vpack.c.b16 %v9971, %v9971
        %v10100 = vpack.c.b16 %v9972, %v9972
        %v10101 = vpack.c.b16 %v9973, %v9973
        %v10102 = vpack.c.b16 %v9974, %v9974
        %v10103 = vpack.c.b16 %v9975, %v9975
        %v10104 = vpack.c.b16 %v9976, %v9976
        %v10105 = vpack.c.b16 %v9977, %v9977
        %v10106 = vpack.c.b16 %v9978, %v9978
        %v10107 = vpack.c.b16 %v9979, %v9979
        %v10108 = vpack.c.b16 %v9980, %v9980
        %v10109 = vpack.c.b16 %v9981, %v9981
        %v10110 = vpack.c.b16 %v9982, %v9982
        %v10111 = vpack.c.b16 %v9983, %v9983
        %v10112 = vpack.c.b16 %v9984, %v9984
        %v10113 = vpack.c.b16 %v9985, %v9985
        %v10114 = vpack.c.b16 %v9986, %v9986
        %v10115 = vpack.c.b16 %v9987, %v9987
        %v10116 = vpack.c.b16 %v9988, %v9988
        %v10117 = vpack.c.b16 %v9989, %v9989
        %v10118 = vpack.c.b16 %v9990, %v9990
        %v10119 = vpack.c.b16 %v9991, %v9991
        %v10120 = vpack.c.b16 %v9992, %v9992
        %v10121 = vpack.c.b16 %v9993, %v9993
        %v10122 = vpack.c.b16 %v9994, %v9994
        %v10123 = vpack.c.b16 %v9995, %v9995
        %v10124 = vpack.c.b16 %v9996, %v9996
        %v10125 = vpack.c.b16 %v9997, %v9997
        %v10126 = vpack.c.b16 %v9998, %v9998
        %v10127 = vpack.c.b16 %v9999, %v9999
        %v10128 = vpack.c.b16 %v10000, %v10000
        %v10129 = vpack.c.b16 %v10001, %v10001
        %v10130 = vpack.c.b16 %v10002, %v10002
        %v10131 = vpack.c.b16 %v10003, %v10003
        %v10132 = vpack.c.b16 %v10004, %v10004
        %v10133 = vpack.c.b16 %v10005, %v10005
        %v10134 = vpack.c.b16 %v10006, %v10006
        %v10135 = vpack.c.b16 %v10007, %v10007
        %v10136 = vpack.c.b16 %v10008, %v10008
        %v10137 = vpack.c.b16 %v10009, %v10009
        %v10138 = vpack.c.b16 %v10010, %v10010
        %v10139 = vpack.c.b16 %v10011, %v10011
        %v10140 = vpack.c.b16 %v10012, %v10012
        %v10141 = vpack.c.b16 %v10013, %v10013
        %v10142 = vpack.c.b16 %v10014, %v10014
        %v10143 = vpack.c.b16 %v10015, %v10015
        %v10144 = vpack.c.b16 %v10016, %v10016
        %v10145 = vpack.c.b16 %v10017, %v10017
        %v10146 = vpack.c.b16 %v10018, %v10018
        %v10147 = vpack.c.b16 %v10019, %v10019
        %v10148 = vpack.c.b16 %v10020, %v10020
        %v10149 = vpack.c.b16 %v10021, %v10021
        %v10150 = vpack.c.b16 %v10022, %v10022
        %v10151 = vpack.c.b16 %v10023, %v10023
        %v10152 = vpack.c.b16 %v10024, %v10024
        %v10153 = vpack.c.b16 %v10025, %v10025
        %v10154 = vpack.c.b16 %v10026, %v10026
        %v10155 = vpack.c.b16 %v10027, %v10027
        %v10156 = vpack.c.b16 %v10028, %v10028
        %v10157 = vpack.c.b16 %v10029, %v10029
        %v10158 = vpack.c.b16 %v10030, %v10030
        %v10159 = vpack.c.b16 %v10031, %v10031
        %v10160 = vpack.c.b16 %v10032, %v10032
        %v10161 = vpack.c.b16 %v10033, %v10033
        %v10162 = vpack.c.b16 %v10034, %v10034
        %v10163 = vpack.c.b16 %v10035, %v10035
        %v10164 = vpack.c.b16 %v10036, %v10036
        %v10165 = vpack.c.b16 %v10037, %v10037
        %v10166 = vpack.c.b16 %v10038, %v10038
        %v10167 = vpack.c.b16 %v10039, %v10039
        %v10168 = vpack.c.b16 %v10040, %v10040
        %v10169 = vpack.c.b16 %v10041, %v10041
        %v10170 = vpack.c.b16 %v10042, %v10042
        %v10171 = vpack.c.b16 %v10043, %v10043
        %v10172 = vpack.c.b16 %v10044, %v10044
        %v10173 = vpack.c.b16 %v10045, %v10045
        %v10174 = vpack.c.b16 %v10046, %v10046
        %v10175 = vpack.c.b16 %v10047, %v10047
        %v10176 = vpack.c.b16 %v10048, %v10048
        %v10177 = vpack.c.b16 %v10049, %v10049
        %v10178 = vpack.c.b16 %v10050, %v10050
        %v10179 = vpack.c.b16 %v10051, %v10051
        %v10180 = vpack.c.b16 %v10052, %v10052
        %v10181 = vpack.c.b16 %v10053, %v10053
        %v10182 = vpack.c.b16 %v10054, %v10054
        %v10183 = vpack.c.b16 %v10055, %v10055
        %v10184 = vpack.c.b16 %v10056, %v10056
        %v10185 = vpack.c.b16 %v10057, %v10057
        %vm10314 = vcmask 519168
        %10315 = vst.msk [vmem:[%s182] sm:$0xf] %vm10314, %v10058
        %10316 = vst.msk [vmem:[%s182 + $0x4] sm:$0xf] %vm10314, %v10059
        %10317 = vst.msk [vmem:[%s182 + $0x8] sm:$0xf] %vm10314, %v10060
        %10318 = vst.msk [vmem:[%s182 + $0xc] sm:$0xf] %vm10314, %v10061
        %10319 = vst.msk [vmem:[%s182 + $0x10] sm:$0xf] %vm10314, %v10062
        %10320 = vst.msk [vmem:[%s182 + $0x14] sm:$0xf] %vm10314, %v10063
        %10321 = vst.msk [vmem:[%s182 + $0x18] sm:$0xf] %vm10314, %v10064
        %10322 = vst.msk [vmem:[%s182 + $0x1c] sm:$0xf] %vm10314, %v10065
        %10323 = vst.msk [vmem:[%s182 + $0x20] sm:$0xf] %vm10314, %v10066
        %10324 = vst.msk [vmem:[%s182 + $0x24] sm:$0xf] %vm10314, %v10067
        %10325 = vst.msk [vmem:[%s182 + $0x28] sm:$0xf] %vm10314, %v10068
        %10326 = vst.msk [vmem:[%s182 + $0x2c] sm:$0xf] %vm10314, %v10069
        %10327 = vst.msk [vmem:[%s182 + $0x30] sm:$0xf] %vm10314, %v10070
        %10328 = vst.msk [vmem:[%s182 + $0x34] sm:$0xf] %vm10314, %v10071
        %10329 = vst.msk [vmem:[%s182 + $0x38] sm:$0xf] %vm10314, %v10072
        %10330 = vst.msk [vmem:[%s182 + $0x3c] sm:$0xf] %vm10314, %v10073
        %10331 = vst.msk [vmem:[%s182 + $0x40] sm:$0xf] %vm10314, %v10074
        %10332 = vst.msk [vmem:[%s182 + $0x44] sm:$0xf] %vm10314, %v10075
        %10333 = vst.msk [vmem:[%s182 + $0x48] sm:$0xf] %vm10314, %v10076
        %10334 = vst.msk [vmem:[%s182 + $0x4c] sm:$0xf] %vm10314, %v10077
        %10335 = vst.msk [vmem:[%s182 + $0x50] sm:$0xf] %vm10314, %v10078
        %10336 = vst.msk [vmem:[%s182 + $0x54] sm:$0xf] %vm10314, %v10079
        %10337 = vst.msk [vmem:[%s182 + $0x58] sm:$0xf] %vm10314, %v10080
        %10338 = vst.msk [vmem:[%s182 + $0x5c] sm:$0xf] %vm10314, %v10081
        %10339 = vst.msk [vmem:[%s182 + $0x60] sm:$0xf] %vm10314, %v10082
        %10340 = vst.msk [vmem:[%s182 + $0x64] sm:$0xf] %vm10314, %v10083
        %10341 = vst.msk [vmem:[%s182 + $0x68] sm:$0xf] %vm10314, %v10084
        %10342 = vst.msk [vmem:[%s182 + $0x6c] sm:$0xf] %vm10314, %v10085
        %10343 = vst.msk [vmem:[%s182 + $0x70] sm:$0xf] %vm10314, %v10086
        %10344 = vst.msk [vmem:[%s182 + $0x74] sm:$0xf] %vm10314, %v10087
        %10345 = vst.msk [vmem:[%s182 + $0x78] sm:$0xf] %vm10314, %v10088
        %10346 = vst.msk [vmem:[%s182 + $0x7c] sm:$0xf] %vm10314, %v10089
        %10347 = vst.msk [vmem:[%s182 + $0x80] sm:$0xf] %vm10314, %v10090
        %10348 = vst.msk [vmem:[%s182 + $0x84] sm:$0xf] %vm10314, %v10091
        %10349 = vst.msk [vmem:[%s182 + $0x88] sm:$0xf] %vm10314, %v10092
        %10350 = vst.msk [vmem:[%s182 + $0x8c] sm:$0xf] %vm10314, %v10093
        %10351 = vst.msk [vmem:[%s182 + $0x90] sm:$0xf] %vm10314, %v10094
        %10352 = vst.msk [vmem:[%s182 + $0x94] sm:$0xf] %vm10314, %v10095
        %10353 = vst.msk [vmem:[%s182 + $0x98] sm:$0xf] %vm10314, %v10096
        %10354 = vst.msk [vmem:[%s182 + $0x9c] sm:$0xf] %vm10314, %v10097
        %10355 = vst.msk [vmem:[%s182 + $0xa0] sm:$0xf] %vm10314, %v10098
        %10356 = vst.msk [vmem:[%s182 + $0xa4] sm:$0xf] %vm10314, %v10099
        %10357 = vst.msk [vmem:[%s182 + $0xa8] sm:$0xf] %vm10314, %v10100
        %10358 = vst.msk [vmem:[%s182 + $0xac] sm:$0xf] %vm10314, %v10101
        %10359 = vst.msk [vmem:[%s182 + $0xb0] sm:$0xf] %vm10314, %v10102
        %10360 = vst.msk [vmem:[%s182 + $0xb4] sm:$0xf] %vm10314, %v10103
        %10361 = vst.msk [vmem:[%s182 + $0xb8] sm:$0xf] %vm10314, %v10104
        %10362 = vst.msk [vmem:[%s182 + $0xbc] sm:$0xf] %vm10314, %v10105
        %10363 = vst.msk [vmem:[%s182 + $0xc0] sm:$0xf] %vm10314, %v10106
        %10364 = vst.msk [vmem:[%s182 + $0xc4] sm:$0xf] %vm10314, %v10107
        %10365 = vst.msk [vmem:[%s182 + $0xc8] sm:$0xf] %vm10314, %v10108
        %10366 = vst.msk [vmem:[%s182 + $0xcc] sm:$0xf] %vm10314, %v10109
        %10367 = vst.msk [vmem:[%s182 + $0xd0] sm:$0xf] %vm10314, %v10110
        %10368 = vst.msk [vmem:[%s182 + $0xd4] sm:$0xf] %vm10314, %v10111
        %10369 = vst.msk [vmem:[%s182 + $0xd8] sm:$0xf] %vm10314, %v10112
        %10370 = vst.msk [vmem:[%s182 + $0xdc] sm:$0xf] %vm10314, %v10113
        %10371 = vst.msk [vmem:[%s182 + $0xe0] sm:$0xf] %vm10314, %v10114
        %10372 = vst.msk [vmem:[%s182 + $0xe4] sm:$0xf] %vm10314, %v10115
        %10373 = vst.msk [vmem:[%s182 + $0xe8] sm:$0xf] %vm10314, %v10116
        %10374 = vst.msk [vmem:[%s182 + $0xec] sm:$0xf] %vm10314, %v10117
        %10375 = vst.msk [vmem:[%s182 + $0xf0] sm:$0xf] %vm10314, %v10118
        %10376 = vst.msk [vmem:[%s182 + $0xf4] sm:$0xf] %vm10314, %v10119
        %10377 = vst.msk [vmem:[%s182 + $0xf8] sm:$0xf] %vm10314, %v10120
        %10378 = vst.msk [vmem:[%s182 + $0xfc] sm:$0xf] %vm10314, %v10121
        %10379 = vst.msk [vmem:[%s182 + $0x100] sm:$0xf] %vm10314, %v10122
        %10380 = vst.msk [vmem:[%s182 + $0x104] sm:$0xf] %vm10314, %v10123
        %10381 = vst.msk [vmem:[%s182 + $0x108] sm:$0xf] %vm10314, %v10124
        %10382 = vst.msk [vmem:[%s182 + $0x10c] sm:$0xf] %vm10314, %v10125
        %10383 = vst.msk [vmem:[%s182 + $0x110] sm:$0xf] %vm10314, %v10126
        %10384 = vst.msk [vmem:[%s182 + $0x114] sm:$0xf] %vm10314, %v10127
        %10385 = vst.msk [vmem:[%s182 + $0x118] sm:$0xf] %vm10314, %v10128
        %10386 = vst.msk [vmem:[%s182 + $0x11c] sm:$0xf] %vm10314, %v10129
        %10387 = vst.msk [vmem:[%s182 + $0x120] sm:$0xf] %vm10314, %v10130
        %10388 = vst.msk [vmem:[%s182 + $0x124] sm:$0xf] %vm10314, %v10131
        %10389 = vst.msk [vmem:[%s182 + $0x128] sm:$0xf] %vm10314, %v10132
        %10390 = vst.msk [vmem:[%s182 + $0x12c] sm:$0xf] %vm10314, %v10133
        %10391 = vst.msk [vmem:[%s182 + $0x130] sm:$0xf] %vm10314, %v10134
        %10392 = vst.msk [vmem:[%s182 + $0x134] sm:$0xf] %vm10314, %v10135
        %10393 = vst.msk [vmem:[%s182 + $0x138] sm:$0xf] %vm10314, %v10136
        %10394 = vst.msk [vmem:[%s182 + $0x13c] sm:$0xf] %vm10314, %v10137
        %10395 = vst.msk [vmem:[%s182 + $0x140] sm:$0xf] %vm10314, %v10138
        %10396 = vst.msk [vmem:[%s182 + $0x144] sm:$0xf] %vm10314, %v10139
        %10397 = vst.msk [vmem:[%s182 + $0x148] sm:$0xf] %vm10314, %v10140
        %10398 = vst.msk [vmem:[%s182 + $0x14c] sm:$0xf] %vm10314, %v10141
        %10399 = vst.msk [vmem:[%s182 + $0x150] sm:$0xf] %vm10314, %v10142
        %10400 = vst.msk [vmem:[%s182 + $0x154] sm:$0xf] %vm10314, %v10143
        %10401 = vst.msk [vmem:[%s182 + $0x158] sm:$0xf] %vm10314, %v10144
        %10402 = vst.msk [vmem:[%s182 + $0x15c] sm:$0xf] %vm10314, %v10145
        %10403 = vst.msk [vmem:[%s182 + $0x160] sm:$0xf] %vm10314, %v10146
        %10404 = vst.msk [vmem:[%s182 + $0x164] sm:$0xf] %vm10314, %v10147
        %10405 = vst.msk [vmem:[%s182 + $0x168] sm:$0xf] %vm10314, %v10148
        %10406 = vst.msk [vmem:[%s182 + $0x16c] sm:$0xf] %vm10314, %v10149
        %10407 = vst.msk [vmem:[%s182 + $0x170] sm:$0xf] %vm10314, %v10150
        %10408 = vst.msk [vmem:[%s182 + $0x174] sm:$0xf] %vm10314, %v10151
        %10409 = vst.msk [vmem:[%s182 + $0x178] sm:$0xf] %vm10314, %v10152
        %10410 = vst.msk [vmem:[%s182 + $0x17c] sm:$0xf] %vm10314, %v10153
        %10411 = vst.msk [vmem:[%s182 + $0x180] sm:$0xf] %vm10314, %v10154
        %10412 = vst.msk [vmem:[%s182 + $0x184] sm:$0xf] %vm10314, %v10155
        %10413 = vst.msk [vmem:[%s182 + $0x188] sm:$0xf] %vm10314, %v10156
        %10414 = vst.msk [vmem:[%s182 + $0x18c] sm:$0xf] %vm10314, %v10157
        %10415 = vst.msk [vmem:[%s182 + $0x190] sm:$0xf] %vm10314, %v10158
        %10416 = vst.msk [vmem:[%s182 + $0x194] sm:$0xf] %vm10314, %v10159
        %10417 = vst.msk [vmem:[%s182 + $0x198] sm:$0xf] %vm10314, %v10160
        %10418 = vst.msk [vmem:[%s182 + $0x19c] sm:$0xf] %vm10314, %v10161
        %10419 = vst.msk [vmem:[%s182 + $0x1a0] sm:$0xf] %vm10314, %v10162
        %10420 = vst.msk [vmem:[%s182 + $0x1a4] sm:$0xf] %vm10314, %v10163
        %10421 = vst.msk [vmem:[%s182 + $0x1a8] sm:$0xf] %vm10314, %v10164
        %10422 = vst.msk [vmem:[%s182 + $0x1ac] sm:$0xf] %vm10314, %v10165
        %10423 = vst.msk [vmem:[%s182 + $0x1b0] sm:$0xf] %vm10314, %v10166
        %10424 = vst.msk [vmem:[%s182 + $0x1b4] sm:$0xf] %vm10314, %v10167
        %10425 = vst.msk [vmem:[%s182 + $0x1b8] sm:$0xf] %vm10314, %v10168
        %10426 = vst.msk [vmem:[%s182 + $0x1bc] sm:$0xf] %vm10314, %v10169
        %10427 = vst.msk [vmem:[%s182 + $0x1c0] sm:$0xf] %vm10314, %v10170
        %10428 = vst.msk [vmem:[%s182 + $0x1c4] sm:$0xf] %vm10314, %v10171
        %10429 = vst.msk [vmem:[%s182 + $0x1c8] sm:$0xf] %vm10314, %v10172
        %10430 = vst.msk [vmem:[%s182 + $0x1cc] sm:$0xf] %vm10314, %v10173
        %10431 = vst.msk [vmem:[%s182 + $0x1d0] sm:$0xf] %vm10314, %v10174
        %10432 = vst.msk [vmem:[%s182 + $0x1d4] sm:$0xf] %vm10314, %v10175
        %10433 = vst.msk [vmem:[%s182 + $0x1d8] sm:$0xf] %vm10314, %v10176
        %10434 = vst.msk [vmem:[%s182 + $0x1dc] sm:$0xf] %vm10314, %v10177
        %10435 = vst.msk [vmem:[%s182 + $0x1e0] sm:$0xf] %vm10314, %v10178
        %10436 = vst.msk [vmem:[%s182 + $0x1e4] sm:$0xf] %vm10314, %v10179
        %10437 = vst.msk [vmem:[%s182 + $0x1e8] sm:$0xf] %vm10314, %v10180
        %10438 = vst.msk [vmem:[%s182 + $0x1ec] sm:$0xf] %vm10314, %v10181
        %10439 = vst.msk [vmem:[%s182 + $0x1f0] sm:$0xf] %vm10314, %v10182
        %10440 = vst.msk [vmem:[%s182 + $0x1f4] sm:$0xf] %vm10314, %v10183
        %10441 = vst.msk [vmem:[%s182 + $0x1f8] sm:$0xf] %vm10314, %v10184
        %10442 = vst.msk [vmem:[%s182 + $0x1fc] sm:$0xf] %vm10314, %v10185
        %s10443 = sand.u32 %s109, 1
        %s10444 = scalar_lea.sflag [#allocation3], %s10443
        %s10445 = sand.u32 %s109, 1
        %s10446 = smul.addr %s10445, 512
        %s10447 = scalar_lea.vmem [#allocation2], %s10446
        // Predicated region
        $region33: #{tpu_custom_call.1} parent=31 // pred_check
          %p10448 = pneg %p119
        $region34: #{tpu_custom_call.1} parent=31 // pred_check_branch
          %10450 = sbr.rel (%p10448) target = $region36
        $region35: #{tpu_custom_call.1} parent=31 // pred_region
          %s10451 = smul.u32 32, %s22
          %s10453 = ssub.s32 8192, 8192
          %10454 = vsyncadd %s10444, %s10453
          %s10455 = smul.addr %s10451, 4
          %s10456 = smul.addr %s21, 128
          %s10457 = sadd.s32 %s10455, %s10456
          %s10458 = smul.addr %s10457, 64
          %s10459 = scalar_lea.hbm %s3, %s10458
          %s10460 = sshll.u32 %s10447, 4
          %s10461 = int_to_ptr.vmem [resolvable:$true] %s10460
          %10466 = dma.vmem_to_hbm [thread:$0]  %s10461, 8192, %s10459, %s10444, 64, 64, 4
        $region36: #{tpu_custom_call.1} parent=31 // pred_fallthru
          _
      $region32: #{tpu_custom_call.1} parent=5 // pred_fallthru
        _
      %p10467 = scmp.le.s32.totalorder 2, %s12
      // Predicated region
      $region37: #{tpu_custom_call.1} parent=5 // pred_check
        %p10468 = pneg %p10467
      $region38: #{tpu_custom_call.1} parent=5 // pred_check_branch
        %10470 = sbr.rel (%p10468) target = $region40
      $region39: #{tpu_custom_call.1} parent=5 // pred_region
        %s10471 = ssub.s32 %s12, 2
        // Predicated region
        $region41: #{tpu_custom_call.1} parent=39 // pred_check
          %p10472 = pneg %p125
        $region42: #{tpu_custom_call.1} parent=39 // pred_check_branch
          %10474 = sbr.rel (%p10472) target = $region44
        $region43: #{tpu_custom_call.1} parent=39 // pred_region
          %s10475 = sand.u32 %s110, 1
          %s10476 = scalar_lea.sflag [#allocation3], %s10475
          %s10477 = sand.u32 %s110, 1
          %s10478 = smul.addr %s10477, 512
          %s10479 = scalar_lea.vmem [#allocation2], %s10478
          %10480 = dma.done %s10476, 8192
        $region44: #{tpu_custom_call.1} parent=39 // pred_fallthru
          _
      $region40: #{tpu_custom_call.1} parent=5 // pred_fallthru
        _
    $region6: #{tpu_custom_call.1} parent=1 // loop_footer
      %s16 = sadd.s32 1, %s12
    $region7: #{tpu_custom_call.1} parent=1 // loop_footer_branch
      %11 = sbr.rel target = $region3
    $region8: #{tpu_custom_call.1} parent=1 // loop_exit
      _
    %10481 = vsyncpa [#allocation3], 1
    %s10482 = scalar_lea.sflag [#allocation3], 1
    %10483 = vsyncpa %s10482, 1

</llo_original>
